<compile_context>
chip_gen: v7x
topology: tpu7x:2x2x1
jax: 0.10.0
libtpu: 0.0.40
codegen_flags: <defaults>
</compile_context>

<pallas_src>
import functools
import math

import jax
import jax.numpy as jnp
from jax import lax
from jax.experimental import pallas as pl
from jax.experimental.pallas import tpu as pltpu

MM_DTYPE = jnp.bfloat16  # MXU operand dtype; accumulation & states stay f32.


def _fused_vc_lstm_kernel(x2d_ref,                    # (T*Bp, D)        bf16, row = t*Bp + b
                          enc_wih_ref,                # (D, 4He)         bf16
                          enc_b_ref,                  # (1, 4He)         f32 (b_ih + b_hh)
                          dec_b_ref,                  # (1, 4Hd)         f32 (b_ih + b_hh)
                          wcomb_hbm,                  # (He, 4He + 4Hd)  bf16, lives in HBM
                          dec_whh_hbm,                # (Hd, 4Hd)        bf16, lives in HBM
                          out_ref,                    # (T*Bp, Hd)       f32, lane/sublane dense
                          gx_ref,                     # scratch (T*Bp, 4He) f32
                          wcomb_ref,                  # scratch (He, 4He + 4Hd) bf16
                          dec_whh_ref,                # scratch (Hd, 4Hd) bf16
                          dma_sem,                    # DMA semaphores (2,)
                          *, seq_len, batch):
    """Fused encoder->decoder LSTM forward over the concatenated sequence."""
    T, Bp = seq_len, batch
    He = enc_wih_ref.shape[1] // 4
    Hd = out_ref.shape[1]

    # ---- Kick off the recurrent-weight DMAs; they are hidden behind the
    # hoisted gx projection and the first encoder cell (first use is at the
    # end of step 0 / start of step 1).
    wcomb_cp = pltpu.make_async_copy(wcomb_hbm, wcomb_ref, dma_sem.at[0])
    dec_whh_cp = pltpu.make_async_copy(dec_whh_hbm, dec_whh_ref, dma_sem.at[1])
    wcomb_cp.start()
    dec_whh_cp.start()

    # ---- Hoisted encoder input projection: one batched matmul for all T*Bp
    # rows (plus the fused bias), instead of T tiny matmuls on the serial path.
    gx_ref[...] = (
        jnp.dot(x2d_ref[...], enc_wih_ref[...], preferred_element_type=jnp.float32)
        + enc_b_ref[...]
    )

    dec_b = dec_b_ref[...]  # (1, 4Hd) f32, reused every step

    def sigmoid(x):
        # 1 EUP pass (tanh) instead of 2 (exp + reciprocal).
        return 0.5 * jnp.tanh(0.5 * x) + 0.5

    def lstm_cell(gates, c_prev, H):
        # PyTorch gate order: i, f, g, o.  c_prev is None at t == 0 (zero
        # initial state), which lets us drop the forget-gate term entirely.
        # NOTE: this shortcut is only valid for zero (h0, c0).
        i_g = sigmoid(gates[:, 0 * H:1 * H])
        g_g = jnp.tanh(gates[:, 2 * H:3 * H])
        o_g = sigmoid(gates[:, 3 * H:4 * H])
        if c_prev is None:
            c_new = i_g * g_g
        else:
            f_g = sigmoid(gates[:, 1 * H:2 * H])
            c_new = f_g * c_prev + i_g * g_g
        h_new = o_g * jnp.tanh(c_new)  # f32
        return h_new, c_new

    # Statically unrolled recurrence (T is small & fixed at trace time): all
    # slices / stores use static, tile-aligned offsets (Bp == 8 sublanes) and
    # the scheduler sees across steps.
    # TODO(synk): for long sequences (T*Bp*4He f32 approaching VMEM, ~half as
    # soon on v7x's 64 MiB) switch to a T-tiled grid with carried (h, c) VMEM
    # scratch + pl.Buffered(2) input blocks; and on v7x use
    # pltpu.matmul_push_rhs / matmul_acc_lhs to keep W_hh MXU-stationary and
    # accumulate in the MRB.
    # TODO(synk): once B >= ~16, add a leading batch grid axis with
    # dimension_semantics=("parallel",) so both v7x TensorCores are used.
    rec_enc = None       # h_e(t-1) @ enc_whh^T, produced by step t-1's combined dot
    c_e = c_d = None
    h_d_bf = None
    for t in range(T):
        row = t * Bp                                 # static, multiple of 8
        g_enc = gx_ref[pl.ds(row, Bp), :]            # (Bp, 4He) f32
        if t > 0:
            g_enc = g_enc + rec_enc
        h_e, c_e = lstm_cell(g_enc, c_e, He)
        h_e_bf = h_e.astype(MM_DTYPE)                # cast once per step

        if t == 0:
            # Recurrent weights needed from here on; DMA has been in flight
            # behind the gx projection + first encoder cell.
            wcomb_cp.wait()
            dec_whh_cp.wait()

        # One combined MXU issue: columns [0, 4He) are the encoder recurrent
        # gates for step t+1, columns [4He, 4He+4Hd) are the decoder input
        # gates for this step.
        comb = jnp.dot(h_e_bf, wcomb_ref[...], preferred_element_type=jnp.float32)
        rec_enc = comb[:, :4 * He]
        g_dec = comb[:, 4 * He:] + dec_b
        if t > 0:
            # Off the encoder critical chain: depends only on h_d(t-1).
            g_dec = g_dec + jnp.dot(h_d_bf, dec_whh_ref[...],
                                    preferred_element_type=jnp.float32)
        h_d, c_d = lstm_cell(g_dec, c_d, Hd)
        h_d_bf = h_d.astype(MM_DTYPE)

        # Full (8, 128) tile store -> unmasked vst, no sublane masking.
        out_ref[pl.ds(row, Bp), :] = h_d


def prepare_params(params):
    """One-time weight prep: transpose, fuse biases, concat recurrent weights, cast."""
    enc, dec = params["encoder"], params["decoder"]
    He = enc["w_hh"].shape[1]
    Hd = dec["w_hh"].shape[1]

    enc_wih_t = jnp.transpose(enc["w_ih"]).astype(MM_DTYPE)          # (D, 4He)
    enc_whh_t = jnp.transpose(enc["w_hh"]).astype(MM_DTYPE)          # (He, 4He)
    dec_wih_t = jnp.transpose(dec["w_ih"]).astype(MM_DTYPE)          # (He, 4Hd)
    dec_whh_t = jnp.transpose(dec["w_hh"]).astype(MM_DTYPE)          # (Hd, 4Hd)

    return dict(
        enc_wih_t=enc_wih_t,
        # Shared-LHS fusion: h_e @ [enc_whh^T | dec_wih^T] in one MXU issue.
        wcomb=jnp.concatenate([enc_whh_t, dec_wih_t], axis=1),       # (He, 4He+4Hd)
        dec_whh_t=dec_whh_t,
        enc_b=(enc["b_ih"] + enc["b_hh"]).reshape(1, 4 * He).astype(jnp.float32),
        dec_b=(dec["b_ih"] + dec["b_hh"]).reshape(1, 4 * Hd).astype(jnp.float32),
    )


def voice_conversion_forward(prepared, audio_features, emotion_embedding):
    """Batch-first in / batch-first out, like the PyTorch module."""
    B, Ta, D = audio_features.shape
    Te = emotion_embedding.shape[1]
    T = Ta + Te
    He = prepared["wcomb"].shape[0]
    Hd = prepared["dec_whh_t"].shape[0]
    Bp = ((B + 7) // 8) * 8  # pad batch to the f32 sublane count (8)

    # Concat along the sequence axis (PyTorch dim=1), go time-major, pad the
    # batch to Bp rows, and flatten to 2-D rows (row = t*Bp + b) so every
    # kernel slice / store is a full (8, 128) tile.
    combined = jnp.concatenate([audio_features, emotion_embedding], axis=1)   # (B,T,D)
    x_tbd = jnp.transpose(combined, (1, 0, 2))                                # (T,B,D)
    x_tbd = jnp.pad(x_tbd, ((0, 0), (0, Bp - B), (0, 0)))                     # (T,Bp,D)
    x2d = x_tbd.reshape(T * Bp, D).astype(MM_DTYPE)

    vmem = pl.BlockSpec(memory_space=pltpu.MemorySpace.VMEM)
    hbm = pl.BlockSpec(memory_space=pl.ANY)   # manual async copy inside the kernel

    kernel = functools.partial(_fused_vc_lstm_kernel, seq_len=T, batch=Bp)

    out2d = pl.pallas_call(
        kernel,
        out_shape=jax.ShapeDtypeStruct((T * Bp, Hd), jnp.float32),
        in_specs=[vmem, vmem, vmem, vmem, hbm, hbm],
        out_specs=vmem,
        scratch_shapes=[
            pltpu.VMEM((T * Bp, 4 * He), jnp.float32),        # gx (hoisted projection)
            pltpu.VMEM((He, 4 * He + 4 * Hd), MM_DTYPE),      # W_comb landing buffer
            pltpu.VMEM((Hd, 4 * Hd), MM_DTYPE),               # dec_whh landing buffer
            pltpu.SemaphoreType.DMA((2,)),
        ],
    )(x2d, prepared["enc_wih_t"], prepared["enc_b"], prepared["dec_b"],
      prepared["wcomb"], prepared["dec_whh_t"])

    out = out2d.reshape(T, Bp, Hd)[:, :B]        # drop batch padding
    return jnp.transpose(out, (1, 0, 2))         # back to batch-first (B, T, Hd)


def init_lstm_params(key, input_size, hidden_size):
    """Deterministic PyTorch-style init: U(-1/sqrt(H), 1/sqrt(H))."""
    k = 1.0 / math.sqrt(hidden_size)
    k1, k2, k3, k4 = jax.random.split(key, 4)
    w_ih = jax.random.uniform(k1, (4 * hidden_size, input_size), jnp.float32, -k, k)
    w_hh = jax.random.uniform(k2, (4 * hidden_size, hidden_size), jnp.float32, -k, k)
    b_ih = jax.random.uniform(k3, (4 * hidden_size,), jnp.float32, -k, k)
    b_hh = jax.random.uniform(k4, (4 * hidden_size,), jnp.float32, -k, k)
    return dict(w_ih=w_ih, w_hh=w_hh, b_ih=b_ih, b_hh=b_hh)


def _lstm_ref(x_btd, w_ih, w_hh, b_ih, b_hh):
    """Pure-JAX f32 reference LSTM (PyTorch semantics, zero init)."""
    B, T, D = x_btd.shape
    H = w_hh.shape[1]
    x_tbd = jnp.transpose(x_btd, (1, 0, 2))

    def step(carry, x_t):
        h, c = carry
        gates = x_t @ w_ih.T + h @ w_hh.T + b_ih + b_hh
        i = jax.nn.sigmoid(gates[:, 0 * H:1 * H])
        f = jax.nn.sigmoid(gates[:, 1 * H:2 * H])
        g = jnp.tanh(gates[:, 2 * H:3 * H])
        o = jax.nn.sigmoid(gates[:, 3 * H:4 * H])
        c = f * c + i * g
        h = o * jnp.tanh(c)
        return (h, c), h

    init = (jnp.zeros((B, H), jnp.float32), jnp.zeros((B, H), jnp.float32))
    _, hs = lax.scan(step, init, x_tbd)
    return jnp.transpose(hs, (1, 0, 2))


def _reference_forward(params, audio_features, emotion_embedding):
    combined = jnp.concatenate([audio_features, emotion_embedding], axis=1)
    enc, dec = params["encoder"], params["decoder"]
    encoded = _lstm_ref(combined, enc["w_ih"], enc["w_hh"], enc["b_ih"], enc["b_hh"])
    decoded = _lstm_ref(encoded, dec["w_ih"], dec["w_hh"], dec["b_ih"], dec["b_hh"])
    return decoded


if __name__ == "__main__":
    key = jax.random.PRNGKey(0)
    k_enc, k_dec, k_a, k_e = jax.random.split(key, 4)

    params = {
        "encoder": init_lstm_params(k_enc, input_size=128, hidden_size=256),
        "decoder": init_lstm_params(k_dec, input_size=256, hidden_size=128),
    }
    prepared = prepare_params(params)

    # Small shapes consistent with the module: feature dim must be 128.
    B, T_audio, T_emotion, F = 2, 6, 2, 128
    audio_features = jax.random.normal(k_a, (B, T_audio, F), jnp.float32)
    emotion_embedding = jax.random.normal(k_e, (B, T_emotion, F), jnp.float32)

    fwd = jax.jit(voice_conversion_forward)
    decoded = jax.block_until_ready(fwd(prepared, audio_features, emotion_embedding))

    assert decoded.shape == (B, T_audio + T_emotion, 128)
    assert bool(jnp.all(jnp.isfinite(decoded)))

    # Numerical sanity vs. pure-JAX f32 reference (bf16 MXU operands -> loose tol).
    ref = _reference_forward(params, audio_features, emotion_embedding)
    max_err = float(jnp.max(jnp.abs(decoded - ref)))
    assert max_err < 0.1, f"max abs err {max_err}"

    print("KERNEL_OK")
</pallas_src>

<mosaic_0001>
module attributes {stable_mosaic.version = 11 : i64} {
  func.func @_fused_vc_lstm_kernel(%arg0: memref<64x128xbf16, #tpu.memory_space<vmem>>, %arg1: memref<128x1024xbf16, #tpu.memory_space<vmem>>, %arg2: memref<1x1024xf32, #tpu.memory_space<vmem>>, %arg3: memref<1x512xf32, #tpu.memory_space<vmem>>, %arg4: memref<256x1536xbf16, #tpu.memory_space<any>>, %arg5: memref<128x512xbf16, #tpu.memory_space<any>>, %arg6: memref<64x128xf32, #tpu.memory_space<vmem>>, %arg7: memref<64x1024xf32, #tpu.memory_space<vmem>>, %arg8: memref<256x1536xbf16, #tpu.memory_space<vmem>>, %arg9: memref<128x512xbf16, #tpu.memory_space<vmem>>, %arg10: memref<2x!tpu.dma_semaphore, #tpu.memory_space<semaphore_mem>>) attributes {dimension_semantics = [], scalar_prefetch = 0 : i64, scratch_operands = 4 : i64, tpu.core_type = #tpu.core_type<tc>} {
    %c0_i32 = arith.constant 0 : i32
    %0 = tpu.memref_slice %arg10[%c0_i32] : memref<2x!tpu.dma_semaphore, #tpu.memory_space<semaphore_mem>> -> memref<1x!tpu.dma_semaphore, #tpu.memory_space<semaphore_mem>>
    %1 = tpu.memref_squeeze %0 : memref<1x!tpu.dma_semaphore, #tpu.memory_space<semaphore_mem>> -> memref<!tpu.dma_semaphore, #tpu.memory_space<semaphore_mem>>
    tpu.enqueue_dma source(%arg4 : memref<256x1536xbf16, #tpu.memory_space<any>>) target(%arg8 : memref<256x1536xbf16, #tpu.memory_space<vmem>>) target_semaphore(%1 : memref<!tpu.dma_semaphore, #tpu.memory_space<semaphore_mem>>)
    %c1_i32 = arith.constant 1 : i32
    %2 = tpu.memref_slice %arg10[%c1_i32] : memref<2x!tpu.dma_semaphore, #tpu.memory_space<semaphore_mem>> -> memref<1x!tpu.dma_semaphore, #tpu.memory_space<semaphore_mem>>
    %3 = tpu.memref_squeeze %2 : memref<1x!tpu.dma_semaphore, #tpu.memory_space<semaphore_mem>> -> memref<!tpu.dma_semaphore, #tpu.memory_space<semaphore_mem>>
    tpu.enqueue_dma source(%arg5 : memref<128x512xbf16, #tpu.memory_space<any>>) target(%arg9 : memref<128x512xbf16, #tpu.memory_space<vmem>>) target_semaphore(%3 : memref<!tpu.dma_semaphore, #tpu.memory_space<semaphore_mem>>)
    %c0 = arith.constant 0 : index
    %c0_0 = arith.constant 0 : index
    %4 = vector.load %arg0[%c0, %c0_0] : memref<64x128xbf16, #tpu.memory_space<vmem>>, vector<64x128xbf16>
    %c0_1 = arith.constant 0 : index
    %c0_2 = arith.constant 0 : index
    %5 = vector.load %arg1[%c0_1, %c0_2] : memref<128x1024xbf16, #tpu.memory_space<vmem>>, vector<128x1024xbf16>
    %cst = arith.constant dense<0.000000e+00> : vector<64x1024xf32>
    %6 = tpu.matmul %4, %5, %cst {dimension_numbers = #tpu.dot_dimension_numbers<[1], [0], [0], [1], [0, 0, 1, 1], [], []>} : vector<64x128xbf16>, vector<128x1024xbf16>, vector<64x1024xf32> -> vector<64x1024xf32>
    %c0_3 = arith.constant 0 : index
    %c0_4 = arith.constant 0 : index
    %7 = vector.load %arg2[%c0_3, %c0_4] : memref<1x1024xf32, #tpu.memory_space<vmem>>, vector<1x1024xf32>
    %8 = vector.broadcast %7 : vector<1x1024xf32> to vector<64x1024xf32>
    %9 = arith.addf %6, %8 : vector<64x1024xf32>
    %c0_5 = arith.constant 0 : index
    %c0_6 = arith.constant 0 : index
    %10 = vector.load %arg7[%c0_5, %c0_6] : memref<64x1024xf32, #tpu.memory_space<vmem>>, vector<64x1024xf32>
    tpu.vector_store %arg7[%c0_5, %c0_6], %9 {strides = array<i32>} : memref<64x1024xf32, #tpu.memory_space<vmem>>, vector<64x1024xf32>,
    %c0_7 = arith.constant 0 : index
    %c0_8 = arith.constant 0 : index
    %11 = vector.load %arg3[%c0_7, %c0_8] : memref<1x512xf32, #tpu.memory_space<vmem>>, vector<1x512xf32>
    %c0_9 = arith.constant 0 : index
    %c0_10 = arith.constant 0 : index
    %12 = vector.load %arg7[%c0_9, %c0_10] : memref<64x1024xf32, #tpu.memory_space<vmem>>, vector<8x1024xf32>
    %13 = vector.extract_strided_slice %12 {offsets = [0, 0], sizes = [8, 256], strides = [1, 1]} : vector<8x1024xf32> to vector<8x256xf32>
    %cst_11 = arith.constant 5.000000e-01 : f32
    %14 = vector.broadcast %cst_11 : f32 to vector<8x256xf32>
    %15 = arith.mulf %14, %13 : vector<8x256xf32>
    %16 = math.tanh %15 : vector<8x256xf32>
    %cst_12 = arith.constant 5.000000e-01 : f32
    %17 = vector.broadcast %cst_12 : f32 to vector<8x256xf32>
    %18 = arith.mulf %17, %16 : vector<8x256xf32>
    %cst_13 = arith.constant 5.000000e-01 : f32
    %19 = vector.broadcast %cst_13 : f32 to vector<8x256xf32>
    %20 = arith.addf %18, %19 : vector<8x256xf32>
    %21 = vector.extract_strided_slice %12 {offsets = [0, 512], sizes = [8, 256], strides = [1, 1]} : vector<8x1024xf32> to vector<8x256xf32>
    %22 = math.tanh %21 : vector<8x256xf32>
    %23 = vector.extract_strided_slice %12 {offsets = [0, 768], sizes = [8, 256], strides = [1, 1]} : vector<8x1024xf32> to vector<8x256xf32>
    %cst_14 = arith.constant 5.000000e-01 : f32
    %24 = vector.broadcast %cst_14 : f32 to vector<8x256xf32>
    %25 = arith.mulf %24, %23 : vector<8x256xf32>
    %26 = math.tanh %25 : vector<8x256xf32>
    %cst_15 = arith.constant 5.000000e-01 : f32
    %27 = vector.broadcast %cst_15 : f32 to vector<8x256xf32>
    %28 = arith.mulf %27, %26 : vector<8x256xf32>
    %cst_16 = arith.constant 5.000000e-01 : f32
    %29 = vector.broadcast %cst_16 : f32 to vector<8x256xf32>
    %30 = arith.addf %28, %29 : vector<8x256xf32>
    %31 = arith.mulf %20, %22 : vector<8x256xf32>
    %32 = math.tanh %31 : vector<8x256xf32>
    %33 = arith.mulf %30, %32 : vector<8x256xf32>
    %34 = arith.truncf %33 : vector<8x256xf32> to vector<8x256xbf16>
    %c0_i32_17 = arith.constant 0 : i32
    %35 = tpu.memref_slice %arg10[%c0_i32_17] : memref<2x!tpu.dma_semaphore, #tpu.memory_space<semaphore_mem>> -> memref<1x!tpu.dma_semaphore, #tpu.memory_space<semaphore_mem>>
    %36 = tpu.memref_squeeze %35 : memref<1x!tpu.dma_semaphore, #tpu.memory_space<semaphore_mem>> -> memref<!tpu.dma_semaphore, #tpu.memory_space<semaphore_mem>>
    tpu.wait_dma2 semaphore(%36 : memref<!tpu.dma_semaphore, #tpu.memory_space<semaphore_mem>>) src(%arg4 : memref<256x1536xbf16, #tpu.memory_space<any>>) dst(%arg8 : memref<256x1536xbf16, #tpu.memory_space<vmem>>)
    %c1_i32_18 = arith.constant 1 : i32
    %37 = tpu.memref_slice %arg10[%c1_i32_18] : memref<2x!tpu.dma_semaphore, #tpu.memory_space<semaphore_mem>> -> memref<1x!tpu.dma_semaphore, #tpu.memory_space<semaphore_mem>>
    %38 = tpu.memref_squeeze %37 : memref<1x!tpu.dma_semaphore, #tpu.memory_space<semaphore_mem>> -> memref<!tpu.dma_semaphore, #tpu.memory_space<semaphore_mem>>
    tpu.wait_dma2 semaphore(%38 : memref<!tpu.dma_semaphore, #tpu.memory_space<semaphore_mem>>) src(%arg5 : memref<128x512xbf16, #tpu.memory_space<any>>) dst(%arg9 : memref<128x512xbf16, #tpu.memory_space<vmem>>)
    %c0_19 = arith.constant 0 : index
    %c0_20 = arith.constant 0 : index
    %39 = vector.load %arg8[%c0_19, %c0_20] : memref<256x1536xbf16, #tpu.memory_space<vmem>>, vector<256x1536xbf16>
    %cst_21 = arith.constant dense<0.000000e+00> : vector<8x1536xf32>
    %40 = tpu.matmul %34, %39, %cst_21 {dimension_numbers = #tpu.dot_dimension_numbers<[1], [0], [0], [1], [0, 0, 1, 1], [], []>} : vector<8x256xbf16>, vector<256x1536xbf16>, vector<8x1536xf32> -> vector<8x1536xf32>
    %41 = vector.extract_strided_slice %40 {offsets = [0, 0], sizes = [8, 1024], strides = [1, 1]} : vector<8x1536xf32> to vector<8x1024xf32>
    %42 = vector.extract_strided_slice %40 {offsets = [0, 1024], sizes = [8, 512], strides = [1, 1]} : vector<8x1536xf32> to vector<8x512xf32>
    %43 = vector.broadcast %11 : vector<1x512xf32> to vector<8x512xf32>
    %44 = arith.addf %42, %43 : vector<8x512xf32>
    %45 = vector.extract_strided_slice %44 {offsets = [0, 0], sizes = [8, 128], strides = [1, 1]} : vector<8x512xf32> to vector<8x128xf32>
    %cst_22 = arith.constant 5.000000e-01 : f32
    %46 = vector.broadcast %cst_22 : f32 to vector<8x128xf32>
    %47 = arith.mulf %46, %45 : vector<8x128xf32>
    %48 = math.tanh %47 : vector<8x128xf32>
    %cst_23 = arith.constant 5.000000e-01 : f32
    %49 = vector.broadcast %cst_23 : f32 to vector<8x128xf32>
    %50 = arith.mulf %49, %48 : vector<8x128xf32>
    %cst_24 = arith.constant 5.000000e-01 : f32
    %51 = vector.broadcast %cst_24 : f32 to vector<8x128xf32>
    %52 = arith.addf %50, %51 : vector<8x128xf32>
    %53 = vector.extract_strided_slice %44 {offsets = [0, 256], sizes = [8, 128], strides = [1, 1]} : vector<8x512xf32> to vector<8x128xf32>
    %54 = math.tanh %53 : vector<8x128xf32>
    %55 = vector.extract_strided_slice %44 {offsets = [0, 384], sizes = [8, 128], strides = [1, 1]} : vector<8x512xf32> to vector<8x128xf32>
    %cst_25 = arith.constant 5.000000e-01 : f32
    %56 = vector.broadcast %cst_25 : f32 to vector<8x128xf32>
    %57 = arith.mulf %56, %55 : vector<8x128xf32>
    %58 = math.tanh %57 : vector<8x128xf32>
    %cst_26 = arith.constant 5.000000e-01 : f32
    %59 = vector.broadcast %cst_26 : f32 to vector<8x128xf32>
    %60 = arith.mulf %59, %58 : vector<8x128xf32>
    %cst_27 = arith.constant 5.000000e-01 : f32
    %61 = vector.broadcast %cst_27 : f32 to vector<8x128xf32>
    %62 = arith.addf %60, %61 : vector<8x128xf32>
    %63 = arith.mulf %52, %54 : vector<8x128xf32>
    %64 = math.tanh %63 : vector<8x128xf32>
    %65 = arith.mulf %62, %64 : vector<8x128xf32>
    %66 = arith.truncf %65 : vector<8x128xf32> to vector<8x128xbf16>
    %c0_28 = arith.constant 0 : index
    %c0_29 = arith.constant 0 : index
    %67 = vector.load %arg6[%c0_28, %c0_29] : memref<64x128xf32, #tpu.memory_space<vmem>>, vector<8x128xf32>
    tpu.vector_store %arg6[%c0_28, %c0_29], %65 {strides = array<i32>} : memref<64x128xf32, #tpu.memory_space<vmem>>, vector<8x128xf32>,
    %c8 = arith.constant 8 : index
    %c0_30 = arith.constant 0 : index
    %68 = vector.load %arg7[%c8, %c0_30] : memref<64x1024xf32, #tpu.memory_space<vmem>>, vector<8x1024xf32>
    %69 = arith.addf %68, %41 : vector<8x1024xf32>
    %70 = vector.extract_strided_slice %69 {offsets = [0, 0], sizes = [8, 256], strides = [1, 1]} : vector<8x1024xf32> to vector<8x256xf32>
    %cst_31 = arith.constant 5.000000e-01 : f32
    %71 = vector.broadcast %cst_31 : f32 to vector<8x256xf32>
    %72 = arith.mulf %71, %70 : vector<8x256xf32>
    %73 = math.tanh %72 : vector<8x256xf32>
    %cst_32 = arith.constant 5.000000e-01 : f32
    %74 = vector.broadcast %cst_32 : f32 to vector<8x256xf32>
    %75 = arith.mulf %74, %73 : vector<8x256xf32>
    %cst_33 = arith.constant 5.000000e-01 : f32
    %76 = vector.broadcast %cst_33 : f32 to vector<8x256xf32>
    %77 = arith.addf %75, %76 : vector<8x256xf32>
    %78 = vector.extract_strided_slice %69 {offsets = [0, 512], sizes = [8, 256], strides = [1, 1]} : vector<8x1024xf32> to vector<8x256xf32>
    %79 = math.tanh %78 : vector<8x256xf32>
    %80 = vector.extract_strided_slice %69 {offsets = [0, 768], sizes = [8, 256], strides = [1, 1]} : vector<8x1024xf32> to vector<8x256xf32>
    %cst_34 = arith.constant 5.000000e-01 : f32
    %81 = vector.broadcast %cst_34 : f32 to vector<8x256xf32>
    %82 = arith.mulf %81, %80 : vector<8x256xf32>
    %83 = math.tanh %82 : vector<8x256xf32>
    %cst_35 = arith.constant 5.000000e-01 : f32
    %84 = vector.broadcast %cst_35 : f32 to vector<8x256xf32>
    %85 = arith.mulf %84, %83 : vector<8x256xf32>
    %cst_36 = arith.constant 5.000000e-01 : f32
    %86 = vector.broadcast %cst_36 : f32 to vector<8x256xf32>
    %87 = arith.addf %85, %86 : vector<8x256xf32>
    %88 = vector.extract_strided_slice %69 {offsets = [0, 256], sizes = [8, 256], strides = [1, 1]} : vector<8x1024xf32> to vector<8x256xf32>
    %cst_37 = arith.constant 5.000000e-01 : f32
    %89 = vector.broadcast %cst_37 : f32 to vector<8x256xf32>
    %90 = arith.mulf %89, %88 : vector<8x256xf32>
    %91 = math.tanh %90 : vector<8x256xf32>
    %cst_38 = arith.constant 5.000000e-01 : f32
    %92 = vector.broadcast %cst_38 : f32 to vector<8x256xf32>
    %93 = arith.mulf %92, %91 : vector<8x256xf32>
    %cst_39 = arith.constant 5.000000e-01 : f32
    %94 = vector.broadcast %cst_39 : f32 to vector<8x256xf32>
    %95 = arith.addf %93, %94 : vector<8x256xf32>
    %96 = arith.mulf %95, %31 : vector<8x256xf32>
    %97 = arith.mulf %77, %79 : vector<8x256xf32>
    %98 = arith.addf %96, %97 : vector<8x256xf32>
    %99 = math.tanh %98 : vector<8x256xf32>
    %100 = arith.mulf %87, %99 : vector<8x256xf32>
    %101 = arith.truncf %100 : vector<8x256xf32> to vector<8x256xbf16>
    %c0_40 = arith.constant 0 : index
    %c0_41 = arith.constant 0 : index
    %102 = vector.load %arg8[%c0_40, %c0_41] : memref<256x1536xbf16, #tpu.memory_space<vmem>>, vector<256x1536xbf16>
    %cst_42 = arith.constant dense<0.000000e+00> : vector<8x1536xf32>
    %103 = tpu.matmul %101, %102, %cst_42 {dimension_numbers = #tpu.dot_dimension_numbers<[1], [0], [0], [1], [0, 0, 1, 1], [], []>} : vector<8x256xbf16>, vector<256x1536xbf16>, vector<8x1536xf32> -> vector<8x1536xf32>
    %104 = vector.extract_strided_slice %103 {offsets = [0, 0], sizes = [8, 1024], strides = [1, 1]} : vector<8x1536xf32> to vector<8x1024xf32>
    %105 = vector.extract_strided_slice %103 {offsets = [0, 1024], sizes = [8, 512], strides = [1, 1]} : vector<8x1536xf32> to vector<8x512xf32>
    %106 = vector.broadcast %11 : vector<1x512xf32> to vector<8x512xf32>
    %107 = arith.addf %105, %106 : vector<8x512xf32>
    %c0_43 = arith.constant 0 : index
    %c0_44 = arith.constant 0 : index
    %108 = vector.load %arg9[%c0_43, %c0_44] : memref<128x512xbf16, #tpu.memory_space<vmem>>, vector<128x512xbf16>
    %cst_45 = arith.constant dense<0.000000e+00> : vector<8x512xf32>
    %109 = tpu.matmul %66, %108, %cst_45 {dimension_numbers = #tpu.dot_dimension_numbers<[1], [0], [0], [1], [0, 0, 1, 1], [], []>} : vector<8x128xbf16>, vector<128x512xbf16>, vector<8x512xf32> -> vector<8x512xf32>
    %110 = arith.addf %107, %109 : vector<8x512xf32>
    %111 = vector.extract_strided_slice %110 {offsets = [0, 0], sizes = [8, 128], strides = [1, 1]} : vector<8x512xf32> to vector<8x128xf32>
    %cst_46 = arith.constant 5.000000e-01 : f32
    %112 = vector.broadcast %cst_46 : f32 to vector<8x128xf32>
    %113 = arith.mulf %112, %111 : vector<8x128xf32>
    %114 = math.tanh %113 : vector<8x128xf32>
    %cst_47 = arith.constant 5.000000e-01 : f32
    %115 = vector.broadcast %cst_47 : f32 to vector<8x128xf32>
    %116 = arith.mulf %115, %114 : vector<8x128xf32>
    %cst_48 = arith.constant 5.000000e-01 : f32
    %117 = vector.broadcast %cst_48 : f32 to vector<8x128xf32>
    %118 = arith.addf %116, %117 : vector<8x128xf32>
    %119 = vector.extract_strided_slice %110 {offsets = [0, 256], sizes = [8, 128], strides = [1, 1]} : vector<8x512xf32> to vector<8x128xf32>
    %120 = math.tanh %119 : vector<8x128xf32>
    %121 = vector.extract_strided_slice %110 {offsets = [0, 384], sizes = [8, 128], strides = [1, 1]} : vector<8x512xf32> to vector<8x128xf32>
    %cst_49 = arith.constant 5.000000e-01 : f32
    %122 = vector.broadcast %cst_49 : f32 to vector<8x128xf32>
    %123 = arith.mulf %122, %121 : vector<8x128xf32>
    %124 = math.tanh %123 : vector<8x128xf32>
    %cst_50 = arith.constant 5.000000e-01 : f32
    %125 = vector.broadcast %cst_50 : f32 to vector<8x128xf32>
    %126 = arith.mulf %125, %124 : vector<8x128xf32>
    %cst_51 = arith.constant 5.000000e-01 : f32
    %127 = vector.broadcast %cst_51 : f32 to vector<8x128xf32>
    %128 = arith.addf %126, %127 : vector<8x128xf32>
    %129 = vector.extract_strided_slice %110 {offsets = [0, 128], sizes = [8, 128], strides = [1, 1]} : vector<8x512xf32> to vector<8x128xf32>
    %cst_52 = arith.constant 5.000000e-01 : f32
    %130 = vector.broadcast %cst_52 : f32 to vector<8x128xf32>
    %131 = arith.mulf %130, %129 : vector<8x128xf32>
    %132 = math.tanh %131 : vector<8x128xf32>
    %cst_53 = arith.constant 5.000000e-01 : f32
    %133 = vector.broadcast %cst_53 : f32 to vector<8x128xf32>
    %134 = arith.mulf %133, %132 : vector<8x128xf32>
    %cst_54 = arith.constant 5.000000e-01 : f32
    %135 = vector.broadcast %cst_54 : f32 to vector<8x128xf32>
    %136 = arith.addf %134, %135 : vector<8x128xf32>
    %137 = arith.mulf %136, %63 : vector<8x128xf32>
    %138 = arith.mulf %118, %120 : vector<8x128xf32>
    %139 = arith.addf %137, %138 : vector<8x128xf32>
    %140 = math.tanh %139 : vector<8x128xf32>
    %141 = arith.mulf %128, %140 : vector<8x128xf32>
    %142 = arith.truncf %141 : vector<8x128xf32> to vector<8x128xbf16>
    %c8_55 = arith.constant 8 : index
    %c0_56 = arith.constant 0 : index
    %143 = vector.load %arg6[%c8_55, %c0_56] : memref<64x128xf32, #tpu.memory_space<vmem>>, vector<8x128xf32>
    tpu.vector_store %arg6[%c8_55, %c0_56], %141 {strides = array<i32>} : memref<64x128xf32, #tpu.memory_space<vmem>>, vector<8x128xf32>,
    %c16 = arith.constant 16 : index
    %c0_57 = arith.constant 0 : index
    %144 = vector.load %arg7[%c16, %c0_57] : memref<64x1024xf32, #tpu.memory_space<vmem>>, vector<8x1024xf32>
    %145 = arith.addf %144, %104 : vector<8x1024xf32>
    %146 = vector.extract_strided_slice %145 {offsets = [0, 0], sizes = [8, 256], strides = [1, 1]} : vector<8x1024xf32> to vector<8x256xf32>
    %cst_58 = arith.constant 5.000000e-01 : f32
    %147 = vector.broadcast %cst_58 : f32 to vector<8x256xf32>
    %148 = arith.mulf %147, %146 : vector<8x256xf32>
    %149 = math.tanh %148 : vector<8x256xf32>
    %cst_59 = arith.constant 5.000000e-01 : f32
    %150 = vector.broadcast %cst_59 : f32 to vector<8x256xf32>
    %151 = arith.mulf %150, %149 : vector<8x256xf32>
    %cst_60 = arith.constant 5.000000e-01 : f32
    %152 = vector.broadcast %cst_60 : f32 to vector<8x256xf32>
    %153 = arith.addf %151, %152 : vector<8x256xf32>
    %154 = vector.extract_strided_slice %145 {offsets = [0, 512], sizes = [8, 256], strides = [1, 1]} : vector<8x1024xf32> to vector<8x256xf32>
    %155 = math.tanh %154 : vector<8x256xf32>
    %156 = vector.extract_strided_slice %145 {offsets = [0, 768], sizes = [8, 256], strides = [1, 1]} : vector<8x1024xf32> to vector<8x256xf32>
    %cst_61 = arith.constant 5.000000e-01 : f32
    %157 = vector.broadcast %cst_61 : f32 to vector<8x256xf32>
    %158 = arith.mulf %157, %156 : vector<8x256xf32>
    %159 = math.tanh %158 : vector<8x256xf32>
    %cst_62 = arith.constant 5.000000e-01 : f32
    %160 = vector.broadcast %cst_62 : f32 to vector<8x256xf32>
    %161 = arith.mulf %160, %159 : vector<8x256xf32>
    %cst_63 = arith.constant 5.000000e-01 : f32
    %162 = vector.broadcast %cst_63 : f32 to vector<8x256xf32>
    %163 = arith.addf %161, %162 : vector<8x256xf32>
    %164 = vector.extract_strided_slice %145 {offsets = [0, 256], sizes = [8, 256], strides = [1, 1]} : vector<8x1024xf32> to vector<8x256xf32>
    %cst_64 = arith.constant 5.000000e-01 : f32
    %165 = vector.broadcast %cst_64 : f32 to vector<8x256xf32>
    %166 = arith.mulf %165, %164 : vector<8x256xf32>
    %167 = math.tanh %166 : vector<8x256xf32>
    %cst_65 = arith.constant 5.000000e-01 : f32
    %168 = vector.broadcast %cst_65 : f32 to vector<8x256xf32>
    %169 = arith.mulf %168, %167 : vector<8x256xf32>
    %cst_66 = arith.constant 5.000000e-01 : f32
    %170 = vector.broadcast %cst_66 : f32 to vector<8x256xf32>
    %171 = arith.addf %169, %170 : vector<8x256xf32>
    %172 = arith.mulf %171, %98 : vector<8x256xf32>
    %173 = arith.mulf %153, %155 : vector<8x256xf32>
    %174 = arith.addf %172, %173 : vector<8x256xf32>
    %175 = math.tanh %174 : vector<8x256xf32>
    %176 = arith.mulf %163, %175 : vector<8x256xf32>
    %177 = arith.truncf %176 : vector<8x256xf32> to vector<8x256xbf16>
    %c0_67 = arith.constant 0 : index
    %c0_68 = arith.constant 0 : index
    %178 = vector.load %arg8[%c0_67, %c0_68] : memref<256x1536xbf16, #tpu.memory_space<vmem>>, vector<256x1536xbf16>
    %cst_69 = arith.constant dense<0.000000e+00> : vector<8x1536xf32>
    %179 = tpu.matmul %177, %178, %cst_69 {dimension_numbers = #tpu.dot_dimension_numbers<[1], [0], [0], [1], [0, 0, 1, 1], [], []>} : vector<8x256xbf16>, vector<256x1536xbf16>, vector<8x1536xf32> -> vector<8x1536xf32>
    %180 = vector.extract_strided_slice %179 {offsets = [0, 0], sizes = [8, 1024], strides = [1, 1]} : vector<8x1536xf32> to vector<8x1024xf32>
    %181 = vector.extract_strided_slice %179 {offsets = [0, 1024], sizes = [8, 512], strides = [1, 1]} : vector<8x1536xf32> to vector<8x512xf32>
    %182 = vector.broadcast %11 : vector<1x512xf32> to vector<8x512xf32>
    %183 = arith.addf %181, %182 : vector<8x512xf32>
    %c0_70 = arith.constant 0 : index
    %c0_71 = arith.constant 0 : index
    %184 = vector.load %arg9[%c0_70, %c0_71] : memref<128x512xbf16, #tpu.memory_space<vmem>>, vector<128x512xbf16>
    %cst_72 = arith.constant dense<0.000000e+00> : vector<8x512xf32>
    %185 = tpu.matmul %142, %184, %cst_72 {dimension_numbers = #tpu.dot_dimension_numbers<[1], [0], [0], [1], [0, 0, 1, 1], [], []>} : vector<8x128xbf16>, vector<128x512xbf16>, vector<8x512xf32> -> vector<8x512xf32>
    %186 = arith.addf %183, %185 : vector<8x512xf32>
    %187 = vector.extract_strided_slice %186 {offsets = [0, 0], sizes = [8, 128], strides = [1, 1]} : vector<8x512xf32> to vector<8x128xf32>
    %cst_73 = arith.constant 5.000000e-01 : f32
    %188 = vector.broadcast %cst_73 : f32 to vector<8x128xf32>
    %189 = arith.mulf %188, %187 : vector<8x128xf32>
    %190 = math.tanh %189 : vector<8x128xf32>
    %cst_74 = arith.constant 5.000000e-01 : f32
    %191 = vector.broadcast %cst_74 : f32 to vector<8x128xf32>
    %192 = arith.mulf %191, %190 : vector<8x128xf32>
    %cst_75 = arith.constant 5.000000e-01 : f32
    %193 = vector.broadcast %cst_75 : f32 to vector<8x128xf32>
    %194 = arith.addf %192, %193 : vector<8x128xf32>
    %195 = vector.extract_strided_slice %186 {offsets = [0, 256], sizes = [8, 128], strides = [1, 1]} : vector<8x512xf32> to vector<8x128xf32>
    %196 = math.tanh %195 : vector<8x128xf32>
    %197 = vector.extract_strided_slice %186 {offsets = [0, 384], sizes = [8, 128], strides = [1, 1]} : vector<8x512xf32> to vector<8x128xf32>
    %cst_76 = arith.constant 5.000000e-01 : f32
    %198 = vector.broadcast %cst_76 : f32 to vector<8x128xf32>
    %199 = arith.mulf %198, %197 : vector<8x128xf32>
    %200 = math.tanh %199 : vector<8x128xf32>
    %cst_77 = arith.constant 5.000000e-01 : f32
    %201 = vector.broadcast %cst_77 : f32 to vector<8x128xf32>
    %202 = arith.mulf %201, %200 : vector<8x128xf32>
    %cst_78 = arith.constant 5.000000e-01 : f32
    %203 = vector.broadcast %cst_78 : f32 to vector<8x128xf32>
    %204 = arith.addf %202, %203 : vector<8x128xf32>
    %205 = vector.extract_strided_slice %186 {offsets = [0, 128], sizes = [8, 128], strides = [1, 1]} : vector<8x512xf32> to vector<8x128xf32>
    %cst_79 = arith.constant 5.000000e-01 : f32
    %206 = vector.broadcast %cst_79 : f32 to vector<8x128xf32>
    %207 = arith.mulf %206, %205 : vector<8x128xf32>
    %208 = math.tanh %207 : vector<8x128xf32>
    %cst_80 = arith.constant 5.000000e-01 : f32
    %209 = vector.broadcast %cst_80 : f32 to vector<8x128xf32>
    %210 = arith.mulf %209, %208 : vector<8x128xf32>
    %cst_81 = arith.constant 5.000000e-01 : f32
    %211 = vector.broadcast %cst_81 : f32 to vector<8x128xf32>
    %212 = arith.addf %210, %211 : vector<8x128xf32>
    %213 = arith.mulf %212, %139 : vector<8x128xf32>
    %214 = arith.mulf %194, %196 : vector<8x128xf32>
    %215 = arith.addf %213, %214 : vector<8x128xf32>
    %216 = math.tanh %215 : vector<8x128xf32>
    %217 = arith.mulf %204, %216 : vector<8x128xf32>
    %218 = arith.truncf %217 : vector<8x128xf32> to vector<8x128xbf16>
    %c16_82 = arith.constant 16 : index
    %c0_83 = arith.constant 0 : index
    %219 = vector.load %arg6[%c16_82, %c0_83] : memref<64x128xf32, #tpu.memory_space<vmem>>, vector<8x128xf32>
    tpu.vector_store %arg6[%c16_82, %c0_83], %217 {strides = array<i32>} : memref<64x128xf32, #tpu.memory_space<vmem>>, vector<8x128xf32>,
    %c24 = arith.constant 24 : index
    %c0_84 = arith.constant 0 : index
    %220 = vector.load %arg7[%c24, %c0_84] : memref<64x1024xf32, #tpu.memory_space<vmem>>, vector<8x1024xf32>
    %221 = arith.addf %220, %180 : vector<8x1024xf32>
    %222 = vector.extract_strided_slice %221 {offsets = [0, 0], sizes = [8, 256], strides = [1, 1]} : vector<8x1024xf32> to vector<8x256xf32>
    %cst_85 = arith.constant 5.000000e-01 : f32
    %223 = vector.broadcast %cst_85 : f32 to vector<8x256xf32>
    %224 = arith.mulf %223, %222 : vector<8x256xf32>
    %225 = math.tanh %224 : vector<8x256xf32>
    %cst_86 = arith.constant 5.000000e-01 : f32
    %226 = vector.broadcast %cst_86 : f32 to vector<8x256xf32>
    %227 = arith.mulf %226, %225 : vector<8x256xf32>
    %cst_87 = arith.constant 5.000000e-01 : f32
    %228 = vector.broadcast %cst_87 : f32 to vector<8x256xf32>
    %229 = arith.addf %227, %228 : vector<8x256xf32>
    %230 = vector.extract_strided_slice %221 {offsets = [0, 512], sizes = [8, 256], strides = [1, 1]} : vector<8x1024xf32> to vector<8x256xf32>
    %231 = math.tanh %230 : vector<8x256xf32>
    %232 = vector.extract_strided_slice %221 {offsets = [0, 768], sizes = [8, 256], strides = [1, 1]} : vector<8x1024xf32> to vector<8x256xf32>
    %cst_88 = arith.constant 5.000000e-01 : f32
    %233 = vector.broadcast %cst_88 : f32 to vector<8x256xf32>
    %234 = arith.mulf %233, %232 : vector<8x256xf32>
    %235 = math.tanh %234 : vector<8x256xf32>
    %cst_89 = arith.constant 5.000000e-01 : f32
    %236 = vector.broadcast %cst_89 : f32 to vector<8x256xf32>
    %237 = arith.mulf %236, %235 : vector<8x256xf32>
    %cst_90 = arith.constant 5.000000e-01 : f32
    %238 = vector.broadcast %cst_90 : f32 to vector<8x256xf32>
    %239 = arith.addf %237, %238 : vector<8x256xf32>
    %240 = vector.extract_strided_slice %221 {offsets = [0, 256], sizes = [8, 256], strides = [1, 1]} : vector<8x1024xf32> to vector<8x256xf32>
    %cst_91 = arith.constant 5.000000e-01 : f32
    %241 = vector.broadcast %cst_91 : f32 to vector<8x256xf32>
    %242 = arith.mulf %241, %240 : vector<8x256xf32>
    %243 = math.tanh %242 : vector<8x256xf32>
    %cst_92 = arith.constant 5.000000e-01 : f32
    %244 = vector.broadcast %cst_92 : f32 to vector<8x256xf32>
    %245 = arith.mulf %244, %243 : vector<8x256xf32>
    %cst_93 = arith.constant 5.000000e-01 : f32
    %246 = vector.broadcast %cst_93 : f32 to vector<8x256xf32>
    %247 = arith.addf %245, %246 : vector<8x256xf32>
    %248 = arith.mulf %247, %174 : vector<8x256xf32>
    %249 = arith.mulf %229, %231 : vector<8x256xf32>
    %250 = arith.addf %248, %249 : vector<8x256xf32>
    %251 = math.tanh %250 : vector<8x256xf32>
    %252 = arith.mulf %239, %251 : vector<8x256xf32>
    %253 = arith.truncf %252 : vector<8x256xf32> to vector<8x256xbf16>
    %c0_94 = arith.constant 0 : index
    %c0_95 = arith.constant 0 : index
    %254 = vector.load %arg8[%c0_94, %c0_95] : memref<256x1536xbf16, #tpu.memory_space<vmem>>, vector<256x1536xbf16>
    %cst_96 = arith.constant dense<0.000000e+00> : vector<8x1536xf32>
    %255 = tpu.matmul %253, %254, %cst_96 {dimension_numbers = #tpu.dot_dimension_numbers<[1], [0], [0], [1], [0, 0, 1, 1], [], []>} : vector<8x256xbf16>, vector<256x1536xbf16>, vector<8x1536xf32> -> vector<8x1536xf32>
    %256 = vector.extract_strided_slice %255 {offsets = [0, 0], sizes = [8, 1024], strides = [1, 1]} : vector<8x1536xf32> to vector<8x1024xf32>
    %257 = vector.extract_strided_slice %255 {offsets = [0, 1024], sizes = [8, 512], strides = [1, 1]} : vector<8x1536xf32> to vector<8x512xf32>
    %258 = vector.broadcast %11 : vector<1x512xf32> to vector<8x512xf32>
    %259 = arith.addf %257, %258 : vector<8x512xf32>
    %c0_97 = arith.constant 0 : index
    %c0_98 = arith.constant 0 : index
    %260 = vector.load %arg9[%c0_97, %c0_98] : memref<128x512xbf16, #tpu.memory_space<vmem>>, vector<128x512xbf16>
    %cst_99 = arith.constant dense<0.000000e+00> : vector<8x512xf32>
    %261 = tpu.matmul %218, %260, %cst_99 {dimension_numbers = #tpu.dot_dimension_numbers<[1], [0], [0], [1], [0, 0, 1, 1], [], []>} : vector<8x128xbf16>, vector<128x512xbf16>, vector<8x512xf32> -> vector<8x512xf32>
    %262 = arith.addf %259, %261 : vector<8x512xf32>
    %263 = vector.extract_strided_slice %262 {offsets = [0, 0], sizes = [8, 128], strides = [1, 1]} : vector<8x512xf32> to vector<8x128xf32>
    %cst_100 = arith.constant 5.000000e-01 : f32
    %264 = vector.broadcast %cst_100 : f32 to vector<8x128xf32>
    %265 = arith.mulf %264, %263 : vector<8x128xf32>
    %266 = math.tanh %265 : vector<8x128xf32>
    %cst_101 = arith.constant 5.000000e-01 : f32
    %267 = vector.broadcast %cst_101 : f32 to vector<8x128xf32>
    %268 = arith.mulf %267, %266 : vector<8x128xf32>
    %cst_102 = arith.constant 5.000000e-01 : f32
    %269 = vector.broadcast %cst_102 : f32 to vector<8x128xf32>
    %270 = arith.addf %268, %269 : vector<8x128xf32>
    %271 = vector.extract_strided_slice %262 {offsets = [0, 256], sizes = [8, 128], strides = [1, 1]} : vector<8x512xf32> to vector<8x128xf32>
    %272 = math.tanh %271 : vector<8x128xf32>
    %273 = vector.extract_strided_slice %262 {offsets = [0, 384], sizes = [8, 128], strides = [1, 1]} : vector<8x512xf32> to vector<8x128xf32>
    %cst_103 = arith.constant 5.000000e-01 : f32
    %274 = vector.broadcast %cst_103 : f32 to vector<8x128xf32>
    %275 = arith.mulf %274, %273 : vector<8x128xf32>
    %276 = math.tanh %275 : vector<8x128xf32>
    %cst_104 = arith.constant 5.000000e-01 : f32
    %277 = vector.broadcast %cst_104 : f32 to vector<8x128xf32>
    %278 = arith.mulf %277, %276 : vector<8x128xf32>
    %cst_105 = arith.constant 5.000000e-01 : f32
    %279 = vector.broadcast %cst_105 : f32 to vector<8x128xf32>
    %280 = arith.addf %278, %279 : vector<8x128xf32>
    %281 = vector.extract_strided_slice %262 {offsets = [0, 128], sizes = [8, 128], strides = [1, 1]} : vector<8x512xf32> to vector<8x128xf32>
    %cst_106 = arith.constant 5.000000e-01 : f32
    %282 = vector.broadcast %cst_106 : f32 to vector<8x128xf32>
    %283 = arith.mulf %282, %281 : vector<8x128xf32>
    %284 = math.tanh %283 : vector<8x128xf32>
    %cst_107 = arith.constant 5.000000e-01 : f32
    %285 = vector.broadcast %cst_107 : f32 to vector<8x128xf32>
    %286 = arith.mulf %285, %284 : vector<8x128xf32>
    %cst_108 = arith.constant 5.000000e-01 : f32
    %287 = vector.broadcast %cst_108 : f32 to vector<8x128xf32>
    %288 = arith.addf %286, %287 : vector<8x128xf32>
    %289 = arith.mulf %288, %215 : vector<8x128xf32>
    %290 = arith.mulf %270, %272 : vector<8x128xf32>
    %291 = arith.addf %289, %290 : vector<8x128xf32>
    %292 = math.tanh %291 : vector<8x128xf32>
    %293 = arith.mulf %280, %292 : vector<8x128xf32>
    %294 = arith.truncf %293 : vector<8x128xf32> to vector<8x128xbf16>
    %c24_109 = arith.constant 24 : index
    %c0_110 = arith.constant 0 : index
    %295 = vector.load %arg6[%c24_109, %c0_110] : memref<64x128xf32, #tpu.memory_space<vmem>>, vector<8x128xf32>
    tpu.vector_store %arg6[%c24_109, %c0_110], %293 {strides = array<i32>} : memref<64x128xf32, #tpu.memory_space<vmem>>, vector<8x128xf32>,
    %c32 = arith.constant 32 : index
    %c0_111 = arith.constant 0 : index
    %296 = vector.load %arg7[%c32, %c0_111] : memref<64x1024xf32, #tpu.memory_space<vmem>>, vector<8x1024xf32>
    %297 = arith.addf %296, %256 : vector<8x1024xf32>
    %298 = vector.extract_strided_slice %297 {offsets = [0, 0], sizes = [8, 256], strides = [1, 1]} : vector<8x1024xf32> to vector<8x256xf32>
    %cst_112 = arith.constant 5.000000e-01 : f32
    %299 = vector.broadcast %cst_112 : f32 to vector<8x256xf32>
    %300 = arith.mulf %299, %298 : vector<8x256xf32>
    %301 = math.tanh %300 : vector<8x256xf32>
    %cst_113 = arith.constant 5.000000e-01 : f32
    %302 = vector.broadcast %cst_113 : f32 to vector<8x256xf32>
    %303 = arith.mulf %302, %301 : vector<8x256xf32>
    %cst_114 = arith.constant 5.000000e-01 : f32
    %304 = vector.broadcast %cst_114 : f32 to vector<8x256xf32>
    %305 = arith.addf %303, %304 : vector<8x256xf32>
    %306 = vector.extract_strided_slice %297 {offsets = [0, 512], sizes = [8, 256], strides = [1, 1]} : vector<8x1024xf32> to vector<8x256xf32>
    %307 = math.tanh %306 : vector<8x256xf32>
    %308 = vector.extract_strided_slice %297 {offsets = [0, 768], sizes = [8, 256], strides = [1, 1]} : vector<8x1024xf32> to vector<8x256xf32>
    %cst_115 = arith.constant 5.000000e-01 : f32
    %309 = vector.broadcast %cst_115 : f32 to vector<8x256xf32>
    %310 = arith.mulf %309, %308 : vector<8x256xf32>
    %311 = math.tanh %310 : vector<8x256xf32>
    %cst_116 = arith.constant 5.000000e-01 : f32
    %312 = vector.broadcast %cst_116 : f32 to vector<8x256xf32>
    %313 = arith.mulf %312, %311 : vector<8x256xf32>
    %cst_117 = arith.constant 5.000000e-01 : f32
    %314 = vector.broadcast %cst_117 : f32 to vector<8x256xf32>
    %315 = arith.addf %313, %314 : vector<8x256xf32>
    %316 = vector.extract_strided_slice %297 {offsets = [0, 256], sizes = [8, 256], strides = [1, 1]} : vector<8x1024xf32> to vector<8x256xf32>
    %cst_118 = arith.constant 5.000000e-01 : f32
    %317 = vector.broadcast %cst_118 : f32 to vector<8x256xf32>
    %318 = arith.mulf %317, %316 : vector<8x256xf32>
    %319 = math.tanh %318 : vector<8x256xf32>
    %cst_119 = arith.constant 5.000000e-01 : f32
    %320 = vector.broadcast %cst_119 : f32 to vector<8x256xf32>
    %321 = arith.mulf %320, %319 : vector<8x256xf32>
    %cst_120 = arith.constant 5.000000e-01 : f32
    %322 = vector.broadcast %cst_120 : f32 to vector<8x256xf32>
    %323 = arith.addf %321, %322 : vector<8x256xf32>
    %324 = arith.mulf %323, %250 : vector<8x256xf32>
    %325 = arith.mulf %305, %307 : vector<8x256xf32>
    %326 = arith.addf %324, %325 : vector<8x256xf32>
    %327 = math.tanh %326 : vector<8x256xf32>
    %328 = arith.mulf %315, %327 : vector<8x256xf32>
    %329 = arith.truncf %328 : vector<8x256xf32> to vector<8x256xbf16>
    %c0_121 = arith.constant 0 : index
    %c0_122 = arith.constant 0 : index
    %330 = vector.load %arg8[%c0_121, %c0_122] : memref<256x1536xbf16, #tpu.memory_space<vmem>>, vector<256x1536xbf16>
    %cst_123 = arith.constant dense<0.000000e+00> : vector<8x1536xf32>
    %331 = tpu.matmul %329, %330, %cst_123 {dimension_numbers = #tpu.dot_dimension_numbers<[1], [0], [0], [1], [0, 0, 1, 1], [], []>} : vector<8x256xbf16>, vector<256x1536xbf16>, vector<8x1536xf32> -> vector<8x1536xf32>
    %332 = vector.extract_strided_slice %331 {offsets = [0, 0], sizes = [8, 1024], strides = [1, 1]} : vector<8x1536xf32> to vector<8x1024xf32>
    %333 = vector.extract_strided_slice %331 {offsets = [0, 1024], sizes = [8, 512], strides = [1, 1]} : vector<8x1536xf32> to vector<8x512xf32>
    %334 = vector.broadcast %11 : vector<1x512xf32> to vector<8x512xf32>
    %335 = arith.addf %333, %334 : vector<8x512xf32>
    %c0_124 = arith.constant 0 : index
    %c0_125 = arith.constant 0 : index
    %336 = vector.load %arg9[%c0_124, %c0_125] : memref<128x512xbf16, #tpu.memory_space<vmem>>, vector<128x512xbf16>
    %cst_126 = arith.constant dense<0.000000e+00> : vector<8x512xf32>
    %337 = tpu.matmul %294, %336, %cst_126 {dimension_numbers = #tpu.dot_dimension_numbers<[1], [0], [0], [1], [0, 0, 1, 1], [], []>} : vector<8x128xbf16>, vector<128x512xbf16>, vector<8x512xf32> -> vector<8x512xf32>
    %338 = arith.addf %335, %337 : vector<8x512xf32>
    %339 = vector.extract_strided_slice %338 {offsets = [0, 0], sizes = [8, 128], strides = [1, 1]} : vector<8x512xf32> to vector<8x128xf32>
    %cst_127 = arith.constant 5.000000e-01 : f32
    %340 = vector.broadcast %cst_127 : f32 to vector<8x128xf32>
    %341 = arith.mulf %340, %339 : vector<8x128xf32>
    %342 = math.tanh %341 : vector<8x128xf32>
    %cst_128 = arith.constant 5.000000e-01 : f32
    %343 = vector.broadcast %cst_128 : f32 to vector<8x128xf32>
    %344 = arith.mulf %343, %342 : vector<8x128xf32>
    %cst_129 = arith.constant 5.000000e-01 : f32
    %345 = vector.broadcast %cst_129 : f32 to vector<8x128xf32>
    %346 = arith.addf %344, %345 : vector<8x128xf32>
    %347 = vector.extract_strided_slice %338 {offsets = [0, 256], sizes = [8, 128], strides = [1, 1]} : vector<8x512xf32> to vector<8x128xf32>
    %348 = math.tanh %347 : vector<8x128xf32>
    %349 = vector.extract_strided_slice %338 {offsets = [0, 384], sizes = [8, 128], strides = [1, 1]} : vector<8x512xf32> to vector<8x128xf32>
    %cst_130 = arith.constant 5.000000e-01 : f32
    %350 = vector.broadcast %cst_130 : f32 to vector<8x128xf32>
    %351 = arith.mulf %350, %349 : vector<8x128xf32>
    %352 = math.tanh %351 : vector<8x128xf32>
    %cst_131 = arith.constant 5.000000e-01 : f32
    %353 = vector.broadcast %cst_131 : f32 to vector<8x128xf32>
    %354 = arith.mulf %353, %352 : vector<8x128xf32>
    %cst_132 = arith.constant 5.000000e-01 : f32
    %355 = vector.broadcast %cst_132 : f32 to vector<8x128xf32>
    %356 = arith.addf %354, %355 : vector<8x128xf32>
    %357 = vector.extract_strided_slice %338 {offsets = [0, 128], sizes = [8, 128], strides = [1, 1]} : vector<8x512xf32> to vector<8x128xf32>
    %cst_133 = arith.constant 5.000000e-01 : f32
    %358 = vector.broadcast %cst_133 : f32 to vector<8x128xf32>
    %359 = arith.mulf %358, %357 : vector<8x128xf32>
    %360 = math.tanh %359 : vector<8x128xf32>
    %cst_134 = arith.constant 5.000000e-01 : f32
    %361 = vector.broadcast %cst_134 : f32 to vector<8x128xf32>
    %362 = arith.mulf %361, %360 : vector<8x128xf32>
    %cst_135 = arith.constant 5.000000e-01 : f32
    %363 = vector.broadcast %cst_135 : f32 to vector<8x128xf32>
    %364 = arith.addf %362, %363 : vector<8x128xf32>
    %365 = arith.mulf %364, %291 : vector<8x128xf32>
    %366 = arith.mulf %346, %348 : vector<8x128xf32>
    %367 = arith.addf %365, %366 : vector<8x128xf32>
    %368 = math.tanh %367 : vector<8x128xf32>
    %369 = arith.mulf %356, %368 : vector<8x128xf32>
    %370 = arith.truncf %369 : vector<8x128xf32> to vector<8x128xbf16>
    %c32_136 = arith.constant 32 : index
    %c0_137 = arith.constant 0 : index
    %371 = vector.load %arg6[%c32_136, %c0_137] : memref<64x128xf32, #tpu.memory_space<vmem>>, vector<8x128xf32>
    tpu.vector_store %arg6[%c32_136, %c0_137], %369 {strides = array<i32>} : memref<64x128xf32, #tpu.memory_space<vmem>>, vector<8x128xf32>,
    %c40 = arith.constant 40 : index
    %c0_138 = arith.constant 0 : index
    %372 = vector.load %arg7[%c40, %c0_138] : memref<64x1024xf32, #tpu.memory_space<vmem>>, vector<8x1024xf32>
    %373 = arith.addf %372, %332 : vector<8x1024xf32>
    %374 = vector.extract_strided_slice %373 {offsets = [0, 0], sizes = [8, 256], strides = [1, 1]} : vector<8x1024xf32> to vector<8x256xf32>
    %cst_139 = arith.constant 5.000000e-01 : f32
    %375 = vector.broadcast %cst_139 : f32 to vector<8x256xf32>
    %376 = arith.mulf %375, %374 : vector<8x256xf32>
    %377 = math.tanh %376 : vector<8x256xf32>
    %cst_140 = arith.constant 5.000000e-01 : f32
    %378 = vector.broadcast %cst_140 : f32 to vector<8x256xf32>
    %379 = arith.mulf %378, %377 : vector<8x256xf32>
    %cst_141 = arith.constant 5.000000e-01 : f32
    %380 = vector.broadcast %cst_141 : f32 to vector<8x256xf32>
    %381 = arith.addf %379, %380 : vector<8x256xf32>
    %382 = vector.extract_strided_slice %373 {offsets = [0, 512], sizes = [8, 256], strides = [1, 1]} : vector<8x1024xf32> to vector<8x256xf32>
    %383 = math.tanh %382 : vector<8x256xf32>
    %384 = vector.extract_strided_slice %373 {offsets = [0, 768], sizes = [8, 256], strides = [1, 1]} : vector<8x1024xf32> to vector<8x256xf32>
    %cst_142 = arith.constant 5.000000e-01 : f32
    %385 = vector.broadcast %cst_142 : f32 to vector<8x256xf32>
    %386 = arith.mulf %385, %384 : vector<8x256xf32>
    %387 = math.tanh %386 : vector<8x256xf32>
    %cst_143 = arith.constant 5.000000e-01 : f32
    %388 = vector.broadcast %cst_143 : f32 to vector<8x256xf32>
    %389 = arith.mulf %388, %387 : vector<8x256xf32>
    %cst_144 = arith.constant 5.000000e-01 : f32
    %390 = vector.broadcast %cst_144 : f32 to vector<8x256xf32>
    %391 = arith.addf %389, %390 : vector<8x256xf32>
    %392 = vector.extract_strided_slice %373 {offsets = [0, 256], sizes = [8, 256], strides = [1, 1]} : vector<8x1024xf32> to vector<8x256xf32>
    %cst_145 = arith.constant 5.000000e-01 : f32
    %393 = vector.broadcast %cst_145 : f32 to vector<8x256xf32>
    %394 = arith.mulf %393, %392 : vector<8x256xf32>
    %395 = math.tanh %394 : vector<8x256xf32>
    %cst_146 = arith.constant 5.000000e-01 : f32
    %396 = vector.broadcast %cst_146 : f32 to vector<8x256xf32>
    %397 = arith.mulf %396, %395 : vector<8x256xf32>
    %cst_147 = arith.constant 5.000000e-01 : f32
    %398 = vector.broadcast %cst_147 : f32 to vector<8x256xf32>
    %399 = arith.addf %397, %398 : vector<8x256xf32>
    %400 = arith.mulf %399, %326 : vector<8x256xf32>
    %401 = arith.mulf %381, %383 : vector<8x256xf32>
    %402 = arith.addf %400, %401 : vector<8x256xf32>
    %403 = math.tanh %402 : vector<8x256xf32>
    %404 = arith.mulf %391, %403 : vector<8x256xf32>
    %405 = arith.truncf %404 : vector<8x256xf32> to vector<8x256xbf16>
    %c0_148 = arith.constant 0 : index
    %c0_149 = arith.constant 0 : index
    %406 = vector.load %arg8[%c0_148, %c0_149] : memref<256x1536xbf16, #tpu.memory_space<vmem>>, vector<256x1536xbf16>
    %cst_150 = arith.constant dense<0.000000e+00> : vector<8x1536xf32>
    %407 = tpu.matmul %405, %406, %cst_150 {dimension_numbers = #tpu.dot_dimension_numbers<[1], [0], [0], [1], [0, 0, 1, 1], [], []>} : vector<8x256xbf16>, vector<256x1536xbf16>, vector<8x1536xf32> -> vector<8x1536xf32>
    %408 = vector.extract_strided_slice %407 {offsets = [0, 0], sizes = [8, 1024], strides = [1, 1]} : vector<8x1536xf32> to vector<8x1024xf32>
    %409 = vector.extract_strided_slice %407 {offsets = [0, 1024], sizes = [8, 512], strides = [1, 1]} : vector<8x1536xf32> to vector<8x512xf32>
    %410 = vector.broadcast %11 : vector<1x512xf32> to vector<8x512xf32>
    %411 = arith.addf %409, %410 : vector<8x512xf32>
    %c0_151 = arith.constant 0 : index
    %c0_152 = arith.constant 0 : index
    %412 = vector.load %arg9[%c0_151, %c0_152] : memref<128x512xbf16, #tpu.memory_space<vmem>>, vector<128x512xbf16>
    %cst_153 = arith.constant dense<0.000000e+00> : vector<8x512xf32>
    %413 = tpu.matmul %370, %412, %cst_153 {dimension_numbers = #tpu.dot_dimension_numbers<[1], [0], [0], [1], [0, 0, 1, 1], [], []>} : vector<8x128xbf16>, vector<128x512xbf16>, vector<8x512xf32> -> vector<8x512xf32>
    %414 = arith.addf %411, %413 : vector<8x512xf32>
    %415 = vector.extract_strided_slice %414 {offsets = [0, 0], sizes = [8, 128], strides = [1, 1]} : vector<8x512xf32> to vector<8x128xf32>
    %cst_154 = arith.constant 5.000000e-01 : f32
    %416 = vector.broadcast %cst_154 : f32 to vector<8x128xf32>
    %417 = arith.mulf %416, %415 : vector<8x128xf32>
    %418 = math.tanh %417 : vector<8x128xf32>
    %cst_155 = arith.constant 5.000000e-01 : f32
    %419 = vector.broadcast %cst_155 : f32 to vector<8x128xf32>
    %420 = arith.mulf %419, %418 : vector<8x128xf32>
    %cst_156 = arith.constant 5.000000e-01 : f32
    %421 = vector.broadcast %cst_156 : f32 to vector<8x128xf32>
    %422 = arith.addf %420, %421 : vector<8x128xf32>
    %423 = vector.extract_strided_slice %414 {offsets = [0, 256], sizes = [8, 128], strides = [1, 1]} : vector<8x512xf32> to vector<8x128xf32>
    %424 = math.tanh %423 : vector<8x128xf32>
    %425 = vector.extract_strided_slice %414 {offsets = [0, 384], sizes = [8, 128], strides = [1, 1]} : vector<8x512xf32> to vector<8x128xf32>
    %cst_157 = arith.constant 5.000000e-01 : f32
    %426 = vector.broadcast %cst_157 : f32 to vector<8x128xf32>
    %427 = arith.mulf %426, %425 : vector<8x128xf32>
    %428 = math.tanh %427 : vector<8x128xf32>
    %cst_158 = arith.constant 5.000000e-01 : f32
    %429 = vector.broadcast %cst_158 : f32 to vector<8x128xf32>
    %430 = arith.mulf %429, %428 : vector<8x128xf32>
    %cst_159 = arith.constant 5.000000e-01 : f32
    %431 = vector.broadcast %cst_159 : f32 to vector<8x128xf32>
    %432 = arith.addf %430, %431 : vector<8x128xf32>
    %433 = vector.extract_strided_slice %414 {offsets = [0, 128], sizes = [8, 128], strides = [1, 1]} : vector<8x512xf32> to vector<8x128xf32>
    %cst_160 = arith.constant 5.000000e-01 : f32
    %434 = vector.broadcast %cst_160 : f32 to vector<8x128xf32>
    %435 = arith.mulf %434, %433 : vector<8x128xf32>
    %436 = math.tanh %435 : vector<8x128xf32>
    %cst_161 = arith.constant 5.000000e-01 : f32
    %437 = vector.broadcast %cst_161 : f32 to vector<8x128xf32>
    %438 = arith.mulf %437, %436 : vector<8x128xf32>
    %cst_162 = arith.constant 5.000000e-01 : f32
    %439 = vector.broadcast %cst_162 : f32 to vector<8x128xf32>
    %440 = arith.addf %438, %439 : vector<8x128xf32>
    %441 = arith.mulf %440, %367 : vector<8x128xf32>
    %442 = arith.mulf %422, %424 : vector<8x128xf32>
    %443 = arith.addf %441, %442 : vector<8x128xf32>
    %444 = math.tanh %443 : vector<8x128xf32>
    %445 = arith.mulf %432, %444 : vector<8x128xf32>
    %446 = arith.truncf %445 : vector<8x128xf32> to vector<8x128xbf16>
    %c40_163 = arith.constant 40 : index
    %c0_164 = arith.constant 0 : index
    %447 = vector.load %arg6[%c40_163, %c0_164] : memref<64x128xf32, #tpu.memory_space<vmem>>, vector<8x128xf32>
    tpu.vector_store %arg6[%c40_163, %c0_164], %445 {strides = array<i32>} : memref<64x128xf32, #tpu.memory_space<vmem>>, vector<8x128xf32>,
    %c48 = arith.constant 48 : index
    %c0_165 = arith.constant 0 : index
    %448 = vector.load %arg7[%c48, %c0_165] : memref<64x1024xf32, #tpu.memory_space<vmem>>, vector<8x1024xf32>
    %449 = arith.addf %448, %408 : vector<8x1024xf32>
    %450 = vector.extract_strided_slice %449 {offsets = [0, 0], sizes = [8, 256], strides = [1, 1]} : vector<8x1024xf32> to vector<8x256xf32>
    %cst_166 = arith.constant 5.000000e-01 : f32
    %451 = vector.broadcast %cst_166 : f32 to vector<8x256xf32>
    %452 = arith.mulf %451, %450 : vector<8x256xf32>
    %453 = math.tanh %452 : vector<8x256xf32>
    %cst_167 = arith.constant 5.000000e-01 : f32
    %454 = vector.broadcast %cst_167 : f32 to vector<8x256xf32>
    %455 = arith.mulf %454, %453 : vector<8x256xf32>
    %cst_168 = arith.constant 5.000000e-01 : f32
    %456 = vector.broadcast %cst_168 : f32 to vector<8x256xf32>
    %457 = arith.addf %455, %456 : vector<8x256xf32>
    %458 = vector.extract_strided_slice %449 {offsets = [0, 512], sizes = [8, 256], strides = [1, 1]} : vector<8x1024xf32> to vector<8x256xf32>
    %459 = math.tanh %458 : vector<8x256xf32>
    %460 = vector.extract_strided_slice %449 {offsets = [0, 768], sizes = [8, 256], strides = [1, 1]} : vector<8x1024xf32> to vector<8x256xf32>
    %cst_169 = arith.constant 5.000000e-01 : f32
    %461 = vector.broadcast %cst_169 : f32 to vector<8x256xf32>
    %462 = arith.mulf %461, %460 : vector<8x256xf32>
    %463 = math.tanh %462 : vector<8x256xf32>
    %cst_170 = arith.constant 5.000000e-01 : f32
    %464 = vector.broadcast %cst_170 : f32 to vector<8x256xf32>
    %465 = arith.mulf %464, %463 : vector<8x256xf32>
    %cst_171 = arith.constant 5.000000e-01 : f32
    %466 = vector.broadcast %cst_171 : f32 to vector<8x256xf32>
    %467 = arith.addf %465, %466 : vector<8x256xf32>
    %468 = vector.extract_strided_slice %449 {offsets = [0, 256], sizes = [8, 256], strides = [1, 1]} : vector<8x1024xf32> to vector<8x256xf32>
    %cst_172 = arith.constant 5.000000e-01 : f32
    %469 = vector.broadcast %cst_172 : f32 to vector<8x256xf32>
    %470 = arith.mulf %469, %468 : vector<8x256xf32>
    %471 = math.tanh %470 : vector<8x256xf32>
    %cst_173 = arith.constant 5.000000e-01 : f32
    %472 = vector.broadcast %cst_173 : f32 to vector<8x256xf32>
    %473 = arith.mulf %472, %471 : vector<8x256xf32>
    %cst_174 = arith.constant 5.000000e-01 : f32
    %474 = vector.broadcast %cst_174 : f32 to vector<8x256xf32>
    %475 = arith.addf %473, %474 : vector<8x256xf32>
    %476 = arith.mulf %475, %402 : vector<8x256xf32>
    %477 = arith.mulf %457, %459 : vector<8x256xf32>
    %478 = arith.addf %476, %477 : vector<8x256xf32>
    %479 = math.tanh %478 : vector<8x256xf32>
    %480 = arith.mulf %467, %479 : vector<8x256xf32>
    %481 = arith.truncf %480 : vector<8x256xf32> to vector<8x256xbf16>
    %c0_175 = arith.constant 0 : index
    %c0_176 = arith.constant 0 : index
    %482 = vector.load %arg8[%c0_175, %c0_176] : memref<256x1536xbf16, #tpu.memory_space<vmem>>, vector<256x1536xbf16>
    %cst_177 = arith.constant dense<0.000000e+00> : vector<8x1536xf32>
    %483 = tpu.matmul %481, %482, %cst_177 {dimension_numbers = #tpu.dot_dimension_numbers<[1], [0], [0], [1], [0, 0, 1, 1], [], []>} : vector<8x256xbf16>, vector<256x1536xbf16>, vector<8x1536xf32> -> vector<8x1536xf32>
    %484 = vector.extract_strided_slice %483 {offsets = [0, 0], sizes = [8, 1024], strides = [1, 1]} : vector<8x1536xf32> to vector<8x1024xf32>
    %485 = vector.extract_strided_slice %483 {offsets = [0, 1024], sizes = [8, 512], strides = [1, 1]} : vector<8x1536xf32> to vector<8x512xf32>
    %486 = vector.broadcast %11 : vector<1x512xf32> to vector<8x512xf32>
    %487 = arith.addf %485, %486 : vector<8x512xf32>
    %c0_178 = arith.constant 0 : index
    %c0_179 = arith.constant 0 : index
    %488 = vector.load %arg9[%c0_178, %c0_179] : memref<128x512xbf16, #tpu.memory_space<vmem>>, vector<128x512xbf16>
    %cst_180 = arith.constant dense<0.000000e+00> : vector<8x512xf32>
    %489 = tpu.matmul %446, %488, %cst_180 {dimension_numbers = #tpu.dot_dimension_numbers<[1], [0], [0], [1], [0, 0, 1, 1], [], []>} : vector<8x128xbf16>, vector<128x512xbf16>, vector<8x512xf32> -> vector<8x512xf32>
    %490 = arith.addf %487, %489 : vector<8x512xf32>
    %491 = vector.extract_strided_slice %490 {offsets = [0, 0], sizes = [8, 128], strides = [1, 1]} : vector<8x512xf32> to vector<8x128xf32>
    %cst_181 = arith.constant 5.000000e-01 : f32
    %492 = vector.broadcast %cst_181 : f32 to vector<8x128xf32>
    %493 = arith.mulf %492, %491 : vector<8x128xf32>
    %494 = math.tanh %493 : vector<8x128xf32>
    %cst_182 = arith.constant 5.000000e-01 : f32
    %495 = vector.broadcast %cst_182 : f32 to vector<8x128xf32>
    %496 = arith.mulf %495, %494 : vector<8x128xf32>
    %cst_183 = arith.constant 5.000000e-01 : f32
    %497 = vector.broadcast %cst_183 : f32 to vector<8x128xf32>
    %498 = arith.addf %496, %497 : vector<8x128xf32>
    %499 = vector.extract_strided_slice %490 {offsets = [0, 256], sizes = [8, 128], strides = [1, 1]} : vector<8x512xf32> to vector<8x128xf32>
    %500 = math.tanh %499 : vector<8x128xf32>
    %501 = vector.extract_strided_slice %490 {offsets = [0, 384], sizes = [8, 128], strides = [1, 1]} : vector<8x512xf32> to vector<8x128xf32>
    %cst_184 = arith.constant 5.000000e-01 : f32
    %502 = vector.broadcast %cst_184 : f32 to vector<8x128xf32>
    %503 = arith.mulf %502, %501 : vector<8x128xf32>
    %504 = math.tanh %503 : vector<8x128xf32>
    %cst_185 = arith.constant 5.000000e-01 : f32
    %505 = vector.broadcast %cst_185 : f32 to vector<8x128xf32>
    %506 = arith.mulf %505, %504 : vector<8x128xf32>
    %cst_186 = arith.constant 5.000000e-01 : f32
    %507 = vector.broadcast %cst_186 : f32 to vector<8x128xf32>
    %508 = arith.addf %506, %507 : vector<8x128xf32>
    %509 = vector.extract_strided_slice %490 {offsets = [0, 128], sizes = [8, 128], strides = [1, 1]} : vector<8x512xf32> to vector<8x128xf32>
    %cst_187 = arith.constant 5.000000e-01 : f32
    %510 = vector.broadcast %cst_187 : f32 to vector<8x128xf32>
    %511 = arith.mulf %510, %509 : vector<8x128xf32>
    %512 = math.tanh %511 : vector<8x128xf32>
    %cst_188 = arith.constant 5.000000e-01 : f32
    %513 = vector.broadcast %cst_188 : f32 to vector<8x128xf32>
    %514 = arith.mulf %513, %512 : vector<8x128xf32>
    %cst_189 = arith.constant 5.000000e-01 : f32
    %515 = vector.broadcast %cst_189 : f32 to vector<8x128xf32>
    %516 = arith.addf %514, %515 : vector<8x128xf32>
    %517 = arith.mulf %516, %443 : vector<8x128xf32>
    %518 = arith.mulf %498, %500 : vector<8x128xf32>
    %519 = arith.addf %517, %518 : vector<8x128xf32>
    %520 = math.tanh %519 : vector<8x128xf32>
    %521 = arith.mulf %508, %520 : vector<8x128xf32>
    %522 = arith.truncf %521 : vector<8x128xf32> to vector<8x128xbf16>
    %c48_190 = arith.constant 48 : index
    %c0_191 = arith.constant 0 : index
    %523 = vector.load %arg6[%c48_190, %c0_191] : memref<64x128xf32, #tpu.memory_space<vmem>>, vector<8x128xf32>
    tpu.vector_store %arg6[%c48_190, %c0_191], %521 {strides = array<i32>} : memref<64x128xf32, #tpu.memory_space<vmem>>, vector<8x128xf32>,
    %c56 = arith.constant 56 : index
    %c0_192 = arith.constant 0 : index
    %524 = vector.load %arg7[%c56, %c0_192] : memref<64x1024xf32, #tpu.memory_space<vmem>>, vector<8x1024xf32>
    %525 = arith.addf %524, %484 : vector<8x1024xf32>
    %526 = vector.extract_strided_slice %525 {offsets = [0, 0], sizes = [8, 256], strides = [1, 1]} : vector<8x1024xf32> to vector<8x256xf32>
    %cst_193 = arith.constant 5.000000e-01 : f32
    %527 = vector.broadcast %cst_193 : f32 to vector<8x256xf32>
    %528 = arith.mulf %527, %526 : vector<8x256xf32>
    %529 = math.tanh %528 : vector<8x256xf32>
    %cst_194 = arith.constant 5.000000e-01 : f32
    %530 = vector.broadcast %cst_194 : f32 to vector<8x256xf32>
    %531 = arith.mulf %530, %529 : vector<8x256xf32>
    %cst_195 = arith.constant 5.000000e-01 : f32
    %532 = vector.broadcast %cst_195 : f32 to vector<8x256xf32>
    %533 = arith.addf %531, %532 : vector<8x256xf32>
    %534 = vector.extract_strided_slice %525 {offsets = [0, 512], sizes = [8, 256], strides = [1, 1]} : vector<8x1024xf32> to vector<8x256xf32>
    %535 = math.tanh %534 : vector<8x256xf32>
    %536 = vector.extract_strided_slice %525 {offsets = [0, 768], sizes = [8, 256], strides = [1, 1]} : vector<8x1024xf32> to vector<8x256xf32>
    %cst_196 = arith.constant 5.000000e-01 : f32
    %537 = vector.broadcast %cst_196 : f32 to vector<8x256xf32>
    %538 = arith.mulf %537, %536 : vector<8x256xf32>
    %539 = math.tanh %538 : vector<8x256xf32>
    %cst_197 = arith.constant 5.000000e-01 : f32
    %540 = vector.broadcast %cst_197 : f32 to vector<8x256xf32>
    %541 = arith.mulf %540, %539 : vector<8x256xf32>
    %cst_198 = arith.constant 5.000000e-01 : f32
    %542 = vector.broadcast %cst_198 : f32 to vector<8x256xf32>
    %543 = arith.addf %541, %542 : vector<8x256xf32>
    %544 = vector.extract_strided_slice %525 {offsets = [0, 256], sizes = [8, 256], strides = [1, 1]} : vector<8x1024xf32> to vector<8x256xf32>
    %cst_199 = arith.constant 5.000000e-01 : f32
    %545 = vector.broadcast %cst_199 : f32 to vector<8x256xf32>
    %546 = arith.mulf %545, %544 : vector<8x256xf32>
    %547 = math.tanh %546 : vector<8x256xf32>
    %cst_200 = arith.constant 5.000000e-01 : f32
    %548 = vector.broadcast %cst_200 : f32 to vector<8x256xf32>
    %549 = arith.mulf %548, %547 : vector<8x256xf32>
    %cst_201 = arith.constant 5.000000e-01 : f32
    %550 = vector.broadcast %cst_201 : f32 to vector<8x256xf32>
    %551 = arith.addf %549, %550 : vector<8x256xf32>
    %552 = arith.mulf %551, %478 : vector<8x256xf32>
    %553 = arith.mulf %533, %535 : vector<8x256xf32>
    %554 = arith.addf %552, %553 : vector<8x256xf32>
    %555 = math.tanh %554 : vector<8x256xf32>
    %556 = arith.mulf %543, %555 : vector<8x256xf32>
    %557 = arith.truncf %556 : vector<8x256xf32> to vector<8x256xbf16>
    %c0_202 = arith.constant 0 : index
    %c0_203 = arith.constant 0 : index
    %558 = vector.load %arg8[%c0_202, %c0_203] : memref<256x1536xbf16, #tpu.memory_space<vmem>>, vector<256x1536xbf16>
    %cst_204 = arith.constant dense<0.000000e+00> : vector<8x1536xf32>
    %559 = tpu.matmul %557, %558, %cst_204 {dimension_numbers = #tpu.dot_dimension_numbers<[1], [0], [0], [1], [0, 0, 1, 1], [], []>} : vector<8x256xbf16>, vector<256x1536xbf16>, vector<8x1536xf32> -> vector<8x1536xf32>
    %560 = vector.extract_strided_slice %559 {offsets = [0, 1024], sizes = [8, 512], strides = [1, 1]} : vector<8x1536xf32> to vector<8x512xf32>
    %561 = vector.broadcast %11 : vector<1x512xf32> to vector<8x512xf32>
    %562 = arith.addf %560, %561 : vector<8x512xf32>
    %c0_205 = arith.constant 0 : index
    %c0_206 = arith.constant 0 : index
    %563 = vector.load %arg9[%c0_205, %c0_206] : memref<128x512xbf16, #tpu.memory_space<vmem>>, vector<128x512xbf16>
    %cst_207 = arith.constant dense<0.000000e+00> : vector<8x512xf32>
    %564 = tpu.matmul %522, %563, %cst_207 {dimension_numbers = #tpu.dot_dimension_numbers<[1], [0], [0], [1], [0, 0, 1, 1], [], []>} : vector<8x128xbf16>, vector<128x512xbf16>, vector<8x512xf32> -> vector<8x512xf32>
    %565 = arith.addf %562, %564 : vector<8x512xf32>
    %566 = vector.extract_strided_slice %565 {offsets = [0, 0], sizes = [8, 128], strides = [1, 1]} : vector<8x512xf32> to vector<8x128xf32>
    %cst_208 = arith.constant 5.000000e-01 : f32
    %567 = vector.broadcast %cst_208 : f32 to vector<8x128xf32>
    %568 = arith.mulf %567, %566 : vector<8x128xf32>
    %569 = math.tanh %568 : vector<8x128xf32>
    %cst_209 = arith.constant 5.000000e-01 : f32
    %570 = vector.broadcast %cst_209 : f32 to vector<8x128xf32>
    %571 = arith.mulf %570, %569 : vector<8x128xf32>
    %cst_210 = arith.constant 5.000000e-01 : f32
    %572 = vector.broadcast %cst_210 : f32 to vector<8x128xf32>
    %573 = arith.addf %571, %572 : vector<8x128xf32>
    %574 = vector.extract_strided_slice %565 {offsets = [0, 256], sizes = [8, 128], strides = [1, 1]} : vector<8x512xf32> to vector<8x128xf32>
    %575 = math.tanh %574 : vector<8x128xf32>
    %576 = vector.extract_strided_slice %565 {offsets = [0, 384], sizes = [8, 128], strides = [1, 1]} : vector<8x512xf32> to vector<8x128xf32>
    %cst_211 = arith.constant 5.000000e-01 : f32
    %577 = vector.broadcast %cst_211 : f32 to vector<8x128xf32>
    %578 = arith.mulf %577, %576 : vector<8x128xf32>
    %579 = math.tanh %578 : vector<8x128xf32>
    %cst_212 = arith.constant 5.000000e-01 : f32
    %580 = vector.broadcast %cst_212 : f32 to vector<8x128xf32>
    %581 = arith.mulf %580, %579 : vector<8x128xf32>
    %cst_213 = arith.constant 5.000000e-01 : f32
    %582 = vector.broadcast %cst_213 : f32 to vector<8x128xf32>
    %583 = arith.addf %581, %582 : vector<8x128xf32>
    %584 = vector.extract_strided_slice %565 {offsets = [0, 128], sizes = [8, 128], strides = [1, 1]} : vector<8x512xf32> to vector<8x128xf32>
    %cst_214 = arith.constant 5.000000e-01 : f32
    %585 = vector.broadcast %cst_214 : f32 to vector<8x128xf32>
    %586 = arith.mulf %585, %584 : vector<8x128xf32>
    %587 = math.tanh %586 : vector<8x128xf32>
    %cst_215 = arith.constant 5.000000e-01 : f32
    %588 = vector.broadcast %cst_215 : f32 to vector<8x128xf32>
    %589 = arith.mulf %588, %587 : vector<8x128xf32>
    %cst_216 = arith.constant 5.000000e-01 : f32
    %590 = vector.broadcast %cst_216 : f32 to vector<8x128xf32>
    %591 = arith.addf %589, %590 : vector<8x128xf32>
    %592 = arith.mulf %591, %519 : vector<8x128xf32>
    %593 = arith.mulf %573, %575 : vector<8x128xf32>
    %594 = arith.addf %592, %593 : vector<8x128xf32>
    %595 = math.tanh %594 : vector<8x128xf32>
    %596 = arith.mulf %583, %595 : vector<8x128xf32>
    %c56_217 = arith.constant 56 : index
    %c0_218 = arith.constant 0 : index
    %597 = vector.load %arg6[%c56_217, %c0_218] : memref<64x128xf32, #tpu.memory_space<vmem>>, vector<8x128xf32>
    tpu.vector_store %arg6[%c56_217, %c0_218], %596 {strides = array<i32>} : memref<64x128xf32, #tpu.memory_space<vmem>>, vector<8x128xf32>,
    return
  }
}

</mosaic_0001>

<llo_original>
// kernel: voice_conversion_forward.1
$region0: #{voice_conversion_forward.1}
  #allocation0 [shape = 'u32[]', space=smem, size = 0x4, offset = 0x4, fixed_abs, tag = 'smem constant byte address 0x4 - core index']
  #allocation1 [shape = 'u32[144,128]{1,0:T(1,128)}', space=vmem, size = 0x12000, scoped, tag = 'internal scratch']
  #allocation2 [shape = 'f32[64,1024]{1,0:T(8,128)}', space=vmem, size = 0x40000, scoped, tag = 'scratch operand']
  #allocation3 [shape = 'bf16[256,1536]{1,0:T(16,128)(2,1)}', space=vmem, size = 0xc0000, scoped, tag = 'scratch operand']
  #allocation4 [shape = 'bf16[128,512]{1,0:T(16,128)(2,1)}', space=vmem, size = 0x20000, scoped, tag = 'scratch operand']
  #allocation5 [shape = 's32[2]{0}', space=sflag, size = 0x8, scoped, tag = 'scratch operand']
  #allocation8 [shape = 's32[]', space=sflag, size = 0x4, offset = 0, fixed_abs, tag = 'sflag constant byte address 0x0 - dummy sync flag']
  #allocation10 [shape = 's32[]', space=sflag, size = 0x4, offset = 0, fixed_abs, tag = 'sflag constant byte address 0x0 - dummy sync flag']
  %s0 = inlined_call_operand.vmem [shape: bf16[64,128], index: 0, kind: input, shape index: {}]
  %s1 = inlined_call_operand.hbm [shape: bf16[128,1024], index: 1, kind: input, shape index: {}]
  %s2 = inlined_call_operand.vmem [shape: f32[1,1024], index: 2, kind: input, shape index: {}]
  %s3 = inlined_call_operand.vmem [shape: f32[1,512], index: 3, kind: input, shape index: {}]
  %s4 = inlined_call_operand.hbm [shape: bf16[256,1536], index: 4, kind: input, shape index: {}]
  %s5 = inlined_call_operand.hbm [shape: bf16[128,512], index: 5, kind: input, shape index: {}]
  %s6 = inlined_call_operand.vmem [shape: f32[64,128], index: 6, kind: output, shape index: {}]
  %s7 = sld [smem:[#allocation0]]
  $region30: #{voice_conversion_forward.1} parent=0
    _
  %s9 = ssub.s32 1, %s7
  %s10 = scalar_select 0, %s9, %s7
  $region1: #{voice_conversion_forward.1} parent=0
    #allocation6 [shape = 'u8[262144]{0}', space=vmem, size = 0x40000, scoped, tag = 'input window, operand 1, single buffered']
    #allocation7 [shape = 's32[1]{0}', space=sflag, size = 0x4, scoped, tag = 'scoped memory for voice_conversion_forward.1']
    #allocation9 [shape = 'u32[9]{0}', space=smem, size = 0x24, scoped, tag = 'DMA stride descriptor']
    #allocation11 [shape = 'u32[9]{0}', space=smem, size = 0x24, scoped, tag = 'DMA stride descriptor']
    %11 = vsyncpa [#allocation7], 0
    // Predicated region
    $region2: #{voice_conversion_forward.1} parent=1 // pred_check
      _
    $region3: #{voice_conversion_forward.1} parent=1 // pred_check_branch
      %13 = sbr.rel (0) target = $region5
    $region4: #{voice_conversion_forward.1} parent=1 // pred_region
      _
    $region5: #{voice_conversion_forward.1} parent=1 // pred_fallthru
      _
    // Predicated region
    $region6: #{voice_conversion_forward.1} parent=1 // pred_check
      _
    $region7: #{voice_conversion_forward.1} parent=1 // pred_check_branch
      %15 = sbr.rel (0) target = $region9
    $region8: #{voice_conversion_forward.1} parent=1 // pred_region
      %s17 = ssub.s32 8192, 8192
      %18 = vsyncadd [#allocation7], %s17
      %s19 = sshll.u32 [#allocation6], 4
      %s20 = int_to_ptr.vmem [resolvable:$true] %s19
      %25 = dma.hbm_to_vmem [thread:$0]  %s1, 8192, %s20, [#allocation7], 512, 512, 32
    $region9: #{voice_conversion_forward.1} parent=1 // pred_fallthru
      _
    // Predicated region
    $region10: #{voice_conversion_forward.1} parent=1 // pred_check
      _
    $region11: #{voice_conversion_forward.1} parent=1 // pred_check_branch
      %27 = sbr.rel (0) target = $region13
    $region12: #{voice_conversion_forward.1} parent=1 // pred_region
      _
    $region13: #{voice_conversion_forward.1} parent=1 // pred_fallthru
      _
    // Predicated region
    $region14: #{voice_conversion_forward.1} parent=1 // pred_check
      _
    $region15: #{voice_conversion_forward.1} parent=1 // pred_check_branch
      %29 = sbr.rel (0) target = $region17
    $region16: #{voice_conversion_forward.1} parent=1 // pred_region
      _
    $region17: #{voice_conversion_forward.1} parent=1 // pred_fallthru
      _
    // Predicated region
    $region18: #{voice_conversion_forward.1} parent=1 // pred_check
      _
    $region19: #{voice_conversion_forward.1} parent=1 // pred_check_branch
      %31 = sbr.rel (0) target = $region21
    $region20: #{voice_conversion_forward.1} parent=1 // pred_region
      %32 = dma.done [#allocation7], 8192
    $region21: #{voice_conversion_forward.1} parent=1 // pred_fallthru
      _
    %s35 = sshll.u32 1, 14
    %s36 = sxor.u32 4294967295, %s35
    %s38 = sld [smem:[#allocation0]]
    %s39 = sadd.s32 2, %s38
    %s41 = sshll.u32 7, 26
    %s42 = sxor.u32 4294967295, %s41
    %s43 = sand.u32 0, %s42
    %s44 = sshll.u32 %s39, 26
    %s45 = sor.u32 %s43, %s44
    %s46 = sshll.u32 [#allocation3], 4
    %s47 = int_to_ptr.vmem [resolvable:$true] %s46
    %50 = sst [smem:[#allocation9]] 1536
    %s51 = scalar_lea.smem [#allocation9], 1
    %52 = sst [smem:[%s51]] 1536
    %s53 = scalar_lea.smem [#allocation9], 2
    %54 = sst [smem:[%s53]] 12
    %s55 = scalar_lea.smem [#allocation9], 3
    %56 = sst [smem:[%s55]] 64
    %s57 = scalar_lea.smem [#allocation9], 4
    %58 = sst [smem:[%s57]] 128
    %s59 = scalar_lea.smem [#allocation9], 5
    %60 = sst [smem:[%s59]] 2
    %s61 = scalar_lea.smem [#allocation9], 6
    %62 = sst [smem:[%s61]] 768
    %s63 = scalar_lea.smem [#allocation9], 7
    %64 = sst [smem:[%s63]] 64
    %s65 = scalar_lea.smem [#allocation9], 8
    %66 = sst [smem:[%s65]] 4
    %68 = dma.general %s4, 24576, %s47, [#allocation5], [#allocation8], [#allocation9], %s45, 0
    %s69 = scalar_lea.sflag [#allocation5], 1
    %s71 = sshll.u32 1, 14
    %s72 = sxor.u32 4294967295, %s71
    %s74 = sadd.s32 2, %s38
    %s76 = sshll.u32 7, 26
    %s77 = sxor.u32 4294967295, %s76
    %s78 = sand.u32 0, %s77
    %s79 = sshll.u32 %s74, 26
    %s80 = sor.u32 %s78, %s79
    %s81 = sshll.u32 [#allocation4], 4
    %s82 = int_to_ptr.vmem [resolvable:$true] %s81
    %85 = sst [smem:[#allocation11]] 512
    %s86 = scalar_lea.smem [#allocation11], 1
    %87 = sst [smem:[%s86]] 512
    %s88 = scalar_lea.smem [#allocation11], 2
    %89 = sst [smem:[%s88]] 4
    %s90 = scalar_lea.smem [#allocation11], 3
    %91 = sst [smem:[%s90]] 64
    %s92 = scalar_lea.smem [#allocation11], 4
    %93 = sst [smem:[%s92]] 128
    %s94 = scalar_lea.smem [#allocation11], 5
    %95 = sst [smem:[%s94]] 2
    %s96 = scalar_lea.smem [#allocation11], 6
    %97 = sst [smem:[%s96]] 256
    %s98 = scalar_lea.smem [#allocation11], 7
    %99 = sst [smem:[%s98]] 64
    %s100 = scalar_lea.smem [#allocation11], 8
    %101 = sst [smem:[%s100]] 4
    %103 = dma.general %s5, 4096, %s82, %s69, [#allocation10], [#allocation11], %s80, 0
    %v104 = vld [vmem:[%s0] sm:$0xf]
    %v105 = vld [vmem:[%s0 + $0x4] sm:$0xf]
    %v106 = vld [vmem:[%s0 + $0x8] sm:$0xf]
    %v107 = vld [vmem:[%s0 + $0xc] sm:$0xf]
    %v108 = vld [vmem:[%s0 + $0x10] sm:$0xf]
    %v109 = vld [vmem:[%s0 + $0x14] sm:$0xf]
    %v110 = vld [vmem:[%s0 + $0x18] sm:$0xf]
    %v111 = vld [vmem:[%s0 + $0x1c] sm:$0xf]
    %v112 = vld [vmem:[#allocation6] sm:$0xff]
    %v113 = vld [vmem:[#allocation6 + $0x8] sm:$0xff]
    %v114 = vld [vmem:[#allocation6 + $0x10] sm:$0xff]
    %v115 = vld [vmem:[#allocation6 + $0x18] sm:$0xff]
    %v116 = vld [vmem:[#allocation6 + $0x20] sm:$0xff]
    %v117 = vld [vmem:[#allocation6 + $0x28] sm:$0xff]
    %v118 = vld [vmem:[#allocation6 + $0x30] sm:$0xff]
    %v119 = vld [vmem:[#allocation6 + $0x38] sm:$0xff]
    %v120 = vld [vmem:[#allocation6 + $0x40] sm:$0xff]
    %v121 = vld [vmem:[#allocation6 + $0x48] sm:$0xff]
    %v122 = vld [vmem:[#allocation6 + $0x50] sm:$0xff]
    %v123 = vld [vmem:[#allocation6 + $0x58] sm:$0xff]
    %v124 = vld [vmem:[#allocation6 + $0x60] sm:$0xff]
    %v125 = vld [vmem:[#allocation6 + $0x68] sm:$0xff]
    %v126 = vld [vmem:[#allocation6 + $0x70] sm:$0xff]
    %v127 = vld [vmem:[#allocation6 + $0x78] sm:$0xff]
    %v128 = vld [vmem:[#allocation6 + $0x80] sm:$0xff]
    %v129 = vld [vmem:[#allocation6 + $0x88] sm:$0xff]
    %v130 = vld [vmem:[#allocation6 + $0x90] sm:$0xff]
    %v131 = vld [vmem:[#allocation6 + $0x98] sm:$0xff]
    %v132 = vld [vmem:[#allocation6 + $0xa0] sm:$0xff]
    %v133 = vld [vmem:[#allocation6 + $0xa8] sm:$0xff]
    %v134 = vld [vmem:[#allocation6 + $0xb0] sm:$0xff]
    %v135 = vld [vmem:[#allocation6 + $0xb8] sm:$0xff]
    %v136 = vld [vmem:[#allocation6 + $0xc0] sm:$0xff]
    %v137 = vld [vmem:[#allocation6 + $0xc8] sm:$0xff]
    %v138 = vld [vmem:[#allocation6 + $0xd0] sm:$0xff]
    %v139 = vld [vmem:[#allocation6 + $0xd8] sm:$0xff]
    %v140 = vld [vmem:[#allocation6 + $0xe0] sm:$0xff]
    %v141 = vld [vmem:[#allocation6 + $0xe8] sm:$0xff]
    %v142 = vld [vmem:[#allocation6 + $0xf0] sm:$0xff]
    %v143 = vld [vmem:[#allocation6 + $0xf8] sm:$0xff]
    %v144 = vld [vmem:[#allocation6 + $0x100] sm:$0xff]
    %v145 = vld [vmem:[#allocation6 + $0x108] sm:$0xff]
    %v146 = vld [vmem:[#allocation6 + $0x110] sm:$0xff]
    %v147 = vld [vmem:[#allocation6 + $0x118] sm:$0xff]
    %v148 = vld [vmem:[#allocation6 + $0x120] sm:$0xff]
    %v149 = vld [vmem:[#allocation6 + $0x128] sm:$0xff]
    %v150 = vld [vmem:[#allocation6 + $0x130] sm:$0xff]
    %v151 = vld [vmem:[#allocation6 + $0x138] sm:$0xff]
    %v152 = vld [vmem:[#allocation6 + $0x140] sm:$0xff]
    %v153 = vld [vmem:[#allocation6 + $0x148] sm:$0xff]
    %v154 = vld [vmem:[#allocation6 + $0x150] sm:$0xff]
    %v155 = vld [vmem:[#allocation6 + $0x158] sm:$0xff]
    %v156 = vld [vmem:[#allocation6 + $0x160] sm:$0xff]
    %v157 = vld [vmem:[#allocation6 + $0x168] sm:$0xff]
    %v158 = vld [vmem:[#allocation6 + $0x170] sm:$0xff]
    %v159 = vld [vmem:[#allocation6 + $0x178] sm:$0xff]
    %v160 = vld [vmem:[#allocation6 + $0x180] sm:$0xff]
    %v161 = vld [vmem:[#allocation6 + $0x188] sm:$0xff]
    %v162 = vld [vmem:[#allocation6 + $0x190] sm:$0xff]
    %v163 = vld [vmem:[#allocation6 + $0x198] sm:$0xff]
    %v164 = vld [vmem:[#allocation6 + $0x1a0] sm:$0xff]
    %v165 = vld [vmem:[#allocation6 + $0x1a8] sm:$0xff]
    %v166 = vld [vmem:[#allocation6 + $0x1b0] sm:$0xff]
    %v167 = vld [vmem:[#allocation6 + $0x1b8] sm:$0xff]
    %v168 = vld [vmem:[#allocation6 + $0x1c0] sm:$0xff]
    %v169 = vld [vmem:[#allocation6 + $0x1c8] sm:$0xff]
    %v170 = vld [vmem:[#allocation6 + $0x1d0] sm:$0xff]
    %v171 = vld [vmem:[#allocation6 + $0x1d8] sm:$0xff]
    %v172 = vld [vmem:[#allocation6 + $0x1e0] sm:$0xff]
    %v173 = vld [vmem:[#allocation6 + $0x1e8] sm:$0xff]
    %v174 = vld [vmem:[#allocation6 + $0x1f0] sm:$0xff]
    %v175 = vld [vmem:[#allocation6 + $0x1f8] sm:$0xff]
    %v176 = vld [vmem:[%s2] sm:$0xff]
    %v178 = vlaneseq
    %v179 = vshrl.u32 %v178, 7
    %v180 = vsub.s32 0, %v179
    %v181 = vrot.slane %v176, %v180
    %v182 = vlaneseq
    %v183 = vshrl.u32 %v182, 7
    %v184 = vsub.s32 1, %v183
    %v185 = vrot.slane %v176, %v184
    %v186 = vlaneseq
    %v187 = vshrl.u32 %v186, 7
    %v188 = vsub.s32 2, %v187
    %v189 = vrot.slane %v176, %v188
    %v190 = vlaneseq
    %v191 = vshrl.u32 %v190, 7
    %v192 = vsub.s32 3, %v191
    %v193 = vrot.slane %v176, %v192
    %v194 = vlaneseq
    %v195 = vshrl.u32 %v194, 7
    %v196 = vsub.s32 4, %v195
    %v197 = vrot.slane %v176, %v196
    %v198 = vlaneseq
    %v199 = vshrl.u32 %v198, 7
    %v200 = vsub.s32 5, %v199
    %v201 = vrot.slane %v176, %v200
    %v202 = vlaneseq
    %v203 = vshrl.u32 %v202, 7
    %v204 = vsub.s32 6, %v203
    %v205 = vrot.slane %v176, %v204
    %v206 = vlaneseq
    %v207 = vshrl.u32 %v206, 7
    %v208 = vsub.s32 7, %v207
    %v209 = vrot.slane %v176, %v208
    %v226 = vunpack.c.l.b16 %v104
    %v227 = vunpack.c.l.b16 %v105
    %v228 = vunpack.c.l.b16 %v106
    %v229 = vunpack.c.l.b16 %v107
    %v230 = vunpack.c.l.b16 %v108
    %v231 = vunpack.c.l.b16 %v109
    %v232 = vunpack.c.l.b16 %v110
    %v233 = vunpack.c.l.b16 %v111
    %v234 = vpack.c.b16 %v227, %v226
    %v235 = vpack.c.b16 %v229, %v228
    %v236 = vpack.c.b16 %v231, %v230
    %v237 = vpack.c.b16 %v233, %v232
    %v306 = vunpack.c.l.b16 %v112
    %v307 = vunpack.c.h.b16 %v112
    %v308 = vunpack.c.l.b16 %v113
    %v309 = vunpack.c.h.b16 %v113
    %v310 = vunpack.c.l.b16 %v114
    %v311 = vunpack.c.h.b16 %v114
    %v312 = vunpack.c.l.b16 %v115
    %v313 = vunpack.c.h.b16 %v115
    %v314 = vunpack.c.l.b16 %v116
    %v315 = vunpack.c.h.b16 %v116
    %v316 = vunpack.c.l.b16 %v117
    %v317 = vunpack.c.h.b16 %v117
    %v318 = vunpack.c.l.b16 %v118
    %v319 = vunpack.c.h.b16 %v118
    %v320 = vunpack.c.l.b16 %v119
    %v321 = vunpack.c.h.b16 %v119
    %v322 = vunpack.c.l.b16 %v120
    %v323 = vunpack.c.h.b16 %v120
    %v324 = vunpack.c.l.b16 %v121
    %v325 = vunpack.c.h.b16 %v121
    %v326 = vunpack.c.l.b16 %v122
    %v327 = vunpack.c.h.b16 %v122
    %v328 = vunpack.c.l.b16 %v123
    %v329 = vunpack.c.h.b16 %v123
    %v330 = vunpack.c.l.b16 %v124
    %v331 = vunpack.c.h.b16 %v124
    %v332 = vunpack.c.l.b16 %v125
    %v333 = vunpack.c.h.b16 %v125
    %v334 = vunpack.c.l.b16 %v126
    %v335 = vunpack.c.h.b16 %v126
    %v336 = vunpack.c.l.b16 %v127
    %v337 = vunpack.c.h.b16 %v127
    %v338 = vunpack.c.l.b16 %v128
    %v339 = vunpack.c.h.b16 %v128
    %v340 = vunpack.c.l.b16 %v129
    %v341 = vunpack.c.h.b16 %v129
    %v342 = vunpack.c.l.b16 %v130
    %v343 = vunpack.c.h.b16 %v130
    %v344 = vunpack.c.l.b16 %v131
    %v345 = vunpack.c.h.b16 %v131
    %v346 = vunpack.c.l.b16 %v132
    %v347 = vunpack.c.h.b16 %v132
    %v348 = vunpack.c.l.b16 %v133
    %v349 = vunpack.c.h.b16 %v133
    %v350 = vunpack.c.l.b16 %v134
    %v351 = vunpack.c.h.b16 %v134
    %v352 = vunpack.c.l.b16 %v135
    %v353 = vunpack.c.h.b16 %v135
    %v354 = vunpack.c.l.b16 %v136
    %v355 = vunpack.c.h.b16 %v136
    %v356 = vunpack.c.l.b16 %v137
    %v357 = vunpack.c.h.b16 %v137
    %v358 = vunpack.c.l.b16 %v138
    %v359 = vunpack.c.h.b16 %v138
    %v360 = vunpack.c.l.b16 %v139
    %v361 = vunpack.c.h.b16 %v139
    %v362 = vunpack.c.l.b16 %v140
    %v363 = vunpack.c.h.b16 %v140
    %v364 = vunpack.c.l.b16 %v141
    %v365 = vunpack.c.h.b16 %v141
    %v366 = vunpack.c.l.b16 %v142
    %v367 = vunpack.c.h.b16 %v142
    %v368 = vunpack.c.l.b16 %v143
    %v369 = vunpack.c.h.b16 %v143
    %v370 = vunpack.c.l.b16 %v144
    %v371 = vunpack.c.h.b16 %v144
    %v372 = vunpack.c.l.b16 %v145
    %v373 = vunpack.c.h.b16 %v145
    %v374 = vunpack.c.l.b16 %v146
    %v375 = vunpack.c.h.b16 %v146
    %v376 = vunpack.c.l.b16 %v147
    %v377 = vunpack.c.h.b16 %v147
    %v378 = vunpack.c.l.b16 %v148
    %v379 = vunpack.c.h.b16 %v148
    %v380 = vunpack.c.l.b16 %v149
    %v381 = vunpack.c.h.b16 %v149
    %v382 = vunpack.c.l.b16 %v150
    %v383 = vunpack.c.h.b16 %v150
    %v384 = vunpack.c.l.b16 %v151
    %v385 = vunpack.c.h.b16 %v151
    %v386 = vunpack.c.l.b16 %v152
    %v387 = vunpack.c.h.b16 %v152
    %v388 = vunpack.c.l.b16 %v153
    %v389 = vunpack.c.h.b16 %v153
    %v390 = vunpack.c.l.b16 %v154
    %v391 = vunpack.c.h.b16 %v154
    %v392 = vunpack.c.l.b16 %v155
    %v393 = vunpack.c.h.b16 %v155
    %v394 = vunpack.c.l.b16 %v156
    %v395 = vunpack.c.h.b16 %v156
    %v396 = vunpack.c.l.b16 %v157
    %v397 = vunpack.c.h.b16 %v157
    %v398 = vunpack.c.l.b16 %v158
    %v399 = vunpack.c.h.b16 %v158
    %v400 = vunpack.c.l.b16 %v159
    %v401 = vunpack.c.h.b16 %v159
    %v402 = vunpack.c.l.b16 %v160
    %v403 = vunpack.c.h.b16 %v160
    %v404 = vunpack.c.l.b16 %v161
    %v405 = vunpack.c.h.b16 %v161
    %v406 = vunpack.c.l.b16 %v162
    %v407 = vunpack.c.h.b16 %v162
    %v408 = vunpack.c.l.b16 %v163
    %v409 = vunpack.c.h.b16 %v163
    %v410 = vunpack.c.l.b16 %v164
    %v411 = vunpack.c.h.b16 %v164
    %v412 = vunpack.c.l.b16 %v165
    %v413 = vunpack.c.h.b16 %v165
    %v414 = vunpack.c.l.b16 %v166
    %v415 = vunpack.c.h.b16 %v166
    %v416 = vunpack.c.l.b16 %v167
    %v417 = vunpack.c.h.b16 %v167
    %v418 = vunpack.c.l.b16 %v168
    %v419 = vunpack.c.h.b16 %v168
    %v420 = vunpack.c.l.b16 %v169
    %v421 = vunpack.c.h.b16 %v169
    %v422 = vunpack.c.l.b16 %v170
    %v423 = vunpack.c.h.b16 %v170
    %v424 = vunpack.c.l.b16 %v171
    %v425 = vunpack.c.h.b16 %v171
    %v426 = vunpack.c.l.b16 %v172
    %v427 = vunpack.c.h.b16 %v172
    %v428 = vunpack.c.l.b16 %v173
    %v429 = vunpack.c.h.b16 %v173
    %v430 = vunpack.c.l.b16 %v174
    %v431 = vunpack.c.h.b16 %v174
    %v432 = vunpack.c.l.b16 %v175
    %v433 = vunpack.c.h.b16 %v175
    %v434 = vpack.c.b16 %v314, %v306
    %v435 = vpack.c.b16 %v315, %v307
    %v436 = vpack.c.b16 %v316, %v308
    %v437 = vpack.c.b16 %v317, %v309
    %v438 = vpack.c.b16 %v318, %v310
    %v439 = vpack.c.b16 %v319, %v311
    %v440 = vpack.c.b16 %v320, %v312
    %v441 = vpack.c.b16 %v321, %v313
    %v442 = vpack.c.b16 %v330, %v322
    %v443 = vpack.c.b16 %v331, %v323
    %v444 = vpack.c.b16 %v332, %v324
    %v445 = vpack.c.b16 %v333, %v325
    %v446 = vpack.c.b16 %v334, %v326
    %v447 = vpack.c.b16 %v335, %v327
    %v448 = vpack.c.b16 %v336, %v328
    %v449 = vpack.c.b16 %v337, %v329
    %v450 = vpack.c.b16 %v346, %v338
    %v451 = vpack.c.b16 %v347, %v339
    %v452 = vpack.c.b16 %v348, %v340
    %v453 = vpack.c.b16 %v349, %v341
    %v454 = vpack.c.b16 %v350, %v342
    %v455 = vpack.c.b16 %v351, %v343
    %v456 = vpack.c.b16 %v352, %v344
    %v457 = vpack.c.b16 %v353, %v345
    %v458 = vpack.c.b16 %v362, %v354
    %v459 = vpack.c.b16 %v363, %v355
    %v460 = vpack.c.b16 %v364, %v356
    %v461 = vpack.c.b16 %v365, %v357
    %v462 = vpack.c.b16 %v366, %v358
    %v463 = vpack.c.b16 %v367, %v359
    %v464 = vpack.c.b16 %v368, %v360
    %v465 = vpack.c.b16 %v369, %v361
    %v466 = vpack.c.b16 %v378, %v370
    %v467 = vpack.c.b16 %v379, %v371
    %v468 = vpack.c.b16 %v380, %v372
    %v469 = vpack.c.b16 %v381, %v373
    %v470 = vpack.c.b16 %v382, %v374
    %v471 = vpack.c.b16 %v383, %v375
    %v472 = vpack.c.b16 %v384, %v376
    %v473 = vpack.c.b16 %v385, %v377
    %v474 = vpack.c.b16 %v394, %v386
    %v475 = vpack.c.b16 %v395, %v387
    %v476 = vpack.c.b16 %v396, %v388
    %v477 = vpack.c.b16 %v397, %v389
    %v478 = vpack.c.b16 %v398, %v390
    %v479 = vpack.c.b16 %v399, %v391
    %v480 = vpack.c.b16 %v400, %v392
    %v481 = vpack.c.b16 %v401, %v393
    %v482 = vpack.c.b16 %v410, %v402
    %v483 = vpack.c.b16 %v411, %v403
    %v484 = vpack.c.b16 %v412, %v404
    %v485 = vpack.c.b16 %v413, %v405
    %v486 = vpack.c.b16 %v414, %v406
    %v487 = vpack.c.b16 %v415, %v407
    %v488 = vpack.c.b16 %v416, %v408
    %v489 = vpack.c.b16 %v417, %v409
    %v490 = vpack.c.b16 %v426, %v418
    %v491 = vpack.c.b16 %v427, %v419
    %v492 = vpack.c.b16 %v428, %v420
    %v493 = vpack.c.b16 %v429, %v421
    %v494 = vpack.c.b16 %v430, %v422
    %v495 = vpack.c.b16 %v431, %v423
    %v496 = vpack.c.b16 %v432, %v424
    %v497 = vpack.c.b16 %v433, %v425
    %562 = vmatprep.subr.bf16.mxu0 %v435
    %563 = vmatpush1.bf16.msra.mxu0 %v434
    %564 = vmatprep.subr.bf16.mxu0 %v443
    %565 = vmatpush1.bf16.msra.mxu0 %v442
    %566 = vmatprep.subr.bf16.mxu0 %v451
    %567 = vmatpush1.bf16.msra.mxu0 %v450
    %568 = vmatprep.subr.bf16.mxu0 %v459
    %569 = vmatpush1.bf16.msra.mxu0 %v458
    %570 = vmatprep.subr.bf16.mxu0 %v467
    %571 = vmatpush1.bf16.msra.mxu0 %v466
    %572 = vmatprep.subr.bf16.mxu0 %v475
    %573 = vmatpush1.bf16.msra.mxu0 %v474
    %574 = vmatprep.subr.bf16.mxu0 %v483
    %575 = vmatpush1.bf16.msra.mxu0 %v482
    %576 = vmatprep.subr.bf16.mxu0 %v491
    %577 = vmatpush1.bf16.msra.mxu0 %v490
    %578 = vmatprep.subr.bf16.mxu0 0
    %579 = vmatpush1.bf16.msra.mxu0 0
    %580 = vmatprep.subr.bf16.mxu0 0
    %581 = vmatpush1.bf16.msra.mxu0 0
    %582 = vmatprep.subr.bf16.mxu0 0
    %583 = vmatpush1.bf16.msra.mxu0 0
    %584 = vmatprep.subr.bf16.mxu0 0
    %585 = vmatpush1.bf16.msra.mxu0 0
    %586 = vmatprep.subr.bf16.mxu0 0
    %587 = vmatpush1.bf16.msra.mxu0 0
    %588 = vmatprep.subr.bf16.mxu0 0
    %589 = vmatpush1.bf16.msra.mxu0 0
    %590 = vmatprep.subr.bf16.mxu0 0
    %591 = vmatpush1.bf16.msra.mxu0 0
    %592 = vmatprep.subr.bf16.mxu0 0
    %593 = vmatpush1.bf16.msra.mxu0 0
    %594 = vmatprep.mubr.bf16.mxu0 0
    %595 = vmatmul.mubr.bf16.gmra.mrb[0].mxu0 %v234
    %v596 = vpop.f32.mrb[0].mxu0
    %v597 = vadd.f32 %v181, %v596
    %v598 = vpop.f32.mrb[0].mxu0
    %v599 = vadd.f32 %v185, %v598
    %v600 = vpop.f32.mrb[0].mxu0
    %v601 = vadd.f32 %v181, %v600
    %v602 = vpop.f32.mrb[0].mxu0
    %v603 = vadd.f32 %v185, %v602
    %604 = vmatprep.mubr.bf16.mxu0 0
    %605 = vmatmul.mubr.bf16.gmra.mrb[0].mxu0 %v235
    %v606 = vpop.f32.mrb[0].mxu0
    %v607 = vadd.f32 %v181, %v606
    %v608 = vpop.f32.mrb[0].mxu0
    %v609 = vadd.f32 %v185, %v608
    %v610 = vpop.f32.mrb[0].mxu0
    %v611 = vadd.f32 %v181, %v610
    %v612 = vpop.f32.mrb[0].mxu0
    %v613 = vadd.f32 %v185, %v612
    %614 = vmatprep.mubr.bf16.mxu0 0
    %615 = vmatmul.mubr.bf16.gmra.mrb[0].mxu0 %v236
    %v616 = vpop.f32.mrb[0].mxu0
    %v617 = vadd.f32 %v181, %v616
    %v618 = vpop.f32.mrb[0].mxu0
    %v619 = vadd.f32 %v185, %v618
    %v620 = vpop.f32.mrb[0].mxu0
    %v621 = vadd.f32 %v181, %v620
    %v622 = vpop.f32.mrb[0].mxu0
    %v623 = vadd.f32 %v185, %v622
    %624 = vmatprep.mubr.bf16.mxu0 0
    %625 = vmatmul.mubr.bf16.gmra.mrb[0].mxu0 %v237
    %v626 = vpop.f32.mrb[0].mxu0
    %v627 = vadd.f32 %v181, %v626
    %v628 = vpop.f32.mrb[0].mxu0
    %v629 = vadd.f32 %v185, %v628
    %v630 = vpop.f32.mrb[0].mxu0
    %v631 = vadd.f32 %v181, %v630
    %v632 = vpop.f32.mrb[0].mxu0
    %v633 = vadd.f32 %v185, %v632
    %634 = vdwg.mxu0
    %635 = vmatprep.subr.bf16.mxu0 %v437
    %636 = vmatpush1.bf16.msra.mxu0 %v436
    %637 = vmatprep.subr.bf16.mxu0 %v445
    %638 = vmatpush1.bf16.msra.mxu0 %v444
    %639 = vmatprep.subr.bf16.mxu0 %v453
    %640 = vmatpush1.bf16.msra.mxu0 %v452
    %641 = vmatprep.subr.bf16.mxu0 %v461
    %642 = vmatpush1.bf16.msra.mxu0 %v460
    %643 = vmatprep.subr.bf16.mxu0 %v469
    %644 = vmatpush1.bf16.msra.mxu0 %v468
    %645 = vmatprep.subr.bf16.mxu0 %v477
    %646 = vmatpush1.bf16.msra.mxu0 %v476
    %647 = vmatprep.subr.bf16.mxu0 %v485
    %648 = vmatpush1.bf16.msra.mxu0 %v484
    %649 = vmatprep.subr.bf16.mxu0 %v493
    %650 = vmatpush1.bf16.msra.mxu0 %v492
    %651 = vmatprep.subr.bf16.mxu0 0
    %652 = vmatpush1.bf16.msra.mxu0 0
    %653 = vmatprep.subr.bf16.mxu0 0
    %654 = vmatpush1.bf16.msra.mxu0 0
    %655 = vmatprep.subr.bf16.mxu0 0
    %656 = vmatpush1.bf16.msra.mxu0 0
    %657 = vmatprep.subr.bf16.mxu0 0
    %658 = vmatpush1.bf16.msra.mxu0 0
    %659 = vmatprep.subr.bf16.mxu0 0
    %660 = vmatpush1.bf16.msra.mxu0 0
    %661 = vmatprep.subr.bf16.mxu0 0
    %662 = vmatpush1.bf16.msra.mxu0 0
    %663 = vmatprep.subr.bf16.mxu0 0
    %664 = vmatpush1.bf16.msra.mxu0 0
    %665 = vmatprep.subr.bf16.mxu0 0
    %666 = vmatpush1.bf16.msra.mxu0 0
    %667 = vmatprep.mubr.bf16.mxu0 0
    %668 = vmatmul.mubr.bf16.gmra.mrb[0].mxu0 %v234
    %v669 = vpop.f32.mrb[0].mxu0
    %v670 = vadd.f32 %v189, %v669
    %v671 = vpop.f32.mrb[0].mxu0
    %v672 = vadd.f32 %v193, %v671
    %v673 = vpop.f32.mrb[0].mxu0
    %v674 = vadd.f32 %v189, %v673
    %v675 = vpop.f32.mrb[0].mxu0
    %v676 = vadd.f32 %v193, %v675
    %677 = vmatprep.mubr.bf16.mxu0 0
    %678 = vmatmul.mubr.bf16.gmra.mrb[0].mxu0 %v235
    %v679 = vpop.f32.mrb[0].mxu0
    %v680 = vadd.f32 %v189, %v679
    %v681 = vpop.f32.mrb[0].mxu0
    %v682 = vadd.f32 %v193, %v681
    %v683 = vpop.f32.mrb[0].mxu0
    %v684 = vadd.f32 %v189, %v683
    %v685 = vpop.f32.mrb[0].mxu0
    %v686 = vadd.f32 %v193, %v685
    %687 = vmatprep.mubr.bf16.mxu0 0
    %688 = vmatmul.mubr.bf16.gmra.mrb[0].mxu0 %v236
    %v689 = vpop.f32.mrb[0].mxu0
    %v690 = vadd.f32 %v189, %v689
    %v691 = vpop.f32.mrb[0].mxu0
    %v692 = vadd.f32 %v193, %v691
    %v693 = vpop.f32.mrb[0].mxu0
    %v694 = vadd.f32 %v189, %v693
    %v695 = vpop.f32.mrb[0].mxu0
    %v696 = vadd.f32 %v193, %v695
    %697 = vmatprep.mubr.bf16.mxu0 0
    %698 = vmatmul.mubr.bf16.gmra.mrb[0].mxu0 %v237
    %v699 = vpop.f32.mrb[0].mxu0
    %v700 = vadd.f32 %v189, %v699
    %v701 = vpop.f32.mrb[0].mxu0
    %v702 = vadd.f32 %v193, %v701
    %v703 = vpop.f32.mrb[0].mxu0
    %v704 = vadd.f32 %v189, %v703
    %v705 = vpop.f32.mrb[0].mxu0
    %v706 = vadd.f32 %v193, %v705
    %707 = vdwg.mxu0
    %708 = vmatprep.subr.bf16.mxu0 %v439
    %709 = vmatpush1.bf16.msra.mxu0 %v438
    %710 = vmatprep.subr.bf16.mxu0 %v447
    %711 = vmatpush1.bf16.msra.mxu0 %v446
    %712 = vmatprep.subr.bf16.mxu0 %v455
    %713 = vmatpush1.bf16.msra.mxu0 %v454
    %714 = vmatprep.subr.bf16.mxu0 %v463
    %715 = vmatpush1.bf16.msra.mxu0 %v462
    %716 = vmatprep.subr.bf16.mxu0 %v471
    %717 = vmatpush1.bf16.msra.mxu0 %v470
    %718 = vmatprep.subr.bf16.mxu0 %v479
    %719 = vmatpush1.bf16.msra.mxu0 %v478
    %720 = vmatprep.subr.bf16.mxu0 %v487
    %721 = vmatpush1.bf16.msra.mxu0 %v486
    %722 = vmatprep.subr.bf16.mxu0 %v495
    %723 = vmatpush1.bf16.msra.mxu0 %v494
    %724 = vmatprep.subr.bf16.mxu0 0
    %725 = vmatpush1.bf16.msra.mxu0 0
    %726 = vmatprep.subr.bf16.mxu0 0
    %727 = vmatpush1.bf16.msra.mxu0 0
    %728 = vmatprep.subr.bf16.mxu0 0
    %729 = vmatpush1.bf16.msra.mxu0 0
    %730 = vmatprep.subr.bf16.mxu0 0
    %731 = vmatpush1.bf16.msra.mxu0 0
    %732 = vmatprep.subr.bf16.mxu0 0
    %733 = vmatpush1.bf16.msra.mxu0 0
    %734 = vmatprep.subr.bf16.mxu0 0
    %735 = vmatpush1.bf16.msra.mxu0 0
    %736 = vmatprep.subr.bf16.mxu0 0
    %737 = vmatpush1.bf16.msra.mxu0 0
    %738 = vmatprep.subr.bf16.mxu0 0
    %739 = vmatpush1.bf16.msra.mxu0 0
    %740 = vmatprep.mubr.bf16.mxu0 0
    %741 = vmatmul.mubr.bf16.gmra.mrb[0].mxu0 %v234
    %v742 = vpop.f32.mrb[0].mxu0
    %v743 = vadd.f32 %v197, %v742
    %v744 = vpop.f32.mrb[0].mxu0
    %v745 = vadd.f32 %v201, %v744
    %v746 = vpop.f32.mrb[0].mxu0
    %v747 = vadd.f32 %v197, %v746
    %v748 = vpop.f32.mrb[0].mxu0
    %v749 = vadd.f32 %v201, %v748
    %750 = vmatprep.mubr.bf16.mxu0 0
    %751 = vmatmul.mubr.bf16.gmra.mrb[0].mxu0 %v235
    %v752 = vpop.f32.mrb[0].mxu0
    %v753 = vadd.f32 %v197, %v752
    %v754 = vpop.f32.mrb[0].mxu0
    %v755 = vadd.f32 %v201, %v754
    %v756 = vpop.f32.mrb[0].mxu0
    %v757 = vadd.f32 %v197, %v756
    %v758 = vpop.f32.mrb[0].mxu0
    %v759 = vadd.f32 %v201, %v758
    %760 = vmatprep.mubr.bf16.mxu0 0
    %761 = vmatmul.mubr.bf16.gmra.mrb[0].mxu0 %v236
    %v762 = vpop.f32.mrb[0].mxu0
    %v763 = vadd.f32 %v197, %v762
    %v764 = vpop.f32.mrb[0].mxu0
    %v765 = vadd.f32 %v201, %v764
    %v766 = vpop.f32.mrb[0].mxu0
    %v767 = vadd.f32 %v197, %v766
    %v768 = vpop.f32.mrb[0].mxu0
    %v769 = vadd.f32 %v201, %v768
    %770 = vmatprep.mubr.bf16.mxu0 0
    %771 = vmatmul.mubr.bf16.gmra.mrb[0].mxu0 %v237
    %v772 = vpop.f32.mrb[0].mxu0
    %v773 = vadd.f32 %v197, %v772
    %v774 = vpop.f32.mrb[0].mxu0
    %v775 = vadd.f32 %v201, %v774
    %v776 = vpop.f32.mrb[0].mxu0
    %v777 = vadd.f32 %v197, %v776
    %v778 = vpop.f32.mrb[0].mxu0
    %v779 = vadd.f32 %v201, %v778
    %780 = vdwg.mxu0
    %781 = vmatprep.subr.bf16.mxu0 %v441
    %782 = vmatpush1.bf16.msra.mxu0 %v440
    %783 = vmatprep.subr.bf16.mxu0 %v449
    %784 = vmatpush1.bf16.msra.mxu0 %v448
    %785 = vmatprep.subr.bf16.mxu0 %v457
    %786 = vmatpush1.bf16.msra.mxu0 %v456
    %787 = vmatprep.subr.bf16.mxu0 %v465
    %788 = vmatpush1.bf16.msra.mxu0 %v464
    %789 = vmatprep.subr.bf16.mxu0 %v473
    %790 = vmatpush1.bf16.msra.mxu0 %v472
    %791 = vmatprep.subr.bf16.mxu0 %v481
    %792 = vmatpush1.bf16.msra.mxu0 %v480
    %793 = vmatprep.subr.bf16.mxu0 %v489
    %794 = vmatpush1.bf16.msra.mxu0 %v488
    %795 = vmatprep.subr.bf16.mxu0 %v497
    %796 = vmatpush1.bf16.msra.mxu0 %v496
    %797 = vmatprep.subr.bf16.mxu0 0
    %798 = vmatpush1.bf16.msra.mxu0 0
    %799 = vmatprep.subr.bf16.mxu0 0
    %800 = vmatpush1.bf16.msra.mxu0 0
    %801 = vmatprep.subr.bf16.mxu0 0
    %802 = vmatpush1.bf16.msra.mxu0 0
    %803 = vmatprep.subr.bf16.mxu0 0
    %804 = vmatpush1.bf16.msra.mxu0 0
    %805 = vmatprep.subr.bf16.mxu0 0
    %806 = vmatpush1.bf16.msra.mxu0 0
    %807 = vmatprep.subr.bf16.mxu0 0
    %808 = vmatpush1.bf16.msra.mxu0 0
    %809 = vmatprep.subr.bf16.mxu0 0
    %810 = vmatpush1.bf16.msra.mxu0 0
    %811 = vmatprep.subr.bf16.mxu0 0
    %812 = vmatpush1.bf16.msra.mxu0 0
    %813 = vmatprep.mubr.bf16.mxu0 0
    %814 = vmatmul.mubr.bf16.gmra.mrb[0].mxu0 %v234
    %v815 = vpop.f32.mrb[0].mxu0
    %v816 = vadd.f32 %v205, %v815
    %v817 = vpop.f32.mrb[0].mxu0
    %v818 = vadd.f32 %v209, %v817
    %v819 = vpop.f32.mrb[0].mxu0
    %v820 = vadd.f32 %v205, %v819
    %v821 = vpop.f32.mrb[0].mxu0
    %v822 = vadd.f32 %v209, %v821
    %823 = vmatprep.mubr.bf16.mxu0 0
    %824 = vmatmul.mubr.bf16.gmra.mrb[0].mxu0 %v235
    %v825 = vpop.f32.mrb[0].mxu0
    %v826 = vadd.f32 %v205, %v825
    %v827 = vpop.f32.mrb[0].mxu0
    %v828 = vadd.f32 %v209, %v827
    %v829 = vpop.f32.mrb[0].mxu0
    %v830 = vadd.f32 %v205, %v829
    %v831 = vpop.f32.mrb[0].mxu0
    %v832 = vadd.f32 %v209, %v831
    %833 = vmatprep.mubr.bf16.mxu0 0
    %834 = vmatmul.mubr.bf16.gmra.mrb[0].mxu0 %v236
    %v835 = vpop.f32.mrb[0].mxu0
    %v836 = vadd.f32 %v205, %v835
    %v837 = vpop.f32.mrb[0].mxu0
    %v838 = vadd.f32 %v209, %v837
    %v839 = vpop.f32.mrb[0].mxu0
    %v840 = vadd.f32 %v205, %v839
    %v841 = vpop.f32.mrb[0].mxu0
    %v842 = vadd.f32 %v209, %v841
    %843 = vmatprep.mubr.bf16.mxu0 0
    %844 = vmatmul.mubr.bf16.gmra.mrb[0].mxu0 %v237
    %v845 = vpop.f32.mrb[0].mxu0
    %v846 = vadd.f32 %v205, %v845
    %v847 = vpop.f32.mrb[0].mxu0
    %v848 = vadd.f32 %v209, %v847
    %v849 = vpop.f32.mrb[0].mxu0
    %v850 = vadd.f32 %v205, %v849
    %v851 = vpop.f32.mrb[0].mxu0
    %v852 = vadd.f32 %v209, %v851
    %853 = vdwg.mxu0
    %854 = vst [vmem:[#allocation2] sm:$0xff] %v597
    %855 = vst [vmem:[#allocation2 + $0x8] sm:$0xff] %v599
    %856 = vst [vmem:[#allocation2 + $0x10] sm:$0xff] %v670
    %857 = vst [vmem:[#allocation2 + $0x18] sm:$0xff] %v672
    %858 = vst [vmem:[#allocation2 + $0x20] sm:$0xff] %v743
    %859 = vst [vmem:[#allocation2 + $0x28] sm:$0xff] %v745
    %860 = vst [vmem:[#allocation2 + $0x30] sm:$0xff] %v816
    %861 = vst [vmem:[#allocation2 + $0x38] sm:$0xff] %v818
    %862 = vst [vmem:[#allocation2 + $0x40] sm:$0xff] %v601
    %863 = vst [vmem:[#allocation2 + $0x48] sm:$0xff] %v603
    %864 = vst [vmem:[#allocation2 + $0x50] sm:$0xff] %v674
    %865 = vst [vmem:[#allocation2 + $0x58] sm:$0xff] %v676
    %866 = vst [vmem:[#allocation2 + $0x60] sm:$0xff] %v747
    %867 = vst [vmem:[#allocation2 + $0x68] sm:$0xff] %v749
    %868 = vst [vmem:[#allocation2 + $0x70] sm:$0xff] %v820
    %869 = vst [vmem:[#allocation2 + $0x78] sm:$0xff] %v822
    %870 = vst [vmem:[#allocation2 + $0x80] sm:$0xff] %v607
    %871 = vst [vmem:[#allocation2 + $0x88] sm:$0xff] %v609
    %872 = vst [vmem:[#allocation2 + $0x90] sm:$0xff] %v680
    %873 = vst [vmem:[#allocation2 + $0x98] sm:$0xff] %v682
    %874 = vst [vmem:[#allocation2 + $0xa0] sm:$0xff] %v753
    %875 = vst [vmem:[#allocation2 + $0xa8] sm:$0xff] %v755
    %876 = vst [vmem:[#allocation2 + $0xb0] sm:$0xff] %v826
    %877 = vst [vmem:[#allocation2 + $0xb8] sm:$0xff] %v828
    %878 = vst [vmem:[#allocation2 + $0xc0] sm:$0xff] %v611
    %879 = vst [vmem:[#allocation2 + $0xc8] sm:$0xff] %v613
    %880 = vst [vmem:[#allocation2 + $0xd0] sm:$0xff] %v684
    %881 = vst [vmem:[#allocation2 + $0xd8] sm:$0xff] %v686
    %882 = vst [vmem:[#allocation2 + $0xe0] sm:$0xff] %v757
    %883 = vst [vmem:[#allocation2 + $0xe8] sm:$0xff] %v759
    %884 = vst [vmem:[#allocation2 + $0xf0] sm:$0xff] %v830
    %885 = vst [vmem:[#allocation2 + $0xf8] sm:$0xff] %v832
    %886 = vst [vmem:[#allocation2 + $0x100] sm:$0xff] %v617
    %887 = vst [vmem:[#allocation2 + $0x108] sm:$0xff] %v619
    %888 = vst [vmem:[#allocation2 + $0x110] sm:$0xff] %v690
    %889 = vst [vmem:[#allocation2 + $0x118] sm:$0xff] %v692
    %890 = vst [vmem:[#allocation2 + $0x120] sm:$0xff] %v763
    %891 = vst [vmem:[#allocation2 + $0x128] sm:$0xff] %v765
    %892 = vst [vmem:[#allocation2 + $0x130] sm:$0xff] %v836
    %893 = vst [vmem:[#allocation2 + $0x138] sm:$0xff] %v838
    %894 = vst [vmem:[#allocation2 + $0x140] sm:$0xff] %v621
    %895 = vst [vmem:[#allocation2 + $0x148] sm:$0xff] %v623
    %896 = vst [vmem:[#allocation2 + $0x150] sm:$0xff] %v694
    %897 = vst [vmem:[#allocation2 + $0x158] sm:$0xff] %v696
    %898 = vst [vmem:[#allocation2 + $0x160] sm:$0xff] %v767
    %899 = vst [vmem:[#allocation2 + $0x168] sm:$0xff] %v769
    %900 = vst [vmem:[#allocation2 + $0x170] sm:$0xff] %v840
    %901 = vst [vmem:[#allocation2 + $0x178] sm:$0xff] %v842
    %902 = vst [vmem:[#allocation2 + $0x180] sm:$0xff] %v627
    %903 = vst [vmem:[#allocation2 + $0x188] sm:$0xff] %v629
    %904 = vst [vmem:[#allocation2 + $0x190] sm:$0xff] %v700
    %905 = vst [vmem:[#allocation2 + $0x198] sm:$0xff] %v702
    %906 = vst [vmem:[#allocation2 + $0x1a0] sm:$0xff] %v773
    %907 = vst [vmem:[#allocation2 + $0x1a8] sm:$0xff] %v775
    %908 = vst [vmem:[#allocation2 + $0x1b0] sm:$0xff] %v846
    %909 = vst [vmem:[#allocation2 + $0x1b8] sm:$0xff] %v848
    %910 = vst [vmem:[#allocation2 + $0x1c0] sm:$0xff] %v631
    %911 = vst [vmem:[#allocation2 + $0x1c8] sm:$0xff] %v633
    %912 = vst [vmem:[#allocation2 + $0x1d0] sm:$0xff] %v704
    %913 = vst [vmem:[#allocation2 + $0x1d8] sm:$0xff] %v706
    %914 = vst [vmem:[#allocation2 + $0x1e0] sm:$0xff] %v777
    %915 = vst [vmem:[#allocation2 + $0x1e8] sm:$0xff] %v779
    %916 = vst [vmem:[#allocation2 + $0x1f0] sm:$0xff] %v850
    %917 = vst [vmem:[#allocation2 + $0x1f8] sm:$0xff] %v852
    %v918 = vld [vmem:[%s3] sm:$0xf]
    %v919 = vld [vmem:[#allocation2] sm:$0xff]
    %v920 = vld [vmem:[#allocation2 + $0x8] sm:$0xff]
    %v921 = vld [vmem:[#allocation2 + $0x20] sm:$0xff]
    %v922 = vld [vmem:[#allocation2 + $0x28] sm:$0xff]
    %v923 = vld [vmem:[#allocation2 + $0x30] sm:$0xff]
    %v924 = vld [vmem:[#allocation2 + $0x38] sm:$0xff]
    %v925 = vmul.f32 %v919, 0.5
    %v926 = vmul.f32 %v920, 0.5
    %v927 = vtanh.pop %v925
    %v928 = vtanh.pop %v926
    %v929 = vmul.f32 %v927, 0.5
    %v930 = vmul.f32 %v928, 0.5
    %v931 = vadd.f32 %v929, 0.5
    %v932 = vadd.f32 %v930, 0.5
    %v933 = vtanh.pop %v921
    %v934 = vtanh.pop %v922
    %v935 = vmul.f32 %v923, 0.5
    %v936 = vmul.f32 %v924, 0.5
    %v937 = vtanh.pop %v935
    %v938 = vtanh.pop %v936
    %v939 = vmul.f32 %v937, 0.5
    %v940 = vmul.f32 %v938, 0.5
    %v941 = vadd.f32 %v939, 0.5
    %v942 = vadd.f32 %v940, 0.5
    %v943 = vmul.f32 %v931, %v933
    %v944 = vmul.f32 %v932, %v934
    %v945 = vtanh.pop %v943
    %v946 = vtanh.pop %v944
    %v947 = vmul.f32 %v941, %v945
    %v948 = vmul.f32 %v942, %v946
    %v949 = vpack.c.bf16 %v947, %v947
    %v950 = vpack.c.bf16 %v948, %v948
    %s951 = smul.u32 4, 32
    %s952 = smul.u32 %s951, 12
    %s953 = sshll.u32 %s952, 4
    %954 = dma.done [#allocation5], %s953
    %s955 = smul.u32 4, 16
    %s956 = smul.u32 %s955, 4
    %s957 = sshll.u32 %s956, 4
    %958 = dma.done %s69, %s957
    %v959 = vld [vmem:[#allocation3] sm:$0xff]
    %v960 = vld [vmem:[#allocation3 + $0x8] sm:$0xff]
    %v961 = vld [vmem:[#allocation3 + $0x10] sm:$0xff]
    %v962 = vld [vmem:[#allocation3 + $0x18] sm:$0xff]
    %v963 = vld [vmem:[#allocation3 + $0x20] sm:$0xff]
    %v964 = vld [vmem:[#allocation3 + $0x28] sm:$0xff]
    %v965 = vld [vmem:[#allocation3 + $0x30] sm:$0xff]
    %v966 = vld [vmem:[#allocation3 + $0x38] sm:$0xff]
    %v967 = vld [vmem:[#allocation3 + $0x40] sm:$0xff]
    %v968 = vld [vmem:[#allocation3 + $0x48] sm:$0xff]
    %v969 = vld [vmem:[#allocation3 + $0x50] sm:$0xff]
    %v970 = vld [vmem:[#allocation3 + $0x58] sm:$0xff]
    %v971 = vld [vmem:[#allocation3 + $0x60] sm:$0xff]
    %v972 = vld [vmem:[#allocation3 + $0x68] sm:$0xff]
    %v973 = vld [vmem:[#allocation3 + $0x70] sm:$0xff]
    %v974 = vld [vmem:[#allocation3 + $0x78] sm:$0xff]
    %v975 = vld [vmem:[#allocation3 + $0x80] sm:$0xff]
    %v976 = vld [vmem:[#allocation3 + $0x88] sm:$0xff]
    %v977 = vld [vmem:[#allocation3 + $0x90] sm:$0xff]
    %v978 = vld [vmem:[#allocation3 + $0x98] sm:$0xff]
    %v979 = vld [vmem:[#allocation3 + $0xa0] sm:$0xff]
    %v980 = vld [vmem:[#allocation3 + $0xa8] sm:$0xff]
    %v981 = vld [vmem:[#allocation3 + $0xb0] sm:$0xff]
    %v982 = vld [vmem:[#allocation3 + $0xb8] sm:$0xff]
    %v983 = vld [vmem:[#allocation3 + $0xc0] sm:$0xff]
    %v984 = vld [vmem:[#allocation3 + $0xc8] sm:$0xff]
    %v985 = vld [vmem:[#allocation3 + $0xd0] sm:$0xff]
    %v986 = vld [vmem:[#allocation3 + $0xd8] sm:$0xff]
    %v987 = vld [vmem:[#allocation3 + $0xe0] sm:$0xff]
    %v988 = vld [vmem:[#allocation3 + $0xe8] sm:$0xff]
    %v989 = vld [vmem:[#allocation3 + $0xf0] sm:$0xff]
    %v990 = vld [vmem:[#allocation3 + $0xf8] sm:$0xff]
    %v991 = vld [vmem:[#allocation3 + $0x100] sm:$0xff]
    %v992 = vld [vmem:[#allocation3 + $0x108] sm:$0xff]
    %v993 = vld [vmem:[#allocation3 + $0x110] sm:$0xff]
    %v994 = vld [vmem:[#allocation3 + $0x118] sm:$0xff]
    %v995 = vld [vmem:[#allocation3 + $0x120] sm:$0xff]
    %v996 = vld [vmem:[#allocation3 + $0x128] sm:$0xff]
    %v997 = vld [vmem:[#allocation3 + $0x130] sm:$0xff]
    %v998 = vld [vmem:[#allocation3 + $0x138] sm:$0xff]
    %v999 = vld [vmem:[#allocation3 + $0x140] sm:$0xff]
    %v1000 = vld [vmem:[#allocation3 + $0x148] sm:$0xff]
    %v1001 = vld [vmem:[#allocation3 + $0x150] sm:$0xff]
    %v1002 = vld [vmem:[#allocation3 + $0x158] sm:$0xff]
    %v1003 = vld [vmem:[#allocation3 + $0x160] sm:$0xff]
    %v1004 = vld [vmem:[#allocation3 + $0x168] sm:$0xff]
    %v1005 = vld [vmem:[#allocation3 + $0x170] sm:$0xff]
    %v1006 = vld [vmem:[#allocation3 + $0x178] sm:$0xff]
    %v1007 = vld [vmem:[#allocation3 + $0x180] sm:$0xff]
    %v1008 = vld [vmem:[#allocation3 + $0x188] sm:$0xff]
    %v1009 = vld [vmem:[#allocation3 + $0x190] sm:$0xff]
    %v1010 = vld [vmem:[#allocation3 + $0x198] sm:$0xff]
    %v1011 = vld [vmem:[#allocation3 + $0x1a0] sm:$0xff]
    %v1012 = vld [vmem:[#allocation3 + $0x1a8] sm:$0xff]
    %v1013 = vld [vmem:[#allocation3 + $0x1b0] sm:$0xff]
    %v1014 = vld [vmem:[#allocation3 + $0x1b8] sm:$0xff]
    %v1015 = vld [vmem:[#allocation3 + $0x1c0] sm:$0xff]
    %v1016 = vld [vmem:[#allocation3 + $0x1c8] sm:$0xff]
    %v1017 = vld [vmem:[#allocation3 + $0x1d0] sm:$0xff]
    %v1018 = vld [vmem:[#allocation3 + $0x1d8] sm:$0xff]
    %v1019 = vld [vmem:[#allocation3 + $0x1e0] sm:$0xff]
    %v1020 = vld [vmem:[#allocation3 + $0x1e8] sm:$0xff]
    %v1021 = vld [vmem:[#allocation3 + $0x1f0] sm:$0xff]
    %v1022 = vld [vmem:[#allocation3 + $0x1f8] sm:$0xff]
    %v1023 = vld [vmem:[#allocation3 + $0x200] sm:$0xff]
    %v1024 = vld [vmem:[#allocation3 + $0x208] sm:$0xff]
    %v1025 = vld [vmem:[#allocation3 + $0x210] sm:$0xff]
    %v1026 = vld [vmem:[#allocation3 + $0x218] sm:$0xff]
    %v1027 = vld [vmem:[#allocation3 + $0x220] sm:$0xff]
    %v1028 = vld [vmem:[#allocation3 + $0x228] sm:$0xff]
    %v1029 = vld [vmem:[#allocation3 + $0x230] sm:$0xff]
    %v1030 = vld [vmem:[#allocation3 + $0x238] sm:$0xff]
    %v1031 = vld [vmem:[#allocation3 + $0x240] sm:$0xff]
    %v1032 = vld [vmem:[#allocation3 + $0x248] sm:$0xff]
    %v1033 = vld [vmem:[#allocation3 + $0x250] sm:$0xff]
    %v1034 = vld [vmem:[#allocation3 + $0x258] sm:$0xff]
    %v1035 = vld [vmem:[#allocation3 + $0x260] sm:$0xff]
    %v1036 = vld [vmem:[#allocation3 + $0x268] sm:$0xff]
    %v1037 = vld [vmem:[#allocation3 + $0x270] sm:$0xff]
    %v1038 = vld [vmem:[#allocation3 + $0x278] sm:$0xff]
    %v1039 = vld [vmem:[#allocation3 + $0x280] sm:$0xff]
    %v1040 = vld [vmem:[#allocation3 + $0x288] sm:$0xff]
    %v1041 = vld [vmem:[#allocation3 + $0x290] sm:$0xff]
    %v1042 = vld [vmem:[#allocation3 + $0x298] sm:$0xff]
    %v1043 = vld [vmem:[#allocation3 + $0x2a0] sm:$0xff]
    %v1044 = vld [vmem:[#allocation3 + $0x2a8] sm:$0xff]
    %v1045 = vld [vmem:[#allocation3 + $0x2b0] sm:$0xff]
    %v1046 = vld [vmem:[#allocation3 + $0x2b8] sm:$0xff]
    %v1047 = vld [vmem:[#allocation3 + $0x2c0] sm:$0xff]
    %v1048 = vld [vmem:[#allocation3 + $0x2c8] sm:$0xff]
    %v1049 = vld [vmem:[#allocation3 + $0x2d0] sm:$0xff]
    %v1050 = vld [vmem:[#allocation3 + $0x2d8] sm:$0xff]
    %v1051 = vld [vmem:[#allocation3 + $0x2e0] sm:$0xff]
    %v1052 = vld [vmem:[#allocation3 + $0x2e8] sm:$0xff]
    %v1053 = vld [vmem:[#allocation3 + $0x2f0] sm:$0xff]
    %v1054 = vld [vmem:[#allocation3 + $0x2f8] sm:$0xff]
    %v1055 = vld [vmem:[#allocation3 + $0x300] sm:$0xff]
    %v1056 = vld [vmem:[#allocation3 + $0x308] sm:$0xff]
    %v1057 = vld [vmem:[#allocation3 + $0x310] sm:$0xff]
    %v1058 = vld [vmem:[#allocation3 + $0x318] sm:$0xff]
    %v1059 = vld [vmem:[#allocation3 + $0x320] sm:$0xff]
    %v1060 = vld [vmem:[#allocation3 + $0x328] sm:$0xff]
    %v1061 = vld [vmem:[#allocation3 + $0x330] sm:$0xff]
    %v1062 = vld [vmem:[#allocation3 + $0x338] sm:$0xff]
    %v1063 = vld [vmem:[#allocation3 + $0x340] sm:$0xff]
    %v1064 = vld [vmem:[#allocation3 + $0x348] sm:$0xff]
    %v1065 = vld [vmem:[#allocation3 + $0x350] sm:$0xff]
    %v1066 = vld [vmem:[#allocation3 + $0x358] sm:$0xff]
    %v1067 = vld [vmem:[#allocation3 + $0x360] sm:$0xff]
    %v1068 = vld [vmem:[#allocation3 + $0x368] sm:$0xff]
    %v1069 = vld [vmem:[#allocation3 + $0x370] sm:$0xff]
    %v1070 = vld [vmem:[#allocation3 + $0x378] sm:$0xff]
    %v1071 = vld [vmem:[#allocation3 + $0x380] sm:$0xff]
    %v1072 = vld [vmem:[#allocation3 + $0x388] sm:$0xff]
    %v1073 = vld [vmem:[#allocation3 + $0x390] sm:$0xff]
    %v1074 = vld [vmem:[#allocation3 + $0x398] sm:$0xff]
    %v1075 = vld [vmem:[#allocation3 + $0x3a0] sm:$0xff]
    %v1076 = vld [vmem:[#allocation3 + $0x3a8] sm:$0xff]
    %v1077 = vld [vmem:[#allocation3 + $0x3b0] sm:$0xff]
    %v1078 = vld [vmem:[#allocation3 + $0x3b8] sm:$0xff]
    %v1079 = vld [vmem:[#allocation3 + $0x3c0] sm:$0xff]
    %v1080 = vld [vmem:[#allocation3 + $0x3c8] sm:$0xff]
    %v1081 = vld [vmem:[#allocation3 + $0x3d0] sm:$0xff]
    %v1082 = vld [vmem:[#allocation3 + $0x3d8] sm:$0xff]
    %v1083 = vld [vmem:[#allocation3 + $0x3e0] sm:$0xff]
    %v1084 = vld [vmem:[#allocation3 + $0x3e8] sm:$0xff]
    %v1085 = vld [vmem:[#allocation3 + $0x3f0] sm:$0xff]
    %v1086 = vld [vmem:[#allocation3 + $0x3f8] sm:$0xff]
    %v1087 = vld [vmem:[#allocation3 + $0x400] sm:$0xff]
    %v1088 = vld [vmem:[#allocation3 + $0x408] sm:$0xff]
    %v1089 = vld [vmem:[#allocation3 + $0x410] sm:$0xff]
    %v1090 = vld [vmem:[#allocation3 + $0x418] sm:$0xff]
    %v1091 = vld [vmem:[#allocation3 + $0x420] sm:$0xff]
    %v1092 = vld [vmem:[#allocation3 + $0x428] sm:$0xff]
    %v1093 = vld [vmem:[#allocation3 + $0x430] sm:$0xff]
    %v1094 = vld [vmem:[#allocation3 + $0x438] sm:$0xff]
    %v1095 = vld [vmem:[#allocation3 + $0x440] sm:$0xff]
    %v1096 = vld [vmem:[#allocation3 + $0x448] sm:$0xff]
    %v1097 = vld [vmem:[#allocation3 + $0x450] sm:$0xff]
    %v1098 = vld [vmem:[#allocation3 + $0x458] sm:$0xff]
    %v1099 = vld [vmem:[#allocation3 + $0x460] sm:$0xff]
    %v1100 = vld [vmem:[#allocation3 + $0x468] sm:$0xff]
    %v1101 = vld [vmem:[#allocation3 + $0x470] sm:$0xff]
    %v1102 = vld [vmem:[#allocation3 + $0x478] sm:$0xff]
    %v1103 = vld [vmem:[#allocation3 + $0x480] sm:$0xff]
    %v1104 = vld [vmem:[#allocation3 + $0x488] sm:$0xff]
    %v1105 = vld [vmem:[#allocation3 + $0x490] sm:$0xff]
    %v1106 = vld [vmem:[#allocation3 + $0x498] sm:$0xff]
    %v1107 = vld [vmem:[#allocation3 + $0x4a0] sm:$0xff]
    %v1108 = vld [vmem:[#allocation3 + $0x4a8] sm:$0xff]
    %v1109 = vld [vmem:[#allocation3 + $0x4b0] sm:$0xff]
    %v1110 = vld [vmem:[#allocation3 + $0x4b8] sm:$0xff]
    %v1111 = vld [vmem:[#allocation3 + $0x4c0] sm:$0xff]
    %v1112 = vld [vmem:[#allocation3 + $0x4c8] sm:$0xff]
    %v1113 = vld [vmem:[#allocation3 + $0x4d0] sm:$0xff]
    %v1114 = vld [vmem:[#allocation3 + $0x4d8] sm:$0xff]
    %v1115 = vld [vmem:[#allocation3 + $0x4e0] sm:$0xff]
    %v1116 = vld [vmem:[#allocation3 + $0x4e8] sm:$0xff]
    %v1117 = vld [vmem:[#allocation3 + $0x4f0] sm:$0xff]
    %v1118 = vld [vmem:[#allocation3 + $0x4f8] sm:$0xff]
    %v1119 = vld [vmem:[#allocation3 + $0x500] sm:$0xff]
    %v1120 = vld [vmem:[#allocation3 + $0x508] sm:$0xff]
    %v1121 = vld [vmem:[#allocation3 + $0x510] sm:$0xff]
    %v1122 = vld [vmem:[#allocation3 + $0x518] sm:$0xff]
    %v1123 = vld [vmem:[#allocation3 + $0x520] sm:$0xff]
    %v1124 = vld [vmem:[#allocation3 + $0x528] sm:$0xff]
    %v1125 = vld [vmem:[#allocation3 + $0x530] sm:$0xff]
    %v1126 = vld [vmem:[#allocation3 + $0x538] sm:$0xff]
    %v1127 = vld [vmem:[#allocation3 + $0x540] sm:$0xff]
    %v1128 = vld [vmem:[#allocation3 + $0x548] sm:$0xff]
    %v1129 = vld [vmem:[#allocation3 + $0x550] sm:$0xff]
    %v1130 = vld [vmem:[#allocation3 + $0x558] sm:$0xff]
    %v1131 = vld [vmem:[#allocation3 + $0x560] sm:$0xff]
    %v1132 = vld [vmem:[#allocation3 + $0x568] sm:$0xff]
    %v1133 = vld [vmem:[#allocation3 + $0x570] sm:$0xff]
    %v1134 = vld [vmem:[#allocation3 + $0x578] sm:$0xff]
    %v1135 = vld [vmem:[#allocation3 + $0x580] sm:$0xff]
    %v1136 = vld [vmem:[#allocation3 + $0x588] sm:$0xff]
    %v1137 = vld [vmem:[#allocation3 + $0x590] sm:$0xff]
    %v1138 = vld [vmem:[#allocation3 + $0x598] sm:$0xff]
    %v1139 = vld [vmem:[#allocation3 + $0x5a0] sm:$0xff]
    %v1140 = vld [vmem:[#allocation3 + $0x5a8] sm:$0xff]
    %v1141 = vld [vmem:[#allocation3 + $0x5b0] sm:$0xff]
    %v1142 = vld [vmem:[#allocation3 + $0x5b8] sm:$0xff]
    %v1143 = vld [vmem:[#allocation3 + $0x5c0] sm:$0xff]
    %v1144 = vld [vmem:[#allocation3 + $0x5c8] sm:$0xff]
    %v1145 = vld [vmem:[#allocation3 + $0x5d0] sm:$0xff]
    %v1146 = vld [vmem:[#allocation3 + $0x5d8] sm:$0xff]
    %v1147 = vld [vmem:[#allocation3 + $0x5e0] sm:$0xff]
    %v1148 = vld [vmem:[#allocation3 + $0x5e8] sm:$0xff]
    %v1149 = vld [vmem:[#allocation3 + $0x5f0] sm:$0xff]
    %v1150 = vld [vmem:[#allocation3 + $0x5f8] sm:$0xff]
    %1151 = vmatprep.subr.bf16.mxu0 %v960
    %1152 = vmatpush1.bf16.msra.mxu0 %v959
    %1153 = vmatprep.subr.bf16.mxu0 %v972
    %1154 = vmatpush1.bf16.msra.mxu0 %v971
    %1155 = vmatprep.subr.bf16.mxu0 %v984
    %1156 = vmatpush1.bf16.msra.mxu0 %v983
    %1157 = vmatprep.subr.bf16.mxu0 %v996
    %1158 = vmatpush1.bf16.msra.mxu0 %v995
    %1159 = vmatprep.subr.bf16.mxu0 %v1008
    %1160 = vmatpush1.bf16.msra.mxu0 %v1007
    %1161 = vmatprep.subr.bf16.mxu0 %v1020
    %1162 = vmatpush1.bf16.msra.mxu0 %v1019
    %1163 = vmatprep.subr.bf16.mxu0 %v1032
    %1164 = vmatpush1.bf16.msra.mxu0 %v1031
    %1165 = vmatprep.subr.bf16.mxu0 %v1044
    %1166 = vmatpush1.bf16.msra.mxu0 %v1043
    %1167 = vmatprep.subr.bf16.mxu0 %v1056
    %1168 = vmatpush1.bf16.msra.mxu0 %v1055
    %1169 = vmatprep.subr.bf16.mxu0 %v1068
    %1170 = vmatpush1.bf16.msra.mxu0 %v1067
    %1171 = vmatprep.subr.bf16.mxu0 %v1080
    %1172 = vmatpush1.bf16.msra.mxu0 %v1079
    %1173 = vmatprep.subr.bf16.mxu0 %v1092
    %1174 = vmatpush1.bf16.msra.mxu0 %v1091
    %1175 = vmatprep.subr.bf16.mxu0 %v1104
    %1176 = vmatpush1.bf16.msra.mxu0 %v1103
    %1177 = vmatprep.subr.bf16.mxu0 %v1116
    %1178 = vmatpush1.bf16.msra.mxu0 %v1115
    %1179 = vmatprep.subr.bf16.mxu0 %v1128
    %1180 = vmatpush1.bf16.msra.mxu0 %v1127
    %1181 = vmatprep.subr.bf16.mxu0 %v1140
    %1182 = vmatpush1.bf16.msra.mxu0 %v1139
    %1183 = vmatprep.mubr.bf16.mxu0 %v950
    %1184 = vmatmul.mubr.bf16.gmra.mrb[0].mxu0 %v949
    %v1185 = vpop.f32.mrb[0].mxu0
    %v1186 = vadd.f32 0.0, %v1185
    %v1187 = vpop.f32.mrb[0].mxu0
    %v1188 = vadd.f32 0.0, %v1187
    %v1189 = vpop.f32.mrb[0].mxu0
    %v1190 = vpop.f32.mrb[0].mxu0
    %1191 = vdwg.mxu0
    %1192 = vmatprep.subr.bf16.mxu0 %v962
    %1193 = vmatpush1.bf16.msra.mxu0 %v961
    %1194 = vmatprep.subr.bf16.mxu0 %v974
    %1195 = vmatpush1.bf16.msra.mxu0 %v973
    %1196 = vmatprep.subr.bf16.mxu0 %v986
    %1197 = vmatpush1.bf16.msra.mxu0 %v985
    %1198 = vmatprep.subr.bf16.mxu0 %v998
    %1199 = vmatpush1.bf16.msra.mxu0 %v997
    %1200 = vmatprep.subr.bf16.mxu0 %v1010
    %1201 = vmatpush1.bf16.msra.mxu0 %v1009
    %1202 = vmatprep.subr.bf16.mxu0 %v1022
    %1203 = vmatpush1.bf16.msra.mxu0 %v1021
    %1204 = vmatprep.subr.bf16.mxu0 %v1034
    %1205 = vmatpush1.bf16.msra.mxu0 %v1033
    %1206 = vmatprep.subr.bf16.mxu0 %v1046
    %1207 = vmatpush1.bf16.msra.mxu0 %v1045
    %1208 = vmatprep.subr.bf16.mxu0 %v1058
    %1209 = vmatpush1.bf16.msra.mxu0 %v1057
    %1210 = vmatprep.subr.bf16.mxu0 %v1070
    %1211 = vmatpush1.bf16.msra.mxu0 %v1069
    %1212 = vmatprep.subr.bf16.mxu0 %v1082
    %1213 = vmatpush1.bf16.msra.mxu0 %v1081
    %1214 = vmatprep.subr.bf16.mxu0 %v1094
    %1215 = vmatpush1.bf16.msra.mxu0 %v1093
    %1216 = vmatprep.subr.bf16.mxu0 %v1106
    %1217 = vmatpush1.bf16.msra.mxu0 %v1105
    %1218 = vmatprep.subr.bf16.mxu0 %v1118
    %1219 = vmatpush1.bf16.msra.mxu0 %v1117
    %1220 = vmatprep.subr.bf16.mxu0 %v1130
    %1221 = vmatpush1.bf16.msra.mxu0 %v1129
    %1222 = vmatprep.subr.bf16.mxu0 %v1142
    %1223 = vmatpush1.bf16.msra.mxu0 %v1141
    %1224 = vmatprep.mubr.bf16.mxu0 %v950
    %1225 = vmatmul.mubr.bf16.gmra.mrb[0].mxu0 %v949
    %v1226 = vpop.f32.mrb[0].mxu0
    %v1227 = vadd.f32 0.0, %v1226
    %v1228 = vpop.f32.mrb[0].mxu0
    %v1229 = vadd.f32 0.0, %v1228
    %v1230 = vpop.f32.mrb[0].mxu0
    %v1231 = vpop.f32.mrb[0].mxu0
    %1232 = vdwg.mxu0
    %1233 = vmatprep.subr.bf16.mxu0 %v964
    %1234 = vmatpush1.bf16.msra.mxu0 %v963
    %1235 = vmatprep.subr.bf16.mxu0 %v976
    %1236 = vmatpush1.bf16.msra.mxu0 %v975
    %1237 = vmatprep.subr.bf16.mxu0 %v988
    %1238 = vmatpush1.bf16.msra.mxu0 %v987
    %1239 = vmatprep.subr.bf16.mxu0 %v1000
    %1240 = vmatpush1.bf16.msra.mxu0 %v999
    %1241 = vmatprep.subr.bf16.mxu0 %v1012
    %1242 = vmatpush1.bf16.msra.mxu0 %v1011
    %1243 = vmatprep.subr.bf16.mxu0 %v1024
    %1244 = vmatpush1.bf16.msra.mxu0 %v1023
    %1245 = vmatprep.subr.bf16.mxu0 %v1036
    %1246 = vmatpush1.bf16.msra.mxu0 %v1035
    %1247 = vmatprep.subr.bf16.mxu0 %v1048
    %1248 = vmatpush1.bf16.msra.mxu0 %v1047
    %1249 = vmatprep.subr.bf16.mxu0 %v1060
    %1250 = vmatpush1.bf16.msra.mxu0 %v1059
    %1251 = vmatprep.subr.bf16.mxu0 %v1072
    %1252 = vmatpush1.bf16.msra.mxu0 %v1071
    %1253 = vmatprep.subr.bf16.mxu0 %v1084
    %1254 = vmatpush1.bf16.msra.mxu0 %v1083
    %1255 = vmatprep.subr.bf16.mxu0 %v1096
    %1256 = vmatpush1.bf16.msra.mxu0 %v1095
    %1257 = vmatprep.subr.bf16.mxu0 %v1108
    %1258 = vmatpush1.bf16.msra.mxu0 %v1107
    %1259 = vmatprep.subr.bf16.mxu0 %v1120
    %1260 = vmatpush1.bf16.msra.mxu0 %v1119
    %1261 = vmatprep.subr.bf16.mxu0 %v1132
    %1262 = vmatpush1.bf16.msra.mxu0 %v1131
    %1263 = vmatprep.subr.bf16.mxu0 %v1144
    %1264 = vmatpush1.bf16.msra.mxu0 %v1143
    %1265 = vmatprep.mubr.bf16.mxu0 %v950
    %1266 = vmatmul.mubr.bf16.gmra.mrb[0].mxu0 %v949
    %v1267 = vpop.f32.mrb[0].mxu0
    %v1268 = vadd.f32 0.0, %v1267
    %v1269 = vpop.f32.mrb[0].mxu0
    %v1270 = vadd.f32 0.0, %v1269
    %v1271 = vpop.f32.mrb[0].mxu0
    %v1272 = vpop.f32.mrb[0].mxu0
    %1273 = vdwg.mxu0
    %1274 = vmatprep.subr.bf16.mxu0 %v966
    %1275 = vmatpush1.bf16.msra.mxu0 %v965
    %1276 = vmatprep.subr.bf16.mxu0 %v978
    %1277 = vmatpush1.bf16.msra.mxu0 %v977
    %1278 = vmatprep.subr.bf16.mxu0 %v990
    %1279 = vmatpush1.bf16.msra.mxu0 %v989
    %1280 = vmatprep.subr.bf16.mxu0 %v1002
    %1281 = vmatpush1.bf16.msra.mxu0 %v1001
    %1282 = vmatprep.subr.bf16.mxu0 %v1014
    %1283 = vmatpush1.bf16.msra.mxu0 %v1013
    %1284 = vmatprep.subr.bf16.mxu0 %v1026
    %1285 = vmatpush1.bf16.msra.mxu0 %v1025
    %1286 = vmatprep.subr.bf16.mxu0 %v1038
    %1287 = vmatpush1.bf16.msra.mxu0 %v1037
    %1288 = vmatprep.subr.bf16.mxu0 %v1050
    %1289 = vmatpush1.bf16.msra.mxu0 %v1049
    %1290 = vmatprep.subr.bf16.mxu0 %v1062
    %1291 = vmatpush1.bf16.msra.mxu0 %v1061
    %1292 = vmatprep.subr.bf16.mxu0 %v1074
    %1293 = vmatpush1.bf16.msra.mxu0 %v1073
    %1294 = vmatprep.subr.bf16.mxu0 %v1086
    %1295 = vmatpush1.bf16.msra.mxu0 %v1085
    %1296 = vmatprep.subr.bf16.mxu0 %v1098
    %1297 = vmatpush1.bf16.msra.mxu0 %v1097
    %1298 = vmatprep.subr.bf16.mxu0 %v1110
    %1299 = vmatpush1.bf16.msra.mxu0 %v1109
    %1300 = vmatprep.subr.bf16.mxu0 %v1122
    %1301 = vmatpush1.bf16.msra.mxu0 %v1121
    %1302 = vmatprep.subr.bf16.mxu0 %v1134
    %1303 = vmatpush1.bf16.msra.mxu0 %v1133
    %1304 = vmatprep.subr.bf16.mxu0 %v1146
    %1305 = vmatpush1.bf16.msra.mxu0 %v1145
    %1306 = vmatprep.mubr.bf16.mxu0 %v950
    %1307 = vmatmul.mubr.bf16.gmra.mrb[0].mxu0 %v949
    %v1308 = vpop.f32.mrb[0].mxu0
    %v1309 = vadd.f32 0.0, %v1308
    %v1310 = vpop.f32.mrb[0].mxu0
    %v1311 = vadd.f32 0.0, %v1310
    %v1312 = vpop.f32.mrb[0].mxu0
    %v1313 = vpop.f32.mrb[0].mxu0
    %1314 = vdwg.mxu0
    %1315 = vmatprep.subr.bf16.mxu0 %v968
    %1316 = vmatpush1.bf16.msra.mxu0 %v967
    %1317 = vmatprep.subr.bf16.mxu0 %v980
    %1318 = vmatpush1.bf16.msra.mxu0 %v979
    %1319 = vmatprep.subr.bf16.mxu0 %v992
    %1320 = vmatpush1.bf16.msra.mxu0 %v991
    %1321 = vmatprep.subr.bf16.mxu0 %v1004
    %1322 = vmatpush1.bf16.msra.mxu0 %v1003
    %1323 = vmatprep.subr.bf16.mxu0 %v1016
    %1324 = vmatpush1.bf16.msra.mxu0 %v1015
    %1325 = vmatprep.subr.bf16.mxu0 %v1028
    %1326 = vmatpush1.bf16.msra.mxu0 %v1027
    %1327 = vmatprep.subr.bf16.mxu0 %v1040
    %1328 = vmatpush1.bf16.msra.mxu0 %v1039
    %1329 = vmatprep.subr.bf16.mxu0 %v1052
    %1330 = vmatpush1.bf16.msra.mxu0 %v1051
    %1331 = vmatprep.subr.bf16.mxu0 %v1064
    %1332 = vmatpush1.bf16.msra.mxu0 %v1063
    %1333 = vmatprep.subr.bf16.mxu0 %v1076
    %1334 = vmatpush1.bf16.msra.mxu0 %v1075
    %1335 = vmatprep.subr.bf16.mxu0 %v1088
    %1336 = vmatpush1.bf16.msra.mxu0 %v1087
    %1337 = vmatprep.subr.bf16.mxu0 %v1100
    %1338 = vmatpush1.bf16.msra.mxu0 %v1099
    %1339 = vmatprep.subr.bf16.mxu0 %v1112
    %1340 = vmatpush1.bf16.msra.mxu0 %v1111
    %1341 = vmatprep.subr.bf16.mxu0 %v1124
    %1342 = vmatpush1.bf16.msra.mxu0 %v1123
    %1343 = vmatprep.subr.bf16.mxu0 %v1136
    %1344 = vmatpush1.bf16.msra.mxu0 %v1135
    %1345 = vmatprep.subr.bf16.mxu0 %v1148
    %1346 = vmatpush1.bf16.msra.mxu0 %v1147
    %1347 = vmatprep.mubr.bf16.mxu0 %v950
    %1348 = vmatmul.mubr.bf16.gmra.mrb[0].mxu0 %v949
    %v1349 = vpop.f32.mrb[0].mxu0
    %v1350 = vadd.f32 0.0, %v1349
    %v1351 = vpop.f32.mrb[0].mxu0
    %v1352 = vpop.f32.mrb[0].mxu0
    %v1353 = vpop.f32.mrb[0].mxu0
    %1354 = vdwg.mxu0
    %1355 = vmatprep.subr.bf16.mxu0 %v970
    %1356 = vmatpush1.bf16.msra.mxu0 %v969
    %1357 = vmatprep.subr.bf16.mxu0 %v982
    %1358 = vmatpush1.bf16.msra.mxu0 %v981
    %1359 = vmatprep.subr.bf16.mxu0 %v994
    %1360 = vmatpush1.bf16.msra.mxu0 %v993
    %1361 = vmatprep.subr.bf16.mxu0 %v1006
    %1362 = vmatpush1.bf16.msra.mxu0 %v1005
    %1363 = vmatprep.subr.bf16.mxu0 %v1018
    %1364 = vmatpush1.bf16.msra.mxu0 %v1017
    %1365 = vmatprep.subr.bf16.mxu0 %v1030
    %1366 = vmatpush1.bf16.msra.mxu0 %v1029
    %1367 = vmatprep.subr.bf16.mxu0 %v1042
    %1368 = vmatpush1.bf16.msra.mxu0 %v1041
    %1369 = vmatprep.subr.bf16.mxu0 %v1054
    %1370 = vmatpush1.bf16.msra.mxu0 %v1053
    %1371 = vmatprep.subr.bf16.mxu0 %v1066
    %1372 = vmatpush1.bf16.msra.mxu0 %v1065
    %1373 = vmatprep.subr.bf16.mxu0 %v1078
    %1374 = vmatpush1.bf16.msra.mxu0 %v1077
    %1375 = vmatprep.subr.bf16.mxu0 %v1090
    %1376 = vmatpush1.bf16.msra.mxu0 %v1089
    %1377 = vmatprep.subr.bf16.mxu0 %v1102
    %1378 = vmatpush1.bf16.msra.mxu0 %v1101
    %1379 = vmatprep.subr.bf16.mxu0 %v1114
    %1380 = vmatpush1.bf16.msra.mxu0 %v1113
    %1381 = vmatprep.subr.bf16.mxu0 %v1126
    %1382 = vmatpush1.bf16.msra.mxu0 %v1125
    %1383 = vmatprep.subr.bf16.mxu0 %v1138
    %1384 = vmatpush1.bf16.msra.mxu0 %v1137
    %1385 = vmatprep.subr.bf16.mxu0 %v1150
    %1386 = vmatpush1.bf16.msra.mxu0 %v1149
    %1387 = vmatprep.mubr.bf16.mxu0 %v950
    %1388 = vmatmul.mubr.bf16.gmra.mrb[0].mxu0 %v949
    %v1389 = vpop.f32.mrb[0].mxu0
    %v1390 = vadd.f32 0.0, %v1389
    %v1391 = vpop.f32.mrb[0].mxu0
    %v1392 = vadd.f32 0.0, %v1391
    %v1393 = vpop.f32.mrb[0].mxu0
    %v1394 = vpop.f32.mrb[0].mxu0
    %1395 = vdwg.mxu0
    %v1397 = vlaneseq
    %v1398 = vshrl.u32 %v1397, 7
    %v1399 = vsub.s32 0, %v1398
    %v1400 = vrot.slane %v918, %v1399
    %v1401 = vlaneseq
    %v1402 = vshrl.u32 %v1401, 7
    %v1403 = vsub.s32 1, %v1402
    %v1404 = vrot.slane %v918, %v1403
    %v1405 = vlaneseq
    %v1406 = vshrl.u32 %v1405, 7
    %v1407 = vsub.s32 2, %v1406
    %v1408 = vrot.slane %v918, %v1407
    %v1409 = vlaneseq
    %v1410 = vshrl.u32 %v1409, 7
    %v1411 = vsub.s32 3, %v1410
    %v1412 = vrot.slane %v918, %v1411
    %v1417 = vadd.f32 %v1350, %v1400
    %v1418 = vadd.f32 %v1390, %v1408
    %v1419 = vadd.f32 %v1392, %v1412
    %v1420 = vmul.f32 %v1417, 0.5
    %v1421 = vtanh.pop %v1420
    %v1422 = vmul.f32 %v1421, 0.5
    %v1423 = vadd.f32 %v1422, 0.5
    %v1424 = vtanh.pop %v1418
    %v1425 = vmul.f32 %v1419, 0.5
    %v1426 = vtanh.pop %v1425
    %v1427 = vmul.f32 %v1426, 0.5
    %v1428 = vadd.f32 %v1427, 0.5
    %v1429 = vmul.f32 %v1423, %v1424
    %v1430 = vtanh.pop %v1429
    %v1431 = vmul.f32 %v1428, %v1430
    %v1432 = vpack.c.bf16 %v1431, %v1431
    %1433 = vst [vmem:[%s6] sm:$0xff] %v1431
    %v1434 = vld [vmem:[#allocation2 + $0x40] sm:$0xff]
    %v1435 = vld [vmem:[#allocation2 + $0x48] sm:$0xff]
    %v1436 = vld [vmem:[#allocation2 + $0x50] sm:$0xff]
    %v1437 = vld [vmem:[#allocation2 + $0x58] sm:$0xff]
    %v1438 = vld [vmem:[#allocation2 + $0x60] sm:$0xff]
    %v1439 = vld [vmem:[#allocation2 + $0x68] sm:$0xff]
    %v1440 = vld [vmem:[#allocation2 + $0x70] sm:$0xff]
    %v1441 = vld [vmem:[#allocation2 + $0x78] sm:$0xff]
    %v1442 = vadd.f32 %v1434, %v1186
    %v1443 = vadd.f32 %v1435, %v1188
    %v1444 = vadd.f32 %v1436, %v1227
    %v1445 = vadd.f32 %v1437, %v1229
    %v1446 = vadd.f32 %v1438, %v1268
    %v1447 = vadd.f32 %v1439, %v1270
    %v1448 = vadd.f32 %v1440, %v1309
    %v1449 = vadd.f32 %v1441, %v1311
    %v1450 = vmul.f32 %v1442, 0.5
    %v1451 = vmul.f32 %v1443, 0.5
    %v1452 = vtanh.pop %v1450
    %v1453 = vtanh.pop %v1451
    %v1454 = vmul.f32 %v1452, 0.5
    %v1455 = vmul.f32 %v1453, 0.5
    %v1456 = vadd.f32 %v1454, 0.5
    %v1457 = vadd.f32 %v1455, 0.5
    %v1458 = vtanh.pop %v1446
    %v1459 = vtanh.pop %v1447
    %v1460 = vmul.f32 %v1448, 0.5
    %v1461 = vmul.f32 %v1449, 0.5
    %v1462 = vtanh.pop %v1460
    %v1463 = vtanh.pop %v1461
    %v1464 = vmul.f32 %v1462, 0.5
    %v1465 = vmul.f32 %v1463, 0.5
    %v1466 = vadd.f32 %v1464, 0.5
    %v1467 = vadd.f32 %v1465, 0.5
    %v1468 = vmul.f32 %v1444, 0.5
    %v1469 = vmul.f32 %v1445, 0.5
    %v1470 = vtanh.pop %v1468
    %v1471 = vtanh.pop %v1469
    %v1472 = vmul.f32 %v1470, 0.5
    %v1473 = vmul.f32 %v1471, 0.5
    %v1474 = vadd.f32 %v1472, 0.5
    %v1475 = vadd.f32 %v1473, 0.5
    %v1476 = vmul.f32 %v1474, %v943
    %v1477 = vmul.f32 %v1475, %v944
    %v1478 = vmul.f32 %v1456, %v1458
    %v1479 = vmul.f32 %v1457, %v1459
    %v1480 = vadd.f32 %v1476, %v1478
    %v1481 = vadd.f32 %v1477, %v1479
    %v1482 = vtanh.pop %v1480
    %v1483 = vtanh.pop %v1481
    %v1484 = vmul.f32 %v1466, %v1482
    %v1485 = vmul.f32 %v1467, %v1483
    %v1486 = vpack.c.bf16 %v1484, %v1484
    %v1487 = vpack.c.bf16 %v1485, %v1485
    %v1488 = vld [vmem:[#allocation3] sm:$0xff]
    %v1489 = vld [vmem:[#allocation3 + $0x8] sm:$0xff]
    %v1490 = vld [vmem:[#allocation3 + $0x10] sm:$0xff]
    %v1491 = vld [vmem:[#allocation3 + $0x18] sm:$0xff]
    %v1492 = vld [vmem:[#allocation3 + $0x20] sm:$0xff]
    %v1493 = vld [vmem:[#allocation3 + $0x28] sm:$0xff]
    %v1494 = vld [vmem:[#allocation3 + $0x30] sm:$0xff]
    %v1495 = vld [vmem:[#allocation3 + $0x38] sm:$0xff]
    %v1496 = vld [vmem:[#allocation3 + $0x40] sm:$0xff]
    %v1497 = vld [vmem:[#allocation3 + $0x48] sm:$0xff]
    %v1498 = vld [vmem:[#allocation3 + $0x50] sm:$0xff]
    %v1499 = vld [vmem:[#allocation3 + $0x58] sm:$0xff]
    %v1500 = vld [vmem:[#allocation3 + $0x60] sm:$0xff]
    %v1501 = vld [vmem:[#allocation3 + $0x68] sm:$0xff]
    %v1502 = vld [vmem:[#allocation3 + $0x70] sm:$0xff]
    %v1503 = vld [vmem:[#allocation3 + $0x78] sm:$0xff]
    %v1504 = vld [vmem:[#allocation3 + $0x80] sm:$0xff]
    %v1505 = vld [vmem:[#allocation3 + $0x88] sm:$0xff]
    %v1506 = vld [vmem:[#allocation3 + $0x90] sm:$0xff]
    %v1507 = vld [vmem:[#allocation3 + $0x98] sm:$0xff]
    %v1508 = vld [vmem:[#allocation3 + $0xa0] sm:$0xff]
    %v1509 = vld [vmem:[#allocation3 + $0xa8] sm:$0xff]
    %v1510 = vld [vmem:[#allocation3 + $0xb0] sm:$0xff]
    %v1511 = vld [vmem:[#allocation3 + $0xb8] sm:$0xff]
    %v1512 = vld [vmem:[#allocation3 + $0xc0] sm:$0xff]
    %v1513 = vld [vmem:[#allocation3 + $0xc8] sm:$0xff]
    %v1514 = vld [vmem:[#allocation3 + $0xd0] sm:$0xff]
    %v1515 = vld [vmem:[#allocation3 + $0xd8] sm:$0xff]
    %v1516 = vld [vmem:[#allocation3 + $0xe0] sm:$0xff]
    %v1517 = vld [vmem:[#allocation3 + $0xe8] sm:$0xff]
    %v1518 = vld [vmem:[#allocation3 + $0xf0] sm:$0xff]
    %v1519 = vld [vmem:[#allocation3 + $0xf8] sm:$0xff]
    %v1520 = vld [vmem:[#allocation3 + $0x100] sm:$0xff]
    %v1521 = vld [vmem:[#allocation3 + $0x108] sm:$0xff]
    %v1522 = vld [vmem:[#allocation3 + $0x110] sm:$0xff]
    %v1523 = vld [vmem:[#allocation3 + $0x118] sm:$0xff]
    %v1524 = vld [vmem:[#allocation3 + $0x120] sm:$0xff]
    %v1525 = vld [vmem:[#allocation3 + $0x128] sm:$0xff]
    %v1526 = vld [vmem:[#allocation3 + $0x130] sm:$0xff]
    %v1527 = vld [vmem:[#allocation3 + $0x138] sm:$0xff]
    %v1528 = vld [vmem:[#allocation3 + $0x140] sm:$0xff]
    %v1529 = vld [vmem:[#allocation3 + $0x148] sm:$0xff]
    %v1530 = vld [vmem:[#allocation3 + $0x150] sm:$0xff]
    %v1531 = vld [vmem:[#allocation3 + $0x158] sm:$0xff]
    %v1532 = vld [vmem:[#allocation3 + $0x160] sm:$0xff]
    %v1533 = vld [vmem:[#allocation3 + $0x168] sm:$0xff]
    %v1534 = vld [vmem:[#allocation3 + $0x170] sm:$0xff]
    %v1535 = vld [vmem:[#allocation3 + $0x178] sm:$0xff]
    %v1536 = vld [vmem:[#allocation3 + $0x180] sm:$0xff]
    %v1537 = vld [vmem:[#allocation3 + $0x188] sm:$0xff]
    %v1538 = vld [vmem:[#allocation3 + $0x190] sm:$0xff]
    %v1539 = vld [vmem:[#allocation3 + $0x198] sm:$0xff]
    %v1540 = vld [vmem:[#allocation3 + $0x1a0] sm:$0xff]
    %v1541 = vld [vmem:[#allocation3 + $0x1a8] sm:$0xff]
    %v1542 = vld [vmem:[#allocation3 + $0x1b0] sm:$0xff]
    %v1543 = vld [vmem:[#allocation3 + $0x1b8] sm:$0xff]
    %v1544 = vld [vmem:[#allocation3 + $0x1c0] sm:$0xff]
    %v1545 = vld [vmem:[#allocation3 + $0x1c8] sm:$0xff]
    %v1546 = vld [vmem:[#allocation3 + $0x1d0] sm:$0xff]
    %v1547 = vld [vmem:[#allocation3 + $0x1d8] sm:$0xff]
    %v1548 = vld [vmem:[#allocation3 + $0x1e0] sm:$0xff]
    %v1549 = vld [vmem:[#allocation3 + $0x1e8] sm:$0xff]
    %v1550 = vld [vmem:[#allocation3 + $0x1f0] sm:$0xff]
    %v1551 = vld [vmem:[#allocation3 + $0x1f8] sm:$0xff]
    %v1552 = vld [vmem:[#allocation3 + $0x200] sm:$0xff]
    %v1553 = vld [vmem:[#allocation3 + $0x208] sm:$0xff]
    %v1554 = vld [vmem:[#allocation3 + $0x210] sm:$0xff]
    %v1555 = vld [vmem:[#allocation3 + $0x218] sm:$0xff]
    %v1556 = vld [vmem:[#allocation3 + $0x220] sm:$0xff]
    %v1557 = vld [vmem:[#allocation3 + $0x228] sm:$0xff]
    %v1558 = vld [vmem:[#allocation3 + $0x230] sm:$0xff]
    %v1559 = vld [vmem:[#allocation3 + $0x238] sm:$0xff]
    %v1560 = vld [vmem:[#allocation3 + $0x240] sm:$0xff]
    %v1561 = vld [vmem:[#allocation3 + $0x248] sm:$0xff]
    %v1562 = vld [vmem:[#allocation3 + $0x250] sm:$0xff]
    %v1563 = vld [vmem:[#allocation3 + $0x258] sm:$0xff]
    %v1564 = vld [vmem:[#allocation3 + $0x260] sm:$0xff]
    %v1565 = vld [vmem:[#allocation3 + $0x268] sm:$0xff]
    %v1566 = vld [vmem:[#allocation3 + $0x270] sm:$0xff]
    %v1567 = vld [vmem:[#allocation3 + $0x278] sm:$0xff]
    %v1568 = vld [vmem:[#allocation3 + $0x280] sm:$0xff]
    %v1569 = vld [vmem:[#allocation3 + $0x288] sm:$0xff]
    %v1570 = vld [vmem:[#allocation3 + $0x290] sm:$0xff]
    %v1571 = vld [vmem:[#allocation3 + $0x298] sm:$0xff]
    %v1572 = vld [vmem:[#allocation3 + $0x2a0] sm:$0xff]
    %v1573 = vld [vmem:[#allocation3 + $0x2a8] sm:$0xff]
    %v1574 = vld [vmem:[#allocation3 + $0x2b0] sm:$0xff]
    %v1575 = vld [vmem:[#allocation3 + $0x2b8] sm:$0xff]
    %v1576 = vld [vmem:[#allocation3 + $0x2c0] sm:$0xff]
    %v1577 = vld [vmem:[#allocation3 + $0x2c8] sm:$0xff]
    %v1578 = vld [vmem:[#allocation3 + $0x2d0] sm:$0xff]
    %v1579 = vld [vmem:[#allocation3 + $0x2d8] sm:$0xff]
    %v1580 = vld [vmem:[#allocation3 + $0x2e0] sm:$0xff]
    %v1581 = vld [vmem:[#allocation3 + $0x2e8] sm:$0xff]
    %v1582 = vld [vmem:[#allocation3 + $0x2f0] sm:$0xff]
    %v1583 = vld [vmem:[#allocation3 + $0x2f8] sm:$0xff]
    %v1584 = vld [vmem:[#allocation3 + $0x300] sm:$0xff]
    %v1585 = vld [vmem:[#allocation3 + $0x308] sm:$0xff]
    %v1586 = vld [vmem:[#allocation3 + $0x310] sm:$0xff]
    %v1587 = vld [vmem:[#allocation3 + $0x318] sm:$0xff]
    %v1588 = vld [vmem:[#allocation3 + $0x320] sm:$0xff]
    %v1589 = vld [vmem:[#allocation3 + $0x328] sm:$0xff]
    %v1590 = vld [vmem:[#allocation3 + $0x330] sm:$0xff]
    %v1591 = vld [vmem:[#allocation3 + $0x338] sm:$0xff]
    %v1592 = vld [vmem:[#allocation3 + $0x340] sm:$0xff]
    %v1593 = vld [vmem:[#allocation3 + $0x348] sm:$0xff]
    %v1594 = vld [vmem:[#allocation3 + $0x350] sm:$0xff]
    %v1595 = vld [vmem:[#allocation3 + $0x358] sm:$0xff]
    %v1596 = vld [vmem:[#allocation3 + $0x360] sm:$0xff]
    %v1597 = vld [vmem:[#allocation3 + $0x368] sm:$0xff]
    %v1598 = vld [vmem:[#allocation3 + $0x370] sm:$0xff]
    %v1599 = vld [vmem:[#allocation3 + $0x378] sm:$0xff]
    %v1600 = vld [vmem:[#allocation3 + $0x380] sm:$0xff]
    %v1601 = vld [vmem:[#allocation3 + $0x388] sm:$0xff]
    %v1602 = vld [vmem:[#allocation3 + $0x390] sm:$0xff]
    %v1603 = vld [vmem:[#allocation3 + $0x398] sm:$0xff]
    %v1604 = vld [vmem:[#allocation3 + $0x3a0] sm:$0xff]
    %v1605 = vld [vmem:[#allocation3 + $0x3a8] sm:$0xff]
    %v1606 = vld [vmem:[#allocation3 + $0x3b0] sm:$0xff]
    %v1607 = vld [vmem:[#allocation3 + $0x3b8] sm:$0xff]
    %v1608 = vld [vmem:[#allocation3 + $0x3c0] sm:$0xff]
    %v1609 = vld [vmem:[#allocation3 + $0x3c8] sm:$0xff]
    %v1610 = vld [vmem:[#allocation3 + $0x3d0] sm:$0xff]
    %v1611 = vld [vmem:[#allocation3 + $0x3d8] sm:$0xff]
    %v1612 = vld [vmem:[#allocation3 + $0x3e0] sm:$0xff]
    %v1613 = vld [vmem:[#allocation3 + $0x3e8] sm:$0xff]
    %v1614 = vld [vmem:[#allocation3 + $0x3f0] sm:$0xff]
    %v1615 = vld [vmem:[#allocation3 + $0x3f8] sm:$0xff]
    %v1616 = vld [vmem:[#allocation3 + $0x400] sm:$0xff]
    %v1617 = vld [vmem:[#allocation3 + $0x408] sm:$0xff]
    %v1618 = vld [vmem:[#allocation3 + $0x410] sm:$0xff]
    %v1619 = vld [vmem:[#allocation3 + $0x418] sm:$0xff]
    %v1620 = vld [vmem:[#allocation3 + $0x420] sm:$0xff]
    %v1621 = vld [vmem:[#allocation3 + $0x428] sm:$0xff]
    %v1622 = vld [vmem:[#allocation3 + $0x430] sm:$0xff]
    %v1623 = vld [vmem:[#allocation3 + $0x438] sm:$0xff]
    %v1624 = vld [vmem:[#allocation3 + $0x440] sm:$0xff]
    %v1625 = vld [vmem:[#allocation3 + $0x448] sm:$0xff]
    %v1626 = vld [vmem:[#allocation3 + $0x450] sm:$0xff]
    %v1627 = vld [vmem:[#allocation3 + $0x458] sm:$0xff]
    %v1628 = vld [vmem:[#allocation3 + $0x460] sm:$0xff]
    %v1629 = vld [vmem:[#allocation3 + $0x468] sm:$0xff]
    %v1630 = vld [vmem:[#allocation3 + $0x470] sm:$0xff]
    %v1631 = vld [vmem:[#allocation3 + $0x478] sm:$0xff]
    %v1632 = vld [vmem:[#allocation3 + $0x480] sm:$0xff]
    %v1633 = vld [vmem:[#allocation3 + $0x488] sm:$0xff]
    %v1634 = vld [vmem:[#allocation3 + $0x490] sm:$0xff]
    %v1635 = vld [vmem:[#allocation3 + $0x498] sm:$0xff]
    %v1636 = vld [vmem:[#allocation3 + $0x4a0] sm:$0xff]
    %v1637 = vld [vmem:[#allocation3 + $0x4a8] sm:$0xff]
    %v1638 = vld [vmem:[#allocation3 + $0x4b0] sm:$0xff]
    %v1639 = vld [vmem:[#allocation3 + $0x4b8] sm:$0xff]
    %v1640 = vld [vmem:[#allocation3 + $0x4c0] sm:$0xff]
    %v1641 = vld [vmem:[#allocation3 + $0x4c8] sm:$0xff]
    %v1642 = vld [vmem:[#allocation3 + $0x4d0] sm:$0xff]
    %v1643 = vld [vmem:[#allocation3 + $0x4d8] sm:$0xff]
    %v1644 = vld [vmem:[#allocation3 + $0x4e0] sm:$0xff]
    %v1645 = vld [vmem:[#allocation3 + $0x4e8] sm:$0xff]
    %v1646 = vld [vmem:[#allocation3 + $0x4f0] sm:$0xff]
    %v1647 = vld [vmem:[#allocation3 + $0x4f8] sm:$0xff]
    %v1648 = vld [vmem:[#allocation3 + $0x500] sm:$0xff]
    %v1649 = vld [vmem:[#allocation3 + $0x508] sm:$0xff]
    %v1650 = vld [vmem:[#allocation3 + $0x510] sm:$0xff]
    %v1651 = vld [vmem:[#allocation3 + $0x518] sm:$0xff]
    %v1652 = vld [vmem:[#allocation3 + $0x520] sm:$0xff]
    %v1653 = vld [vmem:[#allocation3 + $0x528] sm:$0xff]
    %v1654 = vld [vmem:[#allocation3 + $0x530] sm:$0xff]
    %v1655 = vld [vmem:[#allocation3 + $0x538] sm:$0xff]
    %v1656 = vld [vmem:[#allocation3 + $0x540] sm:$0xff]
    %v1657 = vld [vmem:[#allocation3 + $0x548] sm:$0xff]
    %v1658 = vld [vmem:[#allocation3 + $0x550] sm:$0xff]
    %v1659 = vld [vmem:[#allocation3 + $0x558] sm:$0xff]
    %v1660 = vld [vmem:[#allocation3 + $0x560] sm:$0xff]
    %v1661 = vld [vmem:[#allocation3 + $0x568] sm:$0xff]
    %v1662 = vld [vmem:[#allocation3 + $0x570] sm:$0xff]
    %v1663 = vld [vmem:[#allocation3 + $0x578] sm:$0xff]
    %v1664 = vld [vmem:[#allocation3 + $0x580] sm:$0xff]
    %v1665 = vld [vmem:[#allocation3 + $0x588] sm:$0xff]
    %v1666 = vld [vmem:[#allocation3 + $0x590] sm:$0xff]
    %v1667 = vld [vmem:[#allocation3 + $0x598] sm:$0xff]
    %v1668 = vld [vmem:[#allocation3 + $0x5a0] sm:$0xff]
    %v1669 = vld [vmem:[#allocation3 + $0x5a8] sm:$0xff]
    %v1670 = vld [vmem:[#allocation3 + $0x5b0] sm:$0xff]
    %v1671 = vld [vmem:[#allocation3 + $0x5b8] sm:$0xff]
    %v1672 = vld [vmem:[#allocation3 + $0x5c0] sm:$0xff]
    %v1673 = vld [vmem:[#allocation3 + $0x5c8] sm:$0xff]
    %v1674 = vld [vmem:[#allocation3 + $0x5d0] sm:$0xff]
    %v1675 = vld [vmem:[#allocation3 + $0x5d8] sm:$0xff]
    %v1676 = vld [vmem:[#allocation3 + $0x5e0] sm:$0xff]
    %v1677 = vld [vmem:[#allocation3 + $0x5e8] sm:$0xff]
    %v1678 = vld [vmem:[#allocation3 + $0x5f0] sm:$0xff]
    %v1679 = vld [vmem:[#allocation3 + $0x5f8] sm:$0xff]
    %1680 = vmatprep.subr.bf16.mxu0 %v1489
    %1681 = vmatpush1.bf16.msra.mxu0 %v1488
    %1682 = vmatprep.subr.bf16.mxu0 %v1501
    %1683 = vmatpush1.bf16.msra.mxu0 %v1500
    %1684 = vmatprep.subr.bf16.mxu0 %v1513
    %1685 = vmatpush1.bf16.msra.mxu0 %v1512
    %1686 = vmatprep.subr.bf16.mxu0 %v1525
    %1687 = vmatpush1.bf16.msra.mxu0 %v1524
    %1688 = vmatprep.subr.bf16.mxu0 %v1537
    %1689 = vmatpush1.bf16.msra.mxu0 %v1536
    %1690 = vmatprep.subr.bf16.mxu0 %v1549
    %1691 = vmatpush1.bf16.msra.mxu0 %v1548
    %1692 = vmatprep.subr.bf16.mxu0 %v1561
    %1693 = vmatpush1.bf16.msra.mxu0 %v1560
    %1694 = vmatprep.subr.bf16.mxu0 %v1573
    %1695 = vmatpush1.bf16.msra.mxu0 %v1572
    %1696 = vmatprep.subr.bf16.mxu0 %v1585
    %1697 = vmatpush1.bf16.msra.mxu0 %v1584
    %1698 = vmatprep.subr.bf16.mxu0 %v1597
    %1699 = vmatpush1.bf16.msra.mxu0 %v1596
    %1700 = vmatprep.subr.bf16.mxu0 %v1609
    %1701 = vmatpush1.bf16.msra.mxu0 %v1608
    %1702 = vmatprep.subr.bf16.mxu0 %v1621
    %1703 = vmatpush1.bf16.msra.mxu0 %v1620
    %1704 = vmatprep.subr.bf16.mxu0 %v1633
    %1705 = vmatpush1.bf16.msra.mxu0 %v1632
    %1706 = vmatprep.subr.bf16.mxu0 %v1645
    %1707 = vmatpush1.bf16.msra.mxu0 %v1644
    %1708 = vmatprep.subr.bf16.mxu0 %v1657
    %1709 = vmatpush1.bf16.msra.mxu0 %v1656
    %1710 = vmatprep.subr.bf16.mxu0 %v1669
    %1711 = vmatpush1.bf16.msra.mxu0 %v1668
    %1712 = vmatprep.mubr.bf16.mxu0 %v1487
    %1713 = vmatmul.mubr.bf16.gmra.mrb[0].mxu0 %v1486
    %v1714 = vpop.f32.mrb[0].mxu0
    %v1715 = vadd.f32 0.0, %v1714
    %v1716 = vpop.f32.mrb[0].mxu0
    %v1717 = vadd.f32 0.0, %v1716
    %v1718 = vpop.f32.mrb[0].mxu0
    %v1719 = vpop.f32.mrb[0].mxu0
    %1720 = vdwg.mxu0
    %1721 = vmatprep.subr.bf16.mxu0 %v1491
    %1722 = vmatpush1.bf16.msra.mxu0 %v1490
    %1723 = vmatprep.subr.bf16.mxu0 %v1503
    %1724 = vmatpush1.bf16.msra.mxu0 %v1502
    %1725 = vmatprep.subr.bf16.mxu0 %v1515
    %1726 = vmatpush1.bf16.msra.mxu0 %v1514
    %1727 = vmatprep.subr.bf16.mxu0 %v1527
    %1728 = vmatpush1.bf16.msra.mxu0 %v1526
    %1729 = vmatprep.subr.bf16.mxu0 %v1539
    %1730 = vmatpush1.bf16.msra.mxu0 %v1538
    %1731 = vmatprep.subr.bf16.mxu0 %v1551
    %1732 = vmatpush1.bf16.msra.mxu0 %v1550
    %1733 = vmatprep.subr.bf16.mxu0 %v1563
    %1734 = vmatpush1.bf16.msra.mxu0 %v1562
    %1735 = vmatprep.subr.bf16.mxu0 %v1575
    %1736 = vmatpush1.bf16.msra.mxu0 %v1574
    %1737 = vmatprep.subr.bf16.mxu0 %v1587
    %1738 = vmatpush1.bf16.msra.mxu0 %v1586
    %1739 = vmatprep.subr.bf16.mxu0 %v1599
    %1740 = vmatpush1.bf16.msra.mxu0 %v1598
    %1741 = vmatprep.subr.bf16.mxu0 %v1611
    %1742 = vmatpush1.bf16.msra.mxu0 %v1610
    %1743 = vmatprep.subr.bf16.mxu0 %v1623
    %1744 = vmatpush1.bf16.msra.mxu0 %v1622
    %1745 = vmatprep.subr.bf16.mxu0 %v1635
    %1746 = vmatpush1.bf16.msra.mxu0 %v1634
    %1747 = vmatprep.subr.bf16.mxu0 %v1647
    %1748 = vmatpush1.bf16.msra.mxu0 %v1646
    %1749 = vmatprep.subr.bf16.mxu0 %v1659
    %1750 = vmatpush1.bf16.msra.mxu0 %v1658
    %1751 = vmatprep.subr.bf16.mxu0 %v1671
    %1752 = vmatpush1.bf16.msra.mxu0 %v1670
    %1753 = vmatprep.mubr.bf16.mxu0 %v1487
    %1754 = vmatmul.mubr.bf16.gmra.mrb[0].mxu0 %v1486
    %v1755 = vpop.f32.mrb[0].mxu0
    %v1756 = vadd.f32 0.0, %v1755
    %v1757 = vpop.f32.mrb[0].mxu0
    %v1758 = vadd.f32 0.0, %v1757
    %v1759 = vpop.f32.mrb[0].mxu0
    %v1760 = vpop.f32.mrb[0].mxu0
    %1761 = vdwg.mxu0
    %1762 = vmatprep.subr.bf16.mxu0 %v1493
    %1763 = vmatpush1.bf16.msra.mxu0 %v1492
    %1764 = vmatprep.subr.bf16.mxu0 %v1505
    %1765 = vmatpush1.bf16.msra.mxu0 %v1504
    %1766 = vmatprep.subr.bf16.mxu0 %v1517
    %1767 = vmatpush1.bf16.msra.mxu0 %v1516
    %1768 = vmatprep.subr.bf16.mxu0 %v1529
    %1769 = vmatpush1.bf16.msra.mxu0 %v1528
    %1770 = vmatprep.subr.bf16.mxu0 %v1541
    %1771 = vmatpush1.bf16.msra.mxu0 %v1540
    %1772 = vmatprep.subr.bf16.mxu0 %v1553
    %1773 = vmatpush1.bf16.msra.mxu0 %v1552
    %1774 = vmatprep.subr.bf16.mxu0 %v1565
    %1775 = vmatpush1.bf16.msra.mxu0 %v1564
    %1776 = vmatprep.subr.bf16.mxu0 %v1577
    %1777 = vmatpush1.bf16.msra.mxu0 %v1576
    %1778 = vmatprep.subr.bf16.mxu0 %v1589
    %1779 = vmatpush1.bf16.msra.mxu0 %v1588
    %1780 = vmatprep.subr.bf16.mxu0 %v1601
    %1781 = vmatpush1.bf16.msra.mxu0 %v1600
    %1782 = vmatprep.subr.bf16.mxu0 %v1613
    %1783 = vmatpush1.bf16.msra.mxu0 %v1612
    %1784 = vmatprep.subr.bf16.mxu0 %v1625
    %1785 = vmatpush1.bf16.msra.mxu0 %v1624
    %1786 = vmatprep.subr.bf16.mxu0 %v1637
    %1787 = vmatpush1.bf16.msra.mxu0 %v1636
    %1788 = vmatprep.subr.bf16.mxu0 %v1649
    %1789 = vmatpush1.bf16.msra.mxu0 %v1648
    %1790 = vmatprep.subr.bf16.mxu0 %v1661
    %1791 = vmatpush1.bf16.msra.mxu0 %v1660
    %1792 = vmatprep.subr.bf16.mxu0 %v1673
    %1793 = vmatpush1.bf16.msra.mxu0 %v1672
    %1794 = vmatprep.mubr.bf16.mxu0 %v1487
    %1795 = vmatmul.mubr.bf16.gmra.mrb[0].mxu0 %v1486
    %v1796 = vpop.f32.mrb[0].mxu0
    %v1797 = vadd.f32 0.0, %v1796
    %v1798 = vpop.f32.mrb[0].mxu0
    %v1799 = vadd.f32 0.0, %v1798
    %v1800 = vpop.f32.mrb[0].mxu0
    %v1801 = vpop.f32.mrb[0].mxu0
    %1802 = vdwg.mxu0
    %1803 = vmatprep.subr.bf16.mxu0 %v1495
    %1804 = vmatpush1.bf16.msra.mxu0 %v1494
    %1805 = vmatprep.subr.bf16.mxu0 %v1507
    %1806 = vmatpush1.bf16.msra.mxu0 %v1506
    %1807 = vmatprep.subr.bf16.mxu0 %v1519
    %1808 = vmatpush1.bf16.msra.mxu0 %v1518
    %1809 = vmatprep.subr.bf16.mxu0 %v1531
    %1810 = vmatpush1.bf16.msra.mxu0 %v1530
    %1811 = vmatprep.subr.bf16.mxu0 %v1543
    %1812 = vmatpush1.bf16.msra.mxu0 %v1542
    %1813 = vmatprep.subr.bf16.mxu0 %v1555
    %1814 = vmatpush1.bf16.msra.mxu0 %v1554
    %1815 = vmatprep.subr.bf16.mxu0 %v1567
    %1816 = vmatpush1.bf16.msra.mxu0 %v1566
    %1817 = vmatprep.subr.bf16.mxu0 %v1579
    %1818 = vmatpush1.bf16.msra.mxu0 %v1578
    %1819 = vmatprep.subr.bf16.mxu0 %v1591
    %1820 = vmatpush1.bf16.msra.mxu0 %v1590
    %1821 = vmatprep.subr.bf16.mxu0 %v1603
    %1822 = vmatpush1.bf16.msra.mxu0 %v1602
    %1823 = vmatprep.subr.bf16.mxu0 %v1615
    %1824 = vmatpush1.bf16.msra.mxu0 %v1614
    %1825 = vmatprep.subr.bf16.mxu0 %v1627
    %1826 = vmatpush1.bf16.msra.mxu0 %v1626
    %1827 = vmatprep.subr.bf16.mxu0 %v1639
    %1828 = vmatpush1.bf16.msra.mxu0 %v1638
    %1829 = vmatprep.subr.bf16.mxu0 %v1651
    %1830 = vmatpush1.bf16.msra.mxu0 %v1650
    %1831 = vmatprep.subr.bf16.mxu0 %v1663
    %1832 = vmatpush1.bf16.msra.mxu0 %v1662
    %1833 = vmatprep.subr.bf16.mxu0 %v1675
    %1834 = vmatpush1.bf16.msra.mxu0 %v1674
    %1835 = vmatprep.mubr.bf16.mxu0 %v1487
    %1836 = vmatmul.mubr.bf16.gmra.mrb[0].mxu0 %v1486
    %v1837 = vpop.f32.mrb[0].mxu0
    %v1838 = vadd.f32 0.0, %v1837
    %v1839 = vpop.f32.mrb[0].mxu0
    %v1840 = vadd.f32 0.0, %v1839
    %v1841 = vpop.f32.mrb[0].mxu0
    %v1842 = vpop.f32.mrb[0].mxu0
    %1843 = vdwg.mxu0
    %1844 = vmatprep.subr.bf16.mxu0 %v1497
    %1845 = vmatpush1.bf16.msra.mxu0 %v1496
    %1846 = vmatprep.subr.bf16.mxu0 %v1509
    %1847 = vmatpush1.bf16.msra.mxu0 %v1508
    %1848 = vmatprep.subr.bf16.mxu0 %v1521
    %1849 = vmatpush1.bf16.msra.mxu0 %v1520
    %1850 = vmatprep.subr.bf16.mxu0 %v1533
    %1851 = vmatpush1.bf16.msra.mxu0 %v1532
    %1852 = vmatprep.subr.bf16.mxu0 %v1545
    %1853 = vmatpush1.bf16.msra.mxu0 %v1544
    %1854 = vmatprep.subr.bf16.mxu0 %v1557
    %1855 = vmatpush1.bf16.msra.mxu0 %v1556
    %1856 = vmatprep.subr.bf16.mxu0 %v1569
    %1857 = vmatpush1.bf16.msra.mxu0 %v1568
    %1858 = vmatprep.subr.bf16.mxu0 %v1581
    %1859 = vmatpush1.bf16.msra.mxu0 %v1580
    %1860 = vmatprep.subr.bf16.mxu0 %v1593
    %1861 = vmatpush1.bf16.msra.mxu0 %v1592
    %1862 = vmatprep.subr.bf16.mxu0 %v1605
    %1863 = vmatpush1.bf16.msra.mxu0 %v1604
    %1864 = vmatprep.subr.bf16.mxu0 %v1617
    %1865 = vmatpush1.bf16.msra.mxu0 %v1616
    %1866 = vmatprep.subr.bf16.mxu0 %v1629
    %1867 = vmatpush1.bf16.msra.mxu0 %v1628
    %1868 = vmatprep.subr.bf16.mxu0 %v1641
    %1869 = vmatpush1.bf16.msra.mxu0 %v1640
    %1870 = vmatprep.subr.bf16.mxu0 %v1653
    %1871 = vmatpush1.bf16.msra.mxu0 %v1652
    %1872 = vmatprep.subr.bf16.mxu0 %v1665
    %1873 = vmatpush1.bf16.msra.mxu0 %v1664
    %1874 = vmatprep.subr.bf16.mxu0 %v1677
    %1875 = vmatpush1.bf16.msra.mxu0 %v1676
    %1876 = vmatprep.mubr.bf16.mxu0 %v1487
    %1877 = vmatmul.mubr.bf16.gmra.mrb[0].mxu0 %v1486
    %v1878 = vpop.f32.mrb[0].mxu0
    %v1879 = vadd.f32 0.0, %v1878
    %v1880 = vpop.f32.mrb[0].mxu0
    %v1881 = vadd.f32 0.0, %v1880
    %v1882 = vpop.f32.mrb[0].mxu0
    %v1883 = vpop.f32.mrb[0].mxu0
    %1884 = vdwg.mxu0
    %1885 = vmatprep.subr.bf16.mxu0 %v1499
    %1886 = vmatpush1.bf16.msra.mxu0 %v1498
    %1887 = vmatprep.subr.bf16.mxu0 %v1511
    %1888 = vmatpush1.bf16.msra.mxu0 %v1510
    %1889 = vmatprep.subr.bf16.mxu0 %v1523
    %1890 = vmatpush1.bf16.msra.mxu0 %v1522
    %1891 = vmatprep.subr.bf16.mxu0 %v1535
    %1892 = vmatpush1.bf16.msra.mxu0 %v1534
    %1893 = vmatprep.subr.bf16.mxu0 %v1547
    %1894 = vmatpush1.bf16.msra.mxu0 %v1546
    %1895 = vmatprep.subr.bf16.mxu0 %v1559
    %1896 = vmatpush1.bf16.msra.mxu0 %v1558
    %1897 = vmatprep.subr.bf16.mxu0 %v1571
    %1898 = vmatpush1.bf16.msra.mxu0 %v1570
    %1899 = vmatprep.subr.bf16.mxu0 %v1583
    %1900 = vmatpush1.bf16.msra.mxu0 %v1582
    %1901 = vmatprep.subr.bf16.mxu0 %v1595
    %1902 = vmatpush1.bf16.msra.mxu0 %v1594
    %1903 = vmatprep.subr.bf16.mxu0 %v1607
    %1904 = vmatpush1.bf16.msra.mxu0 %v1606
    %1905 = vmatprep.subr.bf16.mxu0 %v1619
    %1906 = vmatpush1.bf16.msra.mxu0 %v1618
    %1907 = vmatprep.subr.bf16.mxu0 %v1631
    %1908 = vmatpush1.bf16.msra.mxu0 %v1630
    %1909 = vmatprep.subr.bf16.mxu0 %v1643
    %1910 = vmatpush1.bf16.msra.mxu0 %v1642
    %1911 = vmatprep.subr.bf16.mxu0 %v1655
    %1912 = vmatpush1.bf16.msra.mxu0 %v1654
    %1913 = vmatprep.subr.bf16.mxu0 %v1667
    %1914 = vmatpush1.bf16.msra.mxu0 %v1666
    %1915 = vmatprep.subr.bf16.mxu0 %v1679
    %1916 = vmatpush1.bf16.msra.mxu0 %v1678
    %1917 = vmatprep.mubr.bf16.mxu0 %v1487
    %1918 = vmatmul.mubr.bf16.gmra.mrb[0].mxu0 %v1486
    %v1919 = vpop.f32.mrb[0].mxu0
    %v1920 = vadd.f32 0.0, %v1919
    %v1921 = vpop.f32.mrb[0].mxu0
    %v1922 = vadd.f32 0.0, %v1921
    %v1923 = vpop.f32.mrb[0].mxu0
    %v1924 = vpop.f32.mrb[0].mxu0
    %1925 = vdwg.mxu0
    %v1926 = vadd.f32 %v1879, %v1400
    %v1927 = vadd.f32 %v1881, %v1404
    %v1928 = vadd.f32 %v1920, %v1408
    %v1929 = vadd.f32 %v1922, %v1412
    %v1930 = vld [vmem:[#allocation4] sm:$0xff]
    %v1931 = vld [vmem:[#allocation4 + $0x8] sm:$0xff]
    %v1932 = vld [vmem:[#allocation4 + $0x10] sm:$0xff]
    %v1933 = vld [vmem:[#allocation4 + $0x18] sm:$0xff]
    %v1934 = vld [vmem:[#allocation4 + $0x20] sm:$0xff]
    %v1935 = vld [vmem:[#allocation4 + $0x28] sm:$0xff]
    %v1936 = vld [vmem:[#allocation4 + $0x30] sm:$0xff]
    %v1937 = vld [vmem:[#allocation4 + $0x38] sm:$0xff]
    %v1938 = vld [vmem:[#allocation4 + $0x40] sm:$0xff]
    %v1939 = vld [vmem:[#allocation4 + $0x48] sm:$0xff]
    %v1940 = vld [vmem:[#allocation4 + $0x50] sm:$0xff]
    %v1941 = vld [vmem:[#allocation4 + $0x58] sm:$0xff]
    %v1942 = vld [vmem:[#allocation4 + $0x60] sm:$0xff]
    %v1943 = vld [vmem:[#allocation4 + $0x68] sm:$0xff]
    %v1944 = vld [vmem:[#allocation4 + $0x70] sm:$0xff]
    %v1945 = vld [vmem:[#allocation4 + $0x78] sm:$0xff]
    %v1946 = vld [vmem:[#allocation4 + $0x80] sm:$0xff]
    %v1947 = vld [vmem:[#allocation4 + $0x88] sm:$0xff]
    %v1948 = vld [vmem:[#allocation4 + $0x90] sm:$0xff]
    %v1949 = vld [vmem:[#allocation4 + $0x98] sm:$0xff]
    %v1950 = vld [vmem:[#allocation4 + $0xa0] sm:$0xff]
    %v1951 = vld [vmem:[#allocation4 + $0xa8] sm:$0xff]
    %v1952 = vld [vmem:[#allocation4 + $0xb0] sm:$0xff]
    %v1953 = vld [vmem:[#allocation4 + $0xb8] sm:$0xff]
    %v1954 = vld [vmem:[#allocation4 + $0xc0] sm:$0xff]
    %v1955 = vld [vmem:[#allocation4 + $0xc8] sm:$0xff]
    %v1956 = vld [vmem:[#allocation4 + $0xd0] sm:$0xff]
    %v1957 = vld [vmem:[#allocation4 + $0xd8] sm:$0xff]
    %v1958 = vld [vmem:[#allocation4 + $0xe0] sm:$0xff]
    %v1959 = vld [vmem:[#allocation4 + $0xe8] sm:$0xff]
    %v1960 = vld [vmem:[#allocation4 + $0xf0] sm:$0xff]
    %v1961 = vld [vmem:[#allocation4 + $0xf8] sm:$0xff]
    %1962 = vmatprep.subr.bf16.mxu0 %v1931
    %1963 = vmatpush1.bf16.msra.mxu0 %v1930
    %1964 = vmatprep.subr.bf16.mxu0 %v1935
    %1965 = vmatpush1.bf16.msra.mxu0 %v1934
    %1966 = vmatprep.subr.bf16.mxu0 %v1939
    %1967 = vmatpush1.bf16.msra.mxu0 %v1938
    %1968 = vmatprep.subr.bf16.mxu0 %v1943
    %1969 = vmatpush1.bf16.msra.mxu0 %v1942
    %1970 = vmatprep.subr.bf16.mxu0 %v1947
    %1971 = vmatpush1.bf16.msra.mxu0 %v1946
    %1972 = vmatprep.subr.bf16.mxu0 %v1951
    %1973 = vmatpush1.bf16.msra.mxu0 %v1950
    %1974 = vmatprep.subr.bf16.mxu0 %v1955
    %1975 = vmatpush1.bf16.msra.mxu0 %v1954
    %1976 = vmatprep.subr.bf16.mxu0 %v1959
    %1977 = vmatpush1.bf16.msra.mxu0 %v1958
    %1978 = vmatprep.subr.bf16.mxu0 0
    %1979 = vmatpush1.bf16.msra.mxu0 0
    %1980 = vmatprep.subr.bf16.mxu0 0
    %1981 = vmatpush1.bf16.msra.mxu0 0
    %1982 = vmatprep.subr.bf16.mxu0 0
    %1983 = vmatpush1.bf16.msra.mxu0 0
    %1984 = vmatprep.subr.bf16.mxu0 0
    %1985 = vmatpush1.bf16.msra.mxu0 0
    %1986 = vmatprep.subr.bf16.mxu0 0
    %1987 = vmatpush1.bf16.msra.mxu0 0
    %1988 = vmatprep.subr.bf16.mxu0 0
    %1989 = vmatpush1.bf16.msra.mxu0 0
    %1990 = vmatprep.subr.bf16.mxu0 0
    %1991 = vmatpush1.bf16.msra.mxu0 0
    %1992 = vmatprep.subr.bf16.mxu0 0
    %1993 = vmatpush1.bf16.msra.mxu0 0
    %1994 = vmatprep.mubr.bf16.mxu0 0
    %1995 = vmatmul.mubr.bf16.gmra.mrb[0].mxu0 %v1432
    %v1996 = vpop.f32.mrb[0].mxu0
    %v1997 = vadd.f32 0.0, %v1996
    %v1998 = vpop.f32.mrb[0].mxu0
    %v1999 = vadd.f32 0.0, %v1998
    %v2000 = vpop.f32.mrb[0].mxu0
    %v2001 = vpop.f32.mrb[0].mxu0
    %2002 = vdwg.mxu0
    %2003 = vmatprep.subr.bf16.mxu0 %v1933
    %2004 = vmatpush1.bf16.msra.mxu0 %v1932
    %2005 = vmatprep.subr.bf16.mxu0 %v1937
    %2006 = vmatpush1.bf16.msra.mxu0 %v1936
    %2007 = vmatprep.subr.bf16.mxu0 %v1941
    %2008 = vmatpush1.bf16.msra.mxu0 %v1940
    %2009 = vmatprep.subr.bf16.mxu0 %v1945
    %2010 = vmatpush1.bf16.msra.mxu0 %v1944
    %2011 = vmatprep.subr.bf16.mxu0 %v1949
    %2012 = vmatpush1.bf16.msra.mxu0 %v1948
    %2013 = vmatprep.subr.bf16.mxu0 %v1953
    %2014 = vmatpush1.bf16.msra.mxu0 %v1952
    %2015 = vmatprep.subr.bf16.mxu0 %v1957
    %2016 = vmatpush1.bf16.msra.mxu0 %v1956
    %2017 = vmatprep.subr.bf16.mxu0 %v1961
    %2018 = vmatpush1.bf16.msra.mxu0 %v1960
    %2019 = vmatprep.subr.bf16.mxu0 0
    %2020 = vmatpush1.bf16.msra.mxu0 0
    %2021 = vmatprep.subr.bf16.mxu0 0
    %2022 = vmatpush1.bf16.msra.mxu0 0
    %2023 = vmatprep.subr.bf16.mxu0 0
    %2024 = vmatpush1.bf16.msra.mxu0 0
    %2025 = vmatprep.subr.bf16.mxu0 0
    %2026 = vmatpush1.bf16.msra.mxu0 0
    %2027 = vmatprep.subr.bf16.mxu0 0
    %2028 = vmatpush1.bf16.msra.mxu0 0
    %2029 = vmatprep.subr.bf16.mxu0 0
    %2030 = vmatpush1.bf16.msra.mxu0 0
    %2031 = vmatprep.subr.bf16.mxu0 0
    %2032 = vmatpush1.bf16.msra.mxu0 0
    %2033 = vmatprep.subr.bf16.mxu0 0
    %2034 = vmatpush1.bf16.msra.mxu0 0
    %2035 = vmatprep.mubr.bf16.mxu0 0
    %2036 = vmatmul.mubr.bf16.gmra.mrb[0].mxu0 %v1432
    %v2037 = vpop.f32.mrb[0].mxu0
    %v2038 = vadd.f32 0.0, %v2037
    %v2039 = vpop.f32.mrb[0].mxu0
    %v2040 = vadd.f32 0.0, %v2039
    %v2041 = vpop.f32.mrb[0].mxu0
    %v2042 = vpop.f32.mrb[0].mxu0
    %2043 = vdwg.mxu0
    %v2044 = vadd.f32 %v1926, %v1997
    %v2045 = vadd.f32 %v1927, %v1999
    %v2046 = vadd.f32 %v1928, %v2038
    %v2047 = vadd.f32 %v1929, %v2040
    %v2048 = vmul.f32 %v2044, 0.5
    %v2049 = vtanh.pop %v2048
    %v2050 = vmul.f32 %v2049, 0.5
    %v2051 = vadd.f32 %v2050, 0.5
    %v2052 = vtanh.pop %v2046
    %v2053 = vmul.f32 %v2047, 0.5
    %v2054 = vtanh.pop %v2053
    %v2055 = vmul.f32 %v2054, 0.5
    %v2056 = vadd.f32 %v2055, 0.5
    %v2057 = vmul.f32 %v2045, 0.5
    %v2058 = vtanh.pop %v2057
    %v2059 = vmul.f32 %v2058, 0.5
    %v2060 = vadd.f32 %v2059, 0.5
    %v2061 = vmul.f32 %v2060, %v1429
    %v2062 = vmul.f32 %v2051, %v2052
    %v2063 = vadd.f32 %v2061, %v2062
    %v2064 = vtanh.pop %v2063
    %v2065 = vmul.f32 %v2056, %v2064
    %v2066 = vpack.c.bf16 %v2065, %v2065
    %2067 = vst [vmem:[%s6 + $0x8] sm:$0xff] %v2065
    %v2068 = vld [vmem:[#allocation2 + $0x80] sm:$0xff]
    %v2069 = vld [vmem:[#allocation2 + $0x88] sm:$0xff]
    %v2070 = vld [vmem:[#allocation2 + $0x90] sm:$0xff]
    %v2071 = vld [vmem:[#allocation2 + $0x98] sm:$0xff]
    %v2072 = vld [vmem:[#allocation2 + $0xa0] sm:$0xff]
    %v2073 = vld [vmem:[#allocation2 + $0xa8] sm:$0xff]
    %v2074 = vld [vmem:[#allocation2 + $0xb0] sm:$0xff]
    %v2075 = vld [vmem:[#allocation2 + $0xb8] sm:$0xff]
    %v2076 = vadd.f32 %v2068, %v1715
    %v2077 = vadd.f32 %v2069, %v1717
    %v2078 = vadd.f32 %v2070, %v1756
    %v2079 = vadd.f32 %v2071, %v1758
    %v2080 = vadd.f32 %v2072, %v1797
    %v2081 = vadd.f32 %v2073, %v1799
    %v2082 = vadd.f32 %v2074, %v1838
    %v2083 = vadd.f32 %v2075, %v1840
    %v2084 = vmul.f32 %v2076, 0.5
    %v2085 = vmul.f32 %v2077, 0.5
    %v2086 = vtanh.pop %v2084
    %v2087 = vtanh.pop %v2085
    %v2088 = vmul.f32 %v2086, 0.5
    %v2089 = vmul.f32 %v2087, 0.5
    %v2090 = vadd.f32 %v2088, 0.5
    %v2091 = vadd.f32 %v2089, 0.5
    %v2092 = vtanh.pop %v2080
    %v2093 = vtanh.pop %v2081
    %v2094 = vmul.f32 %v2082, 0.5
    %v2095 = vmul.f32 %v2083, 0.5
    %v2096 = vtanh.pop %v2094
    %v2097 = vtanh.pop %v2095
    %v2098 = vmul.f32 %v2096, 0.5
    %v2099 = vmul.f32 %v2097, 0.5
    %v2100 = vadd.f32 %v2098, 0.5
    %v2101 = vadd.f32 %v2099, 0.5
    %v2102 = vmul.f32 %v2078, 0.5
    %v2103 = vmul.f32 %v2079, 0.5
    %v2104 = vtanh.pop %v2102
    %v2105 = vtanh.pop %v2103
    %v2106 = vmul.f32 %v2104, 0.5
    %v2107 = vmul.f32 %v2105, 0.5
    %v2108 = vadd.f32 %v2106, 0.5
    %v2109 = vadd.f32 %v2107, 0.5
    %v2110 = vmul.f32 %v2108, %v1480
    %v2111 = vmul.f32 %v2109, %v1481
    %v2112 = vmul.f32 %v2090, %v2092
    %v2113 = vmul.f32 %v2091, %v2093
    %v2114 = vadd.f32 %v2110, %v2112
    %v2115 = vadd.f32 %v2111, %v2113
    %v2116 = vtanh.pop %v2114
    %v2117 = vtanh.pop %v2115
    %v2118 = vmul.f32 %v2100, %v2116
    %v2119 = vmul.f32 %v2101, %v2117
    %v2120 = vpack.c.bf16 %v2118, %v2118
    %v2121 = vpack.c.bf16 %v2119, %v2119
    %v2122 = vld [vmem:[#allocation3] sm:$0xff]
    %v2123 = vld [vmem:[#allocation3 + $0x8] sm:$0xff]
    %v2124 = vld [vmem:[#allocation3 + $0x10] sm:$0xff]
    %v2125 = vld [vmem:[#allocation3 + $0x18] sm:$0xff]
    %v2126 = vld [vmem:[#allocation3 + $0x20] sm:$0xff]
    %v2127 = vld [vmem:[#allocation3 + $0x28] sm:$0xff]
    %v2128 = vld [vmem:[#allocation3 + $0x30] sm:$0xff]
    %v2129 = vld [vmem:[#allocation3 + $0x38] sm:$0xff]
    %v2130 = vld [vmem:[#allocation3 + $0x40] sm:$0xff]
    %v2131 = vld [vmem:[#allocation3 + $0x48] sm:$0xff]
    %v2132 = vld [vmem:[#allocation3 + $0x50] sm:$0xff]
    %v2133 = vld [vmem:[#allocation3 + $0x58] sm:$0xff]
    %v2134 = vld [vmem:[#allocation3 + $0x60] sm:$0xff]
    %v2135 = vld [vmem:[#allocation3 + $0x68] sm:$0xff]
    %v2136 = vld [vmem:[#allocation3 + $0x70] sm:$0xff]
    %v2137 = vld [vmem:[#allocation3 + $0x78] sm:$0xff]
    %v2138 = vld [vmem:[#allocation3 + $0x80] sm:$0xff]
    %v2139 = vld [vmem:[#allocation3 + $0x88] sm:$0xff]
    %v2140 = vld [vmem:[#allocation3 + $0x90] sm:$0xff]
    %v2141 = vld [vmem:[#allocation3 + $0x98] sm:$0xff]
    %v2142 = vld [vmem:[#allocation3 + $0xa0] sm:$0xff]
    %v2143 = vld [vmem:[#allocation3 + $0xa8] sm:$0xff]
    %v2144 = vld [vmem:[#allocation3 + $0xb0] sm:$0xff]
    %v2145 = vld [vmem:[#allocation3 + $0xb8] sm:$0xff]
    %v2146 = vld [vmem:[#allocation3 + $0xc0] sm:$0xff]
    %v2147 = vld [vmem:[#allocation3 + $0xc8] sm:$0xff]
    %v2148 = vld [vmem:[#allocation3 + $0xd0] sm:$0xff]
    %v2149 = vld [vmem:[#allocation3 + $0xd8] sm:$0xff]
    %v2150 = vld [vmem:[#allocation3 + $0xe0] sm:$0xff]
    %v2151 = vld [vmem:[#allocation3 + $0xe8] sm:$0xff]
    %v2152 = vld [vmem:[#allocation3 + $0xf0] sm:$0xff]
    %v2153 = vld [vmem:[#allocation3 + $0xf8] sm:$0xff]
    %v2154 = vld [vmem:[#allocation3 + $0x100] sm:$0xff]
    %v2155 = vld [vmem:[#allocation3 + $0x108] sm:$0xff]
    %v2156 = vld [vmem:[#allocation3 + $0x110] sm:$0xff]
    %v2157 = vld [vmem:[#allocation3 + $0x118] sm:$0xff]
    %v2158 = vld [vmem:[#allocation3 + $0x120] sm:$0xff]
    %v2159 = vld [vmem:[#allocation3 + $0x128] sm:$0xff]
    %v2160 = vld [vmem:[#allocation3 + $0x130] sm:$0xff]
    %v2161 = vld [vmem:[#allocation3 + $0x138] sm:$0xff]
    %v2162 = vld [vmem:[#allocation3 + $0x140] sm:$0xff]
    %v2163 = vld [vmem:[#allocation3 + $0x148] sm:$0xff]
    %v2164 = vld [vmem:[#allocation3 + $0x150] sm:$0xff]
    %v2165 = vld [vmem:[#allocation3 + $0x158] sm:$0xff]
    %v2166 = vld [vmem:[#allocation3 + $0x160] sm:$0xff]
    %v2167 = vld [vmem:[#allocation3 + $0x168] sm:$0xff]
    %v2168 = vld [vmem:[#allocation3 + $0x170] sm:$0xff]
    %v2169 = vld [vmem:[#allocation3 + $0x178] sm:$0xff]
    %v2170 = vld [vmem:[#allocation3 + $0x180] sm:$0xff]
    %v2171 = vld [vmem:[#allocation3 + $0x188] sm:$0xff]
    %v2172 = vld [vmem:[#allocation3 + $0x190] sm:$0xff]
    %v2173 = vld [vmem:[#allocation3 + $0x198] sm:$0xff]
    %v2174 = vld [vmem:[#allocation3 + $0x1a0] sm:$0xff]
    %v2175 = vld [vmem:[#allocation3 + $0x1a8] sm:$0xff]
    %v2176 = vld [vmem:[#allocation3 + $0x1b0] sm:$0xff]
    %v2177 = vld [vmem:[#allocation3 + $0x1b8] sm:$0xff]
    %v2178 = vld [vmem:[#allocation3 + $0x1c0] sm:$0xff]
    %v2179 = vld [vmem:[#allocation3 + $0x1c8] sm:$0xff]
    %v2180 = vld [vmem:[#allocation3 + $0x1d0] sm:$0xff]
    %v2181 = vld [vmem:[#allocation3 + $0x1d8] sm:$0xff]
    %v2182 = vld [vmem:[#allocation3 + $0x1e0] sm:$0xff]
    %v2183 = vld [vmem:[#allocation3 + $0x1e8] sm:$0xff]
    %v2184 = vld [vmem:[#allocation3 + $0x1f0] sm:$0xff]
    %v2185 = vld [vmem:[#allocation3 + $0x1f8] sm:$0xff]
    %v2186 = vld [vmem:[#allocation3 + $0x200] sm:$0xff]
    %v2187 = vld [vmem:[#allocation3 + $0x208] sm:$0xff]
    %v2188 = vld [vmem:[#allocation3 + $0x210] sm:$0xff]
    %v2189 = vld [vmem:[#allocation3 + $0x218] sm:$0xff]
    %v2190 = vld [vmem:[#allocation3 + $0x220] sm:$0xff]
    %v2191 = vld [vmem:[#allocation3 + $0x228] sm:$0xff]
    %v2192 = vld [vmem:[#allocation3 + $0x230] sm:$0xff]
    %v2193 = vld [vmem:[#allocation3 + $0x238] sm:$0xff]
    %v2194 = vld [vmem:[#allocation3 + $0x240] sm:$0xff]
    %v2195 = vld [vmem:[#allocation3 + $0x248] sm:$0xff]
    %v2196 = vld [vmem:[#allocation3 + $0x250] sm:$0xff]
    %v2197 = vld [vmem:[#allocation3 + $0x258] sm:$0xff]
    %v2198 = vld [vmem:[#allocation3 + $0x260] sm:$0xff]
    %v2199 = vld [vmem:[#allocation3 + $0x268] sm:$0xff]
    %v2200 = vld [vmem:[#allocation3 + $0x270] sm:$0xff]
    %v2201 = vld [vmem:[#allocation3 + $0x278] sm:$0xff]
    %v2202 = vld [vmem:[#allocation3 + $0x280] sm:$0xff]
    %v2203 = vld [vmem:[#allocation3 + $0x288] sm:$0xff]
    %v2204 = vld [vmem:[#allocation3 + $0x290] sm:$0xff]
    %v2205 = vld [vmem:[#allocation3 + $0x298] sm:$0xff]
    %v2206 = vld [vmem:[#allocation3 + $0x2a0] sm:$0xff]
    %v2207 = vld [vmem:[#allocation3 + $0x2a8] sm:$0xff]
    %v2208 = vld [vmem:[#allocation3 + $0x2b0] sm:$0xff]
    %v2209 = vld [vmem:[#allocation3 + $0x2b8] sm:$0xff]
    %v2210 = vld [vmem:[#allocation3 + $0x2c0] sm:$0xff]
    %v2211 = vld [vmem:[#allocation3 + $0x2c8] sm:$0xff]
    %v2212 = vld [vmem:[#allocation3 + $0x2d0] sm:$0xff]
    %v2213 = vld [vmem:[#allocation3 + $0x2d8] sm:$0xff]
    %v2214 = vld [vmem:[#allocation3 + $0x2e0] sm:$0xff]
    %v2215 = vld [vmem:[#allocation3 + $0x2e8] sm:$0xff]
    %v2216 = vld [vmem:[#allocation3 + $0x2f0] sm:$0xff]
    %v2217 = vld [vmem:[#allocation3 + $0x2f8] sm:$0xff]
    %v2218 = vld [vmem:[#allocation3 + $0x300] sm:$0xff]
    %v2219 = vld [vmem:[#allocation3 + $0x308] sm:$0xff]
    %v2220 = vld [vmem:[#allocation3 + $0x310] sm:$0xff]
    %v2221 = vld [vmem:[#allocation3 + $0x318] sm:$0xff]
    %v2222 = vld [vmem:[#allocation3 + $0x320] sm:$0xff]
    %v2223 = vld [vmem:[#allocation3 + $0x328] sm:$0xff]
    %v2224 = vld [vmem:[#allocation3 + $0x330] sm:$0xff]
    %v2225 = vld [vmem:[#allocation3 + $0x338] sm:$0xff]
    %v2226 = vld [vmem:[#allocation3 + $0x340] sm:$0xff]
    %v2227 = vld [vmem:[#allocation3 + $0x348] sm:$0xff]
    %v2228 = vld [vmem:[#allocation3 + $0x350] sm:$0xff]
    %v2229 = vld [vmem:[#allocation3 + $0x358] sm:$0xff]
    %v2230 = vld [vmem:[#allocation3 + $0x360] sm:$0xff]
    %v2231 = vld [vmem:[#allocation3 + $0x368] sm:$0xff]
    %v2232 = vld [vmem:[#allocation3 + $0x370] sm:$0xff]
    %v2233 = vld [vmem:[#allocation3 + $0x378] sm:$0xff]
    %v2234 = vld [vmem:[#allocation3 + $0x380] sm:$0xff]
    %v2235 = vld [vmem:[#allocation3 + $0x388] sm:$0xff]
    %v2236 = vld [vmem:[#allocation3 + $0x390] sm:$0xff]
    %v2237 = vld [vmem:[#allocation3 + $0x398] sm:$0xff]
    %v2238 = vld [vmem:[#allocation3 + $0x3a0] sm:$0xff]
    %v2239 = vld [vmem:[#allocation3 + $0x3a8] sm:$0xff]
    %v2240 = vld [vmem:[#allocation3 + $0x3b0] sm:$0xff]
    %v2241 = vld [vmem:[#allocation3 + $0x3b8] sm:$0xff]
    %v2242 = vld [vmem:[#allocation3 + $0x3c0] sm:$0xff]
    %v2243 = vld [vmem:[#allocation3 + $0x3c8] sm:$0xff]
    %v2244 = vld [vmem:[#allocation3 + $0x3d0] sm:$0xff]
    %v2245 = vld [vmem:[#allocation3 + $0x3d8] sm:$0xff]
    %v2246 = vld [vmem:[#allocation3 + $0x3e0] sm:$0xff]
    %v2247 = vld [vmem:[#allocation3 + $0x3e8] sm:$0xff]
    %v2248 = vld [vmem:[#allocation3 + $0x3f0] sm:$0xff]
    %v2249 = vld [vmem:[#allocation3 + $0x3f8] sm:$0xff]
    %v2250 = vld [vmem:[#allocation3 + $0x400] sm:$0xff]
    %v2251 = vld [vmem:[#allocation3 + $0x408] sm:$0xff]
    %v2252 = vld [vmem:[#allocation3 + $0x410] sm:$0xff]
    %v2253 = vld [vmem:[#allocation3 + $0x418] sm:$0xff]
    %v2254 = vld [vmem:[#allocation3 + $0x420] sm:$0xff]
    %v2255 = vld [vmem:[#allocation3 + $0x428] sm:$0xff]
    %v2256 = vld [vmem:[#allocation3 + $0x430] sm:$0xff]
    %v2257 = vld [vmem:[#allocation3 + $0x438] sm:$0xff]
    %v2258 = vld [vmem:[#allocation3 + $0x440] sm:$0xff]
    %v2259 = vld [vmem:[#allocation3 + $0x448] sm:$0xff]
    %v2260 = vld [vmem:[#allocation3 + $0x450] sm:$0xff]
    %v2261 = vld [vmem:[#allocation3 + $0x458] sm:$0xff]
    %v2262 = vld [vmem:[#allocation3 + $0x460] sm:$0xff]
    %v2263 = vld [vmem:[#allocation3 + $0x468] sm:$0xff]
    %v2264 = vld [vmem:[#allocation3 + $0x470] sm:$0xff]
    %v2265 = vld [vmem:[#allocation3 + $0x478] sm:$0xff]
    %v2266 = vld [vmem:[#allocation3 + $0x480] sm:$0xff]
    %v2267 = vld [vmem:[#allocation3 + $0x488] sm:$0xff]
    %v2268 = vld [vmem:[#allocation3 + $0x490] sm:$0xff]
    %v2269 = vld [vmem:[#allocation3 + $0x498] sm:$0xff]
    %v2270 = vld [vmem:[#allocation3 + $0x4a0] sm:$0xff]
    %v2271 = vld [vmem:[#allocation3 + $0x4a8] sm:$0xff]
    %v2272 = vld [vmem:[#allocation3 + $0x4b0] sm:$0xff]
    %v2273 = vld [vmem:[#allocation3 + $0x4b8] sm:$0xff]
    %v2274 = vld [vmem:[#allocation3 + $0x4c0] sm:$0xff]
    %v2275 = vld [vmem:[#allocation3 + $0x4c8] sm:$0xff]
    %v2276 = vld [vmem:[#allocation3 + $0x4d0] sm:$0xff]
    %v2277 = vld [vmem:[#allocation3 + $0x4d8] sm:$0xff]
    %v2278 = vld [vmem:[#allocation3 + $0x4e0] sm:$0xff]
    %v2279 = vld [vmem:[#allocation3 + $0x4e8] sm:$0xff]
    %v2280 = vld [vmem:[#allocation3 + $0x4f0] sm:$0xff]
    %v2281 = vld [vmem:[#allocation3 + $0x4f8] sm:$0xff]
    %v2282 = vld [vmem:[#allocation3 + $0x500] sm:$0xff]
    %v2283 = vld [vmem:[#allocation3 + $0x508] sm:$0xff]
    %v2284 = vld [vmem:[#allocation3 + $0x510] sm:$0xff]
    %v2285 = vld [vmem:[#allocation3 + $0x518] sm:$0xff]
    %v2286 = vld [vmem:[#allocation3 + $0x520] sm:$0xff]
    %v2287 = vld [vmem:[#allocation3 + $0x528] sm:$0xff]
    %v2288 = vld [vmem:[#allocation3 + $0x530] sm:$0xff]
    %v2289 = vld [vmem:[#allocation3 + $0x538] sm:$0xff]
    %v2290 = vld [vmem:[#allocation3 + $0x540] sm:$0xff]
    %v2291 = vld [vmem:[#allocation3 + $0x548] sm:$0xff]
    %v2292 = vld [vmem:[#allocation3 + $0x550] sm:$0xff]
    %v2293 = vld [vmem:[#allocation3 + $0x558] sm:$0xff]
    %v2294 = vld [vmem:[#allocation3 + $0x560] sm:$0xff]
    %v2295 = vld [vmem:[#allocation3 + $0x568] sm:$0xff]
    %v2296 = vld [vmem:[#allocation3 + $0x570] sm:$0xff]
    %v2297 = vld [vmem:[#allocation3 + $0x578] sm:$0xff]
    %v2298 = vld [vmem:[#allocation3 + $0x580] sm:$0xff]
    %v2299 = vld [vmem:[#allocation3 + $0x588] sm:$0xff]
    %v2300 = vld [vmem:[#allocation3 + $0x590] sm:$0xff]
    %v2301 = vld [vmem:[#allocation3 + $0x598] sm:$0xff]
    %v2302 = vld [vmem:[#allocation3 + $0x5a0] sm:$0xff]
    %v2303 = vld [vmem:[#allocation3 + $0x5a8] sm:$0xff]
    %v2304 = vld [vmem:[#allocation3 + $0x5b0] sm:$0xff]
    %v2305 = vld [vmem:[#allocation3 + $0x5b8] sm:$0xff]
    %v2306 = vld [vmem:[#allocation3 + $0x5c0] sm:$0xff]
    %v2307 = vld [vmem:[#allocation3 + $0x5c8] sm:$0xff]
    %v2308 = vld [vmem:[#allocation3 + $0x5d0] sm:$0xff]
    %v2309 = vld [vmem:[#allocation3 + $0x5d8] sm:$0xff]
    %v2310 = vld [vmem:[#allocation3 + $0x5e0] sm:$0xff]
    %v2311 = vld [vmem:[#allocation3 + $0x5e8] sm:$0xff]
    %v2312 = vld [vmem:[#allocation3 + $0x5f0] sm:$0xff]
    %v2313 = vld [vmem:[#allocation3 + $0x5f8] sm:$0xff]
    %2314 = vmatprep.subr.bf16.mxu0 %v2123
    %2315 = vmatpush1.bf16.msra.mxu0 %v2122
    %2316 = vmatprep.subr.bf16.mxu0 %v2135
    %2317 = vmatpush1.bf16.msra.mxu0 %v2134
    %2318 = vmatprep.subr.bf16.mxu0 %v2147
    %2319 = vmatpush1.bf16.msra.mxu0 %v2146
    %2320 = vmatprep.subr.bf16.mxu0 %v2159
    %2321 = vmatpush1.bf16.msra.mxu0 %v2158
    %2322 = vmatprep.subr.bf16.mxu0 %v2171
    %2323 = vmatpush1.bf16.msra.mxu0 %v2170
    %2324 = vmatprep.subr.bf16.mxu0 %v2183
    %2325 = vmatpush1.bf16.msra.mxu0 %v2182
    %2326 = vmatprep.subr.bf16.mxu0 %v2195
    %2327 = vmatpush1.bf16.msra.mxu0 %v2194
    %2328 = vmatprep.subr.bf16.mxu0 %v2207
    %2329 = vmatpush1.bf16.msra.mxu0 %v2206
    %2330 = vmatprep.subr.bf16.mxu0 %v2219
    %2331 = vmatpush1.bf16.msra.mxu0 %v2218
    %2332 = vmatprep.subr.bf16.mxu0 %v2231
    %2333 = vmatpush1.bf16.msra.mxu0 %v2230
    %2334 = vmatprep.subr.bf16.mxu0 %v2243
    %2335 = vmatpush1.bf16.msra.mxu0 %v2242
    %2336 = vmatprep.subr.bf16.mxu0 %v2255
    %2337 = vmatpush1.bf16.msra.mxu0 %v2254
    %2338 = vmatprep.subr.bf16.mxu0 %v2267
    %2339 = vmatpush1.bf16.msra.mxu0 %v2266
    %2340 = vmatprep.subr.bf16.mxu0 %v2279
    %2341 = vmatpush1.bf16.msra.mxu0 %v2278
    %2342 = vmatprep.subr.bf16.mxu0 %v2291
    %2343 = vmatpush1.bf16.msra.mxu0 %v2290
    %2344 = vmatprep.subr.bf16.mxu0 %v2303
    %2345 = vmatpush1.bf16.msra.mxu0 %v2302
    %2346 = vmatprep.mubr.bf16.mxu0 %v2121
    %2347 = vmatmul.mubr.bf16.gmra.mrb[0].mxu0 %v2120
    %v2348 = vpop.f32.mrb[0].mxu0
    %v2349 = vadd.f32 0.0, %v2348
    %v2350 = vpop.f32.mrb[0].mxu0
    %v2351 = vadd.f32 0.0, %v2350
    %v2352 = vpop.f32.mrb[0].mxu0
    %v2353 = vpop.f32.mrb[0].mxu0
    %2354 = vdwg.mxu0
    %2355 = vmatprep.subr.bf16.mxu0 %v2125
    %2356 = vmatpush1.bf16.msra.mxu0 %v2124
    %2357 = vmatprep.subr.bf16.mxu0 %v2137
    %2358 = vmatpush1.bf16.msra.mxu0 %v2136
    %2359 = vmatprep.subr.bf16.mxu0 %v2149
    %2360 = vmatpush1.bf16.msra.mxu0 %v2148
    %2361 = vmatprep.subr.bf16.mxu0 %v2161
    %2362 = vmatpush1.bf16.msra.mxu0 %v2160
    %2363 = vmatprep.subr.bf16.mxu0 %v2173
    %2364 = vmatpush1.bf16.msra.mxu0 %v2172
    %2365 = vmatprep.subr.bf16.mxu0 %v2185
    %2366 = vmatpush1.bf16.msra.mxu0 %v2184
    %2367 = vmatprep.subr.bf16.mxu0 %v2197
    %2368 = vmatpush1.bf16.msra.mxu0 %v2196
    %2369 = vmatprep.subr.bf16.mxu0 %v2209
    %2370 = vmatpush1.bf16.msra.mxu0 %v2208
    %2371 = vmatprep.subr.bf16.mxu0 %v2221
    %2372 = vmatpush1.bf16.msra.mxu0 %v2220
    %2373 = vmatprep.subr.bf16.mxu0 %v2233
    %2374 = vmatpush1.bf16.msra.mxu0 %v2232
    %2375 = vmatprep.subr.bf16.mxu0 %v2245
    %2376 = vmatpush1.bf16.msra.mxu0 %v2244
    %2377 = vmatprep.subr.bf16.mxu0 %v2257
    %2378 = vmatpush1.bf16.msra.mxu0 %v2256
    %2379 = vmatprep.subr.bf16.mxu0 %v2269
    %2380 = vmatpush1.bf16.msra.mxu0 %v2268
    %2381 = vmatprep.subr.bf16.mxu0 %v2281
    %2382 = vmatpush1.bf16.msra.mxu0 %v2280
    %2383 = vmatprep.subr.bf16.mxu0 %v2293
    %2384 = vmatpush1.bf16.msra.mxu0 %v2292
    %2385 = vmatprep.subr.bf16.mxu0 %v2305
    %2386 = vmatpush1.bf16.msra.mxu0 %v2304
    %2387 = vmatprep.mubr.bf16.mxu0 %v2121
    %2388 = vmatmul.mubr.bf16.gmra.mrb[0].mxu0 %v2120
    %v2389 = vpop.f32.mrb[0].mxu0
    %v2390 = vadd.f32 0.0, %v2389
    %v2391 = vpop.f32.mrb[0].mxu0
    %v2392 = vadd.f32 0.0, %v2391
    %v2393 = vpop.f32.mrb[0].mxu0
    %v2394 = vpop.f32.mrb[0].mxu0
    %2395 = vdwg.mxu0
    %2396 = vmatprep.subr.bf16.mxu0 %v2127
    %2397 = vmatpush1.bf16.msra.mxu0 %v2126
    %2398 = vmatprep.subr.bf16.mxu0 %v2139
    %2399 = vmatpush1.bf16.msra.mxu0 %v2138
    %2400 = vmatprep.subr.bf16.mxu0 %v2151
    %2401 = vmatpush1.bf16.msra.mxu0 %v2150
    %2402 = vmatprep.subr.bf16.mxu0 %v2163
    %2403 = vmatpush1.bf16.msra.mxu0 %v2162
    %2404 = vmatprep.subr.bf16.mxu0 %v2175
    %2405 = vmatpush1.bf16.msra.mxu0 %v2174
    %2406 = vmatprep.subr.bf16.mxu0 %v2187
    %2407 = vmatpush1.bf16.msra.mxu0 %v2186
    %2408 = vmatprep.subr.bf16.mxu0 %v2199
    %2409 = vmatpush1.bf16.msra.mxu0 %v2198
    %2410 = vmatprep.subr.bf16.mxu0 %v2211
    %2411 = vmatpush1.bf16.msra.mxu0 %v2210
    %2412 = vmatprep.subr.bf16.mxu0 %v2223
    %2413 = vmatpush1.bf16.msra.mxu0 %v2222
    %2414 = vmatprep.subr.bf16.mxu0 %v2235
    %2415 = vmatpush1.bf16.msra.mxu0 %v2234
    %2416 = vmatprep.subr.bf16.mxu0 %v2247
    %2417 = vmatpush1.bf16.msra.mxu0 %v2246
    %2418 = vmatprep.subr.bf16.mxu0 %v2259
    %2419 = vmatpush1.bf16.msra.mxu0 %v2258
    %2420 = vmatprep.subr.bf16.mxu0 %v2271
    %2421 = vmatpush1.bf16.msra.mxu0 %v2270
    %2422 = vmatprep.subr.bf16.mxu0 %v2283
    %2423 = vmatpush1.bf16.msra.mxu0 %v2282
    %2424 = vmatprep.subr.bf16.mxu0 %v2295
    %2425 = vmatpush1.bf16.msra.mxu0 %v2294
    %2426 = vmatprep.subr.bf16.mxu0 %v2307
    %2427 = vmatpush1.bf16.msra.mxu0 %v2306
    %2428 = vmatprep.mubr.bf16.mxu0 %v2121
    %2429 = vmatmul.mubr.bf16.gmra.mrb[0].mxu0 %v2120
    %v2430 = vpop.f32.mrb[0].mxu0
    %v2431 = vadd.f32 0.0, %v2430
    %v2432 = vpop.f32.mrb[0].mxu0
    %v2433 = vadd.f32 0.0, %v2432
    %v2434 = vpop.f32.mrb[0].mxu0
    %v2435 = vpop.f32.mrb[0].mxu0
    %2436 = vdwg.mxu0
    %2437 = vmatprep.subr.bf16.mxu0 %v2129
    %2438 = vmatpush1.bf16.msra.mxu0 %v2128
    %2439 = vmatprep.subr.bf16.mxu0 %v2141
    %2440 = vmatpush1.bf16.msra.mxu0 %v2140
    %2441 = vmatprep.subr.bf16.mxu0 %v2153
    %2442 = vmatpush1.bf16.msra.mxu0 %v2152
    %2443 = vmatprep.subr.bf16.mxu0 %v2165
    %2444 = vmatpush1.bf16.msra.mxu0 %v2164
    %2445 = vmatprep.subr.bf16.mxu0 %v2177
    %2446 = vmatpush1.bf16.msra.mxu0 %v2176
    %2447 = vmatprep.subr.bf16.mxu0 %v2189
    %2448 = vmatpush1.bf16.msra.mxu0 %v2188
    %2449 = vmatprep.subr.bf16.mxu0 %v2201
    %2450 = vmatpush1.bf16.msra.mxu0 %v2200
    %2451 = vmatprep.subr.bf16.mxu0 %v2213
    %2452 = vmatpush1.bf16.msra.mxu0 %v2212
    %2453 = vmatprep.subr.bf16.mxu0 %v2225
    %2454 = vmatpush1.bf16.msra.mxu0 %v2224
    %2455 = vmatprep.subr.bf16.mxu0 %v2237
    %2456 = vmatpush1.bf16.msra.mxu0 %v2236
    %2457 = vmatprep.subr.bf16.mxu0 %v2249
    %2458 = vmatpush1.bf16.msra.mxu0 %v2248
    %2459 = vmatprep.subr.bf16.mxu0 %v2261
    %2460 = vmatpush1.bf16.msra.mxu0 %v2260
    %2461 = vmatprep.subr.bf16.mxu0 %v2273
    %2462 = vmatpush1.bf16.msra.mxu0 %v2272
    %2463 = vmatprep.subr.bf16.mxu0 %v2285
    %2464 = vmatpush1.bf16.msra.mxu0 %v2284
    %2465 = vmatprep.subr.bf16.mxu0 %v2297
    %2466 = vmatpush1.bf16.msra.mxu0 %v2296
    %2467 = vmatprep.subr.bf16.mxu0 %v2309
    %2468 = vmatpush1.bf16.msra.mxu0 %v2308
    %2469 = vmatprep.mubr.bf16.mxu0 %v2121
    %2470 = vmatmul.mubr.bf16.gmra.mrb[0].mxu0 %v2120
    %v2471 = vpop.f32.mrb[0].mxu0
    %v2472 = vadd.f32 0.0, %v2471
    %v2473 = vpop.f32.mrb[0].mxu0
    %v2474 = vadd.f32 0.0, %v2473
    %v2475 = vpop.f32.mrb[0].mxu0
    %v2476 = vpop.f32.mrb[0].mxu0
    %2477 = vdwg.mxu0
    %2478 = vmatprep.subr.bf16.mxu0 %v2131
    %2479 = vmatpush1.bf16.msra.mxu0 %v2130
    %2480 = vmatprep.subr.bf16.mxu0 %v2143
    %2481 = vmatpush1.bf16.msra.mxu0 %v2142
    %2482 = vmatprep.subr.bf16.mxu0 %v2155
    %2483 = vmatpush1.bf16.msra.mxu0 %v2154
    %2484 = vmatprep.subr.bf16.mxu0 %v2167
    %2485 = vmatpush1.bf16.msra.mxu0 %v2166
    %2486 = vmatprep.subr.bf16.mxu0 %v2179
    %2487 = vmatpush1.bf16.msra.mxu0 %v2178
    %2488 = vmatprep.subr.bf16.mxu0 %v2191
    %2489 = vmatpush1.bf16.msra.mxu0 %v2190
    %2490 = vmatprep.subr.bf16.mxu0 %v2203
    %2491 = vmatpush1.bf16.msra.mxu0 %v2202
    %2492 = vmatprep.subr.bf16.mxu0 %v2215
    %2493 = vmatpush1.bf16.msra.mxu0 %v2214
    %2494 = vmatprep.subr.bf16.mxu0 %v2227
    %2495 = vmatpush1.bf16.msra.mxu0 %v2226
    %2496 = vmatprep.subr.bf16.mxu0 %v2239
    %2497 = vmatpush1.bf16.msra.mxu0 %v2238
    %2498 = vmatprep.subr.bf16.mxu0 %v2251
    %2499 = vmatpush1.bf16.msra.mxu0 %v2250
    %2500 = vmatprep.subr.bf16.mxu0 %v2263
    %2501 = vmatpush1.bf16.msra.mxu0 %v2262
    %2502 = vmatprep.subr.bf16.mxu0 %v2275
    %2503 = vmatpush1.bf16.msra.mxu0 %v2274
    %2504 = vmatprep.subr.bf16.mxu0 %v2287
    %2505 = vmatpush1.bf16.msra.mxu0 %v2286
    %2506 = vmatprep.subr.bf16.mxu0 %v2299
    %2507 = vmatpush1.bf16.msra.mxu0 %v2298
    %2508 = vmatprep.subr.bf16.mxu0 %v2311
    %2509 = vmatpush1.bf16.msra.mxu0 %v2310
    %2510 = vmatprep.mubr.bf16.mxu0 %v2121
    %2511 = vmatmul.mubr.bf16.gmra.mrb[0].mxu0 %v2120
    %v2512 = vpop.f32.mrb[0].mxu0
    %v2513 = vadd.f32 0.0, %v2512
    %v2514 = vpop.f32.mrb[0].mxu0
    %v2515 = vadd.f32 0.0, %v2514
    %v2516 = vpop.f32.mrb[0].mxu0
    %v2517 = vpop.f32.mrb[0].mxu0
    %2518 = vdwg.mxu0
    %2519 = vmatprep.subr.bf16.mxu0 %v2133
    %2520 = vmatpush1.bf16.msra.mxu0 %v2132
    %2521 = vmatprep.subr.bf16.mxu0 %v2145
    %2522 = vmatpush1.bf16.msra.mxu0 %v2144
    %2523 = vmatprep.subr.bf16.mxu0 %v2157
    %2524 = vmatpush1.bf16.msra.mxu0 %v2156
    %2525 = vmatprep.subr.bf16.mxu0 %v2169
    %2526 = vmatpush1.bf16.msra.mxu0 %v2168
    %2527 = vmatprep.subr.bf16.mxu0 %v2181
    %2528 = vmatpush1.bf16.msra.mxu0 %v2180
    %2529 = vmatprep.subr.bf16.mxu0 %v2193
    %2530 = vmatpush1.bf16.msra.mxu0 %v2192
    %2531 = vmatprep.subr.bf16.mxu0 %v2205
    %2532 = vmatpush1.bf16.msra.mxu0 %v2204
    %2533 = vmatprep.subr.bf16.mxu0 %v2217
    %2534 = vmatpush1.bf16.msra.mxu0 %v2216
    %2535 = vmatprep.subr.bf16.mxu0 %v2229
    %2536 = vmatpush1.bf16.msra.mxu0 %v2228
    %2537 = vmatprep.subr.bf16.mxu0 %v2241
    %2538 = vmatpush1.bf16.msra.mxu0 %v2240
    %2539 = vmatprep.subr.bf16.mxu0 %v2253
    %2540 = vmatpush1.bf16.msra.mxu0 %v2252
    %2541 = vmatprep.subr.bf16.mxu0 %v2265
    %2542 = vmatpush1.bf16.msra.mxu0 %v2264
    %2543 = vmatprep.subr.bf16.mxu0 %v2277
    %2544 = vmatpush1.bf16.msra.mxu0 %v2276
    %2545 = vmatprep.subr.bf16.mxu0 %v2289
    %2546 = vmatpush1.bf16.msra.mxu0 %v2288
    %2547 = vmatprep.subr.bf16.mxu0 %v2301
    %2548 = vmatpush1.bf16.msra.mxu0 %v2300
    %2549 = vmatprep.subr.bf16.mxu0 %v2313
    %2550 = vmatpush1.bf16.msra.mxu0 %v2312
    %2551 = vmatprep.mubr.bf16.mxu0 %v2121
    %2552 = vmatmul.mubr.bf16.gmra.mrb[0].mxu0 %v2120
    %v2553 = vpop.f32.mrb[0].mxu0
    %v2554 = vadd.f32 0.0, %v2553
    %v2555 = vpop.f32.mrb[0].mxu0
    %v2556 = vadd.f32 0.0, %v2555
    %v2557 = vpop.f32.mrb[0].mxu0
    %v2558 = vpop.f32.mrb[0].mxu0
    %2559 = vdwg.mxu0
    %v2560 = vadd.f32 %v2513, %v1400
    %v2561 = vadd.f32 %v2515, %v1404
    %v2562 = vadd.f32 %v2554, %v1408
    %v2563 = vadd.f32 %v2556, %v1412
    %v2564 = vld [vmem:[#allocation4] sm:$0xff]
    %v2565 = vld [vmem:[#allocation4 + $0x8] sm:$0xff]
    %v2566 = vld [vmem:[#allocation4 + $0x10] sm:$0xff]
    %v2567 = vld [vmem:[#allocation4 + $0x18] sm:$0xff]
    %v2568 = vld [vmem:[#allocation4 + $0x20] sm:$0xff]
    %v2569 = vld [vmem:[#allocation4 + $0x28] sm:$0xff]
    %v2570 = vld [vmem:[#allocation4 + $0x30] sm:$0xff]
    %v2571 = vld [vmem:[#allocation4 + $0x38] sm:$0xff]
    %v2572 = vld [vmem:[#allocation4 + $0x40] sm:$0xff]
    %v2573 = vld [vmem:[#allocation4 + $0x48] sm:$0xff]
    %v2574 = vld [vmem:[#allocation4 + $0x50] sm:$0xff]
    %v2575 = vld [vmem:[#allocation4 + $0x58] sm:$0xff]
    %v2576 = vld [vmem:[#allocation4 + $0x60] sm:$0xff]
    %v2577 = vld [vmem:[#allocation4 + $0x68] sm:$0xff]
    %v2578 = vld [vmem:[#allocation4 + $0x70] sm:$0xff]
    %v2579 = vld [vmem:[#allocation4 + $0x78] sm:$0xff]
    %v2580 = vld [vmem:[#allocation4 + $0x80] sm:$0xff]
    %v2581 = vld [vmem:[#allocation4 + $0x88] sm:$0xff]
    %v2582 = vld [vmem:[#allocation4 + $0x90] sm:$0xff]
    %v2583 = vld [vmem:[#allocation4 + $0x98] sm:$0xff]
    %v2584 = vld [vmem:[#allocation4 + $0xa0] sm:$0xff]
    %v2585 = vld [vmem:[#allocation4 + $0xa8] sm:$0xff]
    %v2586 = vld [vmem:[#allocation4 + $0xb0] sm:$0xff]
    %v2587 = vld [vmem:[#allocation4 + $0xb8] sm:$0xff]
    %v2588 = vld [vmem:[#allocation4 + $0xc0] sm:$0xff]
    %v2589 = vld [vmem:[#allocation4 + $0xc8] sm:$0xff]
    %v2590 = vld [vmem:[#allocation4 + $0xd0] sm:$0xff]
    %v2591 = vld [vmem:[#allocation4 + $0xd8] sm:$0xff]
    %v2592 = vld [vmem:[#allocation4 + $0xe0] sm:$0xff]
    %v2593 = vld [vmem:[#allocation4 + $0xe8] sm:$0xff]
    %v2594 = vld [vmem:[#allocation4 + $0xf0] sm:$0xff]
    %v2595 = vld [vmem:[#allocation4 + $0xf8] sm:$0xff]
    %2596 = vmatprep.subr.bf16.mxu0 %v2565
    %2597 = vmatpush1.bf16.msra.mxu0 %v2564
    %2598 = vmatprep.subr.bf16.mxu0 %v2569
    %2599 = vmatpush1.bf16.msra.mxu0 %v2568
    %2600 = vmatprep.subr.bf16.mxu0 %v2573
    %2601 = vmatpush1.bf16.msra.mxu0 %v2572
    %2602 = vmatprep.subr.bf16.mxu0 %v2577
    %2603 = vmatpush1.bf16.msra.mxu0 %v2576
    %2604 = vmatprep.subr.bf16.mxu0 %v2581
    %2605 = vmatpush1.bf16.msra.mxu0 %v2580
    %2606 = vmatprep.subr.bf16.mxu0 %v2585
    %2607 = vmatpush1.bf16.msra.mxu0 %v2584
    %2608 = vmatprep.subr.bf16.mxu0 %v2589
    %2609 = vmatpush1.bf16.msra.mxu0 %v2588
    %2610 = vmatprep.subr.bf16.mxu0 %v2593
    %2611 = vmatpush1.bf16.msra.mxu0 %v2592
    %2612 = vmatprep.subr.bf16.mxu0 0
    %2613 = vmatpush1.bf16.msra.mxu0 0
    %2614 = vmatprep.subr.bf16.mxu0 0
    %2615 = vmatpush1.bf16.msra.mxu0 0
    %2616 = vmatprep.subr.bf16.mxu0 0
    %2617 = vmatpush1.bf16.msra.mxu0 0
    %2618 = vmatprep.subr.bf16.mxu0 0
    %2619 = vmatpush1.bf16.msra.mxu0 0
    %2620 = vmatprep.subr.bf16.mxu0 0
    %2621 = vmatpush1.bf16.msra.mxu0 0
    %2622 = vmatprep.subr.bf16.mxu0 0
    %2623 = vmatpush1.bf16.msra.mxu0 0
    %2624 = vmatprep.subr.bf16.mxu0 0
    %2625 = vmatpush1.bf16.msra.mxu0 0
    %2626 = vmatprep.subr.bf16.mxu0 0
    %2627 = vmatpush1.bf16.msra.mxu0 0
    %2628 = vmatprep.mubr.bf16.mxu0 0
    %2629 = vmatmul.mubr.bf16.gmra.mrb[0].mxu0 %v2066
    %v2630 = vpop.f32.mrb[0].mxu0
    %v2631 = vadd.f32 0.0, %v2630
    %v2632 = vpop.f32.mrb[0].mxu0
    %v2633 = vadd.f32 0.0, %v2632
    %v2634 = vpop.f32.mrb[0].mxu0
    %v2635 = vpop.f32.mrb[0].mxu0
    %2636 = vdwg.mxu0
    %2637 = vmatprep.subr.bf16.mxu0 %v2567
    %2638 = vmatpush1.bf16.msra.mxu0 %v2566
    %2639 = vmatprep.subr.bf16.mxu0 %v2571
    %2640 = vmatpush1.bf16.msra.mxu0 %v2570
    %2641 = vmatprep.subr.bf16.mxu0 %v2575
    %2642 = vmatpush1.bf16.msra.mxu0 %v2574
    %2643 = vmatprep.subr.bf16.mxu0 %v2579
    %2644 = vmatpush1.bf16.msra.mxu0 %v2578
    %2645 = vmatprep.subr.bf16.mxu0 %v2583
    %2646 = vmatpush1.bf16.msra.mxu0 %v2582
    %2647 = vmatprep.subr.bf16.mxu0 %v2587
    %2648 = vmatpush1.bf16.msra.mxu0 %v2586
    %2649 = vmatprep.subr.bf16.mxu0 %v2591
    %2650 = vmatpush1.bf16.msra.mxu0 %v2590
    %2651 = vmatprep.subr.bf16.mxu0 %v2595
    %2652 = vmatpush1.bf16.msra.mxu0 %v2594
    %2653 = vmatprep.subr.bf16.mxu0 0
    %2654 = vmatpush1.bf16.msra.mxu0 0
    %2655 = vmatprep.subr.bf16.mxu0 0
    %2656 = vmatpush1.bf16.msra.mxu0 0
    %2657 = vmatprep.subr.bf16.mxu0 0
    %2658 = vmatpush1.bf16.msra.mxu0 0
    %2659 = vmatprep.subr.bf16.mxu0 0
    %2660 = vmatpush1.bf16.msra.mxu0 0
    %2661 = vmatprep.subr.bf16.mxu0 0
    %2662 = vmatpush1.bf16.msra.mxu0 0
    %2663 = vmatprep.subr.bf16.mxu0 0
    %2664 = vmatpush1.bf16.msra.mxu0 0
    %2665 = vmatprep.subr.bf16.mxu0 0
    %2666 = vmatpush1.bf16.msra.mxu0 0
    %2667 = vmatprep.subr.bf16.mxu0 0
    %2668 = vmatpush1.bf16.msra.mxu0 0
    %2669 = vmatprep.mubr.bf16.mxu0 0
    %2670 = vmatmul.mubr.bf16.gmra.mrb[0].mxu0 %v2066
    %v2671 = vpop.f32.mrb[0].mxu0
    %v2672 = vadd.f32 0.0, %v2671
    %v2673 = vpop.f32.mrb[0].mxu0
    %v2674 = vadd.f32 0.0, %v2673
    %v2675 = vpop.f32.mrb[0].mxu0
    %v2676 = vpop.f32.mrb[0].mxu0
    %2677 = vdwg.mxu0
    %v2678 = vadd.f32 %v2560, %v2631
    %v2679 = vadd.f32 %v2561, %v2633
    %v2680 = vadd.f32 %v2562, %v2672
    %v2681 = vadd.f32 %v2563, %v2674
    %v2682 = vmul.f32 %v2678, 0.5
    %v2683 = vtanh.pop %v2682
    %v2684 = vmul.f32 %v2683, 0.5
    %v2685 = vadd.f32 %v2684, 0.5
    %v2686 = vtanh.pop %v2680
    %v2687 = vmul.f32 %v2681, 0.5
    %v2688 = vtanh.pop %v2687
    %v2689 = vmul.f32 %v2688, 0.5
    %v2690 = vadd.f32 %v2689, 0.5
    %v2691 = vmul.f32 %v2679, 0.5
    %v2692 = vtanh.pop %v2691
    %v2693 = vmul.f32 %v2692, 0.5
    %v2694 = vadd.f32 %v2693, 0.5
    %v2695 = vmul.f32 %v2694, %v2063
    %v2696 = vmul.f32 %v2685, %v2686
    %v2697 = vadd.f32 %v2695, %v2696
    %v2698 = vtanh.pop %v2697
    %v2699 = vmul.f32 %v2690, %v2698
    %v2700 = vpack.c.bf16 %v2699, %v2699
    %2701 = vst [vmem:[%s6 + $0x10] sm:$0xff] %v2699
    %v2702 = vld [vmem:[#allocation2 + $0xc0] sm:$0xff]
    %v2703 = vld [vmem:[#allocation2 + $0xc8] sm:$0xff]
    %v2704 = vld [vmem:[#allocation2 + $0xd0] sm:$0xff]
    %v2705 = vld [vmem:[#allocation2 + $0xd8] sm:$0xff]
    %v2706 = vld [vmem:[#allocation2 + $0xe0] sm:$0xff]
    %v2707 = vld [vmem:[#allocation2 + $0xe8] sm:$0xff]
    %v2708 = vld [vmem:[#allocation2 + $0xf0] sm:$0xff]
    %v2709 = vld [vmem:[#allocation2 + $0xf8] sm:$0xff]
    %v2710 = vadd.f32 %v2702, %v2349
    %v2711 = vadd.f32 %v2703, %v2351
    %v2712 = vadd.f32 %v2704, %v2390
    %v2713 = vadd.f32 %v2705, %v2392
    %v2714 = vadd.f32 %v2706, %v2431
    %v2715 = vadd.f32 %v2707, %v2433
    %v2716 = vadd.f32 %v2708, %v2472
    %v2717 = vadd.f32 %v2709, %v2474
    %v2718 = vmul.f32 %v2710, 0.5
    %v2719 = vmul.f32 %v2711, 0.5
    %v2720 = vtanh.pop %v2718
    %v2721 = vtanh.pop %v2719
    %v2722 = vmul.f32 %v2720, 0.5
    %v2723 = vmul.f32 %v2721, 0.5
    %v2724 = vadd.f32 %v2722, 0.5
    %v2725 = vadd.f32 %v2723, 0.5
    %v2726 = vtanh.pop %v2714
    %v2727 = vtanh.pop %v2715
    %v2728 = vmul.f32 %v2716, 0.5
    %v2729 = vmul.f32 %v2717, 0.5
    %v2730 = vtanh.pop %v2728
    %v2731 = vtanh.pop %v2729
    %v2732 = vmul.f32 %v2730, 0.5
    %v2733 = vmul.f32 %v2731, 0.5
    %v2734 = vadd.f32 %v2732, 0.5
    %v2735 = vadd.f32 %v2733, 0.5
    %v2736 = vmul.f32 %v2712, 0.5
    %v2737 = vmul.f32 %v2713, 0.5
    %v2738 = vtanh.pop %v2736
    %v2739 = vtanh.pop %v2737
    %v2740 = vmul.f32 %v2738, 0.5
    %v2741 = vmul.f32 %v2739, 0.5
    %v2742 = vadd.f32 %v2740, 0.5
    %v2743 = vadd.f32 %v2741, 0.5
    %v2744 = vmul.f32 %v2742, %v2114
    %v2745 = vmul.f32 %v2743, %v2115
    %v2746 = vmul.f32 %v2724, %v2726
    %v2747 = vmul.f32 %v2725, %v2727
    %v2748 = vadd.f32 %v2744, %v2746
    %v2749 = vadd.f32 %v2745, %v2747
    %v2750 = vtanh.pop %v2748
    %v2751 = vtanh.pop %v2749
    %v2752 = vmul.f32 %v2734, %v2750
    %v2753 = vmul.f32 %v2735, %v2751
    %v2754 = vpack.c.bf16 %v2752, %v2752
    %v2755 = vpack.c.bf16 %v2753, %v2753
    %v2756 = vld [vmem:[#allocation3] sm:$0xff]
    %v2757 = vld [vmem:[#allocation3 + $0x8] sm:$0xff]
    %v2758 = vld [vmem:[#allocation3 + $0x10] sm:$0xff]
    %v2759 = vld [vmem:[#allocation3 + $0x18] sm:$0xff]
    %v2760 = vld [vmem:[#allocation3 + $0x20] sm:$0xff]
    %v2761 = vld [vmem:[#allocation3 + $0x28] sm:$0xff]
    %v2762 = vld [vmem:[#allocation3 + $0x30] sm:$0xff]
    %v2763 = vld [vmem:[#allocation3 + $0x38] sm:$0xff]
    %v2764 = vld [vmem:[#allocation3 + $0x40] sm:$0xff]
    %v2765 = vld [vmem:[#allocation3 + $0x48] sm:$0xff]
    %v2766 = vld [vmem:[#allocation3 + $0x50] sm:$0xff]
    %v2767 = vld [vmem:[#allocation3 + $0x58] sm:$0xff]
    %v2768 = vld [vmem:[#allocation3 + $0x60] sm:$0xff]
    %v2769 = vld [vmem:[#allocation3 + $0x68] sm:$0xff]
    %v2770 = vld [vmem:[#allocation3 + $0x70] sm:$0xff]
    %v2771 = vld [vmem:[#allocation3 + $0x78] sm:$0xff]
    %v2772 = vld [vmem:[#allocation3 + $0x80] sm:$0xff]
    %v2773 = vld [vmem:[#allocation3 + $0x88] sm:$0xff]
    %v2774 = vld [vmem:[#allocation3 + $0x90] sm:$0xff]
    %v2775 = vld [vmem:[#allocation3 + $0x98] sm:$0xff]
    %v2776 = vld [vmem:[#allocation3 + $0xa0] sm:$0xff]
    %v2777 = vld [vmem:[#allocation3 + $0xa8] sm:$0xff]
    %v2778 = vld [vmem:[#allocation3 + $0xb0] sm:$0xff]
    %v2779 = vld [vmem:[#allocation3 + $0xb8] sm:$0xff]
    %v2780 = vld [vmem:[#allocation3 + $0xc0] sm:$0xff]
    %v2781 = vld [vmem:[#allocation3 + $0xc8] sm:$0xff]
    %v2782 = vld [vmem:[#allocation3 + $0xd0] sm:$0xff]
    %v2783 = vld [vmem:[#allocation3 + $0xd8] sm:$0xff]
    %v2784 = vld [vmem:[#allocation3 + $0xe0] sm:$0xff]
    %v2785 = vld [vmem:[#allocation3 + $0xe8] sm:$0xff]
    %v2786 = vld [vmem:[#allocation3 + $0xf0] sm:$0xff]
    %v2787 = vld [vmem:[#allocation3 + $0xf8] sm:$0xff]
    %v2788 = vld [vmem:[#allocation3 + $0x100] sm:$0xff]
    %v2789 = vld [vmem:[#allocation3 + $0x108] sm:$0xff]
    %v2790 = vld [vmem:[#allocation3 + $0x110] sm:$0xff]
    %v2791 = vld [vmem:[#allocation3 + $0x118] sm:$0xff]
    %v2792 = vld [vmem:[#allocation3 + $0x120] sm:$0xff]
    %v2793 = vld [vmem:[#allocation3 + $0x128] sm:$0xff]
    %v2794 = vld [vmem:[#allocation3 + $0x130] sm:$0xff]
    %v2795 = vld [vmem:[#allocation3 + $0x138] sm:$0xff]
    %v2796 = vld [vmem:[#allocation3 + $0x140] sm:$0xff]
    %v2797 = vld [vmem:[#allocation3 + $0x148] sm:$0xff]
    %v2798 = vld [vmem:[#allocation3 + $0x150] sm:$0xff]
    %v2799 = vld [vmem:[#allocation3 + $0x158] sm:$0xff]
    %v2800 = vld [vmem:[#allocation3 + $0x160] sm:$0xff]
    %v2801 = vld [vmem:[#allocation3 + $0x168] sm:$0xff]
    %v2802 = vld [vmem:[#allocation3 + $0x170] sm:$0xff]
    %v2803 = vld [vmem:[#allocation3 + $0x178] sm:$0xff]
    %v2804 = vld [vmem:[#allocation3 + $0x180] sm:$0xff]
    %v2805 = vld [vmem:[#allocation3 + $0x188] sm:$0xff]
    %v2806 = vld [vmem:[#allocation3 + $0x190] sm:$0xff]
    %v2807 = vld [vmem:[#allocation3 + $0x198] sm:$0xff]
    %v2808 = vld [vmem:[#allocation3 + $0x1a0] sm:$0xff]
    %v2809 = vld [vmem:[#allocation3 + $0x1a8] sm:$0xff]
    %v2810 = vld [vmem:[#allocation3 + $0x1b0] sm:$0xff]
    %v2811 = vld [vmem:[#allocation3 + $0x1b8] sm:$0xff]
    %v2812 = vld [vmem:[#allocation3 + $0x1c0] sm:$0xff]
    %v2813 = vld [vmem:[#allocation3 + $0x1c8] sm:$0xff]
    %v2814 = vld [vmem:[#allocation3 + $0x1d0] sm:$0xff]
    %v2815 = vld [vmem:[#allocation3 + $0x1d8] sm:$0xff]
    %v2816 = vld [vmem:[#allocation3 + $0x1e0] sm:$0xff]
    %v2817 = vld [vmem:[#allocation3 + $0x1e8] sm:$0xff]
    %v2818 = vld [vmem:[#allocation3 + $0x1f0] sm:$0xff]
    %v2819 = vld [vmem:[#allocation3 + $0x1f8] sm:$0xff]
    %v2820 = vld [vmem:[#allocation3 + $0x200] sm:$0xff]
    %v2821 = vld [vmem:[#allocation3 + $0x208] sm:$0xff]
    %v2822 = vld [vmem:[#allocation3 + $0x210] sm:$0xff]
    %v2823 = vld [vmem:[#allocation3 + $0x218] sm:$0xff]
    %v2824 = vld [vmem:[#allocation3 + $0x220] sm:$0xff]
    %v2825 = vld [vmem:[#allocation3 + $0x228] sm:$0xff]
    %v2826 = vld [vmem:[#allocation3 + $0x230] sm:$0xff]
    %v2827 = vld [vmem:[#allocation3 + $0x238] sm:$0xff]
    %v2828 = vld [vmem:[#allocation3 + $0x240] sm:$0xff]
    %v2829 = vld [vmem:[#allocation3 + $0x248] sm:$0xff]
    %v2830 = vld [vmem:[#allocation3 + $0x250] sm:$0xff]
    %v2831 = vld [vmem:[#allocation3 + $0x258] sm:$0xff]
    %v2832 = vld [vmem:[#allocation3 + $0x260] sm:$0xff]
    %v2833 = vld [vmem:[#allocation3 + $0x268] sm:$0xff]
    %v2834 = vld [vmem:[#allocation3 + $0x270] sm:$0xff]
    %v2835 = vld [vmem:[#allocation3 + $0x278] sm:$0xff]
    %v2836 = vld [vmem:[#allocation3 + $0x280] sm:$0xff]
    %v2837 = vld [vmem:[#allocation3 + $0x288] sm:$0xff]
    %v2838 = vld [vmem:[#allocation3 + $0x290] sm:$0xff]
    %v2839 = vld [vmem:[#allocation3 + $0x298] sm:$0xff]
    %v2840 = vld [vmem:[#allocation3 + $0x2a0] sm:$0xff]
    %v2841 = vld [vmem:[#allocation3 + $0x2a8] sm:$0xff]
    %v2842 = vld [vmem:[#allocation3 + $0x2b0] sm:$0xff]
    %v2843 = vld [vmem:[#allocation3 + $0x2b8] sm:$0xff]
    %v2844 = vld [vmem:[#allocation3 + $0x2c0] sm:$0xff]
    %v2845 = vld [vmem:[#allocation3 + $0x2c8] sm:$0xff]
    %v2846 = vld [vmem:[#allocation3 + $0x2d0] sm:$0xff]
    %v2847 = vld [vmem:[#allocation3 + $0x2d8] sm:$0xff]
    %v2848 = vld [vmem:[#allocation3 + $0x2e0] sm:$0xff]
    %v2849 = vld [vmem:[#allocation3 + $0x2e8] sm:$0xff]
    %v2850 = vld [vmem:[#allocation3 + $0x2f0] sm:$0xff]
    %v2851 = vld [vmem:[#allocation3 + $0x2f8] sm:$0xff]
    %v2852 = vld [vmem:[#allocation3 + $0x300] sm:$0xff]
    %v2853 = vld [vmem:[#allocation3 + $0x308] sm:$0xff]
    %v2854 = vld [vmem:[#allocation3 + $0x310] sm:$0xff]
    %v2855 = vld [vmem:[#allocation3 + $0x318] sm:$0xff]
    %v2856 = vld [vmem:[#allocation3 + $0x320] sm:$0xff]
    %v2857 = vld [vmem:[#allocation3 + $0x328] sm:$0xff]
    %v2858 = vld [vmem:[#allocation3 + $0x330] sm:$0xff]
    %v2859 = vld [vmem:[#allocation3 + $0x338] sm:$0xff]
    %v2860 = vld [vmem:[#allocation3 + $0x340] sm:$0xff]
    %v2861 = vld [vmem:[#allocation3 + $0x348] sm:$0xff]
    %v2862 = vld [vmem:[#allocation3 + $0x350] sm:$0xff]
    %v2863 = vld [vmem:[#allocation3 + $0x358] sm:$0xff]
    %v2864 = vld [vmem:[#allocation3 + $0x360] sm:$0xff]
    %v2865 = vld [vmem:[#allocation3 + $0x368] sm:$0xff]
    %v2866 = vld [vmem:[#allocation3 + $0x370] sm:$0xff]
    %v2867 = vld [vmem:[#allocation3 + $0x378] sm:$0xff]
    %v2868 = vld [vmem:[#allocation3 + $0x380] sm:$0xff]
    %v2869 = vld [vmem:[#allocation3 + $0x388] sm:$0xff]
    %v2870 = vld [vmem:[#allocation3 + $0x390] sm:$0xff]
    %v2871 = vld [vmem:[#allocation3 + $0x398] sm:$0xff]
    %v2872 = vld [vmem:[#allocation3 + $0x3a0] sm:$0xff]
    %v2873 = vld [vmem:[#allocation3 + $0x3a8] sm:$0xff]
    %v2874 = vld [vmem:[#allocation3 + $0x3b0] sm:$0xff]
    %v2875 = vld [vmem:[#allocation3 + $0x3b8] sm:$0xff]
    %v2876 = vld [vmem:[#allocation3 + $0x3c0] sm:$0xff]
    %v2877 = vld [vmem:[#allocation3 + $0x3c8] sm:$0xff]
    %v2878 = vld [vmem:[#allocation3 + $0x3d0] sm:$0xff]
    %v2879 = vld [vmem:[#allocation3 + $0x3d8] sm:$0xff]
    %v2880 = vld [vmem:[#allocation3 + $0x3e0] sm:$0xff]
    %v2881 = vld [vmem:[#allocation3 + $0x3e8] sm:$0xff]
    %v2882 = vld [vmem:[#allocation3 + $0x3f0] sm:$0xff]
    %v2883 = vld [vmem:[#allocation3 + $0x3f8] sm:$0xff]
    %v2884 = vld [vmem:[#allocation3 + $0x400] sm:$0xff]
    %v2885 = vld [vmem:[#allocation3 + $0x408] sm:$0xff]
    %v2886 = vld [vmem:[#allocation3 + $0x410] sm:$0xff]
    %v2887 = vld [vmem:[#allocation3 + $0x418] sm:$0xff]
    %v2888 = vld [vmem:[#allocation3 + $0x420] sm:$0xff]
    %v2889 = vld [vmem:[#allocation3 + $0x428] sm:$0xff]
    %v2890 = vld [vmem:[#allocation3 + $0x430] sm:$0xff]
    %v2891 = vld [vmem:[#allocation3 + $0x438] sm:$0xff]
    %v2892 = vld [vmem:[#allocation3 + $0x440] sm:$0xff]
    %v2893 = vld [vmem:[#allocation3 + $0x448] sm:$0xff]
    %v2894 = vld [vmem:[#allocation3 + $0x450] sm:$0xff]
    %v2895 = vld [vmem:[#allocation3 + $0x458] sm:$0xff]
    %v2896 = vld [vmem:[#allocation3 + $0x460] sm:$0xff]
    %v2897 = vld [vmem:[#allocation3 + $0x468] sm:$0xff]
    %v2898 = vld [vmem:[#allocation3 + $0x470] sm:$0xff]
    %v2899 = vld [vmem:[#allocation3 + $0x478] sm:$0xff]
    %v2900 = vld [vmem:[#allocation3 + $0x480] sm:$0xff]
    %v2901 = vld [vmem:[#allocation3 + $0x488] sm:$0xff]
    %v2902 = vld [vmem:[#allocation3 + $0x490] sm:$0xff]
    %v2903 = vld [vmem:[#allocation3 + $0x498] sm:$0xff]
    %v2904 = vld [vmem:[#allocation3 + $0x4a0] sm:$0xff]
    %v2905 = vld [vmem:[#allocation3 + $0x4a8] sm:$0xff]
    %v2906 = vld [vmem:[#allocation3 + $0x4b0] sm:$0xff]
    %v2907 = vld [vmem:[#allocation3 + $0x4b8] sm:$0xff]
    %v2908 = vld [vmem:[#allocation3 + $0x4c0] sm:$0xff]
    %v2909 = vld [vmem:[#allocation3 + $0x4c8] sm:$0xff]
    %v2910 = vld [vmem:[#allocation3 + $0x4d0] sm:$0xff]
    %v2911 = vld [vmem:[#allocation3 + $0x4d8] sm:$0xff]
    %v2912 = vld [vmem:[#allocation3 + $0x4e0] sm:$0xff]
    %v2913 = vld [vmem:[#allocation3 + $0x4e8] sm:$0xff]
    %v2914 = vld [vmem:[#allocation3 + $0x4f0] sm:$0xff]
    %v2915 = vld [vmem:[#allocation3 + $0x4f8] sm:$0xff]
    %v2916 = vld [vmem:[#allocation3 + $0x500] sm:$0xff]
    %v2917 = vld [vmem:[#allocation3 + $0x508] sm:$0xff]
    %v2918 = vld [vmem:[#allocation3 + $0x510] sm:$0xff]
    %v2919 = vld [vmem:[#allocation3 + $0x518] sm:$0xff]
    %v2920 = vld [vmem:[#allocation3 + $0x520] sm:$0xff]
    %v2921 = vld [vmem:[#allocation3 + $0x528] sm:$0xff]
    %v2922 = vld [vmem:[#allocation3 + $0x530] sm:$0xff]
    %v2923 = vld [vmem:[#allocation3 + $0x538] sm:$0xff]
    %v2924 = vld [vmem:[#allocation3 + $0x540] sm:$0xff]
    %v2925 = vld [vmem:[#allocation3 + $0x548] sm:$0xff]
    %v2926 = vld [vmem:[#allocation3 + $0x550] sm:$0xff]
    %v2927 = vld [vmem:[#allocation3 + $0x558] sm:$0xff]
    %v2928 = vld [vmem:[#allocation3 + $0x560] sm:$0xff]
    %v2929 = vld [vmem:[#allocation3 + $0x568] sm:$0xff]
    %v2930 = vld [vmem:[#allocation3 + $0x570] sm:$0xff]
    %v2931 = vld [vmem:[#allocation3 + $0x578] sm:$0xff]
    %v2932 = vld [vmem:[#allocation3 + $0x580] sm:$0xff]
    %v2933 = vld [vmem:[#allocation3 + $0x588] sm:$0xff]
    %v2934 = vld [vmem:[#allocation3 + $0x590] sm:$0xff]
    %v2935 = vld [vmem:[#allocation3 + $0x598] sm:$0xff]
    %v2936 = vld [vmem:[#allocation3 + $0x5a0] sm:$0xff]
    %v2937 = vld [vmem:[#allocation3 + $0x5a8] sm:$0xff]
    %v2938 = vld [vmem:[#allocation3 + $0x5b0] sm:$0xff]
    %v2939 = vld [vmem:[#allocation3 + $0x5b8] sm:$0xff]
    %v2940 = vld [vmem:[#allocation3 + $0x5c0] sm:$0xff]
    %v2941 = vld [vmem:[#allocation3 + $0x5c8] sm:$0xff]
    %v2942 = vld [vmem:[#allocation3 + $0x5d0] sm:$0xff]
    %v2943 = vld [vmem:[#allocation3 + $0x5d8] sm:$0xff]
    %v2944 = vld [vmem:[#allocation3 + $0x5e0] sm:$0xff]
    %v2945 = vld [vmem:[#allocation3 + $0x5e8] sm:$0xff]
    %v2946 = vld [vmem:[#allocation3 + $0x5f0] sm:$0xff]
    %v2947 = vld [vmem:[#allocation3 + $0x5f8] sm:$0xff]
    %2948 = vmatprep.subr.bf16.mxu0 %v2757
    %2949 = vmatpush1.bf16.msra.mxu0 %v2756
    %2950 = vmatprep.subr.bf16.mxu0 %v2769
    %2951 = vmatpush1.bf16.msra.mxu0 %v2768
    %2952 = vmatprep.subr.bf16.mxu0 %v2781
    %2953 = vmatpush1.bf16.msra.mxu0 %v2780
    %2954 = vmatprep.subr.bf16.mxu0 %v2793
    %2955 = vmatpush1.bf16.msra.mxu0 %v2792
    %2956 = vmatprep.subr.bf16.mxu0 %v2805
    %2957 = vmatpush1.bf16.msra.mxu0 %v2804
    %2958 = vmatprep.subr.bf16.mxu0 %v2817
    %2959 = vmatpush1.bf16.msra.mxu0 %v2816
    %2960 = vmatprep.subr.bf16.mxu0 %v2829
    %2961 = vmatpush1.bf16.msra.mxu0 %v2828
    %2962 = vmatprep.subr.bf16.mxu0 %v2841
    %2963 = vmatpush1.bf16.msra.mxu0 %v2840
    %2964 = vmatprep.subr.bf16.mxu0 %v2853
    %2965 = vmatpush1.bf16.msra.mxu0 %v2852
    %2966 = vmatprep.subr.bf16.mxu0 %v2865
    %2967 = vmatpush1.bf16.msra.mxu0 %v2864
    %2968 = vmatprep.subr.bf16.mxu0 %v2877
    %2969 = vmatpush1.bf16.msra.mxu0 %v2876
    %2970 = vmatprep.subr.bf16.mxu0 %v2889
    %2971 = vmatpush1.bf16.msra.mxu0 %v2888
    %2972 = vmatprep.subr.bf16.mxu0 %v2901
    %2973 = vmatpush1.bf16.msra.mxu0 %v2900
    %2974 = vmatprep.subr.bf16.mxu0 %v2913
    %2975 = vmatpush1.bf16.msra.mxu0 %v2912
    %2976 = vmatprep.subr.bf16.mxu0 %v2925
    %2977 = vmatpush1.bf16.msra.mxu0 %v2924
    %2978 = vmatprep.subr.bf16.mxu0 %v2937
    %2979 = vmatpush1.bf16.msra.mxu0 %v2936
    %2980 = vmatprep.mubr.bf16.mxu0 %v2755
    %2981 = vmatmul.mubr.bf16.gmra.mrb[0].mxu0 %v2754
    %v2982 = vpop.f32.mrb[0].mxu0
    %v2983 = vadd.f32 0.0, %v2982
    %v2984 = vpop.f32.mrb[0].mxu0
    %v2985 = vadd.f32 0.0, %v2984
    %v2986 = vpop.f32.mrb[0].mxu0
    %v2987 = vpop.f32.mrb[0].mxu0
    %2988 = vdwg.mxu0
    %2989 = vmatprep.subr.bf16.mxu0 %v2759
    %2990 = vmatpush1.bf16.msra.mxu0 %v2758
    %2991 = vmatprep.subr.bf16.mxu0 %v2771
    %2992 = vmatpush1.bf16.msra.mxu0 %v2770
    %2993 = vmatprep.subr.bf16.mxu0 %v2783
    %2994 = vmatpush1.bf16.msra.mxu0 %v2782
    %2995 = vmatprep.subr.bf16.mxu0 %v2795
    %2996 = vmatpush1.bf16.msra.mxu0 %v2794
    %2997 = vmatprep.subr.bf16.mxu0 %v2807
    %2998 = vmatpush1.bf16.msra.mxu0 %v2806
    %2999 = vmatprep.subr.bf16.mxu0 %v2819
    %3000 = vmatpush1.bf16.msra.mxu0 %v2818
    %3001 = vmatprep.subr.bf16.mxu0 %v2831
    %3002 = vmatpush1.bf16.msra.mxu0 %v2830
    %3003 = vmatprep.subr.bf16.mxu0 %v2843
    %3004 = vmatpush1.bf16.msra.mxu0 %v2842
    %3005 = vmatprep.subr.bf16.mxu0 %v2855
    %3006 = vmatpush1.bf16.msra.mxu0 %v2854
    %3007 = vmatprep.subr.bf16.mxu0 %v2867
    %3008 = vmatpush1.bf16.msra.mxu0 %v2866
    %3009 = vmatprep.subr.bf16.mxu0 %v2879
    %3010 = vmatpush1.bf16.msra.mxu0 %v2878
    %3011 = vmatprep.subr.bf16.mxu0 %v2891
    %3012 = vmatpush1.bf16.msra.mxu0 %v2890
    %3013 = vmatprep.subr.bf16.mxu0 %v2903
    %3014 = vmatpush1.bf16.msra.mxu0 %v2902
    %3015 = vmatprep.subr.bf16.mxu0 %v2915
    %3016 = vmatpush1.bf16.msra.mxu0 %v2914
    %3017 = vmatprep.subr.bf16.mxu0 %v2927
    %3018 = vmatpush1.bf16.msra.mxu0 %v2926
    %3019 = vmatprep.subr.bf16.mxu0 %v2939
    %3020 = vmatpush1.bf16.msra.mxu0 %v2938
    %3021 = vmatprep.mubr.bf16.mxu0 %v2755
    %3022 = vmatmul.mubr.bf16.gmra.mrb[0].mxu0 %v2754
    %v3023 = vpop.f32.mrb[0].mxu0
    %v3024 = vadd.f32 0.0, %v3023
    %v3025 = vpop.f32.mrb[0].mxu0
    %v3026 = vadd.f32 0.0, %v3025
    %v3027 = vpop.f32.mrb[0].mxu0
    %v3028 = vpop.f32.mrb[0].mxu0
    %3029 = vdwg.mxu0
    %3030 = vmatprep.subr.bf16.mxu0 %v2761
    %3031 = vmatpush1.bf16.msra.mxu0 %v2760
    %3032 = vmatprep.subr.bf16.mxu0 %v2773
    %3033 = vmatpush1.bf16.msra.mxu0 %v2772
    %3034 = vmatprep.subr.bf16.mxu0 %v2785
    %3035 = vmatpush1.bf16.msra.mxu0 %v2784
    %3036 = vmatprep.subr.bf16.mxu0 %v2797
    %3037 = vmatpush1.bf16.msra.mxu0 %v2796
    %3038 = vmatprep.subr.bf16.mxu0 %v2809
    %3039 = vmatpush1.bf16.msra.mxu0 %v2808
    %3040 = vmatprep.subr.bf16.mxu0 %v2821
    %3041 = vmatpush1.bf16.msra.mxu0 %v2820
    %3042 = vmatprep.subr.bf16.mxu0 %v2833
    %3043 = vmatpush1.bf16.msra.mxu0 %v2832
    %3044 = vmatprep.subr.bf16.mxu0 %v2845
    %3045 = vmatpush1.bf16.msra.mxu0 %v2844
    %3046 = vmatprep.subr.bf16.mxu0 %v2857
    %3047 = vmatpush1.bf16.msra.mxu0 %v2856
    %3048 = vmatprep.subr.bf16.mxu0 %v2869
    %3049 = vmatpush1.bf16.msra.mxu0 %v2868
    %3050 = vmatprep.subr.bf16.mxu0 %v2881
    %3051 = vmatpush1.bf16.msra.mxu0 %v2880
    %3052 = vmatprep.subr.bf16.mxu0 %v2893
    %3053 = vmatpush1.bf16.msra.mxu0 %v2892
    %3054 = vmatprep.subr.bf16.mxu0 %v2905
    %3055 = vmatpush1.bf16.msra.mxu0 %v2904
    %3056 = vmatprep.subr.bf16.mxu0 %v2917
    %3057 = vmatpush1.bf16.msra.mxu0 %v2916
    %3058 = vmatprep.subr.bf16.mxu0 %v2929
    %3059 = vmatpush1.bf16.msra.mxu0 %v2928
    %3060 = vmatprep.subr.bf16.mxu0 %v2941
    %3061 = vmatpush1.bf16.msra.mxu0 %v2940
    %3062 = vmatprep.mubr.bf16.mxu0 %v2755
    %3063 = vmatmul.mubr.bf16.gmra.mrb[0].mxu0 %v2754
    %v3064 = vpop.f32.mrb[0].mxu0
    %v3065 = vadd.f32 0.0, %v3064
    %v3066 = vpop.f32.mrb[0].mxu0
    %v3067 = vadd.f32 0.0, %v3066
    %v3068 = vpop.f32.mrb[0].mxu0
    %v3069 = vpop.f32.mrb[0].mxu0
    %3070 = vdwg.mxu0
    %3071 = vmatprep.subr.bf16.mxu0 %v2763
    %3072 = vmatpush1.bf16.msra.mxu0 %v2762
    %3073 = vmatprep.subr.bf16.mxu0 %v2775
    %3074 = vmatpush1.bf16.msra.mxu0 %v2774
    %3075 = vmatprep.subr.bf16.mxu0 %v2787
    %3076 = vmatpush1.bf16.msra.mxu0 %v2786
    %3077 = vmatprep.subr.bf16.mxu0 %v2799
    %3078 = vmatpush1.bf16.msra.mxu0 %v2798
    %3079 = vmatprep.subr.bf16.mxu0 %v2811
    %3080 = vmatpush1.bf16.msra.mxu0 %v2810
    %3081 = vmatprep.subr.bf16.mxu0 %v2823
    %3082 = vmatpush1.bf16.msra.mxu0 %v2822
    %3083 = vmatprep.subr.bf16.mxu0 %v2835
    %3084 = vmatpush1.bf16.msra.mxu0 %v2834
    %3085 = vmatprep.subr.bf16.mxu0 %v2847
    %3086 = vmatpush1.bf16.msra.mxu0 %v2846
    %3087 = vmatprep.subr.bf16.mxu0 %v2859
    %3088 = vmatpush1.bf16.msra.mxu0 %v2858
    %3089 = vmatprep.subr.bf16.mxu0 %v2871
    %3090 = vmatpush1.bf16.msra.mxu0 %v2870
    %3091 = vmatprep.subr.bf16.mxu0 %v2883
    %3092 = vmatpush1.bf16.msra.mxu0 %v2882
    %3093 = vmatprep.subr.bf16.mxu0 %v2895
    %3094 = vmatpush1.bf16.msra.mxu0 %v2894
    %3095 = vmatprep.subr.bf16.mxu0 %v2907
    %3096 = vmatpush1.bf16.msra.mxu0 %v2906
    %3097 = vmatprep.subr.bf16.mxu0 %v2919
    %3098 = vmatpush1.bf16.msra.mxu0 %v2918
    %3099 = vmatprep.subr.bf16.mxu0 %v2931
    %3100 = vmatpush1.bf16.msra.mxu0 %v2930
    %3101 = vmatprep.subr.bf16.mxu0 %v2943
    %3102 = vmatpush1.bf16.msra.mxu0 %v2942
    %3103 = vmatprep.mubr.bf16.mxu0 %v2755
    %3104 = vmatmul.mubr.bf16.gmra.mrb[0].mxu0 %v2754
    %v3105 = vpop.f32.mrb[0].mxu0
    %v3106 = vadd.f32 0.0, %v3105
    %v3107 = vpop.f32.mrb[0].mxu0
    %v3108 = vadd.f32 0.0, %v3107
    %v3109 = vpop.f32.mrb[0].mxu0
    %v3110 = vpop.f32.mrb[0].mxu0
    %3111 = vdwg.mxu0
    %3112 = vmatprep.subr.bf16.mxu0 %v2765
    %3113 = vmatpush1.bf16.msra.mxu0 %v2764
    %3114 = vmatprep.subr.bf16.mxu0 %v2777
    %3115 = vmatpush1.bf16.msra.mxu0 %v2776
    %3116 = vmatprep.subr.bf16.mxu0 %v2789
    %3117 = vmatpush1.bf16.msra.mxu0 %v2788
    %3118 = vmatprep.subr.bf16.mxu0 %v2801
    %3119 = vmatpush1.bf16.msra.mxu0 %v2800
    %3120 = vmatprep.subr.bf16.mxu0 %v2813
    %3121 = vmatpush1.bf16.msra.mxu0 %v2812
    %3122 = vmatprep.subr.bf16.mxu0 %v2825
    %3123 = vmatpush1.bf16.msra.mxu0 %v2824
    %3124 = vmatprep.subr.bf16.mxu0 %v2837
    %3125 = vmatpush1.bf16.msra.mxu0 %v2836
    %3126 = vmatprep.subr.bf16.mxu0 %v2849
    %3127 = vmatpush1.bf16.msra.mxu0 %v2848
    %3128 = vmatprep.subr.bf16.mxu0 %v2861
    %3129 = vmatpush1.bf16.msra.mxu0 %v2860
    %3130 = vmatprep.subr.bf16.mxu0 %v2873
    %3131 = vmatpush1.bf16.msra.mxu0 %v2872
    %3132 = vmatprep.subr.bf16.mxu0 %v2885
    %3133 = vmatpush1.bf16.msra.mxu0 %v2884
    %3134 = vmatprep.subr.bf16.mxu0 %v2897
    %3135 = vmatpush1.bf16.msra.mxu0 %v2896
    %3136 = vmatprep.subr.bf16.mxu0 %v2909
    %3137 = vmatpush1.bf16.msra.mxu0 %v2908
    %3138 = vmatprep.subr.bf16.mxu0 %v2921
    %3139 = vmatpush1.bf16.msra.mxu0 %v2920
    %3140 = vmatprep.subr.bf16.mxu0 %v2933
    %3141 = vmatpush1.bf16.msra.mxu0 %v2932
    %3142 = vmatprep.subr.bf16.mxu0 %v2945
    %3143 = vmatpush1.bf16.msra.mxu0 %v2944
    %3144 = vmatprep.mubr.bf16.mxu0 %v2755
    %3145 = vmatmul.mubr.bf16.gmra.mrb[0].mxu0 %v2754
    %v3146 = vpop.f32.mrb[0].mxu0
    %v3147 = vadd.f32 0.0, %v3146
    %v3148 = vpop.f32.mrb[0].mxu0
    %v3149 = vadd.f32 0.0, %v3148
    %v3150 = vpop.f32.mrb[0].mxu0
    %v3151 = vpop.f32.mrb[0].mxu0
    %3152 = vdwg.mxu0
    %3153 = vmatprep.subr.bf16.mxu0 %v2767
    %3154 = vmatpush1.bf16.msra.mxu0 %v2766
    %3155 = vmatprep.subr.bf16.mxu0 %v2779
    %3156 = vmatpush1.bf16.msra.mxu0 %v2778
    %3157 = vmatprep.subr.bf16.mxu0 %v2791
    %3158 = vmatpush1.bf16.msra.mxu0 %v2790
    %3159 = vmatprep.subr.bf16.mxu0 %v2803
    %3160 = vmatpush1.bf16.msra.mxu0 %v2802
    %3161 = vmatprep.subr.bf16.mxu0 %v2815
    %3162 = vmatpush1.bf16.msra.mxu0 %v2814
    %3163 = vmatprep.subr.bf16.mxu0 %v2827
    %3164 = vmatpush1.bf16.msra.mxu0 %v2826
    %3165 = vmatprep.subr.bf16.mxu0 %v2839
    %3166 = vmatpush1.bf16.msra.mxu0 %v2838
    %3167 = vmatprep.subr.bf16.mxu0 %v2851
    %3168 = vmatpush1.bf16.msra.mxu0 %v2850
    %3169 = vmatprep.subr.bf16.mxu0 %v2863
    %3170 = vmatpush1.bf16.msra.mxu0 %v2862
    %3171 = vmatprep.subr.bf16.mxu0 %v2875
    %3172 = vmatpush1.bf16.msra.mxu0 %v2874
    %3173 = vmatprep.subr.bf16.mxu0 %v2887
    %3174 = vmatpush1.bf16.msra.mxu0 %v2886
    %3175 = vmatprep.subr.bf16.mxu0 %v2899
    %3176 = vmatpush1.bf16.msra.mxu0 %v2898
    %3177 = vmatprep.subr.bf16.mxu0 %v2911
    %3178 = vmatpush1.bf16.msra.mxu0 %v2910
    %3179 = vmatprep.subr.bf16.mxu0 %v2923
    %3180 = vmatpush1.bf16.msra.mxu0 %v2922
    %3181 = vmatprep.subr.bf16.mxu0 %v2935
    %3182 = vmatpush1.bf16.msra.mxu0 %v2934
    %3183 = vmatprep.subr.bf16.mxu0 %v2947
    %3184 = vmatpush1.bf16.msra.mxu0 %v2946
    %3185 = vmatprep.mubr.bf16.mxu0 %v2755
    %3186 = vmatmul.mubr.bf16.gmra.mrb[0].mxu0 %v2754
    %v3187 = vpop.f32.mrb[0].mxu0
    %v3188 = vadd.f32 0.0, %v3187
    %v3189 = vpop.f32.mrb[0].mxu0
    %v3190 = vadd.f32 0.0, %v3189
    %v3191 = vpop.f32.mrb[0].mxu0
    %v3192 = vpop.f32.mrb[0].mxu0
    %3193 = vdwg.mxu0
    %v3194 = vadd.f32 %v3147, %v1400
    %v3195 = vadd.f32 %v3149, %v1404
    %v3196 = vadd.f32 %v3188, %v1408
    %v3197 = vadd.f32 %v3190, %v1412
    %v3198 = vld [vmem:[#allocation4] sm:$0xff]
    %v3199 = vld [vmem:[#allocation4 + $0x8] sm:$0xff]
    %v3200 = vld [vmem:[#allocation4 + $0x10] sm:$0xff]
    %v3201 = vld [vmem:[#allocation4 + $0x18] sm:$0xff]
    %v3202 = vld [vmem:[#allocation4 + $0x20] sm:$0xff]
    %v3203 = vld [vmem:[#allocation4 + $0x28] sm:$0xff]
    %v3204 = vld [vmem:[#allocation4 + $0x30] sm:$0xff]
    %v3205 = vld [vmem:[#allocation4 + $0x38] sm:$0xff]
    %v3206 = vld [vmem:[#allocation4 + $0x40] sm:$0xff]
    %v3207 = vld [vmem:[#allocation4 + $0x48] sm:$0xff]
    %v3208 = vld [vmem:[#allocation4 + $0x50] sm:$0xff]
    %v3209 = vld [vmem:[#allocation4 + $0x58] sm:$0xff]
    %v3210 = vld [vmem:[#allocation4 + $0x60] sm:$0xff]
    %v3211 = vld [vmem:[#allocation4 + $0x68] sm:$0xff]
    %v3212 = vld [vmem:[#allocation4 + $0x70] sm:$0xff]
    %v3213 = vld [vmem:[#allocation4 + $0x78] sm:$0xff]
    %v3214 = vld [vmem:[#allocation4 + $0x80] sm:$0xff]
    %v3215 = vld [vmem:[#allocation4 + $0x88] sm:$0xff]
    %v3216 = vld [vmem:[#allocation4 + $0x90] sm:$0xff]
    %v3217 = vld [vmem:[#allocation4 + $0x98] sm:$0xff]
    %v3218 = vld [vmem:[#allocation4 + $0xa0] sm:$0xff]
    %v3219 = vld [vmem:[#allocation4 + $0xa8] sm:$0xff]
    %v3220 = vld [vmem:[#allocation4 + $0xb0] sm:$0xff]
    %v3221 = vld [vmem:[#allocation4 + $0xb8] sm:$0xff]
    %v3222 = vld [vmem:[#allocation4 + $0xc0] sm:$0xff]
    %v3223 = vld [vmem:[#allocation4 + $0xc8] sm:$0xff]
    %v3224 = vld [vmem:[#allocation4 + $0xd0] sm:$0xff]
    %v3225 = vld [vmem:[#allocation4 + $0xd8] sm:$0xff]
    %v3226 = vld [vmem:[#allocation4 + $0xe0] sm:$0xff]
    %v3227 = vld [vmem:[#allocation4 + $0xe8] sm:$0xff]
    %v3228 = vld [vmem:[#allocation4 + $0xf0] sm:$0xff]
    %v3229 = vld [vmem:[#allocation4 + $0xf8] sm:$0xff]
    %3230 = vmatprep.subr.bf16.mxu0 %v3199
    %3231 = vmatpush1.bf16.msra.mxu0 %v3198
    %3232 = vmatprep.subr.bf16.mxu0 %v3203
    %3233 = vmatpush1.bf16.msra.mxu0 %v3202
    %3234 = vmatprep.subr.bf16.mxu0 %v3207
    %3235 = vmatpush1.bf16.msra.mxu0 %v3206
    %3236 = vmatprep.subr.bf16.mxu0 %v3211
    %3237 = vmatpush1.bf16.msra.mxu0 %v3210
    %3238 = vmatprep.subr.bf16.mxu0 %v3215
    %3239 = vmatpush1.bf16.msra.mxu0 %v3214
    %3240 = vmatprep.subr.bf16.mxu0 %v3219
    %3241 = vmatpush1.bf16.msra.mxu0 %v3218
    %3242 = vmatprep.subr.bf16.mxu0 %v3223
    %3243 = vmatpush1.bf16.msra.mxu0 %v3222
    %3244 = vmatprep.subr.bf16.mxu0 %v3227
    %3245 = vmatpush1.bf16.msra.mxu0 %v3226
    %3246 = vmatprep.subr.bf16.mxu0 0
    %3247 = vmatpush1.bf16.msra.mxu0 0
    %3248 = vmatprep.subr.bf16.mxu0 0
    %3249 = vmatpush1.bf16.msra.mxu0 0
    %3250 = vmatprep.subr.bf16.mxu0 0
    %3251 = vmatpush1.bf16.msra.mxu0 0
    %3252 = vmatprep.subr.bf16.mxu0 0
    %3253 = vmatpush1.bf16.msra.mxu0 0
    %3254 = vmatprep.subr.bf16.mxu0 0
    %3255 = vmatpush1.bf16.msra.mxu0 0
    %3256 = vmatprep.subr.bf16.mxu0 0
    %3257 = vmatpush1.bf16.msra.mxu0 0
    %3258 = vmatprep.subr.bf16.mxu0 0
    %3259 = vmatpush1.bf16.msra.mxu0 0
    %3260 = vmatprep.subr.bf16.mxu0 0
    %3261 = vmatpush1.bf16.msra.mxu0 0
    %3262 = vmatprep.mubr.bf16.mxu0 0
    %3263 = vmatmul.mubr.bf16.gmra.mrb[0].mxu0 %v2700
    %v3264 = vpop.f32.mrb[0].mxu0
    %v3265 = vadd.f32 0.0, %v3264
    %v3266 = vpop.f32.mrb[0].mxu0
    %v3267 = vadd.f32 0.0, %v3266
    %v3268 = vpop.f32.mrb[0].mxu0
    %v3269 = vpop.f32.mrb[0].mxu0
    %3270 = vdwg.mxu0
    %3271 = vmatprep.subr.bf16.mxu0 %v3201
    %3272 = vmatpush1.bf16.msra.mxu0 %v3200
    %3273 = vmatprep.subr.bf16.mxu0 %v3205
    %3274 = vmatpush1.bf16.msra.mxu0 %v3204
    %3275 = vmatprep.subr.bf16.mxu0 %v3209
    %3276 = vmatpush1.bf16.msra.mxu0 %v3208
    %3277 = vmatprep.subr.bf16.mxu0 %v3213
    %3278 = vmatpush1.bf16.msra.mxu0 %v3212
    %3279 = vmatprep.subr.bf16.mxu0 %v3217
    %3280 = vmatpush1.bf16.msra.mxu0 %v3216
    %3281 = vmatprep.subr.bf16.mxu0 %v3221
    %3282 = vmatpush1.bf16.msra.mxu0 %v3220
    %3283 = vmatprep.subr.bf16.mxu0 %v3225
    %3284 = vmatpush1.bf16.msra.mxu0 %v3224
    %3285 = vmatprep.subr.bf16.mxu0 %v3229
    %3286 = vmatpush1.bf16.msra.mxu0 %v3228
    %3287 = vmatprep.subr.bf16.mxu0 0
    %3288 = vmatpush1.bf16.msra.mxu0 0
    %3289 = vmatprep.subr.bf16.mxu0 0
    %3290 = vmatpush1.bf16.msra.mxu0 0
    %3291 = vmatprep.subr.bf16.mxu0 0
    %3292 = vmatpush1.bf16.msra.mxu0 0
    %3293 = vmatprep.subr.bf16.mxu0 0
    %3294 = vmatpush1.bf16.msra.mxu0 0
    %3295 = vmatprep.subr.bf16.mxu0 0
    %3296 = vmatpush1.bf16.msra.mxu0 0
    %3297 = vmatprep.subr.bf16.mxu0 0
    %3298 = vmatpush1.bf16.msra.mxu0 0
    %3299 = vmatprep.subr.bf16.mxu0 0
    %3300 = vmatpush1.bf16.msra.mxu0 0
    %3301 = vmatprep.subr.bf16.mxu0 0
    %3302 = vmatpush1.bf16.msra.mxu0 0
    %3303 = vmatprep.mubr.bf16.mxu0 0
    %3304 = vmatmul.mubr.bf16.gmra.mrb[0].mxu0 %v2700
    %v3305 = vpop.f32.mrb[0].mxu0
    %v3306 = vadd.f32 0.0, %v3305
    %v3307 = vpop.f32.mrb[0].mxu0
    %v3308 = vadd.f32 0.0, %v3307
    %v3309 = vpop.f32.mrb[0].mxu0
    %v3310 = vpop.f32.mrb[0].mxu0
    %3311 = vdwg.mxu0
    %v3312 = vadd.f32 %v3194, %v3265
    %v3313 = vadd.f32 %v3195, %v3267
    %v3314 = vadd.f32 %v3196, %v3306
    %v3315 = vadd.f32 %v3197, %v3308
    %v3316 = vmul.f32 %v3312, 0.5
    %v3317 = vtanh.pop %v3316
    %v3318 = vmul.f32 %v3317, 0.5
    %v3319 = vadd.f32 %v3318, 0.5
    %v3320 = vtanh.pop %v3314
    %v3321 = vmul.f32 %v3315, 0.5
    %v3322 = vtanh.pop %v3321
    %v3323 = vmul.f32 %v3322, 0.5
    %v3324 = vadd.f32 %v3323, 0.5
    %v3325 = vmul.f32 %v3313, 0.5
    %v3326 = vtanh.pop %v3325
    %v3327 = vmul.f32 %v3326, 0.5
    %v3328 = vadd.f32 %v3327, 0.5
    %v3329 = vmul.f32 %v3328, %v2697
    %v3330 = vmul.f32 %v3319, %v3320
    %v3331 = vadd.f32 %v3329, %v3330
    %v3332 = vtanh.pop %v3331
    %v3333 = vmul.f32 %v3324, %v3332
    %v3334 = vpack.c.bf16 %v3333, %v3333
    %3335 = vst [vmem:[%s6 + $0x18] sm:$0xff] %v3333
    %v3336 = vld [vmem:[#allocation2 + $0x100] sm:$0xff]
    %v3337 = vld [vmem:[#allocation2 + $0x108] sm:$0xff]
    %v3338 = vld [vmem:[#allocation2 + $0x110] sm:$0xff]
    %v3339 = vld [vmem:[#allocation2 + $0x118] sm:$0xff]
    %v3340 = vld [vmem:[#allocation2 + $0x120] sm:$0xff]
    %v3341 = vld [vmem:[#allocation2 + $0x128] sm:$0xff]
    %v3342 = vld [vmem:[#allocation2 + $0x130] sm:$0xff]
    %v3343 = vld [vmem:[#allocation2 + $0x138] sm:$0xff]
    %v3344 = vadd.f32 %v3336, %v2983
    %v3345 = vadd.f32 %v3337, %v2985
    %v3346 = vadd.f32 %v3338, %v3024
    %v3347 = vadd.f32 %v3339, %v3026
    %v3348 = vadd.f32 %v3340, %v3065
    %v3349 = vadd.f32 %v3341, %v3067
    %v3350 = vadd.f32 %v3342, %v3106
    %v3351 = vadd.f32 %v3343, %v3108
    %v3352 = vmul.f32 %v3344, 0.5
    %v3353 = vmul.f32 %v3345, 0.5
    %v3354 = vtanh.pop %v3352
    %v3355 = vtanh.pop %v3353
    %v3356 = vmul.f32 %v3354, 0.5
    %v3357 = vmul.f32 %v3355, 0.5
    %v3358 = vadd.f32 %v3356, 0.5
    %v3359 = vadd.f32 %v3357, 0.5
    %v3360 = vtanh.pop %v3348
    %v3361 = vtanh.pop %v3349
    %v3362 = vmul.f32 %v3350, 0.5
    %v3363 = vmul.f32 %v3351, 0.5
    %v3364 = vtanh.pop %v3362
    %v3365 = vtanh.pop %v3363
    %v3366 = vmul.f32 %v3364, 0.5
    %v3367 = vmul.f32 %v3365, 0.5
    %v3368 = vadd.f32 %v3366, 0.5
    %v3369 = vadd.f32 %v3367, 0.5
    %v3370 = vmul.f32 %v3346, 0.5
    %v3371 = vmul.f32 %v3347, 0.5
    %v3372 = vtanh.pop %v3370
    %v3373 = vtanh.pop %v3371
    %v3374 = vmul.f32 %v3372, 0.5
    %v3375 = vmul.f32 %v3373, 0.5
    %v3376 = vadd.f32 %v3374, 0.5
    %v3377 = vadd.f32 %v3375, 0.5
    %v3378 = vmul.f32 %v3376, %v2748
    %v3379 = vmul.f32 %v3377, %v2749
    %v3380 = vmul.f32 %v3358, %v3360
    %v3381 = vmul.f32 %v3359, %v3361
    %v3382 = vadd.f32 %v3378, %v3380
    %v3383 = vadd.f32 %v3379, %v3381
    %v3384 = vtanh.pop %v3382
    %v3385 = vtanh.pop %v3383
    %v3386 = vmul.f32 %v3368, %v3384
    %v3387 = vmul.f32 %v3369, %v3385
    %v3388 = vpack.c.bf16 %v3386, %v3386
    %v3389 = vpack.c.bf16 %v3387, %v3387
    %v3390 = vld [vmem:[#allocation3] sm:$0xff]
    %v3391 = vld [vmem:[#allocation3 + $0x8] sm:$0xff]
    %v3392 = vld [vmem:[#allocation3 + $0x10] sm:$0xff]
    %v3393 = vld [vmem:[#allocation3 + $0x18] sm:$0xff]
    %v3394 = vld [vmem:[#allocation3 + $0x20] sm:$0xff]
    %v3395 = vld [vmem:[#allocation3 + $0x28] sm:$0xff]
    %v3396 = vld [vmem:[#allocation3 + $0x30] sm:$0xff]
    %v3397 = vld [vmem:[#allocation3 + $0x38] sm:$0xff]
    %v3398 = vld [vmem:[#allocation3 + $0x40] sm:$0xff]
    %v3399 = vld [vmem:[#allocation3 + $0x48] sm:$0xff]
    %v3400 = vld [vmem:[#allocation3 + $0x50] sm:$0xff]
    %v3401 = vld [vmem:[#allocation3 + $0x58] sm:$0xff]
    %v3402 = vld [vmem:[#allocation3 + $0x60] sm:$0xff]
    %v3403 = vld [vmem:[#allocation3 + $0x68] sm:$0xff]
    %v3404 = vld [vmem:[#allocation3 + $0x70] sm:$0xff]
    %v3405 = vld [vmem:[#allocation3 + $0x78] sm:$0xff]
    %v3406 = vld [vmem:[#allocation3 + $0x80] sm:$0xff]
    %v3407 = vld [vmem:[#allocation3 + $0x88] sm:$0xff]
    %v3408 = vld [vmem:[#allocation3 + $0x90] sm:$0xff]
    %v3409 = vld [vmem:[#allocation3 + $0x98] sm:$0xff]
    %v3410 = vld [vmem:[#allocation3 + $0xa0] sm:$0xff]
    %v3411 = vld [vmem:[#allocation3 + $0xa8] sm:$0xff]
    %v3412 = vld [vmem:[#allocation3 + $0xb0] sm:$0xff]
    %v3413 = vld [vmem:[#allocation3 + $0xb8] sm:$0xff]
    %v3414 = vld [vmem:[#allocation3 + $0xc0] sm:$0xff]
    %v3415 = vld [vmem:[#allocation3 + $0xc8] sm:$0xff]
    %v3416 = vld [vmem:[#allocation3 + $0xd0] sm:$0xff]
    %v3417 = vld [vmem:[#allocation3 + $0xd8] sm:$0xff]
    %v3418 = vld [vmem:[#allocation3 + $0xe0] sm:$0xff]
    %v3419 = vld [vmem:[#allocation3 + $0xe8] sm:$0xff]
    %v3420 = vld [vmem:[#allocation3 + $0xf0] sm:$0xff]
    %v3421 = vld [vmem:[#allocation3 + $0xf8] sm:$0xff]
    %v3422 = vld [vmem:[#allocation3 + $0x100] sm:$0xff]
    %v3423 = vld [vmem:[#allocation3 + $0x108] sm:$0xff]
    %v3424 = vld [vmem:[#allocation3 + $0x110] sm:$0xff]
    %v3425 = vld [vmem:[#allocation3 + $0x118] sm:$0xff]
    %v3426 = vld [vmem:[#allocation3 + $0x120] sm:$0xff]
    %v3427 = vld [vmem:[#allocation3 + $0x128] sm:$0xff]
    %v3428 = vld [vmem:[#allocation3 + $0x130] sm:$0xff]
    %v3429 = vld [vmem:[#allocation3 + $0x138] sm:$0xff]
    %v3430 = vld [vmem:[#allocation3 + $0x140] sm:$0xff]
    %v3431 = vld [vmem:[#allocation3 + $0x148] sm:$0xff]
    %v3432 = vld [vmem:[#allocation3 + $0x150] sm:$0xff]
    %v3433 = vld [vmem:[#allocation3 + $0x158] sm:$0xff]
    %v3434 = vld [vmem:[#allocation3 + $0x160] sm:$0xff]
    %v3435 = vld [vmem:[#allocation3 + $0x168] sm:$0xff]
    %v3436 = vld [vmem:[#allocation3 + $0x170] sm:$0xff]
    %v3437 = vld [vmem:[#allocation3 + $0x178] sm:$0xff]
    %v3438 = vld [vmem:[#allocation3 + $0x180] sm:$0xff]
    %v3439 = vld [vmem:[#allocation3 + $0x188] sm:$0xff]
    %v3440 = vld [vmem:[#allocation3 + $0x190] sm:$0xff]
    %v3441 = vld [vmem:[#allocation3 + $0x198] sm:$0xff]
    %v3442 = vld [vmem:[#allocation3 + $0x1a0] sm:$0xff]
    %v3443 = vld [vmem:[#allocation3 + $0x1a8] sm:$0xff]
    %v3444 = vld [vmem:[#allocation3 + $0x1b0] sm:$0xff]
    %v3445 = vld [vmem:[#allocation3 + $0x1b8] sm:$0xff]
    %v3446 = vld [vmem:[#allocation3 + $0x1c0] sm:$0xff]
    %v3447 = vld [vmem:[#allocation3 + $0x1c8] sm:$0xff]
    %v3448 = vld [vmem:[#allocation3 + $0x1d0] sm:$0xff]
    %v3449 = vld [vmem:[#allocation3 + $0x1d8] sm:$0xff]
    %v3450 = vld [vmem:[#allocation3 + $0x1e0] sm:$0xff]
    %v3451 = vld [vmem:[#allocation3 + $0x1e8] sm:$0xff]
    %v3452 = vld [vmem:[#allocation3 + $0x1f0] sm:$0xff]
    %v3453 = vld [vmem:[#allocation3 + $0x1f8] sm:$0xff]
    %v3454 = vld [vmem:[#allocation3 + $0x200] sm:$0xff]
    %v3455 = vld [vmem:[#allocation3 + $0x208] sm:$0xff]
    %v3456 = vld [vmem:[#allocation3 + $0x210] sm:$0xff]
    %v3457 = vld [vmem:[#allocation3 + $0x218] sm:$0xff]
    %v3458 = vld [vmem:[#allocation3 + $0x220] sm:$0xff]
    %v3459 = vld [vmem:[#allocation3 + $0x228] sm:$0xff]
    %v3460 = vld [vmem:[#allocation3 + $0x230] sm:$0xff]
    %v3461 = vld [vmem:[#allocation3 + $0x238] sm:$0xff]
    %v3462 = vld [vmem:[#allocation3 + $0x240] sm:$0xff]
    %v3463 = vld [vmem:[#allocation3 + $0x248] sm:$0xff]
    %v3464 = vld [vmem:[#allocation3 + $0x250] sm:$0xff]
    %v3465 = vld [vmem:[#allocation3 + $0x258] sm:$0xff]
    %v3466 = vld [vmem:[#allocation3 + $0x260] sm:$0xff]
    %v3467 = vld [vmem:[#allocation3 + $0x268] sm:$0xff]
    %v3468 = vld [vmem:[#allocation3 + $0x270] sm:$0xff]
    %v3469 = vld [vmem:[#allocation3 + $0x278] sm:$0xff]
    %v3470 = vld [vmem:[#allocation3 + $0x280] sm:$0xff]
    %v3471 = vld [vmem:[#allocation3 + $0x288] sm:$0xff]
    %v3472 = vld [vmem:[#allocation3 + $0x290] sm:$0xff]
    %v3473 = vld [vmem:[#allocation3 + $0x298] sm:$0xff]
    %v3474 = vld [vmem:[#allocation3 + $0x2a0] sm:$0xff]
    %v3475 = vld [vmem:[#allocation3 + $0x2a8] sm:$0xff]
    %v3476 = vld [vmem:[#allocation3 + $0x2b0] sm:$0xff]
    %v3477 = vld [vmem:[#allocation3 + $0x2b8] sm:$0xff]
    %v3478 = vld [vmem:[#allocation3 + $0x2c0] sm:$0xff]
    %v3479 = vld [vmem:[#allocation3 + $0x2c8] sm:$0xff]
    %v3480 = vld [vmem:[#allocation3 + $0x2d0] sm:$0xff]
    %v3481 = vld [vmem:[#allocation3 + $0x2d8] sm:$0xff]
    %v3482 = vld [vmem:[#allocation3 + $0x2e0] sm:$0xff]
    %v3483 = vld [vmem:[#allocation3 + $0x2e8] sm:$0xff]
    %v3484 = vld [vmem:[#allocation3 + $0x2f0] sm:$0xff]
    %v3485 = vld [vmem:[#allocation3 + $0x2f8] sm:$0xff]
    %v3486 = vld [vmem:[#allocation3 + $0x300] sm:$0xff]
    %v3487 = vld [vmem:[#allocation3 + $0x308] sm:$0xff]
    %v3488 = vld [vmem:[#allocation3 + $0x310] sm:$0xff]
    %v3489 = vld [vmem:[#allocation3 + $0x318] sm:$0xff]
    %v3490 = vld [vmem:[#allocation3 + $0x320] sm:$0xff]
    %v3491 = vld [vmem:[#allocation3 + $0x328] sm:$0xff]
    %v3492 = vld [vmem:[#allocation3 + $0x330] sm:$0xff]
    %v3493 = vld [vmem:[#allocation3 + $0x338] sm:$0xff]
    %v3494 = vld [vmem:[#allocation3 + $0x340] sm:$0xff]
    %v3495 = vld [vmem:[#allocation3 + $0x348] sm:$0xff]
    %v3496 = vld [vmem:[#allocation3 + $0x350] sm:$0xff]
    %v3497 = vld [vmem:[#allocation3 + $0x358] sm:$0xff]
    %v3498 = vld [vmem:[#allocation3 + $0x360] sm:$0xff]
    %v3499 = vld [vmem:[#allocation3 + $0x368] sm:$0xff]
    %v3500 = vld [vmem:[#allocation3 + $0x370] sm:$0xff]
    %v3501 = vld [vmem:[#allocation3 + $0x378] sm:$0xff]
    %v3502 = vld [vmem:[#allocation3 + $0x380] sm:$0xff]
    %v3503 = vld [vmem:[#allocation3 + $0x388] sm:$0xff]
    %v3504 = vld [vmem:[#allocation3 + $0x390] sm:$0xff]
    %v3505 = vld [vmem:[#allocation3 + $0x398] sm:$0xff]
    %v3506 = vld [vmem:[#allocation3 + $0x3a0] sm:$0xff]
    %v3507 = vld [vmem:[#allocation3 + $0x3a8] sm:$0xff]
    %v3508 = vld [vmem:[#allocation3 + $0x3b0] sm:$0xff]
    %v3509 = vld [vmem:[#allocation3 + $0x3b8] sm:$0xff]
    %v3510 = vld [vmem:[#allocation3 + $0x3c0] sm:$0xff]
    %v3511 = vld [vmem:[#allocation3 + $0x3c8] sm:$0xff]
    %v3512 = vld [vmem:[#allocation3 + $0x3d0] sm:$0xff]
    %v3513 = vld [vmem:[#allocation3 + $0x3d8] sm:$0xff]
    %v3514 = vld [vmem:[#allocation3 + $0x3e0] sm:$0xff]
    %v3515 = vld [vmem:[#allocation3 + $0x3e8] sm:$0xff]
    %v3516 = vld [vmem:[#allocation3 + $0x3f0] sm:$0xff]
    %v3517 = vld [vmem:[#allocation3 + $0x3f8] sm:$0xff]
    %v3518 = vld [vmem:[#allocation3 + $0x400] sm:$0xff]
    %v3519 = vld [vmem:[#allocation3 + $0x408] sm:$0xff]
    %v3520 = vld [vmem:[#allocation3 + $0x410] sm:$0xff]
    %v3521 = vld [vmem:[#allocation3 + $0x418] sm:$0xff]
    %v3522 = vld [vmem:[#allocation3 + $0x420] sm:$0xff]
    %v3523 = vld [vmem:[#allocation3 + $0x428] sm:$0xff]
    %v3524 = vld [vmem:[#allocation3 + $0x430] sm:$0xff]
    %v3525 = vld [vmem:[#allocation3 + $0x438] sm:$0xff]
    %v3526 = vld [vmem:[#allocation3 + $0x440] sm:$0xff]
    %v3527 = vld [vmem:[#allocation3 + $0x448] sm:$0xff]
    %v3528 = vld [vmem:[#allocation3 + $0x450] sm:$0xff]
    %v3529 = vld [vmem:[#allocation3 + $0x458] sm:$0xff]
    %v3530 = vld [vmem:[#allocation3 + $0x460] sm:$0xff]
    %v3531 = vld [vmem:[#allocation3 + $0x468] sm:$0xff]
    %v3532 = vld [vmem:[#allocation3 + $0x470] sm:$0xff]
    %v3533 = vld [vmem:[#allocation3 + $0x478] sm:$0xff]
    %v3534 = vld [vmem:[#allocation3 + $0x480] sm:$0xff]
    %v3535 = vld [vmem:[#allocation3 + $0x488] sm:$0xff]
    %v3536 = vld [vmem:[#allocation3 + $0x490] sm:$0xff]
    %v3537 = vld [vmem:[#allocation3 + $0x498] sm:$0xff]
    %v3538 = vld [vmem:[#allocation3 + $0x4a0] sm:$0xff]
    %v3539 = vld [vmem:[#allocation3 + $0x4a8] sm:$0xff]
    %v3540 = vld [vmem:[#allocation3 + $0x4b0] sm:$0xff]
    %v3541 = vld [vmem:[#allocation3 + $0x4b8] sm:$0xff]
    %v3542 = vld [vmem:[#allocation3 + $0x4c0] sm:$0xff]
    %v3543 = vld [vmem:[#allocation3 + $0x4c8] sm:$0xff]
    %v3544 = vld [vmem:[#allocation3 + $0x4d0] sm:$0xff]
    %v3545 = vld [vmem:[#allocation3 + $0x4d8] sm:$0xff]
    %v3546 = vld [vmem:[#allocation3 + $0x4e0] sm:$0xff]
    %v3547 = vld [vmem:[#allocation3 + $0x4e8] sm:$0xff]
    %v3548 = vld [vmem:[#allocation3 + $0x4f0] sm:$0xff]
    %v3549 = vld [vmem:[#allocation3 + $0x4f8] sm:$0xff]
    %v3550 = vld [vmem:[#allocation3 + $0x500] sm:$0xff]
    %v3551 = vld [vmem:[#allocation3 + $0x508] sm:$0xff]
    %v3552 = vld [vmem:[#allocation3 + $0x510] sm:$0xff]
    %v3553 = vld [vmem:[#allocation3 + $0x518] sm:$0xff]
    %v3554 = vld [vmem:[#allocation3 + $0x520] sm:$0xff]
    %v3555 = vld [vmem:[#allocation3 + $0x528] sm:$0xff]
    %v3556 = vld [vmem:[#allocation3 + $0x530] sm:$0xff]
    %v3557 = vld [vmem:[#allocation3 + $0x538] sm:$0xff]
    %v3558 = vld [vmem:[#allocation3 + $0x540] sm:$0xff]
    %v3559 = vld [vmem:[#allocation3 + $0x548] sm:$0xff]
    %v3560 = vld [vmem:[#allocation3 + $0x550] sm:$0xff]
    %v3561 = vld [vmem:[#allocation3 + $0x558] sm:$0xff]
    %v3562 = vld [vmem:[#allocation3 + $0x560] sm:$0xff]
    %v3563 = vld [vmem:[#allocation3 + $0x568] sm:$0xff]
    %v3564 = vld [vmem:[#allocation3 + $0x570] sm:$0xff]
    %v3565 = vld [vmem:[#allocation3 + $0x578] sm:$0xff]
    %v3566 = vld [vmem:[#allocation3 + $0x580] sm:$0xff]
    %v3567 = vld [vmem:[#allocation3 + $0x588] sm:$0xff]
    %v3568 = vld [vmem:[#allocation3 + $0x590] sm:$0xff]
    %v3569 = vld [vmem:[#allocation3 + $0x598] sm:$0xff]
    %v3570 = vld [vmem:[#allocation3 + $0x5a0] sm:$0xff]
    %v3571 = vld [vmem:[#allocation3 + $0x5a8] sm:$0xff]
    %v3572 = vld [vmem:[#allocation3 + $0x5b0] sm:$0xff]
    %v3573 = vld [vmem:[#allocation3 + $0x5b8] sm:$0xff]
    %v3574 = vld [vmem:[#allocation3 + $0x5c0] sm:$0xff]
    %v3575 = vld [vmem:[#allocation3 + $0x5c8] sm:$0xff]
    %v3576 = vld [vmem:[#allocation3 + $0x5d0] sm:$0xff]
    %v3577 = vld [vmem:[#allocation3 + $0x5d8] sm:$0xff]
    %v3578 = vld [vmem:[#allocation3 + $0x5e0] sm:$0xff]
    %v3579 = vld [vmem:[#allocation3 + $0x5e8] sm:$0xff]
    %v3580 = vld [vmem:[#allocation3 + $0x5f0] sm:$0xff]
    %v3581 = vld [vmem:[#allocation3 + $0x5f8] sm:$0xff]
    %3582 = vmatprep.subr.bf16.mxu0 %v3391
    %3583 = vmatpush1.bf16.msra.mxu0 %v3390
    %3584 = vmatprep.subr.bf16.mxu0 %v3403
    %3585 = vmatpush1.bf16.msra.mxu0 %v3402
    %3586 = vmatprep.subr.bf16.mxu0 %v3415
    %3587 = vmatpush1.bf16.msra.mxu0 %v3414
    %3588 = vmatprep.subr.bf16.mxu0 %v3427
    %3589 = vmatpush1.bf16.msra.mxu0 %v3426
    %3590 = vmatprep.subr.bf16.mxu0 %v3439
    %3591 = vmatpush1.bf16.msra.mxu0 %v3438
    %3592 = vmatprep.subr.bf16.mxu0 %v3451
    %3593 = vmatpush1.bf16.msra.mxu0 %v3450
    %3594 = vmatprep.subr.bf16.mxu0 %v3463
    %3595 = vmatpush1.bf16.msra.mxu0 %v3462
    %3596 = vmatprep.subr.bf16.mxu0 %v3475
    %3597 = vmatpush1.bf16.msra.mxu0 %v3474
    %3598 = vmatprep.subr.bf16.mxu0 %v3487
    %3599 = vmatpush1.bf16.msra.mxu0 %v3486
    %3600 = vmatprep.subr.bf16.mxu0 %v3499
    %3601 = vmatpush1.bf16.msra.mxu0 %v3498
    %3602 = vmatprep.subr.bf16.mxu0 %v3511
    %3603 = vmatpush1.bf16.msra.mxu0 %v3510
    %3604 = vmatprep.subr.bf16.mxu0 %v3523
    %3605 = vmatpush1.bf16.msra.mxu0 %v3522
    %3606 = vmatprep.subr.bf16.mxu0 %v3535
    %3607 = vmatpush1.bf16.msra.mxu0 %v3534
    %3608 = vmatprep.subr.bf16.mxu0 %v3547
    %3609 = vmatpush1.bf16.msra.mxu0 %v3546
    %3610 = vmatprep.subr.bf16.mxu0 %v3559
    %3611 = vmatpush1.bf16.msra.mxu0 %v3558
    %3612 = vmatprep.subr.bf16.mxu0 %v3571
    %3613 = vmatpush1.bf16.msra.mxu0 %v3570
    %3614 = vmatprep.mubr.bf16.mxu0 %v3389
    %3615 = vmatmul.mubr.bf16.gmra.mrb[0].mxu0 %v3388
    %v3616 = vpop.f32.mrb[0].mxu0
    %v3617 = vadd.f32 0.0, %v3616
    %v3618 = vpop.f32.mrb[0].mxu0
    %v3619 = vadd.f32 0.0, %v3618
    %v3620 = vpop.f32.mrb[0].mxu0
    %v3621 = vpop.f32.mrb[0].mxu0
    %3622 = vdwg.mxu0
    %3623 = vmatprep.subr.bf16.mxu0 %v3393
    %3624 = vmatpush1.bf16.msra.mxu0 %v3392
    %3625 = vmatprep.subr.bf16.mxu0 %v3405
    %3626 = vmatpush1.bf16.msra.mxu0 %v3404
    %3627 = vmatprep.subr.bf16.mxu0 %v3417
    %3628 = vmatpush1.bf16.msra.mxu0 %v3416
    %3629 = vmatprep.subr.bf16.mxu0 %v3429
    %3630 = vmatpush1.bf16.msra.mxu0 %v3428
    %3631 = vmatprep.subr.bf16.mxu0 %v3441
    %3632 = vmatpush1.bf16.msra.mxu0 %v3440
    %3633 = vmatprep.subr.bf16.mxu0 %v3453
    %3634 = vmatpush1.bf16.msra.mxu0 %v3452
    %3635 = vmatprep.subr.bf16.mxu0 %v3465
    %3636 = vmatpush1.bf16.msra.mxu0 %v3464
    %3637 = vmatprep.subr.bf16.mxu0 %v3477
    %3638 = vmatpush1.bf16.msra.mxu0 %v3476
    %3639 = vmatprep.subr.bf16.mxu0 %v3489
    %3640 = vmatpush1.bf16.msra.mxu0 %v3488
    %3641 = vmatprep.subr.bf16.mxu0 %v3501
    %3642 = vmatpush1.bf16.msra.mxu0 %v3500
    %3643 = vmatprep.subr.bf16.mxu0 %v3513
    %3644 = vmatpush1.bf16.msra.mxu0 %v3512
    %3645 = vmatprep.subr.bf16.mxu0 %v3525
    %3646 = vmatpush1.bf16.msra.mxu0 %v3524
    %3647 = vmatprep.subr.bf16.mxu0 %v3537
    %3648 = vmatpush1.bf16.msra.mxu0 %v3536
    %3649 = vmatprep.subr.bf16.mxu0 %v3549
    %3650 = vmatpush1.bf16.msra.mxu0 %v3548
    %3651 = vmatprep.subr.bf16.mxu0 %v3561
    %3652 = vmatpush1.bf16.msra.mxu0 %v3560
    %3653 = vmatprep.subr.bf16.mxu0 %v3573
    %3654 = vmatpush1.bf16.msra.mxu0 %v3572
    %3655 = vmatprep.mubr.bf16.mxu0 %v3389
    %3656 = vmatmul.mubr.bf16.gmra.mrb[0].mxu0 %v3388
    %v3657 = vpop.f32.mrb[0].mxu0
    %v3658 = vadd.f32 0.0, %v3657
    %v3659 = vpop.f32.mrb[0].mxu0
    %v3660 = vadd.f32 0.0, %v3659
    %v3661 = vpop.f32.mrb[0].mxu0
    %v3662 = vpop.f32.mrb[0].mxu0
    %3663 = vdwg.mxu0
    %3664 = vmatprep.subr.bf16.mxu0 %v3395
    %3665 = vmatpush1.bf16.msra.mxu0 %v3394
    %3666 = vmatprep.subr.bf16.mxu0 %v3407
    %3667 = vmatpush1.bf16.msra.mxu0 %v3406
    %3668 = vmatprep.subr.bf16.mxu0 %v3419
    %3669 = vmatpush1.bf16.msra.mxu0 %v3418
    %3670 = vmatprep.subr.bf16.mxu0 %v3431
    %3671 = vmatpush1.bf16.msra.mxu0 %v3430
    %3672 = vmatprep.subr.bf16.mxu0 %v3443
    %3673 = vmatpush1.bf16.msra.mxu0 %v3442
    %3674 = vmatprep.subr.bf16.mxu0 %v3455
    %3675 = vmatpush1.bf16.msra.mxu0 %v3454
    %3676 = vmatprep.subr.bf16.mxu0 %v3467
    %3677 = vmatpush1.bf16.msra.mxu0 %v3466
    %3678 = vmatprep.subr.bf16.mxu0 %v3479
    %3679 = vmatpush1.bf16.msra.mxu0 %v3478
    %3680 = vmatprep.subr.bf16.mxu0 %v3491
    %3681 = vmatpush1.bf16.msra.mxu0 %v3490
    %3682 = vmatprep.subr.bf16.mxu0 %v3503
    %3683 = vmatpush1.bf16.msra.mxu0 %v3502
    %3684 = vmatprep.subr.bf16.mxu0 %v3515
    %3685 = vmatpush1.bf16.msra.mxu0 %v3514
    %3686 = vmatprep.subr.bf16.mxu0 %v3527
    %3687 = vmatpush1.bf16.msra.mxu0 %v3526
    %3688 = vmatprep.subr.bf16.mxu0 %v3539
    %3689 = vmatpush1.bf16.msra.mxu0 %v3538
    %3690 = vmatprep.subr.bf16.mxu0 %v3551
    %3691 = vmatpush1.bf16.msra.mxu0 %v3550
    %3692 = vmatprep.subr.bf16.mxu0 %v3563
    %3693 = vmatpush1.bf16.msra.mxu0 %v3562
    %3694 = vmatprep.subr.bf16.mxu0 %v3575
    %3695 = vmatpush1.bf16.msra.mxu0 %v3574
    %3696 = vmatprep.mubr.bf16.mxu0 %v3389
    %3697 = vmatmul.mubr.bf16.gmra.mrb[0].mxu0 %v3388
    %v3698 = vpop.f32.mrb[0].mxu0
    %v3699 = vadd.f32 0.0, %v3698
    %v3700 = vpop.f32.mrb[0].mxu0
    %v3701 = vadd.f32 0.0, %v3700
    %v3702 = vpop.f32.mrb[0].mxu0
    %v3703 = vpop.f32.mrb[0].mxu0
    %3704 = vdwg.mxu0
    %3705 = vmatprep.subr.bf16.mxu0 %v3397
    %3706 = vmatpush1.bf16.msra.mxu0 %v3396
    %3707 = vmatprep.subr.bf16.mxu0 %v3409
    %3708 = vmatpush1.bf16.msra.mxu0 %v3408
    %3709 = vmatprep.subr.bf16.mxu0 %v3421
    %3710 = vmatpush1.bf16.msra.mxu0 %v3420
    %3711 = vmatprep.subr.bf16.mxu0 %v3433
    %3712 = vmatpush1.bf16.msra.mxu0 %v3432
    %3713 = vmatprep.subr.bf16.mxu0 %v3445
    %3714 = vmatpush1.bf16.msra.mxu0 %v3444
    %3715 = vmatprep.subr.bf16.mxu0 %v3457
    %3716 = vmatpush1.bf16.msra.mxu0 %v3456
    %3717 = vmatprep.subr.bf16.mxu0 %v3469
    %3718 = vmatpush1.bf16.msra.mxu0 %v3468
    %3719 = vmatprep.subr.bf16.mxu0 %v3481
    %3720 = vmatpush1.bf16.msra.mxu0 %v3480
    %3721 = vmatprep.subr.bf16.mxu0 %v3493
    %3722 = vmatpush1.bf16.msra.mxu0 %v3492
    %3723 = vmatprep.subr.bf16.mxu0 %v3505
    %3724 = vmatpush1.bf16.msra.mxu0 %v3504
    %3725 = vmatprep.subr.bf16.mxu0 %v3517
    %3726 = vmatpush1.bf16.msra.mxu0 %v3516
    %3727 = vmatprep.subr.bf16.mxu0 %v3529
    %3728 = vmatpush1.bf16.msra.mxu0 %v3528
    %3729 = vmatprep.subr.bf16.mxu0 %v3541
    %3730 = vmatpush1.bf16.msra.mxu0 %v3540
    %3731 = vmatprep.subr.bf16.mxu0 %v3553
    %3732 = vmatpush1.bf16.msra.mxu0 %v3552
    %3733 = vmatprep.subr.bf16.mxu0 %v3565
    %3734 = vmatpush1.bf16.msra.mxu0 %v3564
    %3735 = vmatprep.subr.bf16.mxu0 %v3577
    %3736 = vmatpush1.bf16.msra.mxu0 %v3576
    %3737 = vmatprep.mubr.bf16.mxu0 %v3389
    %3738 = vmatmul.mubr.bf16.gmra.mrb[0].mxu0 %v3388
    %v3739 = vpop.f32.mrb[0].mxu0
    %v3740 = vadd.f32 0.0, %v3739
    %v3741 = vpop.f32.mrb[0].mxu0
    %v3742 = vadd.f32 0.0, %v3741
    %v3743 = vpop.f32.mrb[0].mxu0
    %v3744 = vpop.f32.mrb[0].mxu0
    %3745 = vdwg.mxu0
    %3746 = vmatprep.subr.bf16.mxu0 %v3399
    %3747 = vmatpush1.bf16.msra.mxu0 %v3398
    %3748 = vmatprep.subr.bf16.mxu0 %v3411
    %3749 = vmatpush1.bf16.msra.mxu0 %v3410
    %3750 = vmatprep.subr.bf16.mxu0 %v3423
    %3751 = vmatpush1.bf16.msra.mxu0 %v3422
    %3752 = vmatprep.subr.bf16.mxu0 %v3435
    %3753 = vmatpush1.bf16.msra.mxu0 %v3434
    %3754 = vmatprep.subr.bf16.mxu0 %v3447
    %3755 = vmatpush1.bf16.msra.mxu0 %v3446
    %3756 = vmatprep.subr.bf16.mxu0 %v3459
    %3757 = vmatpush1.bf16.msra.mxu0 %v3458
    %3758 = vmatprep.subr.bf16.mxu0 %v3471
    %3759 = vmatpush1.bf16.msra.mxu0 %v3470
    %3760 = vmatprep.subr.bf16.mxu0 %v3483
    %3761 = vmatpush1.bf16.msra.mxu0 %v3482
    %3762 = vmatprep.subr.bf16.mxu0 %v3495
    %3763 = vmatpush1.bf16.msra.mxu0 %v3494
    %3764 = vmatprep.subr.bf16.mxu0 %v3507
    %3765 = vmatpush1.bf16.msra.mxu0 %v3506
    %3766 = vmatprep.subr.bf16.mxu0 %v3519
    %3767 = vmatpush1.bf16.msra.mxu0 %v3518
    %3768 = vmatprep.subr.bf16.mxu0 %v3531
    %3769 = vmatpush1.bf16.msra.mxu0 %v3530
    %3770 = vmatprep.subr.bf16.mxu0 %v3543
    %3771 = vmatpush1.bf16.msra.mxu0 %v3542
    %3772 = vmatprep.subr.bf16.mxu0 %v3555
    %3773 = vmatpush1.bf16.msra.mxu0 %v3554
    %3774 = vmatprep.subr.bf16.mxu0 %v3567
    %3775 = vmatpush1.bf16.msra.mxu0 %v3566
    %3776 = vmatprep.subr.bf16.mxu0 %v3579
    %3777 = vmatpush1.bf16.msra.mxu0 %v3578
    %3778 = vmatprep.mubr.bf16.mxu0 %v3389
    %3779 = vmatmul.mubr.bf16.gmra.mrb[0].mxu0 %v3388
    %v3780 = vpop.f32.mrb[0].mxu0
    %v3781 = vadd.f32 0.0, %v3780
    %v3782 = vpop.f32.mrb[0].mxu0
    %v3783 = vadd.f32 0.0, %v3782
    %v3784 = vpop.f32.mrb[0].mxu0
    %v3785 = vpop.f32.mrb[0].mxu0
    %3786 = vdwg.mxu0
    %3787 = vmatprep.subr.bf16.mxu0 %v3401
    %3788 = vmatpush1.bf16.msra.mxu0 %v3400
    %3789 = vmatprep.subr.bf16.mxu0 %v3413
    %3790 = vmatpush1.bf16.msra.mxu0 %v3412
    %3791 = vmatprep.subr.bf16.mxu0 %v3425
    %3792 = vmatpush1.bf16.msra.mxu0 %v3424
    %3793 = vmatprep.subr.bf16.mxu0 %v3437
    %3794 = vmatpush1.bf16.msra.mxu0 %v3436
    %3795 = vmatprep.subr.bf16.mxu0 %v3449
    %3796 = vmatpush1.bf16.msra.mxu0 %v3448
    %3797 = vmatprep.subr.bf16.mxu0 %v3461
    %3798 = vmatpush1.bf16.msra.mxu0 %v3460
    %3799 = vmatprep.subr.bf16.mxu0 %v3473
    %3800 = vmatpush1.bf16.msra.mxu0 %v3472
    %3801 = vmatprep.subr.bf16.mxu0 %v3485
    %3802 = vmatpush1.bf16.msra.mxu0 %v3484
    %3803 = vmatprep.subr.bf16.mxu0 %v3497
    %3804 = vmatpush1.bf16.msra.mxu0 %v3496
    %3805 = vmatprep.subr.bf16.mxu0 %v3509
    %3806 = vmatpush1.bf16.msra.mxu0 %v3508
    %3807 = vmatprep.subr.bf16.mxu0 %v3521
    %3808 = vmatpush1.bf16.msra.mxu0 %v3520
    %3809 = vmatprep.subr.bf16.mxu0 %v3533
    %3810 = vmatpush1.bf16.msra.mxu0 %v3532
    %3811 = vmatprep.subr.bf16.mxu0 %v3545
    %3812 = vmatpush1.bf16.msra.mxu0 %v3544
    %3813 = vmatprep.subr.bf16.mxu0 %v3557
    %3814 = vmatpush1.bf16.msra.mxu0 %v3556
    %3815 = vmatprep.subr.bf16.mxu0 %v3569
    %3816 = vmatpush1.bf16.msra.mxu0 %v3568
    %3817 = vmatprep.subr.bf16.mxu0 %v3581
    %3818 = vmatpush1.bf16.msra.mxu0 %v3580
    %3819 = vmatprep.mubr.bf16.mxu0 %v3389
    %3820 = vmatmul.mubr.bf16.gmra.mrb[0].mxu0 %v3388
    %v3821 = vpop.f32.mrb[0].mxu0
    %v3822 = vadd.f32 0.0, %v3821
    %v3823 = vpop.f32.mrb[0].mxu0
    %v3824 = vadd.f32 0.0, %v3823
    %v3825 = vpop.f32.mrb[0].mxu0
    %v3826 = vpop.f32.mrb[0].mxu0
    %3827 = vdwg.mxu0
    %v3828 = vadd.f32 %v3781, %v1400
    %v3829 = vadd.f32 %v3783, %v1404
    %v3830 = vadd.f32 %v3822, %v1408
    %v3831 = vadd.f32 %v3824, %v1412
    %v3832 = vld [vmem:[#allocation4] sm:$0xff]
    %v3833 = vld [vmem:[#allocation4 + $0x8] sm:$0xff]
    %v3834 = vld [vmem:[#allocation4 + $0x10] sm:$0xff]
    %v3835 = vld [vmem:[#allocation4 + $0x18] sm:$0xff]
    %v3836 = vld [vmem:[#allocation4 + $0x20] sm:$0xff]
    %v3837 = vld [vmem:[#allocation4 + $0x28] sm:$0xff]
    %v3838 = vld [vmem:[#allocation4 + $0x30] sm:$0xff]
    %v3839 = vld [vmem:[#allocation4 + $0x38] sm:$0xff]
    %v3840 = vld [vmem:[#allocation4 + $0x40] sm:$0xff]
    %v3841 = vld [vmem:[#allocation4 + $0x48] sm:$0xff]
    %v3842 = vld [vmem:[#allocation4 + $0x50] sm:$0xff]
    %v3843 = vld [vmem:[#allocation4 + $0x58] sm:$0xff]
    %v3844 = vld [vmem:[#allocation4 + $0x60] sm:$0xff]
    %v3845 = vld [vmem:[#allocation4 + $0x68] sm:$0xff]
    %v3846 = vld [vmem:[#allocation4 + $0x70] sm:$0xff]
    %v3847 = vld [vmem:[#allocation4 + $0x78] sm:$0xff]
    %v3848 = vld [vmem:[#allocation4 + $0x80] sm:$0xff]
    %v3849 = vld [vmem:[#allocation4 + $0x88] sm:$0xff]
    %v3850 = vld [vmem:[#allocation4 + $0x90] sm:$0xff]
    %v3851 = vld [vmem:[#allocation4 + $0x98] sm:$0xff]
    %v3852 = vld [vmem:[#allocation4 + $0xa0] sm:$0xff]
    %v3853 = vld [vmem:[#allocation4 + $0xa8] sm:$0xff]
    %v3854 = vld [vmem:[#allocation4 + $0xb0] sm:$0xff]
    %v3855 = vld [vmem:[#allocation4 + $0xb8] sm:$0xff]
    %v3856 = vld [vmem:[#allocation4 + $0xc0] sm:$0xff]
    %v3857 = vld [vmem:[#allocation4 + $0xc8] sm:$0xff]
    %v3858 = vld [vmem:[#allocation4 + $0xd0] sm:$0xff]
    %v3859 = vld [vmem:[#allocation4 + $0xd8] sm:$0xff]
    %v3860 = vld [vmem:[#allocation4 + $0xe0] sm:$0xff]
    %v3861 = vld [vmem:[#allocation4 + $0xe8] sm:$0xff]
    %v3862 = vld [vmem:[#allocation4 + $0xf0] sm:$0xff]
    %v3863 = vld [vmem:[#allocation4 + $0xf8] sm:$0xff]
    %3864 = vmatprep.subr.bf16.mxu0 %v3833
    %3865 = vmatpush1.bf16.msra.mxu0 %v3832
    %3866 = vmatprep.subr.bf16.mxu0 %v3837
    %3867 = vmatpush1.bf16.msra.mxu0 %v3836
    %3868 = vmatprep.subr.bf16.mxu0 %v3841
    %3869 = vmatpush1.bf16.msra.mxu0 %v3840
    %3870 = vmatprep.subr.bf16.mxu0 %v3845
    %3871 = vmatpush1.bf16.msra.mxu0 %v3844
    %3872 = vmatprep.subr.bf16.mxu0 %v3849
    %3873 = vmatpush1.bf16.msra.mxu0 %v3848
    %3874 = vmatprep.subr.bf16.mxu0 %v3853
    %3875 = vmatpush1.bf16.msra.mxu0 %v3852
    %3876 = vmatprep.subr.bf16.mxu0 %v3857
    %3877 = vmatpush1.bf16.msra.mxu0 %v3856
    %3878 = vmatprep.subr.bf16.mxu0 %v3861
    %3879 = vmatpush1.bf16.msra.mxu0 %v3860
    %3880 = vmatprep.subr.bf16.mxu0 0
    %3881 = vmatpush1.bf16.msra.mxu0 0
    %3882 = vmatprep.subr.bf16.mxu0 0
    %3883 = vmatpush1.bf16.msra.mxu0 0
    %3884 = vmatprep.subr.bf16.mxu0 0
    %3885 = vmatpush1.bf16.msra.mxu0 0
    %3886 = vmatprep.subr.bf16.mxu0 0
    %3887 = vmatpush1.bf16.msra.mxu0 0
    %3888 = vmatprep.subr.bf16.mxu0 0
    %3889 = vmatpush1.bf16.msra.mxu0 0
    %3890 = vmatprep.subr.bf16.mxu0 0
    %3891 = vmatpush1.bf16.msra.mxu0 0
    %3892 = vmatprep.subr.bf16.mxu0 0
    %3893 = vmatpush1.bf16.msra.mxu0 0
    %3894 = vmatprep.subr.bf16.mxu0 0
    %3895 = vmatpush1.bf16.msra.mxu0 0
    %3896 = vmatprep.mubr.bf16.mxu0 0
    %3897 = vmatmul.mubr.bf16.gmra.mrb[0].mxu0 %v3334
    %v3898 = vpop.f32.mrb[0].mxu0
    %v3899 = vadd.f32 0.0, %v3898
    %v3900 = vpop.f32.mrb[0].mxu0
    %v3901 = vadd.f32 0.0, %v3900
    %v3902 = vpop.f32.mrb[0].mxu0
    %v3903 = vpop.f32.mrb[0].mxu0
    %3904 = vdwg.mxu0
    %3905 = vmatprep.subr.bf16.mxu0 %v3835
    %3906 = vmatpush1.bf16.msra.mxu0 %v3834
    %3907 = vmatprep.subr.bf16.mxu0 %v3839
    %3908 = vmatpush1.bf16.msra.mxu0 %v3838
    %3909 = vmatprep.subr.bf16.mxu0 %v3843
    %3910 = vmatpush1.bf16.msra.mxu0 %v3842
    %3911 = vmatprep.subr.bf16.mxu0 %v3847
    %3912 = vmatpush1.bf16.msra.mxu0 %v3846
    %3913 = vmatprep.subr.bf16.mxu0 %v3851
    %3914 = vmatpush1.bf16.msra.mxu0 %v3850
    %3915 = vmatprep.subr.bf16.mxu0 %v3855
    %3916 = vmatpush1.bf16.msra.mxu0 %v3854
    %3917 = vmatprep.subr.bf16.mxu0 %v3859
    %3918 = vmatpush1.bf16.msra.mxu0 %v3858
    %3919 = vmatprep.subr.bf16.mxu0 %v3863
    %3920 = vmatpush1.bf16.msra.mxu0 %v3862
    %3921 = vmatprep.subr.bf16.mxu0 0
    %3922 = vmatpush1.bf16.msra.mxu0 0
    %3923 = vmatprep.subr.bf16.mxu0 0
    %3924 = vmatpush1.bf16.msra.mxu0 0
    %3925 = vmatprep.subr.bf16.mxu0 0
    %3926 = vmatpush1.bf16.msra.mxu0 0
    %3927 = vmatprep.subr.bf16.mxu0 0
    %3928 = vmatpush1.bf16.msra.mxu0 0
    %3929 = vmatprep.subr.bf16.mxu0 0
    %3930 = vmatpush1.bf16.msra.mxu0 0
    %3931 = vmatprep.subr.bf16.mxu0 0
    %3932 = vmatpush1.bf16.msra.mxu0 0
    %3933 = vmatprep.subr.bf16.mxu0 0
    %3934 = vmatpush1.bf16.msra.mxu0 0
    %3935 = vmatprep.subr.bf16.mxu0 0
    %3936 = vmatpush1.bf16.msra.mxu0 0
    %3937 = vmatprep.mubr.bf16.mxu0 0
    %3938 = vmatmul.mubr.bf16.gmra.mrb[0].mxu0 %v3334
    %v3939 = vpop.f32.mrb[0].mxu0
    %v3940 = vadd.f32 0.0, %v3939
    %v3941 = vpop.f32.mrb[0].mxu0
    %v3942 = vadd.f32 0.0, %v3941
    %v3943 = vpop.f32.mrb[0].mxu0
    %v3944 = vpop.f32.mrb[0].mxu0
    %3945 = vdwg.mxu0
    %v3946 = vadd.f32 %v3828, %v3899
    %v3947 = vadd.f32 %v3829, %v3901
    %v3948 = vadd.f32 %v3830, %v3940
    %v3949 = vadd.f32 %v3831, %v3942
    %v3950 = vmul.f32 %v3946, 0.5
    %v3951 = vtanh.pop %v3950
    %v3952 = vmul.f32 %v3951, 0.5
    %v3953 = vadd.f32 %v3952, 0.5
    %v3954 = vtanh.pop %v3948
    %v3955 = vmul.f32 %v3949, 0.5
    %v3956 = vtanh.pop %v3955
    %v3957 = vmul.f32 %v3956, 0.5
    %v3958 = vadd.f32 %v3957, 0.5
    %v3959 = vmul.f32 %v3947, 0.5
    %v3960 = vtanh.pop %v3959
    %v3961 = vmul.f32 %v3960, 0.5
    %v3962 = vadd.f32 %v3961, 0.5
    %v3963 = vmul.f32 %v3962, %v3331
    %v3964 = vmul.f32 %v3953, %v3954
    %v3965 = vadd.f32 %v3963, %v3964
    %v3966 = vtanh.pop %v3965
    %v3967 = vmul.f32 %v3958, %v3966
    %v3968 = vpack.c.bf16 %v3967, %v3967
    %3969 = vst [vmem:[%s6 + $0x20] sm:$0xff] %v3967
    %v3970 = vld [vmem:[#allocation2 + $0x140] sm:$0xff]
    %v3971 = vld [vmem:[#allocation2 + $0x148] sm:$0xff]
    %v3972 = vld [vmem:[#allocation2 + $0x150] sm:$0xff]
    %v3973 = vld [vmem:[#allocation2 + $0x158] sm:$0xff]
    %v3974 = vld [vmem:[#allocation2 + $0x160] sm:$0xff]
    %v3975 = vld [vmem:[#allocation2 + $0x168] sm:$0xff]
    %v3976 = vld [vmem:[#allocation2 + $0x170] sm:$0xff]
    %v3977 = vld [vmem:[#allocation2 + $0x178] sm:$0xff]
    %v3978 = vadd.f32 %v3970, %v3617
    %v3979 = vadd.f32 %v3971, %v3619
    %v3980 = vadd.f32 %v3972, %v3658
    %v3981 = vadd.f32 %v3973, %v3660
    %v3982 = vadd.f32 %v3974, %v3699
    %v3983 = vadd.f32 %v3975, %v3701
    %v3984 = vadd.f32 %v3976, %v3740
    %v3985 = vadd.f32 %v3977, %v3742
    %v3986 = vmul.f32 %v3978, 0.5
    %v3987 = vmul.f32 %v3979, 0.5
    %v3988 = vtanh.pop %v3986
    %v3989 = vtanh.pop %v3987
    %v3990 = vmul.f32 %v3988, 0.5
    %v3991 = vmul.f32 %v3989, 0.5
    %v3992 = vadd.f32 %v3990, 0.5
    %v3993 = vadd.f32 %v3991, 0.5
    %v3994 = vtanh.pop %v3982
    %v3995 = vtanh.pop %v3983
    %v3996 = vmul.f32 %v3984, 0.5
    %v3997 = vmul.f32 %v3985, 0.5
    %v3998 = vtanh.pop %v3996
    %v3999 = vtanh.pop %v3997
    %v4000 = vmul.f32 %v3998, 0.5
    %v4001 = vmul.f32 %v3999, 0.5
    %v4002 = vadd.f32 %v4000, 0.5
    %v4003 = vadd.f32 %v4001, 0.5
    %v4004 = vmul.f32 %v3980, 0.5
    %v4005 = vmul.f32 %v3981, 0.5
    %v4006 = vtanh.pop %v4004
    %v4007 = vtanh.pop %v4005
    %v4008 = vmul.f32 %v4006, 0.5
    %v4009 = vmul.f32 %v4007, 0.5
    %v4010 = vadd.f32 %v4008, 0.5
    %v4011 = vadd.f32 %v4009, 0.5
    %v4012 = vmul.f32 %v4010, %v3382
    %v4013 = vmul.f32 %v4011, %v3383
    %v4014 = vmul.f32 %v3992, %v3994
    %v4015 = vmul.f32 %v3993, %v3995
    %v4016 = vadd.f32 %v4012, %v4014
    %v4017 = vadd.f32 %v4013, %v4015
    %v4018 = vtanh.pop %v4016
    %v4019 = vtanh.pop %v4017
    %v4020 = vmul.f32 %v4002, %v4018
    %v4021 = vmul.f32 %v4003, %v4019
    %v4022 = vpack.c.bf16 %v4020, %v4020
    %v4023 = vpack.c.bf16 %v4021, %v4021
    %v4024 = vld [vmem:[#allocation3] sm:$0xff]
    %v4025 = vld [vmem:[#allocation3 + $0x8] sm:$0xff]
    %v4026 = vld [vmem:[#allocation3 + $0x10] sm:$0xff]
    %v4027 = vld [vmem:[#allocation3 + $0x18] sm:$0xff]
    %v4028 = vld [vmem:[#allocation3 + $0x20] sm:$0xff]
    %v4029 = vld [vmem:[#allocation3 + $0x28] sm:$0xff]
    %v4030 = vld [vmem:[#allocation3 + $0x30] sm:$0xff]
    %v4031 = vld [vmem:[#allocation3 + $0x38] sm:$0xff]
    %v4032 = vld [vmem:[#allocation3 + $0x40] sm:$0xff]
    %v4033 = vld [vmem:[#allocation3 + $0x48] sm:$0xff]
    %v4034 = vld [vmem:[#allocation3 + $0x50] sm:$0xff]
    %v4035 = vld [vmem:[#allocation3 + $0x58] sm:$0xff]
    %v4036 = vld [vmem:[#allocation3 + $0x60] sm:$0xff]
    %v4037 = vld [vmem:[#allocation3 + $0x68] sm:$0xff]
    %v4038 = vld [vmem:[#allocation3 + $0x70] sm:$0xff]
    %v4039 = vld [vmem:[#allocation3 + $0x78] sm:$0xff]
    %v4040 = vld [vmem:[#allocation3 + $0x80] sm:$0xff]
    %v4041 = vld [vmem:[#allocation3 + $0x88] sm:$0xff]
    %v4042 = vld [vmem:[#allocation3 + $0x90] sm:$0xff]
    %v4043 = vld [vmem:[#allocation3 + $0x98] sm:$0xff]
    %v4044 = vld [vmem:[#allocation3 + $0xa0] sm:$0xff]
    %v4045 = vld [vmem:[#allocation3 + $0xa8] sm:$0xff]
    %v4046 = vld [vmem:[#allocation3 + $0xb0] sm:$0xff]
    %v4047 = vld [vmem:[#allocation3 + $0xb8] sm:$0xff]
    %v4048 = vld [vmem:[#allocation3 + $0xc0] sm:$0xff]
    %v4049 = vld [vmem:[#allocation3 + $0xc8] sm:$0xff]
    %v4050 = vld [vmem:[#allocation3 + $0xd0] sm:$0xff]
    %v4051 = vld [vmem:[#allocation3 + $0xd8] sm:$0xff]
    %v4052 = vld [vmem:[#allocation3 + $0xe0] sm:$0xff]
    %v4053 = vld [vmem:[#allocation3 + $0xe8] sm:$0xff]
    %v4054 = vld [vmem:[#allocation3 + $0xf0] sm:$0xff]
    %v4055 = vld [vmem:[#allocation3 + $0xf8] sm:$0xff]
    %v4056 = vld [vmem:[#allocation3 + $0x100] sm:$0xff]
    %v4057 = vld [vmem:[#allocation3 + $0x108] sm:$0xff]
    %v4058 = vld [vmem:[#allocation3 + $0x110] sm:$0xff]
    %v4059 = vld [vmem:[#allocation3 + $0x118] sm:$0xff]
    %v4060 = vld [vmem:[#allocation3 + $0x120] sm:$0xff]
    %v4061 = vld [vmem:[#allocation3 + $0x128] sm:$0xff]
    %v4062 = vld [vmem:[#allocation3 + $0x130] sm:$0xff]
    %v4063 = vld [vmem:[#allocation3 + $0x138] sm:$0xff]
    %v4064 = vld [vmem:[#allocation3 + $0x140] sm:$0xff]
    %v4065 = vld [vmem:[#allocation3 + $0x148] sm:$0xff]
    %v4066 = vld [vmem:[#allocation3 + $0x150] sm:$0xff]
    %v4067 = vld [vmem:[#allocation3 + $0x158] sm:$0xff]
    %v4068 = vld [vmem:[#allocation3 + $0x160] sm:$0xff]
    %v4069 = vld [vmem:[#allocation3 + $0x168] sm:$0xff]
    %v4070 = vld [vmem:[#allocation3 + $0x170] sm:$0xff]
    %v4071 = vld [vmem:[#allocation3 + $0x178] sm:$0xff]
    %v4072 = vld [vmem:[#allocation3 + $0x180] sm:$0xff]
    %v4073 = vld [vmem:[#allocation3 + $0x188] sm:$0xff]
    %v4074 = vld [vmem:[#allocation3 + $0x190] sm:$0xff]
    %v4075 = vld [vmem:[#allocation3 + $0x198] sm:$0xff]
    %v4076 = vld [vmem:[#allocation3 + $0x1a0] sm:$0xff]
    %v4077 = vld [vmem:[#allocation3 + $0x1a8] sm:$0xff]
    %v4078 = vld [vmem:[#allocation3 + $0x1b0] sm:$0xff]
    %v4079 = vld [vmem:[#allocation3 + $0x1b8] sm:$0xff]
    %v4080 = vld [vmem:[#allocation3 + $0x1c0] sm:$0xff]
    %v4081 = vld [vmem:[#allocation3 + $0x1c8] sm:$0xff]
    %v4082 = vld [vmem:[#allocation3 + $0x1d0] sm:$0xff]
    %v4083 = vld [vmem:[#allocation3 + $0x1d8] sm:$0xff]
    %v4084 = vld [vmem:[#allocation3 + $0x1e0] sm:$0xff]
    %v4085 = vld [vmem:[#allocation3 + $0x1e8] sm:$0xff]
    %v4086 = vld [vmem:[#allocation3 + $0x1f0] sm:$0xff]
    %v4087 = vld [vmem:[#allocation3 + $0x1f8] sm:$0xff]
    %v4088 = vld [vmem:[#allocation3 + $0x200] sm:$0xff]
    %v4089 = vld [vmem:[#allocation3 + $0x208] sm:$0xff]
    %v4090 = vld [vmem:[#allocation3 + $0x210] sm:$0xff]
    %v4091 = vld [vmem:[#allocation3 + $0x218] sm:$0xff]
    %v4092 = vld [vmem:[#allocation3 + $0x220] sm:$0xff]
    %v4093 = vld [vmem:[#allocation3 + $0x228] sm:$0xff]
    %v4094 = vld [vmem:[#allocation3 + $0x230] sm:$0xff]
    %v4095 = vld [vmem:[#allocation3 + $0x238] sm:$0xff]
    %v4096 = vld [vmem:[#allocation3 + $0x240] sm:$0xff]
    %v4097 = vld [vmem:[#allocation3 + $0x248] sm:$0xff]
    %v4098 = vld [vmem:[#allocation3 + $0x250] sm:$0xff]
    %v4099 = vld [vmem:[#allocation3 + $0x258] sm:$0xff]
    %v4100 = vld [vmem:[#allocation3 + $0x260] sm:$0xff]
    %v4101 = vld [vmem:[#allocation3 + $0x268] sm:$0xff]
    %v4102 = vld [vmem:[#allocation3 + $0x270] sm:$0xff]
    %v4103 = vld [vmem:[#allocation3 + $0x278] sm:$0xff]
    %v4104 = vld [vmem:[#allocation3 + $0x280] sm:$0xff]
    %v4105 = vld [vmem:[#allocation3 + $0x288] sm:$0xff]
    %v4106 = vld [vmem:[#allocation3 + $0x290] sm:$0xff]
    %v4107 = vld [vmem:[#allocation3 + $0x298] sm:$0xff]
    %v4108 = vld [vmem:[#allocation3 + $0x2a0] sm:$0xff]
    %v4109 = vld [vmem:[#allocation3 + $0x2a8] sm:$0xff]
    %v4110 = vld [vmem:[#allocation3 + $0x2b0] sm:$0xff]
    %v4111 = vld [vmem:[#allocation3 + $0x2b8] sm:$0xff]
    %v4112 = vld [vmem:[#allocation3 + $0x2c0] sm:$0xff]
    %v4113 = vld [vmem:[#allocation3 + $0x2c8] sm:$0xff]
    %v4114 = vld [vmem:[#allocation3 + $0x2d0] sm:$0xff]
    %v4115 = vld [vmem:[#allocation3 + $0x2d8] sm:$0xff]
    %v4116 = vld [vmem:[#allocation3 + $0x2e0] sm:$0xff]
    %v4117 = vld [vmem:[#allocation3 + $0x2e8] sm:$0xff]
    %v4118 = vld [vmem:[#allocation3 + $0x2f0] sm:$0xff]
    %v4119 = vld [vmem:[#allocation3 + $0x2f8] sm:$0xff]
    %v4120 = vld [vmem:[#allocation3 + $0x300] sm:$0xff]
    %v4121 = vld [vmem:[#allocation3 + $0x308] sm:$0xff]
    %v4122 = vld [vmem:[#allocation3 + $0x310] sm:$0xff]
    %v4123 = vld [vmem:[#allocation3 + $0x318] sm:$0xff]
    %v4124 = vld [vmem:[#allocation3 + $0x320] sm:$0xff]
    %v4125 = vld [vmem:[#allocation3 + $0x328] sm:$0xff]
    %v4126 = vld [vmem:[#allocation3 + $0x330] sm:$0xff]
    %v4127 = vld [vmem:[#allocation3 + $0x338] sm:$0xff]
    %v4128 = vld [vmem:[#allocation3 + $0x340] sm:$0xff]
    %v4129 = vld [vmem:[#allocation3 + $0x348] sm:$0xff]
    %v4130 = vld [vmem:[#allocation3 + $0x350] sm:$0xff]
    %v4131 = vld [vmem:[#allocation3 + $0x358] sm:$0xff]
    %v4132 = vld [vmem:[#allocation3 + $0x360] sm:$0xff]
    %v4133 = vld [vmem:[#allocation3 + $0x368] sm:$0xff]
    %v4134 = vld [vmem:[#allocation3 + $0x370] sm:$0xff]
    %v4135 = vld [vmem:[#allocation3 + $0x378] sm:$0xff]
    %v4136 = vld [vmem:[#allocation3 + $0x380] sm:$0xff]
    %v4137 = vld [vmem:[#allocation3 + $0x388] sm:$0xff]
    %v4138 = vld [vmem:[#allocation3 + $0x390] sm:$0xff]
    %v4139 = vld [vmem:[#allocation3 + $0x398] sm:$0xff]
    %v4140 = vld [vmem:[#allocation3 + $0x3a0] sm:$0xff]
    %v4141 = vld [vmem:[#allocation3 + $0x3a8] sm:$0xff]
    %v4142 = vld [vmem:[#allocation3 + $0x3b0] sm:$0xff]
    %v4143 = vld [vmem:[#allocation3 + $0x3b8] sm:$0xff]
    %v4144 = vld [vmem:[#allocation3 + $0x3c0] sm:$0xff]
    %v4145 = vld [vmem:[#allocation3 + $0x3c8] sm:$0xff]
    %v4146 = vld [vmem:[#allocation3 + $0x3d0] sm:$0xff]
    %v4147 = vld [vmem:[#allocation3 + $0x3d8] sm:$0xff]
    %v4148 = vld [vmem:[#allocation3 + $0x3e0] sm:$0xff]
    %v4149 = vld [vmem:[#allocation3 + $0x3e8] sm:$0xff]
    %v4150 = vld [vmem:[#allocation3 + $0x3f0] sm:$0xff]
    %v4151 = vld [vmem:[#allocation3 + $0x3f8] sm:$0xff]
    %v4152 = vld [vmem:[#allocation3 + $0x400] sm:$0xff]
    %v4153 = vld [vmem:[#allocation3 + $0x408] sm:$0xff]
    %v4154 = vld [vmem:[#allocation3 + $0x410] sm:$0xff]
    %v4155 = vld [vmem:[#allocation3 + $0x418] sm:$0xff]
    %v4156 = vld [vmem:[#allocation3 + $0x420] sm:$0xff]
    %v4157 = vld [vmem:[#allocation3 + $0x428] sm:$0xff]
    %v4158 = vld [vmem:[#allocation3 + $0x430] sm:$0xff]
    %v4159 = vld [vmem:[#allocation3 + $0x438] sm:$0xff]
    %v4160 = vld [vmem:[#allocation3 + $0x440] sm:$0xff]
    %v4161 = vld [vmem:[#allocation3 + $0x448] sm:$0xff]
    %v4162 = vld [vmem:[#allocation3 + $0x450] sm:$0xff]
    %v4163 = vld [vmem:[#allocation3 + $0x458] sm:$0xff]
    %v4164 = vld [vmem:[#allocation3 + $0x460] sm:$0xff]
    %v4165 = vld [vmem:[#allocation3 + $0x468] sm:$0xff]
    %v4166 = vld [vmem:[#allocation3 + $0x470] sm:$0xff]
    %v4167 = vld [vmem:[#allocation3 + $0x478] sm:$0xff]
    %v4168 = vld [vmem:[#allocation3 + $0x480] sm:$0xff]
    %v4169 = vld [vmem:[#allocation3 + $0x488] sm:$0xff]
    %v4170 = vld [vmem:[#allocation3 + $0x490] sm:$0xff]
    %v4171 = vld [vmem:[#allocation3 + $0x498] sm:$0xff]
    %v4172 = vld [vmem:[#allocation3 + $0x4a0] sm:$0xff]
    %v4173 = vld [vmem:[#allocation3 + $0x4a8] sm:$0xff]
    %v4174 = vld [vmem:[#allocation3 + $0x4b0] sm:$0xff]
    %v4175 = vld [vmem:[#allocation3 + $0x4b8] sm:$0xff]
    %v4176 = vld [vmem:[#allocation3 + $0x4c0] sm:$0xff]
    %v4177 = vld [vmem:[#allocation3 + $0x4c8] sm:$0xff]
    %v4178 = vld [vmem:[#allocation3 + $0x4d0] sm:$0xff]
    %v4179 = vld [vmem:[#allocation3 + $0x4d8] sm:$0xff]
    %v4180 = vld [vmem:[#allocation3 + $0x4e0] sm:$0xff]
    %v4181 = vld [vmem:[#allocation3 + $0x4e8] sm:$0xff]
    %v4182 = vld [vmem:[#allocation3 + $0x4f0] sm:$0xff]
    %v4183 = vld [vmem:[#allocation3 + $0x4f8] sm:$0xff]
    %v4184 = vld [vmem:[#allocation3 + $0x500] sm:$0xff]
    %v4185 = vld [vmem:[#allocation3 + $0x508] sm:$0xff]
    %v4186 = vld [vmem:[#allocation3 + $0x510] sm:$0xff]
    %v4187 = vld [vmem:[#allocation3 + $0x518] sm:$0xff]
    %v4188 = vld [vmem:[#allocation3 + $0x520] sm:$0xff]
    %v4189 = vld [vmem:[#allocation3 + $0x528] sm:$0xff]
    %v4190 = vld [vmem:[#allocation3 + $0x530] sm:$0xff]
    %v4191 = vld [vmem:[#allocation3 + $0x538] sm:$0xff]
    %v4192 = vld [vmem:[#allocation3 + $0x540] sm:$0xff]
    %v4193 = vld [vmem:[#allocation3 + $0x548] sm:$0xff]
    %v4194 = vld [vmem:[#allocation3 + $0x550] sm:$0xff]
    %v4195 = vld [vmem:[#allocation3 + $0x558] sm:$0xff]
    %v4196 = vld [vmem:[#allocation3 + $0x560] sm:$0xff]
    %v4197 = vld [vmem:[#allocation3 + $0x568] sm:$0xff]
    %v4198 = vld [vmem:[#allocation3 + $0x570] sm:$0xff]
    %v4199 = vld [vmem:[#allocation3 + $0x578] sm:$0xff]
    %v4200 = vld [vmem:[#allocation3 + $0x580] sm:$0xff]
    %v4201 = vld [vmem:[#allocation3 + $0x588] sm:$0xff]
    %v4202 = vld [vmem:[#allocation3 + $0x590] sm:$0xff]
    %v4203 = vld [vmem:[#allocation3 + $0x598] sm:$0xff]
    %v4204 = vld [vmem:[#allocation3 + $0x5a0] sm:$0xff]
    %v4205 = vld [vmem:[#allocation3 + $0x5a8] sm:$0xff]
    %v4206 = vld [vmem:[#allocation3 + $0x5b0] sm:$0xff]
    %v4207 = vld [vmem:[#allocation3 + $0x5b8] sm:$0xff]
    %v4208 = vld [vmem:[#allocation3 + $0x5c0] sm:$0xff]
    %v4209 = vld [vmem:[#allocation3 + $0x5c8] sm:$0xff]
    %v4210 = vld [vmem:[#allocation3 + $0x5d0] sm:$0xff]
    %v4211 = vld [vmem:[#allocation3 + $0x5d8] sm:$0xff]
    %v4212 = vld [vmem:[#allocation3 + $0x5e0] sm:$0xff]
    %v4213 = vld [vmem:[#allocation3 + $0x5e8] sm:$0xff]
    %v4214 = vld [vmem:[#allocation3 + $0x5f0] sm:$0xff]
    %v4215 = vld [vmem:[#allocation3 + $0x5f8] sm:$0xff]
    %4216 = vmatprep.subr.bf16.mxu0 %v4025
    %4217 = vmatpush1.bf16.msra.mxu0 %v4024
    %4218 = vmatprep.subr.bf16.mxu0 %v4037
    %4219 = vmatpush1.bf16.msra.mxu0 %v4036
    %4220 = vmatprep.subr.bf16.mxu0 %v4049
    %4221 = vmatpush1.bf16.msra.mxu0 %v4048
    %4222 = vmatprep.subr.bf16.mxu0 %v4061
    %4223 = vmatpush1.bf16.msra.mxu0 %v4060
    %4224 = vmatprep.subr.bf16.mxu0 %v4073
    %4225 = vmatpush1.bf16.msra.mxu0 %v4072
    %4226 = vmatprep.subr.bf16.mxu0 %v4085
    %4227 = vmatpush1.bf16.msra.mxu0 %v4084
    %4228 = vmatprep.subr.bf16.mxu0 %v4097
    %4229 = vmatpush1.bf16.msra.mxu0 %v4096
    %4230 = vmatprep.subr.bf16.mxu0 %v4109
    %4231 = vmatpush1.bf16.msra.mxu0 %v4108
    %4232 = vmatprep.subr.bf16.mxu0 %v4121
    %4233 = vmatpush1.bf16.msra.mxu0 %v4120
    %4234 = vmatprep.subr.bf16.mxu0 %v4133
    %4235 = vmatpush1.bf16.msra.mxu0 %v4132
    %4236 = vmatprep.subr.bf16.mxu0 %v4145
    %4237 = vmatpush1.bf16.msra.mxu0 %v4144
    %4238 = vmatprep.subr.bf16.mxu0 %v4157
    %4239 = vmatpush1.bf16.msra.mxu0 %v4156
    %4240 = vmatprep.subr.bf16.mxu0 %v4169
    %4241 = vmatpush1.bf16.msra.mxu0 %v4168
    %4242 = vmatprep.subr.bf16.mxu0 %v4181
    %4243 = vmatpush1.bf16.msra.mxu0 %v4180
    %4244 = vmatprep.subr.bf16.mxu0 %v4193
    %4245 = vmatpush1.bf16.msra.mxu0 %v4192
    %4246 = vmatprep.subr.bf16.mxu0 %v4205
    %4247 = vmatpush1.bf16.msra.mxu0 %v4204
    %4248 = vmatprep.mubr.bf16.mxu0 %v4023
    %4249 = vmatmul.mubr.bf16.gmra.mrb[0].mxu0 %v4022
    %v4250 = vpop.f32.mrb[0].mxu0
    %v4251 = vadd.f32 0.0, %v4250
    %v4252 = vpop.f32.mrb[0].mxu0
    %v4253 = vadd.f32 0.0, %v4252
    %v4254 = vpop.f32.mrb[0].mxu0
    %v4255 = vpop.f32.mrb[0].mxu0
    %4256 = vdwg.mxu0
    %4257 = vmatprep.subr.bf16.mxu0 %v4027
    %4258 = vmatpush1.bf16.msra.mxu0 %v4026
    %4259 = vmatprep.subr.bf16.mxu0 %v4039
    %4260 = vmatpush1.bf16.msra.mxu0 %v4038
    %4261 = vmatprep.subr.bf16.mxu0 %v4051
    %4262 = vmatpush1.bf16.msra.mxu0 %v4050
    %4263 = vmatprep.subr.bf16.mxu0 %v4063
    %4264 = vmatpush1.bf16.msra.mxu0 %v4062
    %4265 = vmatprep.subr.bf16.mxu0 %v4075
    %4266 = vmatpush1.bf16.msra.mxu0 %v4074
    %4267 = vmatprep.subr.bf16.mxu0 %v4087
    %4268 = vmatpush1.bf16.msra.mxu0 %v4086
    %4269 = vmatprep.subr.bf16.mxu0 %v4099
    %4270 = vmatpush1.bf16.msra.mxu0 %v4098
    %4271 = vmatprep.subr.bf16.mxu0 %v4111
    %4272 = vmatpush1.bf16.msra.mxu0 %v4110
    %4273 = vmatprep.subr.bf16.mxu0 %v4123
    %4274 = vmatpush1.bf16.msra.mxu0 %v4122
    %4275 = vmatprep.subr.bf16.mxu0 %v4135
    %4276 = vmatpush1.bf16.msra.mxu0 %v4134
    %4277 = vmatprep.subr.bf16.mxu0 %v4147
    %4278 = vmatpush1.bf16.msra.mxu0 %v4146
    %4279 = vmatprep.subr.bf16.mxu0 %v4159
    %4280 = vmatpush1.bf16.msra.mxu0 %v4158
    %4281 = vmatprep.subr.bf16.mxu0 %v4171
    %4282 = vmatpush1.bf16.msra.mxu0 %v4170
    %4283 = vmatprep.subr.bf16.mxu0 %v4183
    %4284 = vmatpush1.bf16.msra.mxu0 %v4182
    %4285 = vmatprep.subr.bf16.mxu0 %v4195
    %4286 = vmatpush1.bf16.msra.mxu0 %v4194
    %4287 = vmatprep.subr.bf16.mxu0 %v4207
    %4288 = vmatpush1.bf16.msra.mxu0 %v4206
    %4289 = vmatprep.mubr.bf16.mxu0 %v4023
    %4290 = vmatmul.mubr.bf16.gmra.mrb[0].mxu0 %v4022
    %v4291 = vpop.f32.mrb[0].mxu0
    %v4292 = vadd.f32 0.0, %v4291
    %v4293 = vpop.f32.mrb[0].mxu0
    %v4294 = vadd.f32 0.0, %v4293
    %v4295 = vpop.f32.mrb[0].mxu0
    %v4296 = vpop.f32.mrb[0].mxu0
    %4297 = vdwg.mxu0
    %4298 = vmatprep.subr.bf16.mxu0 %v4029
    %4299 = vmatpush1.bf16.msra.mxu0 %v4028
    %4300 = vmatprep.subr.bf16.mxu0 %v4041
    %4301 = vmatpush1.bf16.msra.mxu0 %v4040
    %4302 = vmatprep.subr.bf16.mxu0 %v4053
    %4303 = vmatpush1.bf16.msra.mxu0 %v4052
    %4304 = vmatprep.subr.bf16.mxu0 %v4065
    %4305 = vmatpush1.bf16.msra.mxu0 %v4064
    %4306 = vmatprep.subr.bf16.mxu0 %v4077
    %4307 = vmatpush1.bf16.msra.mxu0 %v4076
    %4308 = vmatprep.subr.bf16.mxu0 %v4089
    %4309 = vmatpush1.bf16.msra.mxu0 %v4088
    %4310 = vmatprep.subr.bf16.mxu0 %v4101
    %4311 = vmatpush1.bf16.msra.mxu0 %v4100
    %4312 = vmatprep.subr.bf16.mxu0 %v4113
    %4313 = vmatpush1.bf16.msra.mxu0 %v4112
    %4314 = vmatprep.subr.bf16.mxu0 %v4125
    %4315 = vmatpush1.bf16.msra.mxu0 %v4124
    %4316 = vmatprep.subr.bf16.mxu0 %v4137
    %4317 = vmatpush1.bf16.msra.mxu0 %v4136
    %4318 = vmatprep.subr.bf16.mxu0 %v4149
    %4319 = vmatpush1.bf16.msra.mxu0 %v4148
    %4320 = vmatprep.subr.bf16.mxu0 %v4161
    %4321 = vmatpush1.bf16.msra.mxu0 %v4160
    %4322 = vmatprep.subr.bf16.mxu0 %v4173
    %4323 = vmatpush1.bf16.msra.mxu0 %v4172
    %4324 = vmatprep.subr.bf16.mxu0 %v4185
    %4325 = vmatpush1.bf16.msra.mxu0 %v4184
    %4326 = vmatprep.subr.bf16.mxu0 %v4197
    %4327 = vmatpush1.bf16.msra.mxu0 %v4196
    %4328 = vmatprep.subr.bf16.mxu0 %v4209
    %4329 = vmatpush1.bf16.msra.mxu0 %v4208
    %4330 = vmatprep.mubr.bf16.mxu0 %v4023
    %4331 = vmatmul.mubr.bf16.gmra.mrb[0].mxu0 %v4022
    %v4332 = vpop.f32.mrb[0].mxu0
    %v4333 = vadd.f32 0.0, %v4332
    %v4334 = vpop.f32.mrb[0].mxu0
    %v4335 = vadd.f32 0.0, %v4334
    %v4336 = vpop.f32.mrb[0].mxu0
    %v4337 = vpop.f32.mrb[0].mxu0
    %4338 = vdwg.mxu0
    %4339 = vmatprep.subr.bf16.mxu0 %v4031
    %4340 = vmatpush1.bf16.msra.mxu0 %v4030
    %4341 = vmatprep.subr.bf16.mxu0 %v4043
    %4342 = vmatpush1.bf16.msra.mxu0 %v4042
    %4343 = vmatprep.subr.bf16.mxu0 %v4055
    %4344 = vmatpush1.bf16.msra.mxu0 %v4054
    %4345 = vmatprep.subr.bf16.mxu0 %v4067
    %4346 = vmatpush1.bf16.msra.mxu0 %v4066
    %4347 = vmatprep.subr.bf16.mxu0 %v4079
    %4348 = vmatpush1.bf16.msra.mxu0 %v4078
    %4349 = vmatprep.subr.bf16.mxu0 %v4091
    %4350 = vmatpush1.bf16.msra.mxu0 %v4090
    %4351 = vmatprep.subr.bf16.mxu0 %v4103
    %4352 = vmatpush1.bf16.msra.mxu0 %v4102
    %4353 = vmatprep.subr.bf16.mxu0 %v4115
    %4354 = vmatpush1.bf16.msra.mxu0 %v4114
    %4355 = vmatprep.subr.bf16.mxu0 %v4127
    %4356 = vmatpush1.bf16.msra.mxu0 %v4126
    %4357 = vmatprep.subr.bf16.mxu0 %v4139
    %4358 = vmatpush1.bf16.msra.mxu0 %v4138
    %4359 = vmatprep.subr.bf16.mxu0 %v4151
    %4360 = vmatpush1.bf16.msra.mxu0 %v4150
    %4361 = vmatprep.subr.bf16.mxu0 %v4163
    %4362 = vmatpush1.bf16.msra.mxu0 %v4162
    %4363 = vmatprep.subr.bf16.mxu0 %v4175
    %4364 = vmatpush1.bf16.msra.mxu0 %v4174
    %4365 = vmatprep.subr.bf16.mxu0 %v4187
    %4366 = vmatpush1.bf16.msra.mxu0 %v4186
    %4367 = vmatprep.subr.bf16.mxu0 %v4199
    %4368 = vmatpush1.bf16.msra.mxu0 %v4198
    %4369 = vmatprep.subr.bf16.mxu0 %v4211
    %4370 = vmatpush1.bf16.msra.mxu0 %v4210
    %4371 = vmatprep.mubr.bf16.mxu0 %v4023
    %4372 = vmatmul.mubr.bf16.gmra.mrb[0].mxu0 %v4022
    %v4373 = vpop.f32.mrb[0].mxu0
    %v4374 = vadd.f32 0.0, %v4373
    %v4375 = vpop.f32.mrb[0].mxu0
    %v4376 = vadd.f32 0.0, %v4375
    %v4377 = vpop.f32.mrb[0].mxu0
    %v4378 = vpop.f32.mrb[0].mxu0
    %4379 = vdwg.mxu0
    %4380 = vmatprep.subr.bf16.mxu0 %v4033
    %4381 = vmatpush1.bf16.msra.mxu0 %v4032
    %4382 = vmatprep.subr.bf16.mxu0 %v4045
    %4383 = vmatpush1.bf16.msra.mxu0 %v4044
    %4384 = vmatprep.subr.bf16.mxu0 %v4057
    %4385 = vmatpush1.bf16.msra.mxu0 %v4056
    %4386 = vmatprep.subr.bf16.mxu0 %v4069
    %4387 = vmatpush1.bf16.msra.mxu0 %v4068
    %4388 = vmatprep.subr.bf16.mxu0 %v4081
    %4389 = vmatpush1.bf16.msra.mxu0 %v4080
    %4390 = vmatprep.subr.bf16.mxu0 %v4093
    %4391 = vmatpush1.bf16.msra.mxu0 %v4092
    %4392 = vmatprep.subr.bf16.mxu0 %v4105
    %4393 = vmatpush1.bf16.msra.mxu0 %v4104
    %4394 = vmatprep.subr.bf16.mxu0 %v4117
    %4395 = vmatpush1.bf16.msra.mxu0 %v4116
    %4396 = vmatprep.subr.bf16.mxu0 %v4129
    %4397 = vmatpush1.bf16.msra.mxu0 %v4128
    %4398 = vmatprep.subr.bf16.mxu0 %v4141
    %4399 = vmatpush1.bf16.msra.mxu0 %v4140
    %4400 = vmatprep.subr.bf16.mxu0 %v4153
    %4401 = vmatpush1.bf16.msra.mxu0 %v4152
    %4402 = vmatprep.subr.bf16.mxu0 %v4165
    %4403 = vmatpush1.bf16.msra.mxu0 %v4164
    %4404 = vmatprep.subr.bf16.mxu0 %v4177
    %4405 = vmatpush1.bf16.msra.mxu0 %v4176
    %4406 = vmatprep.subr.bf16.mxu0 %v4189
    %4407 = vmatpush1.bf16.msra.mxu0 %v4188
    %4408 = vmatprep.subr.bf16.mxu0 %v4201
    %4409 = vmatpush1.bf16.msra.mxu0 %v4200
    %4410 = vmatprep.subr.bf16.mxu0 %v4213
    %4411 = vmatpush1.bf16.msra.mxu0 %v4212
    %4412 = vmatprep.mubr.bf16.mxu0 %v4023
    %4413 = vmatmul.mubr.bf16.gmra.mrb[0].mxu0 %v4022
    %v4414 = vpop.f32.mrb[0].mxu0
    %v4415 = vadd.f32 0.0, %v4414
    %v4416 = vpop.f32.mrb[0].mxu0
    %v4417 = vadd.f32 0.0, %v4416
    %v4418 = vpop.f32.mrb[0].mxu0
    %v4419 = vpop.f32.mrb[0].mxu0
    %4420 = vdwg.mxu0
    %4421 = vmatprep.subr.bf16.mxu0 %v4035
    %4422 = vmatpush1.bf16.msra.mxu0 %v4034
    %4423 = vmatprep.subr.bf16.mxu0 %v4047
    %4424 = vmatpush1.bf16.msra.mxu0 %v4046
    %4425 = vmatprep.subr.bf16.mxu0 %v4059
    %4426 = vmatpush1.bf16.msra.mxu0 %v4058
    %4427 = vmatprep.subr.bf16.mxu0 %v4071
    %4428 = vmatpush1.bf16.msra.mxu0 %v4070
    %4429 = vmatprep.subr.bf16.mxu0 %v4083
    %4430 = vmatpush1.bf16.msra.mxu0 %v4082
    %4431 = vmatprep.subr.bf16.mxu0 %v4095
    %4432 = vmatpush1.bf16.msra.mxu0 %v4094
    %4433 = vmatprep.subr.bf16.mxu0 %v4107
    %4434 = vmatpush1.bf16.msra.mxu0 %v4106
    %4435 = vmatprep.subr.bf16.mxu0 %v4119
    %4436 = vmatpush1.bf16.msra.mxu0 %v4118
    %4437 = vmatprep.subr.bf16.mxu0 %v4131
    %4438 = vmatpush1.bf16.msra.mxu0 %v4130
    %4439 = vmatprep.subr.bf16.mxu0 %v4143
    %4440 = vmatpush1.bf16.msra.mxu0 %v4142
    %4441 = vmatprep.subr.bf16.mxu0 %v4155
    %4442 = vmatpush1.bf16.msra.mxu0 %v4154
    %4443 = vmatprep.subr.bf16.mxu0 %v4167
    %4444 = vmatpush1.bf16.msra.mxu0 %v4166
    %4445 = vmatprep.subr.bf16.mxu0 %v4179
    %4446 = vmatpush1.bf16.msra.mxu0 %v4178
    %4447 = vmatprep.subr.bf16.mxu0 %v4191
    %4448 = vmatpush1.bf16.msra.mxu0 %v4190
    %4449 = vmatprep.subr.bf16.mxu0 %v4203
    %4450 = vmatpush1.bf16.msra.mxu0 %v4202
    %4451 = vmatprep.subr.bf16.mxu0 %v4215
    %4452 = vmatpush1.bf16.msra.mxu0 %v4214
    %4453 = vmatprep.mubr.bf16.mxu0 %v4023
    %4454 = vmatmul.mubr.bf16.gmra.mrb[0].mxu0 %v4022
    %v4455 = vpop.f32.mrb[0].mxu0
    %v4456 = vadd.f32 0.0, %v4455
    %v4457 = vpop.f32.mrb[0].mxu0
    %v4458 = vadd.f32 0.0, %v4457
    %v4459 = vpop.f32.mrb[0].mxu0
    %v4460 = vpop.f32.mrb[0].mxu0
    %4461 = vdwg.mxu0
    %v4462 = vadd.f32 %v4415, %v1400
    %v4463 = vadd.f32 %v4417, %v1404
    %v4464 = vadd.f32 %v4456, %v1408
    %v4465 = vadd.f32 %v4458, %v1412
    %v4466 = vld [vmem:[#allocation4] sm:$0xff]
    %v4467 = vld [vmem:[#allocation4 + $0x8] sm:$0xff]
    %v4468 = vld [vmem:[#allocation4 + $0x10] sm:$0xff]
    %v4469 = vld [vmem:[#allocation4 + $0x18] sm:$0xff]
    %v4470 = vld [vmem:[#allocation4 + $0x20] sm:$0xff]
    %v4471 = vld [vmem:[#allocation4 + $0x28] sm:$0xff]
    %v4472 = vld [vmem:[#allocation4 + $0x30] sm:$0xff]
    %v4473 = vld [vmem:[#allocation4 + $0x38] sm:$0xff]
    %v4474 = vld [vmem:[#allocation4 + $0x40] sm:$0xff]
    %v4475 = vld [vmem:[#allocation4 + $0x48] sm:$0xff]
    %v4476 = vld [vmem:[#allocation4 + $0x50] sm:$0xff]
    %v4477 = vld [vmem:[#allocation4 + $0x58] sm:$0xff]
    %v4478 = vld [vmem:[#allocation4 + $0x60] sm:$0xff]
    %v4479 = vld [vmem:[#allocation4 + $0x68] sm:$0xff]
    %v4480 = vld [vmem:[#allocation4 + $0x70] sm:$0xff]
    %v4481 = vld [vmem:[#allocation4 + $0x78] sm:$0xff]
    %v4482 = vld [vmem:[#allocation4 + $0x80] sm:$0xff]
    %v4483 = vld [vmem:[#allocation4 + $0x88] sm:$0xff]
    %v4484 = vld [vmem:[#allocation4 + $0x90] sm:$0xff]
    %v4485 = vld [vmem:[#allocation4 + $0x98] sm:$0xff]
    %v4486 = vld [vmem:[#allocation4 + $0xa0] sm:$0xff]
    %v4487 = vld [vmem:[#allocation4 + $0xa8] sm:$0xff]
    %v4488 = vld [vmem:[#allocation4 + $0xb0] sm:$0xff]
    %v4489 = vld [vmem:[#allocation4 + $0xb8] sm:$0xff]
    %v4490 = vld [vmem:[#allocation4 + $0xc0] sm:$0xff]
    %v4491 = vld [vmem:[#allocation4 + $0xc8] sm:$0xff]
    %v4492 = vld [vmem:[#allocation4 + $0xd0] sm:$0xff]
    %v4493 = vld [vmem:[#allocation4 + $0xd8] sm:$0xff]
    %v4494 = vld [vmem:[#allocation4 + $0xe0] sm:$0xff]
    %v4495 = vld [vmem:[#allocation4 + $0xe8] sm:$0xff]
    %v4496 = vld [vmem:[#allocation4 + $0xf0] sm:$0xff]
    %v4497 = vld [vmem:[#allocation4 + $0xf8] sm:$0xff]
    %4498 = vmatprep.subr.bf16.mxu0 %v4467
    %4499 = vmatpush1.bf16.msra.mxu0 %v4466
    %4500 = vmatprep.subr.bf16.mxu0 %v4471
    %4501 = vmatpush1.bf16.msra.mxu0 %v4470
    %4502 = vmatprep.subr.bf16.mxu0 %v4475
    %4503 = vmatpush1.bf16.msra.mxu0 %v4474
    %4504 = vmatprep.subr.bf16.mxu0 %v4479
    %4505 = vmatpush1.bf16.msra.mxu0 %v4478
    %4506 = vmatprep.subr.bf16.mxu0 %v4483
    %4507 = vmatpush1.bf16.msra.mxu0 %v4482
    %4508 = vmatprep.subr.bf16.mxu0 %v4487
    %4509 = vmatpush1.bf16.msra.mxu0 %v4486
    %4510 = vmatprep.subr.bf16.mxu0 %v4491
    %4511 = vmatpush1.bf16.msra.mxu0 %v4490
    %4512 = vmatprep.subr.bf16.mxu0 %v4495
    %4513 = vmatpush1.bf16.msra.mxu0 %v4494
    %4514 = vmatprep.subr.bf16.mxu0 0
    %4515 = vmatpush1.bf16.msra.mxu0 0
    %4516 = vmatprep.subr.bf16.mxu0 0
    %4517 = vmatpush1.bf16.msra.mxu0 0
    %4518 = vmatprep.subr.bf16.mxu0 0
    %4519 = vmatpush1.bf16.msra.mxu0 0
    %4520 = vmatprep.subr.bf16.mxu0 0
    %4521 = vmatpush1.bf16.msra.mxu0 0
    %4522 = vmatprep.subr.bf16.mxu0 0
    %4523 = vmatpush1.bf16.msra.mxu0 0
    %4524 = vmatprep.subr.bf16.mxu0 0
    %4525 = vmatpush1.bf16.msra.mxu0 0
    %4526 = vmatprep.subr.bf16.mxu0 0
    %4527 = vmatpush1.bf16.msra.mxu0 0
    %4528 = vmatprep.subr.bf16.mxu0 0
    %4529 = vmatpush1.bf16.msra.mxu0 0
    %4530 = vmatprep.mubr.bf16.mxu0 0
    %4531 = vmatmul.mubr.bf16.gmra.mrb[0].mxu0 %v3968
    %v4532 = vpop.f32.mrb[0].mxu0
    %v4533 = vadd.f32 0.0, %v4532
    %v4534 = vpop.f32.mrb[0].mxu0
    %v4535 = vadd.f32 0.0, %v4534
    %v4536 = vpop.f32.mrb[0].mxu0
    %v4537 = vpop.f32.mrb[0].mxu0
    %4538 = vdwg.mxu0
    %4539 = vmatprep.subr.bf16.mxu0 %v4469
    %4540 = vmatpush1.bf16.msra.mxu0 %v4468
    %4541 = vmatprep.subr.bf16.mxu0 %v4473
    %4542 = vmatpush1.bf16.msra.mxu0 %v4472
    %4543 = vmatprep.subr.bf16.mxu0 %v4477
    %4544 = vmatpush1.bf16.msra.mxu0 %v4476
    %4545 = vmatprep.subr.bf16.mxu0 %v4481
    %4546 = vmatpush1.bf16.msra.mxu0 %v4480
    %4547 = vmatprep.subr.bf16.mxu0 %v4485
    %4548 = vmatpush1.bf16.msra.mxu0 %v4484
    %4549 = vmatprep.subr.bf16.mxu0 %v4489
    %4550 = vmatpush1.bf16.msra.mxu0 %v4488
    %4551 = vmatprep.subr.bf16.mxu0 %v4493
    %4552 = vmatpush1.bf16.msra.mxu0 %v4492
    %4553 = vmatprep.subr.bf16.mxu0 %v4497
    %4554 = vmatpush1.bf16.msra.mxu0 %v4496
    %4555 = vmatprep.subr.bf16.mxu0 0
    %4556 = vmatpush1.bf16.msra.mxu0 0
    %4557 = vmatprep.subr.bf16.mxu0 0
    %4558 = vmatpush1.bf16.msra.mxu0 0
    %4559 = vmatprep.subr.bf16.mxu0 0
    %4560 = vmatpush1.bf16.msra.mxu0 0
    %4561 = vmatprep.subr.bf16.mxu0 0
    %4562 = vmatpush1.bf16.msra.mxu0 0
    %4563 = vmatprep.subr.bf16.mxu0 0
    %4564 = vmatpush1.bf16.msra.mxu0 0
    %4565 = vmatprep.subr.bf16.mxu0 0
    %4566 = vmatpush1.bf16.msra.mxu0 0
    %4567 = vmatprep.subr.bf16.mxu0 0
    %4568 = vmatpush1.bf16.msra.mxu0 0
    %4569 = vmatprep.subr.bf16.mxu0 0
    %4570 = vmatpush1.bf16.msra.mxu0 0
    %4571 = vmatprep.mubr.bf16.mxu0 0
    %4572 = vmatmul.mubr.bf16.gmra.mrb[0].mxu0 %v3968
    %v4573 = vpop.f32.mrb[0].mxu0
    %v4574 = vadd.f32 0.0, %v4573
    %v4575 = vpop.f32.mrb[0].mxu0
    %v4576 = vadd.f32 0.0, %v4575
    %v4577 = vpop.f32.mrb[0].mxu0
    %v4578 = vpop.f32.mrb[0].mxu0
    %4579 = vdwg.mxu0
    %v4580 = vadd.f32 %v4462, %v4533
    %v4581 = vadd.f32 %v4463, %v4535
    %v4582 = vadd.f32 %v4464, %v4574
    %v4583 = vadd.f32 %v4465, %v4576
    %v4584 = vmul.f32 %v4580, 0.5
    %v4585 = vtanh.pop %v4584
    %v4586 = vmul.f32 %v4585, 0.5
    %v4587 = vadd.f32 %v4586, 0.5
    %v4588 = vtanh.pop %v4582
    %v4589 = vmul.f32 %v4583, 0.5
    %v4590 = vtanh.pop %v4589
    %v4591 = vmul.f32 %v4590, 0.5
    %v4592 = vadd.f32 %v4591, 0.5
    %v4593 = vmul.f32 %v4581, 0.5
    %v4594 = vtanh.pop %v4593
    %v4595 = vmul.f32 %v4594, 0.5
    %v4596 = vadd.f32 %v4595, 0.5
    %v4597 = vmul.f32 %v4596, %v3965
    %v4598 = vmul.f32 %v4587, %v4588
    %v4599 = vadd.f32 %v4597, %v4598
    %v4600 = vtanh.pop %v4599
    %v4601 = vmul.f32 %v4592, %v4600
    %v4602 = vpack.c.bf16 %v4601, %v4601
    %4603 = vst [vmem:[%s6 + $0x28] sm:$0xff] %v4601
    %v4604 = vld [vmem:[#allocation2 + $0x180] sm:$0xff]
    %v4605 = vld [vmem:[#allocation2 + $0x188] sm:$0xff]
    %v4606 = vld [vmem:[#allocation2 + $0x190] sm:$0xff]
    %v4607 = vld [vmem:[#allocation2 + $0x198] sm:$0xff]
    %v4608 = vld [vmem:[#allocation2 + $0x1a0] sm:$0xff]
    %v4609 = vld [vmem:[#allocation2 + $0x1a8] sm:$0xff]
    %v4610 = vld [vmem:[#allocation2 + $0x1b0] sm:$0xff]
    %v4611 = vld [vmem:[#allocation2 + $0x1b8] sm:$0xff]
    %v4612 = vadd.f32 %v4604, %v4251
    %v4613 = vadd.f32 %v4605, %v4253
    %v4614 = vadd.f32 %v4606, %v4292
    %v4615 = vadd.f32 %v4607, %v4294
    %v4616 = vadd.f32 %v4608, %v4333
    %v4617 = vadd.f32 %v4609, %v4335
    %v4618 = vadd.f32 %v4610, %v4374
    %v4619 = vadd.f32 %v4611, %v4376
    %v4620 = vmul.f32 %v4612, 0.5
    %v4621 = vmul.f32 %v4613, 0.5
    %v4622 = vtanh.pop %v4620
    %v4623 = vtanh.pop %v4621
    %v4624 = vmul.f32 %v4622, 0.5
    %v4625 = vmul.f32 %v4623, 0.5
    %v4626 = vadd.f32 %v4624, 0.5
    %v4627 = vadd.f32 %v4625, 0.5
    %v4628 = vtanh.pop %v4616
    %v4629 = vtanh.pop %v4617
    %v4630 = vmul.f32 %v4618, 0.5
    %v4631 = vmul.f32 %v4619, 0.5
    %v4632 = vtanh.pop %v4630
    %v4633 = vtanh.pop %v4631
    %v4634 = vmul.f32 %v4632, 0.5
    %v4635 = vmul.f32 %v4633, 0.5
    %v4636 = vadd.f32 %v4634, 0.5
    %v4637 = vadd.f32 %v4635, 0.5
    %v4638 = vmul.f32 %v4614, 0.5
    %v4639 = vmul.f32 %v4615, 0.5
    %v4640 = vtanh.pop %v4638
    %v4641 = vtanh.pop %v4639
    %v4642 = vmul.f32 %v4640, 0.5
    %v4643 = vmul.f32 %v4641, 0.5
    %v4644 = vadd.f32 %v4642, 0.5
    %v4645 = vadd.f32 %v4643, 0.5
    %v4646 = vmul.f32 %v4644, %v4016
    %v4647 = vmul.f32 %v4645, %v4017
    %v4648 = vmul.f32 %v4626, %v4628
    %v4649 = vmul.f32 %v4627, %v4629
    %v4650 = vadd.f32 %v4646, %v4648
    %v4651 = vadd.f32 %v4647, %v4649
    %v4652 = vtanh.pop %v4650
    %v4653 = vtanh.pop %v4651
    %v4654 = vmul.f32 %v4636, %v4652
    %v4655 = vmul.f32 %v4637, %v4653
    %v4656 = vpack.c.bf16 %v4654, %v4654
    %v4657 = vpack.c.bf16 %v4655, %v4655
    %v4658 = vld [vmem:[#allocation3] sm:$0xff]
    %v4659 = vld [vmem:[#allocation3 + $0x8] sm:$0xff]
    %v4660 = vld [vmem:[#allocation3 + $0x10] sm:$0xff]
    %v4661 = vld [vmem:[#allocation3 + $0x18] sm:$0xff]
    %v4662 = vld [vmem:[#allocation3 + $0x20] sm:$0xff]
    %v4663 = vld [vmem:[#allocation3 + $0x28] sm:$0xff]
    %v4664 = vld [vmem:[#allocation3 + $0x30] sm:$0xff]
    %v4665 = vld [vmem:[#allocation3 + $0x38] sm:$0xff]
    %v4666 = vld [vmem:[#allocation3 + $0x40] sm:$0xff]
    %v4667 = vld [vmem:[#allocation3 + $0x48] sm:$0xff]
    %v4668 = vld [vmem:[#allocation3 + $0x50] sm:$0xff]
    %v4669 = vld [vmem:[#allocation3 + $0x58] sm:$0xff]
    %v4670 = vld [vmem:[#allocation3 + $0x60] sm:$0xff]
    %v4671 = vld [vmem:[#allocation3 + $0x68] sm:$0xff]
    %v4672 = vld [vmem:[#allocation3 + $0x70] sm:$0xff]
    %v4673 = vld [vmem:[#allocation3 + $0x78] sm:$0xff]
    %v4674 = vld [vmem:[#allocation3 + $0x80] sm:$0xff]
    %v4675 = vld [vmem:[#allocation3 + $0x88] sm:$0xff]
    %v4676 = vld [vmem:[#allocation3 + $0x90] sm:$0xff]
    %v4677 = vld [vmem:[#allocation3 + $0x98] sm:$0xff]
    %v4678 = vld [vmem:[#allocation3 + $0xa0] sm:$0xff]
    %v4679 = vld [vmem:[#allocation3 + $0xa8] sm:$0xff]
    %v4680 = vld [vmem:[#allocation3 + $0xb0] sm:$0xff]
    %v4681 = vld [vmem:[#allocation3 + $0xb8] sm:$0xff]
    %v4682 = vld [vmem:[#allocation3 + $0xc0] sm:$0xff]
    %v4683 = vld [vmem:[#allocation3 + $0xc8] sm:$0xff]
    %v4684 = vld [vmem:[#allocation3 + $0xd0] sm:$0xff]
    %v4685 = vld [vmem:[#allocation3 + $0xd8] sm:$0xff]
    %v4686 = vld [vmem:[#allocation3 + $0xe0] sm:$0xff]
    %v4687 = vld [vmem:[#allocation3 + $0xe8] sm:$0xff]
    %v4688 = vld [vmem:[#allocation3 + $0xf0] sm:$0xff]
    %v4689 = vld [vmem:[#allocation3 + $0xf8] sm:$0xff]
    %v4690 = vld [vmem:[#allocation3 + $0x100] sm:$0xff]
    %v4691 = vld [vmem:[#allocation3 + $0x108] sm:$0xff]
    %v4692 = vld [vmem:[#allocation3 + $0x110] sm:$0xff]
    %v4693 = vld [vmem:[#allocation3 + $0x118] sm:$0xff]
    %v4694 = vld [vmem:[#allocation3 + $0x120] sm:$0xff]
    %v4695 = vld [vmem:[#allocation3 + $0x128] sm:$0xff]
    %v4696 = vld [vmem:[#allocation3 + $0x130] sm:$0xff]
    %v4697 = vld [vmem:[#allocation3 + $0x138] sm:$0xff]
    %v4698 = vld [vmem:[#allocation3 + $0x140] sm:$0xff]
    %v4699 = vld [vmem:[#allocation3 + $0x148] sm:$0xff]
    %v4700 = vld [vmem:[#allocation3 + $0x150] sm:$0xff]
    %v4701 = vld [vmem:[#allocation3 + $0x158] sm:$0xff]
    %v4702 = vld [vmem:[#allocation3 + $0x160] sm:$0xff]
    %v4703 = vld [vmem:[#allocation3 + $0x168] sm:$0xff]
    %v4704 = vld [vmem:[#allocation3 + $0x170] sm:$0xff]
    %v4705 = vld [vmem:[#allocation3 + $0x178] sm:$0xff]
    %v4706 = vld [vmem:[#allocation3 + $0x180] sm:$0xff]
    %v4707 = vld [vmem:[#allocation3 + $0x188] sm:$0xff]
    %v4708 = vld [vmem:[#allocation3 + $0x190] sm:$0xff]
    %v4709 = vld [vmem:[#allocation3 + $0x198] sm:$0xff]
    %v4710 = vld [vmem:[#allocation3 + $0x1a0] sm:$0xff]
    %v4711 = vld [vmem:[#allocation3 + $0x1a8] sm:$0xff]
    %v4712 = vld [vmem:[#allocation3 + $0x1b0] sm:$0xff]
    %v4713 = vld [vmem:[#allocation3 + $0x1b8] sm:$0xff]
    %v4714 = vld [vmem:[#allocation3 + $0x1c0] sm:$0xff]
    %v4715 = vld [vmem:[#allocation3 + $0x1c8] sm:$0xff]
    %v4716 = vld [vmem:[#allocation3 + $0x1d0] sm:$0xff]
    %v4717 = vld [vmem:[#allocation3 + $0x1d8] sm:$0xff]
    %v4718 = vld [vmem:[#allocation3 + $0x1e0] sm:$0xff]
    %v4719 = vld [vmem:[#allocation3 + $0x1e8] sm:$0xff]
    %v4720 = vld [vmem:[#allocation3 + $0x1f0] sm:$0xff]
    %v4721 = vld [vmem:[#allocation3 + $0x1f8] sm:$0xff]
    %v4722 = vld [vmem:[#allocation3 + $0x200] sm:$0xff]
    %v4723 = vld [vmem:[#allocation3 + $0x208] sm:$0xff]
    %v4724 = vld [vmem:[#allocation3 + $0x210] sm:$0xff]
    %v4725 = vld [vmem:[#allocation3 + $0x218] sm:$0xff]
    %v4726 = vld [vmem:[#allocation3 + $0x220] sm:$0xff]
    %v4727 = vld [vmem:[#allocation3 + $0x228] sm:$0xff]
    %v4728 = vld [vmem:[#allocation3 + $0x230] sm:$0xff]
    %v4729 = vld [vmem:[#allocation3 + $0x238] sm:$0xff]
    %v4730 = vld [vmem:[#allocation3 + $0x240] sm:$0xff]
    %v4731 = vld [vmem:[#allocation3 + $0x248] sm:$0xff]
    %v4732 = vld [vmem:[#allocation3 + $0x250] sm:$0xff]
    %v4733 = vld [vmem:[#allocation3 + $0x258] sm:$0xff]
    %v4734 = vld [vmem:[#allocation3 + $0x260] sm:$0xff]
    %v4735 = vld [vmem:[#allocation3 + $0x268] sm:$0xff]
    %v4736 = vld [vmem:[#allocation3 + $0x270] sm:$0xff]
    %v4737 = vld [vmem:[#allocation3 + $0x278] sm:$0xff]
    %v4738 = vld [vmem:[#allocation3 + $0x280] sm:$0xff]
    %v4739 = vld [vmem:[#allocation3 + $0x288] sm:$0xff]
    %v4740 = vld [vmem:[#allocation3 + $0x290] sm:$0xff]
    %v4741 = vld [vmem:[#allocation3 + $0x298] sm:$0xff]
    %v4742 = vld [vmem:[#allocation3 + $0x2a0] sm:$0xff]
    %v4743 = vld [vmem:[#allocation3 + $0x2a8] sm:$0xff]
    %v4744 = vld [vmem:[#allocation3 + $0x2b0] sm:$0xff]
    %v4745 = vld [vmem:[#allocation3 + $0x2b8] sm:$0xff]
    %v4746 = vld [vmem:[#allocation3 + $0x2c0] sm:$0xff]
    %v4747 = vld [vmem:[#allocation3 + $0x2c8] sm:$0xff]
    %v4748 = vld [vmem:[#allocation3 + $0x2d0] sm:$0xff]
    %v4749 = vld [vmem:[#allocation3 + $0x2d8] sm:$0xff]
    %v4750 = vld [vmem:[#allocation3 + $0x2e0] sm:$0xff]
    %v4751 = vld [vmem:[#allocation3 + $0x2e8] sm:$0xff]
    %v4752 = vld [vmem:[#allocation3 + $0x2f0] sm:$0xff]
    %v4753 = vld [vmem:[#allocation3 + $0x2f8] sm:$0xff]
    %v4754 = vld [vmem:[#allocation3 + $0x300] sm:$0xff]
    %v4755 = vld [vmem:[#allocation3 + $0x308] sm:$0xff]
    %v4756 = vld [vmem:[#allocation3 + $0x310] sm:$0xff]
    %v4757 = vld [vmem:[#allocation3 + $0x318] sm:$0xff]
    %v4758 = vld [vmem:[#allocation3 + $0x320] sm:$0xff]
    %v4759 = vld [vmem:[#allocation3 + $0x328] sm:$0xff]
    %v4760 = vld [vmem:[#allocation3 + $0x330] sm:$0xff]
    %v4761 = vld [vmem:[#allocation3 + $0x338] sm:$0xff]
    %v4762 = vld [vmem:[#allocation3 + $0x340] sm:$0xff]
    %v4763 = vld [vmem:[#allocation3 + $0x348] sm:$0xff]
    %v4764 = vld [vmem:[#allocation3 + $0x350] sm:$0xff]
    %v4765 = vld [vmem:[#allocation3 + $0x358] sm:$0xff]
    %v4766 = vld [vmem:[#allocation3 + $0x360] sm:$0xff]
    %v4767 = vld [vmem:[#allocation3 + $0x368] sm:$0xff]
    %v4768 = vld [vmem:[#allocation3 + $0x370] sm:$0xff]
    %v4769 = vld [vmem:[#allocation3 + $0x378] sm:$0xff]
    %v4770 = vld [vmem:[#allocation3 + $0x380] sm:$0xff]
    %v4771 = vld [vmem:[#allocation3 + $0x388] sm:$0xff]
    %v4772 = vld [vmem:[#allocation3 + $0x390] sm:$0xff]
    %v4773 = vld [vmem:[#allocation3 + $0x398] sm:$0xff]
    %v4774 = vld [vmem:[#allocation3 + $0x3a0] sm:$0xff]
    %v4775 = vld [vmem:[#allocation3 + $0x3a8] sm:$0xff]
    %v4776 = vld [vmem:[#allocation3 + $0x3b0] sm:$0xff]
    %v4777 = vld [vmem:[#allocation3 + $0x3b8] sm:$0xff]
    %v4778 = vld [vmem:[#allocation3 + $0x3c0] sm:$0xff]
    %v4779 = vld [vmem:[#allocation3 + $0x3c8] sm:$0xff]
    %v4780 = vld [vmem:[#allocation3 + $0x3d0] sm:$0xff]
    %v4781 = vld [vmem:[#allocation3 + $0x3d8] sm:$0xff]
    %v4782 = vld [vmem:[#allocation3 + $0x3e0] sm:$0xff]
    %v4783 = vld [vmem:[#allocation3 + $0x3e8] sm:$0xff]
    %v4784 = vld [vmem:[#allocation3 + $0x3f0] sm:$0xff]
    %v4785 = vld [vmem:[#allocation3 + $0x3f8] sm:$0xff]
    %v4786 = vld [vmem:[#allocation3 + $0x400] sm:$0xff]
    %v4787 = vld [vmem:[#allocation3 + $0x408] sm:$0xff]
    %v4788 = vld [vmem:[#allocation3 + $0x410] sm:$0xff]
    %v4789 = vld [vmem:[#allocation3 + $0x418] sm:$0xff]
    %v4790 = vld [vmem:[#allocation3 + $0x420] sm:$0xff]
    %v4791 = vld [vmem:[#allocation3 + $0x428] sm:$0xff]
    %v4792 = vld [vmem:[#allocation3 + $0x430] sm:$0xff]
    %v4793 = vld [vmem:[#allocation3 + $0x438] sm:$0xff]
    %v4794 = vld [vmem:[#allocation3 + $0x440] sm:$0xff]
    %v4795 = vld [vmem:[#allocation3 + $0x448] sm:$0xff]
    %v4796 = vld [vmem:[#allocation3 + $0x450] sm:$0xff]
    %v4797 = vld [vmem:[#allocation3 + $0x458] sm:$0xff]
    %v4798 = vld [vmem:[#allocation3 + $0x460] sm:$0xff]
    %v4799 = vld [vmem:[#allocation3 + $0x468] sm:$0xff]
    %v4800 = vld [vmem:[#allocation3 + $0x470] sm:$0xff]
    %v4801 = vld [vmem:[#allocation3 + $0x478] sm:$0xff]
    %v4802 = vld [vmem:[#allocation3 + $0x480] sm:$0xff]
    %v4803 = vld [vmem:[#allocation3 + $0x488] sm:$0xff]
    %v4804 = vld [vmem:[#allocation3 + $0x490] sm:$0xff]
    %v4805 = vld [vmem:[#allocation3 + $0x498] sm:$0xff]
    %v4806 = vld [vmem:[#allocation3 + $0x4a0] sm:$0xff]
    %v4807 = vld [vmem:[#allocation3 + $0x4a8] sm:$0xff]
    %v4808 = vld [vmem:[#allocation3 + $0x4b0] sm:$0xff]
    %v4809 = vld [vmem:[#allocation3 + $0x4b8] sm:$0xff]
    %v4810 = vld [vmem:[#allocation3 + $0x4c0] sm:$0xff]
    %v4811 = vld [vmem:[#allocation3 + $0x4c8] sm:$0xff]
    %v4812 = vld [vmem:[#allocation3 + $0x4d0] sm:$0xff]
    %v4813 = vld [vmem:[#allocation3 + $0x4d8] sm:$0xff]
    %v4814 = vld [vmem:[#allocation3 + $0x4e0] sm:$0xff]
    %v4815 = vld [vmem:[#allocation3 + $0x4e8] sm:$0xff]
    %v4816 = vld [vmem:[#allocation3 + $0x4f0] sm:$0xff]
    %v4817 = vld [vmem:[#allocation3 + $0x4f8] sm:$0xff]
    %v4818 = vld [vmem:[#allocation3 + $0x500] sm:$0xff]
    %v4819 = vld [vmem:[#allocation3 + $0x508] sm:$0xff]
    %v4820 = vld [vmem:[#allocation3 + $0x510] sm:$0xff]
    %v4821 = vld [vmem:[#allocation3 + $0x518] sm:$0xff]
    %v4822 = vld [vmem:[#allocation3 + $0x520] sm:$0xff]
    %v4823 = vld [vmem:[#allocation3 + $0x528] sm:$0xff]
    %v4824 = vld [vmem:[#allocation3 + $0x530] sm:$0xff]
    %v4825 = vld [vmem:[#allocation3 + $0x538] sm:$0xff]
    %v4826 = vld [vmem:[#allocation3 + $0x540] sm:$0xff]
    %v4827 = vld [vmem:[#allocation3 + $0x548] sm:$0xff]
    %v4828 = vld [vmem:[#allocation3 + $0x550] sm:$0xff]
    %v4829 = vld [vmem:[#allocation3 + $0x558] sm:$0xff]
    %v4830 = vld [vmem:[#allocation3 + $0x560] sm:$0xff]
    %v4831 = vld [vmem:[#allocation3 + $0x568] sm:$0xff]
    %v4832 = vld [vmem:[#allocation3 + $0x570] sm:$0xff]
    %v4833 = vld [vmem:[#allocation3 + $0x578] sm:$0xff]
    %v4834 = vld [vmem:[#allocation3 + $0x580] sm:$0xff]
    %v4835 = vld [vmem:[#allocation3 + $0x588] sm:$0xff]
    %v4836 = vld [vmem:[#allocation3 + $0x590] sm:$0xff]
    %v4837 = vld [vmem:[#allocation3 + $0x598] sm:$0xff]
    %v4838 = vld [vmem:[#allocation3 + $0x5a0] sm:$0xff]
    %v4839 = vld [vmem:[#allocation3 + $0x5a8] sm:$0xff]
    %v4840 = vld [vmem:[#allocation3 + $0x5b0] sm:$0xff]
    %v4841 = vld [vmem:[#allocation3 + $0x5b8] sm:$0xff]
    %v4842 = vld [vmem:[#allocation3 + $0x5c0] sm:$0xff]
    %v4843 = vld [vmem:[#allocation3 + $0x5c8] sm:$0xff]
    %v4844 = vld [vmem:[#allocation3 + $0x5d0] sm:$0xff]
    %v4845 = vld [vmem:[#allocation3 + $0x5d8] sm:$0xff]
    %v4846 = vld [vmem:[#allocation3 + $0x5e0] sm:$0xff]
    %v4847 = vld [vmem:[#allocation3 + $0x5e8] sm:$0xff]
    %v4848 = vld [vmem:[#allocation3 + $0x5f0] sm:$0xff]
    %v4849 = vld [vmem:[#allocation3 + $0x5f8] sm:$0xff]
    %4850 = vmatprep.subr.bf16.mxu0 %v4659
    %4851 = vmatpush1.bf16.msra.mxu0 %v4658
    %4852 = vmatprep.subr.bf16.mxu0 %v4671
    %4853 = vmatpush1.bf16.msra.mxu0 %v4670
    %4854 = vmatprep.subr.bf16.mxu0 %v4683
    %4855 = vmatpush1.bf16.msra.mxu0 %v4682
    %4856 = vmatprep.subr.bf16.mxu0 %v4695
    %4857 = vmatpush1.bf16.msra.mxu0 %v4694
    %4858 = vmatprep.subr.bf16.mxu0 %v4707
    %4859 = vmatpush1.bf16.msra.mxu0 %v4706
    %4860 = vmatprep.subr.bf16.mxu0 %v4719
    %4861 = vmatpush1.bf16.msra.mxu0 %v4718
    %4862 = vmatprep.subr.bf16.mxu0 %v4731
    %4863 = vmatpush1.bf16.msra.mxu0 %v4730
    %4864 = vmatprep.subr.bf16.mxu0 %v4743
    %4865 = vmatpush1.bf16.msra.mxu0 %v4742
    %4866 = vmatprep.subr.bf16.mxu0 %v4755
    %4867 = vmatpush1.bf16.msra.mxu0 %v4754
    %4868 = vmatprep.subr.bf16.mxu0 %v4767
    %4869 = vmatpush1.bf16.msra.mxu0 %v4766
    %4870 = vmatprep.subr.bf16.mxu0 %v4779
    %4871 = vmatpush1.bf16.msra.mxu0 %v4778
    %4872 = vmatprep.subr.bf16.mxu0 %v4791
    %4873 = vmatpush1.bf16.msra.mxu0 %v4790
    %4874 = vmatprep.subr.bf16.mxu0 %v4803
    %4875 = vmatpush1.bf16.msra.mxu0 %v4802
    %4876 = vmatprep.subr.bf16.mxu0 %v4815
    %4877 = vmatpush1.bf16.msra.mxu0 %v4814
    %4878 = vmatprep.subr.bf16.mxu0 %v4827
    %4879 = vmatpush1.bf16.msra.mxu0 %v4826
    %4880 = vmatprep.subr.bf16.mxu0 %v4839
    %4881 = vmatpush1.bf16.msra.mxu0 %v4838
    %4882 = vmatprep.mubr.bf16.mxu0 %v4657
    %4883 = vmatmul.mubr.bf16.gmra.mrb[0].mxu0 %v4656
    %v4884 = vpop.f32.mrb[0].mxu0
    %v4885 = vadd.f32 0.0, %v4884
    %v4886 = vpop.f32.mrb[0].mxu0
    %v4887 = vadd.f32 0.0, %v4886
    %v4888 = vpop.f32.mrb[0].mxu0
    %v4889 = vpop.f32.mrb[0].mxu0
    %4890 = vdwg.mxu0
    %4891 = vmatprep.subr.bf16.mxu0 %v4661
    %4892 = vmatpush1.bf16.msra.mxu0 %v4660
    %4893 = vmatprep.subr.bf16.mxu0 %v4673
    %4894 = vmatpush1.bf16.msra.mxu0 %v4672
    %4895 = vmatprep.subr.bf16.mxu0 %v4685
    %4896 = vmatpush1.bf16.msra.mxu0 %v4684
    %4897 = vmatprep.subr.bf16.mxu0 %v4697
    %4898 = vmatpush1.bf16.msra.mxu0 %v4696
    %4899 = vmatprep.subr.bf16.mxu0 %v4709
    %4900 = vmatpush1.bf16.msra.mxu0 %v4708
    %4901 = vmatprep.subr.bf16.mxu0 %v4721
    %4902 = vmatpush1.bf16.msra.mxu0 %v4720
    %4903 = vmatprep.subr.bf16.mxu0 %v4733
    %4904 = vmatpush1.bf16.msra.mxu0 %v4732
    %4905 = vmatprep.subr.bf16.mxu0 %v4745
    %4906 = vmatpush1.bf16.msra.mxu0 %v4744
    %4907 = vmatprep.subr.bf16.mxu0 %v4757
    %4908 = vmatpush1.bf16.msra.mxu0 %v4756
    %4909 = vmatprep.subr.bf16.mxu0 %v4769
    %4910 = vmatpush1.bf16.msra.mxu0 %v4768
    %4911 = vmatprep.subr.bf16.mxu0 %v4781
    %4912 = vmatpush1.bf16.msra.mxu0 %v4780
    %4913 = vmatprep.subr.bf16.mxu0 %v4793
    %4914 = vmatpush1.bf16.msra.mxu0 %v4792
    %4915 = vmatprep.subr.bf16.mxu0 %v4805
    %4916 = vmatpush1.bf16.msra.mxu0 %v4804
    %4917 = vmatprep.subr.bf16.mxu0 %v4817
    %4918 = vmatpush1.bf16.msra.mxu0 %v4816
    %4919 = vmatprep.subr.bf16.mxu0 %v4829
    %4920 = vmatpush1.bf16.msra.mxu0 %v4828
    %4921 = vmatprep.subr.bf16.mxu0 %v4841
    %4922 = vmatpush1.bf16.msra.mxu0 %v4840
    %4923 = vmatprep.mubr.bf16.mxu0 %v4657
    %4924 = vmatmul.mubr.bf16.gmra.mrb[0].mxu0 %v4656
    %v4925 = vpop.f32.mrb[0].mxu0
    %v4926 = vadd.f32 0.0, %v4925
    %v4927 = vpop.f32.mrb[0].mxu0
    %v4928 = vadd.f32 0.0, %v4927
    %v4929 = vpop.f32.mrb[0].mxu0
    %v4930 = vpop.f32.mrb[0].mxu0
    %4931 = vdwg.mxu0
    %4932 = vmatprep.subr.bf16.mxu0 %v4663
    %4933 = vmatpush1.bf16.msra.mxu0 %v4662
    %4934 = vmatprep.subr.bf16.mxu0 %v4675
    %4935 = vmatpush1.bf16.msra.mxu0 %v4674
    %4936 = vmatprep.subr.bf16.mxu0 %v4687
    %4937 = vmatpush1.bf16.msra.mxu0 %v4686
    %4938 = vmatprep.subr.bf16.mxu0 %v4699
    %4939 = vmatpush1.bf16.msra.mxu0 %v4698
    %4940 = vmatprep.subr.bf16.mxu0 %v4711
    %4941 = vmatpush1.bf16.msra.mxu0 %v4710
    %4942 = vmatprep.subr.bf16.mxu0 %v4723
    %4943 = vmatpush1.bf16.msra.mxu0 %v4722
    %4944 = vmatprep.subr.bf16.mxu0 %v4735
    %4945 = vmatpush1.bf16.msra.mxu0 %v4734
    %4946 = vmatprep.subr.bf16.mxu0 %v4747
    %4947 = vmatpush1.bf16.msra.mxu0 %v4746
    %4948 = vmatprep.subr.bf16.mxu0 %v4759
    %4949 = vmatpush1.bf16.msra.mxu0 %v4758
    %4950 = vmatprep.subr.bf16.mxu0 %v4771
    %4951 = vmatpush1.bf16.msra.mxu0 %v4770
    %4952 = vmatprep.subr.bf16.mxu0 %v4783
    %4953 = vmatpush1.bf16.msra.mxu0 %v4782
    %4954 = vmatprep.subr.bf16.mxu0 %v4795
    %4955 = vmatpush1.bf16.msra.mxu0 %v4794
    %4956 = vmatprep.subr.bf16.mxu0 %v4807
    %4957 = vmatpush1.bf16.msra.mxu0 %v4806
    %4958 = vmatprep.subr.bf16.mxu0 %v4819
    %4959 = vmatpush1.bf16.msra.mxu0 %v4818
    %4960 = vmatprep.subr.bf16.mxu0 %v4831
    %4961 = vmatpush1.bf16.msra.mxu0 %v4830
    %4962 = vmatprep.subr.bf16.mxu0 %v4843
    %4963 = vmatpush1.bf16.msra.mxu0 %v4842
    %4964 = vmatprep.mubr.bf16.mxu0 %v4657
    %4965 = vmatmul.mubr.bf16.gmra.mrb[0].mxu0 %v4656
    %v4966 = vpop.f32.mrb[0].mxu0
    %v4967 = vadd.f32 0.0, %v4966
    %v4968 = vpop.f32.mrb[0].mxu0
    %v4969 = vadd.f32 0.0, %v4968
    %v4970 = vpop.f32.mrb[0].mxu0
    %v4971 = vpop.f32.mrb[0].mxu0
    %4972 = vdwg.mxu0
    %4973 = vmatprep.subr.bf16.mxu0 %v4665
    %4974 = vmatpush1.bf16.msra.mxu0 %v4664
    %4975 = vmatprep.subr.bf16.mxu0 %v4677
    %4976 = vmatpush1.bf16.msra.mxu0 %v4676
    %4977 = vmatprep.subr.bf16.mxu0 %v4689
    %4978 = vmatpush1.bf16.msra.mxu0 %v4688
    %4979 = vmatprep.subr.bf16.mxu0 %v4701
    %4980 = vmatpush1.bf16.msra.mxu0 %v4700
    %4981 = vmatprep.subr.bf16.mxu0 %v4713
    %4982 = vmatpush1.bf16.msra.mxu0 %v4712
    %4983 = vmatprep.subr.bf16.mxu0 %v4725
    %4984 = vmatpush1.bf16.msra.mxu0 %v4724
    %4985 = vmatprep.subr.bf16.mxu0 %v4737
    %4986 = vmatpush1.bf16.msra.mxu0 %v4736
    %4987 = vmatprep.subr.bf16.mxu0 %v4749
    %4988 = vmatpush1.bf16.msra.mxu0 %v4748
    %4989 = vmatprep.subr.bf16.mxu0 %v4761
    %4990 = vmatpush1.bf16.msra.mxu0 %v4760
    %4991 = vmatprep.subr.bf16.mxu0 %v4773
    %4992 = vmatpush1.bf16.msra.mxu0 %v4772
    %4993 = vmatprep.subr.bf16.mxu0 %v4785
    %4994 = vmatpush1.bf16.msra.mxu0 %v4784
    %4995 = vmatprep.subr.bf16.mxu0 %v4797
    %4996 = vmatpush1.bf16.msra.mxu0 %v4796
    %4997 = vmatprep.subr.bf16.mxu0 %v4809
    %4998 = vmatpush1.bf16.msra.mxu0 %v4808
    %4999 = vmatprep.subr.bf16.mxu0 %v4821
    %5000 = vmatpush1.bf16.msra.mxu0 %v4820
    %5001 = vmatprep.subr.bf16.mxu0 %v4833
    %5002 = vmatpush1.bf16.msra.mxu0 %v4832
    %5003 = vmatprep.subr.bf16.mxu0 %v4845
    %5004 = vmatpush1.bf16.msra.mxu0 %v4844
    %5005 = vmatprep.mubr.bf16.mxu0 %v4657
    %5006 = vmatmul.mubr.bf16.gmra.mrb[0].mxu0 %v4656
    %v5007 = vpop.f32.mrb[0].mxu0
    %v5008 = vadd.f32 0.0, %v5007
    %v5009 = vpop.f32.mrb[0].mxu0
    %v5010 = vadd.f32 0.0, %v5009
    %v5011 = vpop.f32.mrb[0].mxu0
    %v5012 = vpop.f32.mrb[0].mxu0
    %5013 = vdwg.mxu0
    %5014 = vmatprep.subr.bf16.mxu0 %v4667
    %5015 = vmatpush1.bf16.msra.mxu0 %v4666
    %5016 = vmatprep.subr.bf16.mxu0 %v4679
    %5017 = vmatpush1.bf16.msra.mxu0 %v4678
    %5018 = vmatprep.subr.bf16.mxu0 %v4691
    %5019 = vmatpush1.bf16.msra.mxu0 %v4690
    %5020 = vmatprep.subr.bf16.mxu0 %v4703
    %5021 = vmatpush1.bf16.msra.mxu0 %v4702
    %5022 = vmatprep.subr.bf16.mxu0 %v4715
    %5023 = vmatpush1.bf16.msra.mxu0 %v4714
    %5024 = vmatprep.subr.bf16.mxu0 %v4727
    %5025 = vmatpush1.bf16.msra.mxu0 %v4726
    %5026 = vmatprep.subr.bf16.mxu0 %v4739
    %5027 = vmatpush1.bf16.msra.mxu0 %v4738
    %5028 = vmatprep.subr.bf16.mxu0 %v4751
    %5029 = vmatpush1.bf16.msra.mxu0 %v4750
    %5030 = vmatprep.subr.bf16.mxu0 %v4763
    %5031 = vmatpush1.bf16.msra.mxu0 %v4762
    %5032 = vmatprep.subr.bf16.mxu0 %v4775
    %5033 = vmatpush1.bf16.msra.mxu0 %v4774
    %5034 = vmatprep.subr.bf16.mxu0 %v4787
    %5035 = vmatpush1.bf16.msra.mxu0 %v4786
    %5036 = vmatprep.subr.bf16.mxu0 %v4799
    %5037 = vmatpush1.bf16.msra.mxu0 %v4798
    %5038 = vmatprep.subr.bf16.mxu0 %v4811
    %5039 = vmatpush1.bf16.msra.mxu0 %v4810
    %5040 = vmatprep.subr.bf16.mxu0 %v4823
    %5041 = vmatpush1.bf16.msra.mxu0 %v4822
    %5042 = vmatprep.subr.bf16.mxu0 %v4835
    %5043 = vmatpush1.bf16.msra.mxu0 %v4834
    %5044 = vmatprep.subr.bf16.mxu0 %v4847
    %5045 = vmatpush1.bf16.msra.mxu0 %v4846
    %5046 = vmatprep.mubr.bf16.mxu0 %v4657
    %5047 = vmatmul.mubr.bf16.gmra.mrb[0].mxu0 %v4656
    %v5048 = vpop.f32.mrb[0].mxu0
    %v5049 = vadd.f32 0.0, %v5048
    %v5050 = vpop.f32.mrb[0].mxu0
    %v5051 = vadd.f32 0.0, %v5050
    %v5052 = vpop.f32.mrb[0].mxu0
    %v5053 = vpop.f32.mrb[0].mxu0
    %5054 = vdwg.mxu0
    %5055 = vmatprep.subr.bf16.mxu0 %v4669
    %5056 = vmatpush1.bf16.msra.mxu0 %v4668
    %5057 = vmatprep.subr.bf16.mxu0 %v4681
    %5058 = vmatpush1.bf16.msra.mxu0 %v4680
    %5059 = vmatprep.subr.bf16.mxu0 %v4693
    %5060 = vmatpush1.bf16.msra.mxu0 %v4692
    %5061 = vmatprep.subr.bf16.mxu0 %v4705
    %5062 = vmatpush1.bf16.msra.mxu0 %v4704
    %5063 = vmatprep.subr.bf16.mxu0 %v4717
    %5064 = vmatpush1.bf16.msra.mxu0 %v4716
    %5065 = vmatprep.subr.bf16.mxu0 %v4729
    %5066 = vmatpush1.bf16.msra.mxu0 %v4728
    %5067 = vmatprep.subr.bf16.mxu0 %v4741
    %5068 = vmatpush1.bf16.msra.mxu0 %v4740
    %5069 = vmatprep.subr.bf16.mxu0 %v4753
    %5070 = vmatpush1.bf16.msra.mxu0 %v4752
    %5071 = vmatprep.subr.bf16.mxu0 %v4765
    %5072 = vmatpush1.bf16.msra.mxu0 %v4764
    %5073 = vmatprep.subr.bf16.mxu0 %v4777
    %5074 = vmatpush1.bf16.msra.mxu0 %v4776
    %5075 = vmatprep.subr.bf16.mxu0 %v4789
    %5076 = vmatpush1.bf16.msra.mxu0 %v4788
    %5077 = vmatprep.subr.bf16.mxu0 %v4801
    %5078 = vmatpush1.bf16.msra.mxu0 %v4800
    %5079 = vmatprep.subr.bf16.mxu0 %v4813
    %5080 = vmatpush1.bf16.msra.mxu0 %v4812
    %5081 = vmatprep.subr.bf16.mxu0 %v4825
    %5082 = vmatpush1.bf16.msra.mxu0 %v4824
    %5083 = vmatprep.subr.bf16.mxu0 %v4837
    %5084 = vmatpush1.bf16.msra.mxu0 %v4836
    %5085 = vmatprep.subr.bf16.mxu0 %v4849
    %5086 = vmatpush1.bf16.msra.mxu0 %v4848
    %5087 = vmatprep.mubr.bf16.mxu0 %v4657
    %5088 = vmatmul.mubr.bf16.gmra.mrb[0].mxu0 %v4656
    %v5089 = vpop.f32.mrb[0].mxu0
    %v5090 = vadd.f32 0.0, %v5089
    %v5091 = vpop.f32.mrb[0].mxu0
    %v5092 = vadd.f32 0.0, %v5091
    %v5093 = vpop.f32.mrb[0].mxu0
    %v5094 = vpop.f32.mrb[0].mxu0
    %5095 = vdwg.mxu0
    %v5096 = vadd.f32 %v5049, %v1400
    %v5097 = vadd.f32 %v5051, %v1404
    %v5098 = vadd.f32 %v5090, %v1408
    %v5099 = vadd.f32 %v5092, %v1412
    %v5100 = vld [vmem:[#allocation4] sm:$0xff]
    %v5101 = vld [vmem:[#allocation4 + $0x8] sm:$0xff]
    %v5102 = vld [vmem:[#allocation4 + $0x10] sm:$0xff]
    %v5103 = vld [vmem:[#allocation4 + $0x18] sm:$0xff]
    %v5104 = vld [vmem:[#allocation4 + $0x20] sm:$0xff]
    %v5105 = vld [vmem:[#allocation4 + $0x28] sm:$0xff]
    %v5106 = vld [vmem:[#allocation4 + $0x30] sm:$0xff]
    %v5107 = vld [vmem:[#allocation4 + $0x38] sm:$0xff]
    %v5108 = vld [vmem:[#allocation4 + $0x40] sm:$0xff]
    %v5109 = vld [vmem:[#allocation4 + $0x48] sm:$0xff]
    %v5110 = vld [vmem:[#allocation4 + $0x50] sm:$0xff]
    %v5111 = vld [vmem:[#allocation4 + $0x58] sm:$0xff]
    %v5112 = vld [vmem:[#allocation4 + $0x60] sm:$0xff]
    %v5113 = vld [vmem:[#allocation4 + $0x68] sm:$0xff]
    %v5114 = vld [vmem:[#allocation4 + $0x70] sm:$0xff]
    %v5115 = vld [vmem:[#allocation4 + $0x78] sm:$0xff]
    %v5116 = vld [vmem:[#allocation4 + $0x80] sm:$0xff]
    %v5117 = vld [vmem:[#allocation4 + $0x88] sm:$0xff]
    %v5118 = vld [vmem:[#allocation4 + $0x90] sm:$0xff]
    %v5119 = vld [vmem:[#allocation4 + $0x98] sm:$0xff]
    %v5120 = vld [vmem:[#allocation4 + $0xa0] sm:$0xff]
    %v5121 = vld [vmem:[#allocation4 + $0xa8] sm:$0xff]
    %v5122 = vld [vmem:[#allocation4 + $0xb0] sm:$0xff]
    %v5123 = vld [vmem:[#allocation4 + $0xb8] sm:$0xff]
    %v5124 = vld [vmem:[#allocation4 + $0xc0] sm:$0xff]
    %v5125 = vld [vmem:[#allocation4 + $0xc8] sm:$0xff]
    %v5126 = vld [vmem:[#allocation4 + $0xd0] sm:$0xff]
    %v5127 = vld [vmem:[#allocation4 + $0xd8] sm:$0xff]
    %v5128 = vld [vmem:[#allocation4 + $0xe0] sm:$0xff]
    %v5129 = vld [vmem:[#allocation4 + $0xe8] sm:$0xff]
    %v5130 = vld [vmem:[#allocation4 + $0xf0] sm:$0xff]
    %v5131 = vld [vmem:[#allocation4 + $0xf8] sm:$0xff]
    %5132 = vmatprep.subr.bf16.mxu0 %v5101
    %5133 = vmatpush1.bf16.msra.mxu0 %v5100
    %5134 = vmatprep.subr.bf16.mxu0 %v5105
    %5135 = vmatpush1.bf16.msra.mxu0 %v5104
    %5136 = vmatprep.subr.bf16.mxu0 %v5109
    %5137 = vmatpush1.bf16.msra.mxu0 %v5108
    %5138 = vmatprep.subr.bf16.mxu0 %v5113
    %5139 = vmatpush1.bf16.msra.mxu0 %v5112
    %5140 = vmatprep.subr.bf16.mxu0 %v5117
    %5141 = vmatpush1.bf16.msra.mxu0 %v5116
    %5142 = vmatprep.subr.bf16.mxu0 %v5121
    %5143 = vmatpush1.bf16.msra.mxu0 %v5120
    %5144 = vmatprep.subr.bf16.mxu0 %v5125
    %5145 = vmatpush1.bf16.msra.mxu0 %v5124
    %5146 = vmatprep.subr.bf16.mxu0 %v5129
    %5147 = vmatpush1.bf16.msra.mxu0 %v5128
    %5148 = vmatprep.subr.bf16.mxu0 0
    %5149 = vmatpush1.bf16.msra.mxu0 0
    %5150 = vmatprep.subr.bf16.mxu0 0
    %5151 = vmatpush1.bf16.msra.mxu0 0
    %5152 = vmatprep.subr.bf16.mxu0 0
    %5153 = vmatpush1.bf16.msra.mxu0 0
    %5154 = vmatprep.subr.bf16.mxu0 0
    %5155 = vmatpush1.bf16.msra.mxu0 0
    %5156 = vmatprep.subr.bf16.mxu0 0
    %5157 = vmatpush1.bf16.msra.mxu0 0
    %5158 = vmatprep.subr.bf16.mxu0 0
    %5159 = vmatpush1.bf16.msra.mxu0 0
    %5160 = vmatprep.subr.bf16.mxu0 0
    %5161 = vmatpush1.bf16.msra.mxu0 0
    %5162 = vmatprep.subr.bf16.mxu0 0
    %5163 = vmatpush1.bf16.msra.mxu0 0
    %5164 = vmatprep.mubr.bf16.mxu0 0
    %5165 = vmatmul.mubr.bf16.gmra.mrb[0].mxu0 %v4602
    %v5166 = vpop.f32.mrb[0].mxu0
    %v5167 = vadd.f32 0.0, %v5166
    %v5168 = vpop.f32.mrb[0].mxu0
    %v5169 = vadd.f32 0.0, %v5168
    %v5170 = vpop.f32.mrb[0].mxu0
    %v5171 = vpop.f32.mrb[0].mxu0
    %5172 = vdwg.mxu0
    %5173 = vmatprep.subr.bf16.mxu0 %v5103
    %5174 = vmatpush1.bf16.msra.mxu0 %v5102
    %5175 = vmatprep.subr.bf16.mxu0 %v5107
    %5176 = vmatpush1.bf16.msra.mxu0 %v5106
    %5177 = vmatprep.subr.bf16.mxu0 %v5111
    %5178 = vmatpush1.bf16.msra.mxu0 %v5110
    %5179 = vmatprep.subr.bf16.mxu0 %v5115
    %5180 = vmatpush1.bf16.msra.mxu0 %v5114
    %5181 = vmatprep.subr.bf16.mxu0 %v5119
    %5182 = vmatpush1.bf16.msra.mxu0 %v5118
    %5183 = vmatprep.subr.bf16.mxu0 %v5123
    %5184 = vmatpush1.bf16.msra.mxu0 %v5122
    %5185 = vmatprep.subr.bf16.mxu0 %v5127
    %5186 = vmatpush1.bf16.msra.mxu0 %v5126
    %5187 = vmatprep.subr.bf16.mxu0 %v5131
    %5188 = vmatpush1.bf16.msra.mxu0 %v5130
    %5189 = vmatprep.subr.bf16.mxu0 0
    %5190 = vmatpush1.bf16.msra.mxu0 0
    %5191 = vmatprep.subr.bf16.mxu0 0
    %5192 = vmatpush1.bf16.msra.mxu0 0
    %5193 = vmatprep.subr.bf16.mxu0 0
    %5194 = vmatpush1.bf16.msra.mxu0 0
    %5195 = vmatprep.subr.bf16.mxu0 0
    %5196 = vmatpush1.bf16.msra.mxu0 0
    %5197 = vmatprep.subr.bf16.mxu0 0
    %5198 = vmatpush1.bf16.msra.mxu0 0
    %5199 = vmatprep.subr.bf16.mxu0 0
    %5200 = vmatpush1.bf16.msra.mxu0 0
    %5201 = vmatprep.subr.bf16.mxu0 0
    %5202 = vmatpush1.bf16.msra.mxu0 0
    %5203 = vmatprep.subr.bf16.mxu0 0
    %5204 = vmatpush1.bf16.msra.mxu0 0
    %5205 = vmatprep.mubr.bf16.mxu0 0
    %5206 = vmatmul.mubr.bf16.gmra.mrb[0].mxu0 %v4602
    %v5207 = vpop.f32.mrb[0].mxu0
    %v5208 = vadd.f32 0.0, %v5207
    %v5209 = vpop.f32.mrb[0].mxu0
    %v5210 = vadd.f32 0.0, %v5209
    %v5211 = vpop.f32.mrb[0].mxu0
    %v5212 = vpop.f32.mrb[0].mxu0
    %5213 = vdwg.mxu0
    %v5214 = vadd.f32 %v5096, %v5167
    %v5215 = vadd.f32 %v5097, %v5169
    %v5216 = vadd.f32 %v5098, %v5208
    %v5217 = vadd.f32 %v5099, %v5210
    %v5218 = vmul.f32 %v5214, 0.5
    %v5219 = vtanh.pop %v5218
    %v5220 = vmul.f32 %v5219, 0.5
    %v5221 = vadd.f32 %v5220, 0.5
    %v5222 = vtanh.pop %v5216
    %v5223 = vmul.f32 %v5217, 0.5
    %v5224 = vtanh.pop %v5223
    %v5225 = vmul.f32 %v5224, 0.5
    %v5226 = vadd.f32 %v5225, 0.5
    %v5227 = vmul.f32 %v5215, 0.5
    %v5228 = vtanh.pop %v5227
    %v5229 = vmul.f32 %v5228, 0.5
    %v5230 = vadd.f32 %v5229, 0.5
    %v5231 = vmul.f32 %v5230, %v4599
    %v5232 = vmul.f32 %v5221, %v5222
    %v5233 = vadd.f32 %v5231, %v5232
    %v5234 = vtanh.pop %v5233
    %v5235 = vmul.f32 %v5226, %v5234
    %v5236 = vpack.c.bf16 %v5235, %v5235
    %5237 = vst [vmem:[%s6 + $0x30] sm:$0xff] %v5235
    %v5238 = vld [vmem:[#allocation2 + $0x1c0] sm:$0xff]
    %v5239 = vld [vmem:[#allocation2 + $0x1c8] sm:$0xff]
    %v5240 = vld [vmem:[#allocation2 + $0x1d0] sm:$0xff]
    %v5241 = vld [vmem:[#allocation2 + $0x1d8] sm:$0xff]
    %v5242 = vld [vmem:[#allocation2 + $0x1e0] sm:$0xff]
    %v5243 = vld [vmem:[#allocation2 + $0x1e8] sm:$0xff]
    %v5244 = vld [vmem:[#allocation2 + $0x1f0] sm:$0xff]
    %v5245 = vld [vmem:[#allocation2 + $0x1f8] sm:$0xff]
    %v5246 = vadd.f32 %v5238, %v4885
    %v5247 = vadd.f32 %v5239, %v4887
    %v5248 = vadd.f32 %v5240, %v4926
    %v5249 = vadd.f32 %v5241, %v4928
    %v5250 = vadd.f32 %v5242, %v4967
    %v5251 = vadd.f32 %v5243, %v4969
    %v5252 = vadd.f32 %v5244, %v5008
    %v5253 = vadd.f32 %v5245, %v5010
    %v5254 = vmul.f32 %v5246, 0.5
    %v5255 = vmul.f32 %v5247, 0.5
    %v5256 = vtanh.pop %v5254
    %v5257 = vtanh.pop %v5255
    %v5258 = vmul.f32 %v5256, 0.5
    %v5259 = vmul.f32 %v5257, 0.5
    %v5260 = vadd.f32 %v5258, 0.5
    %v5261 = vadd.f32 %v5259, 0.5
    %v5262 = vtanh.pop %v5250
    %v5263 = vtanh.pop %v5251
    %v5264 = vmul.f32 %v5252, 0.5
    %v5265 = vmul.f32 %v5253, 0.5
    %v5266 = vtanh.pop %v5264
    %v5267 = vtanh.pop %v5265
    %v5268 = vmul.f32 %v5266, 0.5
    %v5269 = vmul.f32 %v5267, 0.5
    %v5270 = vadd.f32 %v5268, 0.5
    %v5271 = vadd.f32 %v5269, 0.5
    %v5272 = vmul.f32 %v5248, 0.5
    %v5273 = vmul.f32 %v5249, 0.5
    %v5274 = vtanh.pop %v5272
    %v5275 = vtanh.pop %v5273
    %v5276 = vmul.f32 %v5274, 0.5
    %v5277 = vmul.f32 %v5275, 0.5
    %v5278 = vadd.f32 %v5276, 0.5
    %v5279 = vadd.f32 %v5277, 0.5
    %v5280 = vmul.f32 %v5278, %v4650
    %v5281 = vmul.f32 %v5279, %v4651
    %v5282 = vmul.f32 %v5260, %v5262
    %v5283 = vmul.f32 %v5261, %v5263
    %v5284 = vadd.f32 %v5280, %v5282
    %v5285 = vadd.f32 %v5281, %v5283
    %v5286 = vtanh.pop %v5284
    %v5287 = vtanh.pop %v5285
    %v5288 = vmul.f32 %v5270, %v5286
    %v5289 = vmul.f32 %v5271, %v5287
    %v5290 = vpack.c.bf16 %v5288, %v5288
    %v5291 = vpack.c.bf16 %v5289, %v5289
    %v5292 = vld [vmem:[#allocation3 + $0x40] sm:$0xff]
    %v5293 = vld [vmem:[#allocation3 + $0x48] sm:$0xff]
    %v5294 = vld [vmem:[#allocation3 + $0x50] sm:$0xff]
    %v5295 = vld [vmem:[#allocation3 + $0x58] sm:$0xff]
    %v5296 = vld [vmem:[#allocation3 + $0xa0] sm:$0xff]
    %v5297 = vld [vmem:[#allocation3 + $0xa8] sm:$0xff]
    %v5298 = vld [vmem:[#allocation3 + $0xb0] sm:$0xff]
    %v5299 = vld [vmem:[#allocation3 + $0xb8] sm:$0xff]
    %v5300 = vld [vmem:[#allocation3 + $0x100] sm:$0xff]
    %v5301 = vld [vmem:[#allocation3 + $0x108] sm:$0xff]
    %v5302 = vld [vmem:[#allocation3 + $0x110] sm:$0xff]
    %v5303 = vld [vmem:[#allocation3 + $0x118] sm:$0xff]
    %v5304 = vld [vmem:[#allocation3 + $0x160] sm:$0xff]
    %v5305 = vld [vmem:[#allocation3 + $0x168] sm:$0xff]
    %v5306 = vld [vmem:[#allocation3 + $0x170] sm:$0xff]
    %v5307 = vld [vmem:[#allocation3 + $0x178] sm:$0xff]
    %v5308 = vld [vmem:[#allocation3 + $0x1c0] sm:$0xff]
    %v5309 = vld [vmem:[#allocation3 + $0x1c8] sm:$0xff]
    %v5310 = vld [vmem:[#allocation3 + $0x1d0] sm:$0xff]
    %v5311 = vld [vmem:[#allocation3 + $0x1d8] sm:$0xff]
    %v5312 = vld [vmem:[#allocation3 + $0x220] sm:$0xff]
    %v5313 = vld [vmem:[#allocation3 + $0x228] sm:$0xff]
    %v5314 = vld [vmem:[#allocation3 + $0x230] sm:$0xff]
    %v5315 = vld [vmem:[#allocation3 + $0x238] sm:$0xff]
    %v5316 = vld [vmem:[#allocation3 + $0x280] sm:$0xff]
    %v5317 = vld [vmem:[#allocation3 + $0x288] sm:$0xff]
    %v5318 = vld [vmem:[#allocation3 + $0x290] sm:$0xff]
    %v5319 = vld [vmem:[#allocation3 + $0x298] sm:$0xff]
    %v5320 = vld [vmem:[#allocation3 + $0x2e0] sm:$0xff]
    %v5321 = vld [vmem:[#allocation3 + $0x2e8] sm:$0xff]
    %v5322 = vld [vmem:[#allocation3 + $0x2f0] sm:$0xff]
    %v5323 = vld [vmem:[#allocation3 + $0x2f8] sm:$0xff]
    %v5324 = vld [vmem:[#allocation3 + $0x340] sm:$0xff]
    %v5325 = vld [vmem:[#allocation3 + $0x348] sm:$0xff]
    %v5326 = vld [vmem:[#allocation3 + $0x350] sm:$0xff]
    %v5327 = vld [vmem:[#allocation3 + $0x358] sm:$0xff]
    %v5328 = vld [vmem:[#allocation3 + $0x3a0] sm:$0xff]
    %v5329 = vld [vmem:[#allocation3 + $0x3a8] sm:$0xff]
    %v5330 = vld [vmem:[#allocation3 + $0x3b0] sm:$0xff]
    %v5331 = vld [vmem:[#allocation3 + $0x3b8] sm:$0xff]
    %v5332 = vld [vmem:[#allocation3 + $0x400] sm:$0xff]
    %v5333 = vld [vmem:[#allocation3 + $0x408] sm:$0xff]
    %v5334 = vld [vmem:[#allocation3 + $0x410] sm:$0xff]
    %v5335 = vld [vmem:[#allocation3 + $0x418] sm:$0xff]
    %v5336 = vld [vmem:[#allocation3 + $0x460] sm:$0xff]
    %v5337 = vld [vmem:[#allocation3 + $0x468] sm:$0xff]
    %v5338 = vld [vmem:[#allocation3 + $0x470] sm:$0xff]
    %v5339 = vld [vmem:[#allocation3 + $0x478] sm:$0xff]
    %v5340 = vld [vmem:[#allocation3 + $0x4c0] sm:$0xff]
    %v5341 = vld [vmem:[#allocation3 + $0x4c8] sm:$0xff]
    %v5342 = vld [vmem:[#allocation3 + $0x4d0] sm:$0xff]
    %v5343 = vld [vmem:[#allocation3 + $0x4d8] sm:$0xff]
    %v5344 = vld [vmem:[#allocation3 + $0x520] sm:$0xff]
    %v5345 = vld [vmem:[#allocation3 + $0x528] sm:$0xff]
    %v5346 = vld [vmem:[#allocation3 + $0x530] sm:$0xff]
    %v5347 = vld [vmem:[#allocation3 + $0x538] sm:$0xff]
    %v5348 = vld [vmem:[#allocation3 + $0x580] sm:$0xff]
    %v5349 = vld [vmem:[#allocation3 + $0x588] sm:$0xff]
    %v5350 = vld [vmem:[#allocation3 + $0x590] sm:$0xff]
    %v5351 = vld [vmem:[#allocation3 + $0x598] sm:$0xff]
    %v5352 = vld [vmem:[#allocation3 + $0x5e0] sm:$0xff]
    %v5353 = vld [vmem:[#allocation3 + $0x5e8] sm:$0xff]
    %v5354 = vld [vmem:[#allocation3 + $0x5f0] sm:$0xff]
    %v5355 = vld [vmem:[#allocation3 + $0x5f8] sm:$0xff]
    %5356 = vmatprep.subr.bf16.mxu0 %v5293
    %5357 = vmatpush1.bf16.msra.mxu0 %v5292
    %5358 = vmatprep.subr.bf16.mxu0 %v5297
    %5359 = vmatpush1.bf16.msra.mxu0 %v5296
    %5360 = vmatprep.subr.bf16.mxu0 %v5301
    %5361 = vmatpush1.bf16.msra.mxu0 %v5300
    %5362 = vmatprep.subr.bf16.mxu0 %v5305
    %5363 = vmatpush1.bf16.msra.mxu0 %v5304
    %5364 = vmatprep.subr.bf16.mxu0 %v5309
    %5365 = vmatpush1.bf16.msra.mxu0 %v5308
    %5366 = vmatprep.subr.bf16.mxu0 %v5313
    %5367 = vmatpush1.bf16.msra.mxu0 %v5312
    %5368 = vmatprep.subr.bf16.mxu0 %v5317
    %5369 = vmatpush1.bf16.msra.mxu0 %v5316
    %5370 = vmatprep.subr.bf16.mxu0 %v5321
    %5371 = vmatpush1.bf16.msra.mxu0 %v5320
    %5372 = vmatprep.subr.bf16.mxu0 %v5325
    %5373 = vmatpush1.bf16.msra.mxu0 %v5324
    %5374 = vmatprep.subr.bf16.mxu0 %v5329
    %5375 = vmatpush1.bf16.msra.mxu0 %v5328
    %5376 = vmatprep.subr.bf16.mxu0 %v5333
    %5377 = vmatpush1.bf16.msra.mxu0 %v5332
    %5378 = vmatprep.subr.bf16.mxu0 %v5337
    %5379 = vmatpush1.bf16.msra.mxu0 %v5336
    %5380 = vmatprep.subr.bf16.mxu0 %v5341
    %5381 = vmatpush1.bf16.msra.mxu0 %v5340
    %5382 = vmatprep.subr.bf16.mxu0 %v5345
    %5383 = vmatpush1.bf16.msra.mxu0 %v5344
    %5384 = vmatprep.subr.bf16.mxu0 %v5349
    %5385 = vmatpush1.bf16.msra.mxu0 %v5348
    %5386 = vmatprep.subr.bf16.mxu0 %v5353
    %5387 = vmatpush1.bf16.msra.mxu0 %v5352
    %5388 = vmatprep.mubr.bf16.mxu0 %v5291
    %5389 = vmatmul.mubr.bf16.gmra.mrb[0].mxu0 %v5290
    %v5390 = vpop.f32.mrb[0].mxu0
    %v5391 = vadd.f32 0.0, %v5390
    %v5392 = vpop.f32.mrb[0].mxu0
    %v5393 = vadd.f32 0.0, %v5392
    %v5394 = vpop.f32.mrb[0].mxu0
    %v5395 = vpop.f32.mrb[0].mxu0
    %5396 = vdwg.mxu0
    %5397 = vmatprep.subr.bf16.mxu0 %v5295
    %5398 = vmatpush1.bf16.msra.mxu0 %v5294
    %5399 = vmatprep.subr.bf16.mxu0 %v5299
    %5400 = vmatpush1.bf16.msra.mxu0 %v5298
    %5401 = vmatprep.subr.bf16.mxu0 %v5303
    %5402 = vmatpush1.bf16.msra.mxu0 %v5302
    %5403 = vmatprep.subr.bf16.mxu0 %v5307
    %5404 = vmatpush1.bf16.msra.mxu0 %v5306
    %5405 = vmatprep.subr.bf16.mxu0 %v5311
    %5406 = vmatpush1.bf16.msra.mxu0 %v5310
    %5407 = vmatprep.subr.bf16.mxu0 %v5315
    %5408 = vmatpush1.bf16.msra.mxu0 %v5314
    %5409 = vmatprep.subr.bf16.mxu0 %v5319
    %5410 = vmatpush1.bf16.msra.mxu0 %v5318
    %5411 = vmatprep.subr.bf16.mxu0 %v5323
    %5412 = vmatpush1.bf16.msra.mxu0 %v5322
    %5413 = vmatprep.subr.bf16.mxu0 %v5327
    %5414 = vmatpush1.bf16.msra.mxu0 %v5326
    %5415 = vmatprep.subr.bf16.mxu0 %v5331
    %5416 = vmatpush1.bf16.msra.mxu0 %v5330
    %5417 = vmatprep.subr.bf16.mxu0 %v5335
    %5418 = vmatpush1.bf16.msra.mxu0 %v5334
    %5419 = vmatprep.subr.bf16.mxu0 %v5339
    %5420 = vmatpush1.bf16.msra.mxu0 %v5338
    %5421 = vmatprep.subr.bf16.mxu0 %v5343
    %5422 = vmatpush1.bf16.msra.mxu0 %v5342
    %5423 = vmatprep.subr.bf16.mxu0 %v5347
    %5424 = vmatpush1.bf16.msra.mxu0 %v5346
    %5425 = vmatprep.subr.bf16.mxu0 %v5351
    %5426 = vmatpush1.bf16.msra.mxu0 %v5350
    %5427 = vmatprep.subr.bf16.mxu0 %v5355
    %5428 = vmatpush1.bf16.msra.mxu0 %v5354
    %5429 = vmatprep.mubr.bf16.mxu0 %v5291
    %5430 = vmatmul.mubr.bf16.gmra.mrb[0].mxu0 %v5290
    %v5431 = vpop.f32.mrb[0].mxu0
    %v5432 = vadd.f32 0.0, %v5431
    %v5433 = vpop.f32.mrb[0].mxu0
    %v5434 = vadd.f32 0.0, %v5433
    %v5435 = vpop.f32.mrb[0].mxu0
    %v5436 = vpop.f32.mrb[0].mxu0
    %5437 = vdwg.mxu0
    %v5438 = vadd.f32 %v5391, %v1400
    %v5439 = vadd.f32 %v5393, %v1404
    %v5440 = vadd.f32 %v5432, %v1408
    %v5441 = vadd.f32 %v5434, %v1412
    %v5442 = vld [vmem:[#allocation4] sm:$0xff]
    %v5443 = vld [vmem:[#allocation4 + $0x8] sm:$0xff]
    %v5444 = vld [vmem:[#allocation4 + $0x10] sm:$0xff]
    %v5445 = vld [vmem:[#allocation4 + $0x18] sm:$0xff]
    %v5446 = vld [vmem:[#allocation4 + $0x20] sm:$0xff]
    %v5447 = vld [vmem:[#allocation4 + $0x28] sm:$0xff]
    %v5448 = vld [vmem:[#allocation4 + $0x30] sm:$0xff]
    %v5449 = vld [vmem:[#allocation4 + $0x38] sm:$0xff]
    %v5450 = vld [vmem:[#allocation4 + $0x40] sm:$0xff]
    %v5451 = vld [vmem:[#allocation4 + $0x48] sm:$0xff]
    %v5452 = vld [vmem:[#allocation4 + $0x50] sm:$0xff]
    %v5453 = vld [vmem:[#allocation4 + $0x58] sm:$0xff]
    %v5454 = vld [vmem:[#allocation4 + $0x60] sm:$0xff]
    %v5455 = vld [vmem:[#allocation4 + $0x68] sm:$0xff]
    %v5456 = vld [vmem:[#allocation4 + $0x70] sm:$0xff]
    %v5457 = vld [vmem:[#allocation4 + $0x78] sm:$0xff]
    %v5458 = vld [vmem:[#allocation4 + $0x80] sm:$0xff]
    %v5459 = vld [vmem:[#allocation4 + $0x88] sm:$0xff]
    %v5460 = vld [vmem:[#allocation4 + $0x90] sm:$0xff]
    %v5461 = vld [vmem:[#allocation4 + $0x98] sm:$0xff]
    %v5462 = vld [vmem:[#allocation4 + $0xa0] sm:$0xff]
    %v5463 = vld [vmem:[#allocation4 + $0xa8] sm:$0xff]
    %v5464 = vld [vmem:[#allocation4 + $0xb0] sm:$0xff]
    %v5465 = vld [vmem:[#allocation4 + $0xb8] sm:$0xff]
    %v5466 = vld [vmem:[#allocation4 + $0xc0] sm:$0xff]
    %v5467 = vld [vmem:[#allocation4 + $0xc8] sm:$0xff]
    %v5468 = vld [vmem:[#allocation4 + $0xd0] sm:$0xff]
    %v5469 = vld [vmem:[#allocation4 + $0xd8] sm:$0xff]
    %v5470 = vld [vmem:[#allocation4 + $0xe0] sm:$0xff]
    %v5471 = vld [vmem:[#allocation4 + $0xe8] sm:$0xff]
    %v5472 = vld [vmem:[#allocation4 + $0xf0] sm:$0xff]
    %v5473 = vld [vmem:[#allocation4 + $0xf8] sm:$0xff]
    %5474 = vmatprep.subr.bf16.mxu0 %v5443
    %5475 = vmatpush1.bf16.msra.mxu0 %v5442
    %5476 = vmatprep.subr.bf16.mxu0 %v5447
    %5477 = vmatpush1.bf16.msra.mxu0 %v5446
    %5478 = vmatprep.subr.bf16.mxu0 %v5451
    %5479 = vmatpush1.bf16.msra.mxu0 %v5450
    %5480 = vmatprep.subr.bf16.mxu0 %v5455
    %5481 = vmatpush1.bf16.msra.mxu0 %v5454
    %5482 = vmatprep.subr.bf16.mxu0 %v5459
    %5483 = vmatpush1.bf16.msra.mxu0 %v5458
    %5484 = vmatprep.subr.bf16.mxu0 %v5463
    %5485 = vmatpush1.bf16.msra.mxu0 %v5462
    %5486 = vmatprep.subr.bf16.mxu0 %v5467
    %5487 = vmatpush1.bf16.msra.mxu0 %v5466
    %5488 = vmatprep.subr.bf16.mxu0 %v5471
    %5489 = vmatpush1.bf16.msra.mxu0 %v5470
    %5490 = vmatprep.subr.bf16.mxu0 0
    %5491 = vmatpush1.bf16.msra.mxu0 0
    %5492 = vmatprep.subr.bf16.mxu0 0
    %5493 = vmatpush1.bf16.msra.mxu0 0
    %5494 = vmatprep.subr.bf16.mxu0 0
    %5495 = vmatpush1.bf16.msra.mxu0 0
    %5496 = vmatprep.subr.bf16.mxu0 0
    %5497 = vmatpush1.bf16.msra.mxu0 0
    %5498 = vmatprep.subr.bf16.mxu0 0
    %5499 = vmatpush1.bf16.msra.mxu0 0
    %5500 = vmatprep.subr.bf16.mxu0 0
    %5501 = vmatpush1.bf16.msra.mxu0 0
    %5502 = vmatprep.subr.bf16.mxu0 0
    %5503 = vmatpush1.bf16.msra.mxu0 0
    %5504 = vmatprep.subr.bf16.mxu0 0
    %5505 = vmatpush1.bf16.msra.mxu0 0
    %5506 = vmatprep.mubr.bf16.mxu0 0
    %5507 = vmatmul.mubr.bf16.gmra.mrb[0].mxu0 %v5236
    %v5508 = vpop.f32.mrb[0].mxu0
    %v5509 = vadd.f32 0.0, %v5508
    %v5510 = vpop.f32.mrb[0].mxu0
    %v5511 = vadd.f32 0.0, %v5510
    %v5512 = vpop.f32.mrb[0].mxu0
    %v5513 = vpop.f32.mrb[0].mxu0
    %5514 = vdwg.mxu0
    %5515 = vmatprep.subr.bf16.mxu0 %v5445
    %5516 = vmatpush1.bf16.msra.mxu0 %v5444
    %5517 = vmatprep.subr.bf16.mxu0 %v5449
    %5518 = vmatpush1.bf16.msra.mxu0 %v5448
    %5519 = vmatprep.subr.bf16.mxu0 %v5453
    %5520 = vmatpush1.bf16.msra.mxu0 %v5452
    %5521 = vmatprep.subr.bf16.mxu0 %v5457
    %5522 = vmatpush1.bf16.msra.mxu0 %v5456
    %5523 = vmatprep.subr.bf16.mxu0 %v5461
    %5524 = vmatpush1.bf16.msra.mxu0 %v5460
    %5525 = vmatprep.subr.bf16.mxu0 %v5465
    %5526 = vmatpush1.bf16.msra.mxu0 %v5464
    %5527 = vmatprep.subr.bf16.mxu0 %v5469
    %5528 = vmatpush1.bf16.msra.mxu0 %v5468
    %5529 = vmatprep.subr.bf16.mxu0 %v5473
    %5530 = vmatpush1.bf16.msra.mxu0 %v5472
    %5531 = vmatprep.subr.bf16.mxu0 0
    %5532 = vmatpush1.bf16.msra.mxu0 0
    %5533 = vmatprep.subr.bf16.mxu0 0
    %5534 = vmatpush1.bf16.msra.mxu0 0
    %5535 = vmatprep.subr.bf16.mxu0 0
    %5536 = vmatpush1.bf16.msra.mxu0 0
    %5537 = vmatprep.subr.bf16.mxu0 0
    %5538 = vmatpush1.bf16.msra.mxu0 0
    %5539 = vmatprep.subr.bf16.mxu0 0
    %5540 = vmatpush1.bf16.msra.mxu0 0
    %5541 = vmatprep.subr.bf16.mxu0 0
    %5542 = vmatpush1.bf16.msra.mxu0 0
    %5543 = vmatprep.subr.bf16.mxu0 0
    %5544 = vmatpush1.bf16.msra.mxu0 0
    %5545 = vmatprep.subr.bf16.mxu0 0
    %5546 = vmatpush1.bf16.msra.mxu0 0
    %5547 = vmatprep.mubr.bf16.mxu0 0
    %5548 = vmatmul.mubr.bf16.gmra.mrb[0].mxu0 %v5236
    %v5549 = vpop.f32.mrb[0].mxu0
    %v5550 = vadd.f32 0.0, %v5549
    %v5551 = vpop.f32.mrb[0].mxu0
    %v5552 = vadd.f32 0.0, %v5551
    %v5553 = vpop.f32.mrb[0].mxu0
    %v5554 = vpop.f32.mrb[0].mxu0
    %5555 = vdwg.mxu0
    %v5556 = vadd.f32 %v5438, %v5509
    %v5557 = vadd.f32 %v5439, %v5511
    %v5558 = vadd.f32 %v5440, %v5550
    %v5559 = vadd.f32 %v5441, %v5552
    %v5560 = vmul.f32 %v5556, 0.5
    %v5561 = vtanh.pop %v5560
    %v5562 = vmul.f32 %v5561, 0.5
    %v5563 = vadd.f32 %v5562, 0.5
    %v5564 = vtanh.pop %v5558
    %v5565 = vmul.f32 %v5559, 0.5
    %v5566 = vtanh.pop %v5565
    %v5567 = vmul.f32 %v5566, 0.5
    %v5568 = vadd.f32 %v5567, 0.5
    %v5569 = vmul.f32 %v5557, 0.5
    %v5570 = vtanh.pop %v5569
    %v5571 = vmul.f32 %v5570, 0.5
    %v5572 = vadd.f32 %v5571, 0.5
    %v5573 = vmul.f32 %v5572, %v5233
    %v5574 = vmul.f32 %v5563, %v5564
    %v5575 = vadd.f32 %v5573, %v5574
    %v5576 = vtanh.pop %v5575
    %v5577 = vmul.f32 %v5568, %v5576
    %5578 = vst [vmem:[%s6 + $0x38] sm:$0xff] %v5577
    // Predicated region
    $region22: #{voice_conversion_forward.1} parent=1 // pred_check
      _
    $region23: #{voice_conversion_forward.1} parent=1 // pred_check_branch
      %5580 = sbr.rel (0) target = $region25
    $region24: #{voice_conversion_forward.1} parent=1 // pred_region
      _
    $region25: #{voice_conversion_forward.1} parent=1 // pred_fallthru
      _
    // Predicated region
    $region26: #{voice_conversion_forward.1} parent=1 // pred_check
      _
    $region27: #{voice_conversion_forward.1} parent=1 // pred_check_branch
      %5582 = sbr.rel (0) target = $region29
    $region28: #{voice_conversion_forward.1} parent=1 // pred_region
      _
    $region29: #{voice_conversion_forward.1} parent=1 // pred_fallthru
      _
    %5583 = vsyncpa [#allocation7], 1
  %5584 = vsyncmov [#allocation5]
  %s5585 = vpop.sfrf %5584
  %p5586 = scmp.eq.s32.totalorder %s5585, 0
  %p5587 = pneg %p5586
  %5589 = shalt.err (%p5587)
  %s5590 = scalar_lea.sflag [#allocation5], 1
  %5591 = vsyncmov %s5590
  %s5592 = vpop.sfrf %5591
  %p5593 = scmp.eq.s32.totalorder %s5592, 0
  %p5594 = pneg %p5593
  %5596 = shalt.err (%p5594)

</llo_original>
